<compile_context>
chip_gen: v6e
topology: v6e:2x2x1
jax: 0.10.0
libtpu: 0.0.40
codegen_flags: <defaults>
</compile_context>

<pallas_src>
import functools

import jax
import jax.numpy as jnp
from jax.experimental import pallas as pl
from jax.experimental.pallas import tpu as pltpu


# ----------------------------------------------------------------------------
# Fused CG kernel: one grid step, whole solve in VMEM / vregs.
# ----------------------------------------------------------------------------
def _cg_kernel(mu_ref, rhs_ref, sr2_ref, si2s_ref, si2c_ref, m2_ref, sgn_ref,
               fh_fwd_ref, fh_inv_ref, dr_ref, di_ref, cc_ref,
               out_ref, *, hdim, cg_iter):
    H = hdim
    mu = mu_ref[0]

    def mm(a, b):
        return jnp.dot(a, b, preferred_element_type=jnp.float32)

    def swap(x):
        # [top; bottom] -> [bottom; top] : sublane rotation on the XLU slot,
        # replaces all half-slice + concatenate relayout copies.
        return pltpu.roll(x, shift=H, axis=0)

    def ehe(ps):
        # ps: (2H, BCW) row-stacked [real; imag], coil-replicated.
        # ---- coil images: S * p  (two full-tile FMAs, no slices) ----------
        cs = ps * sr2_ref[...] + swap(ps) * si2s_ref[...]
        # ---- FFT along H: single real matmul via 2x2 block embedding ------
        ks = mm(fh_fwd_ref[...], cs)
        # ---- FFT along W: recombination folded into matmul accumulation ---
        ks = mm(ks, dr_ref[...]) + mm(sgn_ref[...] * swap(ks), di_ref[...])
        # ---- undersampling mask -------------------------------------------
        ks = ks * m2_ref[...]
        # ---- IFFT along H ---------------------------------------------------
        js = mm(fh_inv_ref[...], ks)
        # ---- IFFT along W (conjugate DFT -> subtract the Di term) ----------
        js = mm(js, dr_ref[...]) - mm(sgn_ref[...] * swap(js), di_ref[...])
        # ---- SENSE combine: conj(S) * I -------------------------------------
        zs = js * sr2_ref[...] + swap(js) * si2c_ref[...]
        # ---- sum over coils + broadcast back: one 0/1 matmul (CC = bmt@bm) -
        return mm(zs, cc_ref[...]) + mu * ps

    rhs = rhs_ref[...]                       # (2H, BCW)
    x0 = jnp.zeros_like(rhs)
    rs0 = jnp.sum(rhs * rhs)                 # C * true |r|^2 (factor cancels)

    def body(_, state):
        x, r, p, rsold = state
        ap = ehe(p)
        pap = jnp.sum(p * ap)                # Re(p^H EhE p), replicated x C
        alpha = rsold / pap                  # exact divide (no approx recip)
        x = x + alpha * p
        r = r - alpha * ap
        rsnew = jnp.sum(r * r)
        beta = rsnew / rsold
        p = r + beta * p
        return x, r, p, rsnew

    x, _, _, _ = jax.lax.fori_loop(0, cg_iter, body, (x0, rhs, rhs, rs0),
                                   unroll=True)
    out_ref[...] = x


# ----------------------------------------------------------------------------
# Wrapper: layout plumbing + constants, one pallas_call for the whole solve.
# ----------------------------------------------------------------------------
def conjugate_gradient(rhs, sens_maps, mask, mu=0.05, cg_iter=10):
    f32 = jnp.float32
    rhs_r = rhs[..., 0].astype(f32)          # (B, H, W)
    rhs_i = rhs[..., 1].astype(f32)
    sr = sens_maps[..., 0].astype(f32)       # (B, C, H, W)
    si = sens_maps[..., 1].astype(f32)
    m = mask[:, 0, :, :, 0].astype(f32)      # (B, H, W)
    B, C, H, W = sr.shape
    BCW = B * C * W

    # slab layout: lane axis = (b, c, w), b outermost -> BCW lanes
    def to_coil_slab(a):                     # (B, C, H, W) -> (H, BCW)
        return a.transpose(2, 0, 1, 3).reshape(H, BCW)

    sr_slab = to_coil_slab(sr)
    si_slab = to_coil_slab(si)
    m_slab = to_coil_slab(jnp.broadcast_to(m[:, None], (B, C, H, W)))

    # CG state: coil-replicated, row-stacked [real; imag] -> (2H, BCW)
    rhs_slab = jnp.concatenate(
        [to_coil_slab(jnp.broadcast_to(rhs_r[:, None], (B, C, H, W))),
         to_coil_slab(jnp.broadcast_to(rhs_i[:, None], (B, C, H, W)))], axis=0)

    # sublane-duplicated / sign-folded elementwise constants (2H, BCW)
    sr2 = jnp.concatenate([sr_slab, sr_slab], axis=0)
    si2s = jnp.concatenate([-si_slab, si_slab], axis=0)   # for S * p
    si2c = jnp.concatenate([si_slab, -si_slab], axis=0)   # for conj(S) * I
    m2 = jnp.concatenate([m_slab, m_slab], axis=0)
    sgn = jnp.concatenate([-jnp.ones((H, BCW), f32),
                           jnp.ones((H, BCW), f32)], axis=0)

    # ortho-normalized, non-centered DFT matrices
    def dft_mat(n):
        k = jnp.arange(n, dtype=f32)
        ang = -2.0 * jnp.pi * jnp.outer(k, k) / n
        s = 1.0 / jnp.sqrt(jnp.asarray(n, f32))
        return jnp.cos(ang) * s, jnp.sin(ang) * s

    fhr, fhi = dft_mat(H)
    fwr, fwi = dft_mat(W)
    fh_fwd = jnp.block([[fhr, -fhi], [fhi, fhr]])          # (2H, 2H) fwd DFT_H
    fh_inv = jnp.block([[fhr, fhi], [-fhi, fhr]])          # conj(DFT_H)
    eye_bc = jnp.eye(B * C, dtype=f32)
    dr = jnp.kron(eye_bc, fwr)                             # (BCW, BCW) blk-diag
    di = jnp.kron(eye_bc, fwi)
    # combined coil-sum + re-broadcast matrix  (replaces bm and bmt matmuls)
    cc = jnp.kron(jnp.eye(B, dtype=f32),
                  jnp.kron(jnp.ones((C, C), f32), jnp.eye(W, dtype=f32)))
    mu_arr = jnp.asarray([mu], dtype=f32)

    kernel = functools.partial(_cg_kernel, hdim=H, cg_iter=cg_iter)

    def full2d(rows, cols):
        return pl.BlockSpec((rows, cols), lambda i: (0, 0))

    out = pl.pallas_call(
        kernel,
        out_shape=jax.ShapeDtypeStruct((2 * H, BCW), f32),
        grid=(1,),
        in_specs=[
            pl.BlockSpec(memory_space=pltpu.MemorySpace.SMEM),  # mu
            full2d(2 * H, BCW),     # rhs (coil-replicated, row-stacked)
            full2d(2 * H, BCW),     # [sr; sr]
            full2d(2 * H, BCW),     # [-si; si]
            full2d(2 * H, BCW),     # [si; -si]
            full2d(2 * H, BCW),     # [m; m]
            full2d(2 * H, BCW),     # [-1; +1] sign mask
            full2d(2 * H, 2 * H),   # DFT_H forward (block embedded)
            full2d(2 * H, 2 * H),   # DFT_H inverse
            full2d(BCW, BCW),       # block-diag DFT_W real
            full2d(BCW, BCW),       # block-diag DFT_W imag
            full2d(BCW, BCW),       # combined coil-sum/broadcast matrix
        ],
        out_specs=full2d(2 * H, BCW),
        compiler_params=pltpu.CompilerParams(
            dimension_semantics=("arbitrary",)),
    )(mu_arr, rhs_slab, sr2, si2s, si2c, m2, sgn,
      fh_fwd, fh_inv, dr, di, cc)

    # take coil-0 replica, back to [B, H, W, 2]
    xr = out[:H].reshape(H, B, C, W)[:, :, 0].transpose(1, 0, 2)
    xi = out[H:].reshape(H, B, C, W)[:, :, 0].transpose(1, 0, 2)
    return jnp.stack([xr, xi], axis=-1)


# ----------------------------------------------------------------------------
# Pure-JAX reference (complex64, jnp.fft) used for a correctness check.
# ----------------------------------------------------------------------------
def _cg_reference(rhs_c, sens_c, mask_c, mu, iters):
    def ehe(p):
        ks = jnp.fft.fft2(p[:, None] * sens_c, axes=(-2, -1), norm="ortho")
        ks = ks * mask_c
        img = jnp.fft.ifft2(ks, axes=(-2, -1), norm="ortho")
        return jnp.sum(jnp.conj(sens_c) * img, axis=1) + mu * p

    x = jnp.zeros_like(rhs_c)
    r = rhs_c
    p = rhs_c
    rsold = jnp.sum(jnp.conj(r) * r)
    for _ in range(iters):
        Ap = ehe(p)
        alpha = rsold / jnp.sum(jnp.conj(p) * Ap)
        x = x + alpha * p
        r = r - alpha * Ap
        rsnew = jnp.sum(jnp.conj(r) * r)
        beta = rsnew / rsold
        p = r + beta * p
        rsold = rsnew
    return x


if __name__ == "__main__":
    key = jax.random.PRNGKey(0)
    B, C, H, W = 2, 4, 16, 16
    CG_ITER = 10
    MU = 0.05  # nn.Parameter(torch.tensor([0.05])) — deterministic init

    k1, k2, k3 = jax.random.split(key, 3)
    rhs = jax.random.normal(k1, (B, H, W, 2), jnp.float32)
    sens = jax.random.normal(k2, (B, C, H, W, 2), jnp.float32)
    # normalize sensitivity maps (sum_c |S_c|^2 = 1), typical for SENSE
    norm = jnp.sqrt(jnp.sum(sens[..., 0] ** 2 + sens[..., 1] ** 2,
                            axis=1, keepdims=True))[..., None]
    sens = sens / norm
    mask = (jax.random.uniform(k3, (1, 1, H, W, 1)) > 0.5).astype(jnp.float32)
    mask = jnp.broadcast_to(mask, (B, 1, H, W, 1))

    run = jax.jit(lambda a, b, c: conjugate_gradient(a, b, c, mu=MU,
                                                     cg_iter=CG_ITER))
    out = jax.block_until_ready(run(rhs, sens, mask))

    # correctness check against complex64 / jnp.fft reference
    rhs_c = rhs[..., 0] + 1j * rhs[..., 1]
    sens_c = sens[..., 0] + 1j * sens[..., 1]
    mask_c = mask[:, 0, :, :, 0][:, None]
    x_ref = _cg_reference(rhs_c, sens_c, mask_c, MU, CG_ITER)
    ref = jnp.stack([jnp.real(x_ref), jnp.imag(x_ref)], axis=-1)
    assert out.shape == (B, H, W, 2) and out.dtype == jnp.float32
    err = float(jnp.max(jnp.abs(out - ref)))
    assert jnp.allclose(out, ref, atol=3e-3, rtol=2e-2), err

    print("KERNEL_OK")
</pallas_src>

<mosaic_0001>
module attributes {stable_mosaic.version = 11 : i64} {
  func.func @_cg_kernel(%arg0: i32, %arg1: memref<1xf32, #tpu.memory_space<smem>>, %arg2: memref<32x128xf32, #tpu.memory_space<vmem>>, %arg3: memref<32x128xf32, #tpu.memory_space<vmem>>, %arg4: memref<32x128xf32, #tpu.memory_space<vmem>>, %arg5: memref<32x128xf32, #tpu.memory_space<vmem>>, %arg6: memref<32x128xf32, #tpu.memory_space<vmem>>, %arg7: memref<32x128xf32, #tpu.memory_space<vmem>>, %arg8: memref<32x32xf32, #tpu.memory_space<vmem>>, %arg9: memref<32x32xf32, #tpu.memory_space<vmem>>, %arg10: memref<128x128xf32, #tpu.memory_space<vmem>>, %arg11: memref<128x128xf32, #tpu.memory_space<vmem>>, %arg12: memref<128x128xf32, #tpu.memory_space<vmem>>, %arg13: memref<32x128xf32, #tpu.memory_space<vmem>>) attributes {dimension_semantics = [#tpu.dimension_semantics<arbitrary>], iteration_bounds = array<i64: 1>, scalar_prefetch = 0 : i64, scratch_operands = 0 : i64, tpu.core_type = #tpu.core_type<tc>, window_params = [{transform_indices = @transform_0, window_bounds = array<i64: 1>}, {pipeline_mode = #tpu.pipeline_mode<synchronous>, transform_indices = @transform_1, window_bounds = array<i64: 32, 128>}, {pipeline_mode = #tpu.pipeline_mode<synchronous>, transform_indices = @transform_2, window_bounds = array<i64: 32, 128>}, {pipeline_mode = #tpu.pipeline_mode<synchronous>, transform_indices = @transform_3, window_bounds = array<i64: 32, 128>}, {pipeline_mode = #tpu.pipeline_mode<synchronous>, transform_indices = @transform_4, window_bounds = array<i64: 32, 128>}, {pipeline_mode = #tpu.pipeline_mode<synchronous>, transform_indices = @transform_5, window_bounds = array<i64: 32, 128>}, {pipeline_mode = #tpu.pipeline_mode<synchronous>, transform_indices = @transform_6, window_bounds = array<i64: 32, 128>}, {pipeline_mode = #tpu.pipeline_mode<synchronous>, transform_indices = @transform_7, window_bounds = array<i64: 32, 32>}, {pipeline_mode = #tpu.pipeline_mode<synchronous>, transform_indices = @transform_8, window_bounds = array<i64: 32, 32>}, {pipeline_mode = #tpu.pipeline_mode<synchronous>, transform_indices = @transform_9, window_bounds = array<i64: 128, 128>}, {pipeline_mode = #tpu.pipeline_mode<synchronous>, transform_indices = @transform_10, window_bounds = array<i64: 128, 128>}, {pipeline_mode = #tpu.pipeline_mode<synchronous>, transform_indices = @transform_11, window_bounds = array<i64: 128, 128>}, {pipeline_mode = #tpu.pipeline_mode<synchronous>, transform_indices = @transform_12, window_bounds = array<i64: 32, 128>}]} {
    %c0 = arith.constant 0 : index
    %0 = memref.load %arg1[%c0] : memref<1xf32, #tpu.memory_space<smem>>
    %c0_0 = arith.constant 0 : index
    %c0_1 = arith.constant 0 : index
    %1 = vector.load %arg2[%c0_0, %c0_1] : memref<32x128xf32, #tpu.memory_space<vmem>>, vector<32x128xf32>
    %cst = arith.constant 0.000000e+00 : f32
    %2 = vector.broadcast %cst : f32 to vector<32x128xf32>
    %3 = arith.mulf %1, %1 : vector<32x128xf32>
    %4 = vector.shape_cast %3 : vector<32x128xf32> to vector<1x32x128xf32>
    %cst_2 = arith.constant dense<0.000000e+00> : vector<1xf32>
    %5 = vector.multi_reduction <add>, %4, %cst_2 [1, 2] : vector<1x32x128xf32> to vector<1xf32>
    %6 = vector.shape_cast %5 : vector<1xf32> to vector<1x1x1xf32>
    %7 = vector.extract %6[0, 0, 0] : f32 from vector<1x1x1xf32>
    %c0_i32 = arith.constant 0 : i32
    %c0_3 = arith.constant 0 : index
    %c0_4 = arith.constant 0 : index
    %8 = vector.load %arg3[%c0_3, %c0_4] : memref<32x128xf32, #tpu.memory_space<vmem>>, vector<32x128xf32>
    %9 = arith.mulf %1, %8 : vector<32x128xf32>
    %c16_i32 = arith.constant 16 : i32
    %10 = tpu.dynamic_rotate %1 by %c16_i32 dim 0 : vector<32x128xf32>, i32 -> vector<32x128xf32>
    %c0_5 = arith.constant 0 : index
    %c0_6 = arith.constant 0 : index
    %11 = vector.load %arg4[%c0_5, %c0_6] : memref<32x128xf32, #tpu.memory_space<vmem>>, vector<32x128xf32>
    %12 = arith.mulf %10, %11 : vector<32x128xf32>
    %13 = arith.addf %9, %12 : vector<32x128xf32>
    %c0_7 = arith.constant 0 : index
    %c0_8 = arith.constant 0 : index
    %14 = vector.load %arg8[%c0_7, %c0_8] : memref<32x32xf32, #tpu.memory_space<vmem>>, vector<32x32xf32>
    %cst_9 = arith.constant dense<0.000000e+00> : vector<32x128xf32>
    %15 = tpu.matmul %14, %13, %cst_9 {dimension_numbers = #tpu.dot_dimension_numbers<[1], [0], [0], [1], [0, 0, 1, 1], [], []>} : vector<32x32xf32>, vector<32x128xf32>, vector<32x128xf32> -> vector<32x128xf32>
    %c0_10 = arith.constant 0 : index
    %c0_11 = arith.constant 0 : index
    %16 = vector.load %arg10[%c0_10, %c0_11] : memref<128x128xf32, #tpu.memory_space<vmem>>, vector<128x128xf32>
    %cst_12 = arith.constant dense<0.000000e+00> : vector<32x128xf32>
    %17 = tpu.matmul %15, %16, %cst_12 {dimension_numbers = #tpu.dot_dimension_numbers<[1], [0], [0], [1], [0, 0, 1, 1], [], []>} : vector<32x128xf32>, vector<128x128xf32>, vector<32x128xf32> -> vector<32x128xf32>
    %c0_13 = arith.constant 0 : index
    %c0_14 = arith.constant 0 : index
    %18 = vector.load %arg7[%c0_13, %c0_14] : memref<32x128xf32, #tpu.memory_space<vmem>>, vector<32x128xf32>
    %c16_i32_15 = arith.constant 16 : i32
    %19 = tpu.dynamic_rotate %15 by %c16_i32_15 dim 0 : vector<32x128xf32>, i32 -> vector<32x128xf32>
    %20 = arith.mulf %18, %19 : vector<32x128xf32>
    %c0_16 = arith.constant 0 : index
    %c0_17 = arith.constant 0 : index
    %21 = vector.load %arg11[%c0_16, %c0_17] : memref<128x128xf32, #tpu.memory_space<vmem>>, vector<128x128xf32>
    %cst_18 = arith.constant dense<0.000000e+00> : vector<32x128xf32>
    %22 = tpu.matmul %20, %21, %cst_18 {dimension_numbers = #tpu.dot_dimension_numbers<[1], [0], [0], [1], [0, 0, 1, 1], [], []>} : vector<32x128xf32>, vector<128x128xf32>, vector<32x128xf32> -> vector<32x128xf32>
    %23 = arith.addf %17, %22 : vector<32x128xf32>
    %c0_19 = arith.constant 0 : index
    %c0_20 = arith.constant 0 : index
    %24 = vector.load %arg6[%c0_19, %c0_20] : memref<32x128xf32, #tpu.memory_space<vmem>>, vector<32x128xf32>
    %25 = arith.mulf %23, %24 : vector<32x128xf32>
    %c0_21 = arith.constant 0 : index
    %c0_22 = arith.constant 0 : index
    %26 = vector.load %arg9[%c0_21, %c0_22] : memref<32x32xf32, #tpu.memory_space<vmem>>, vector<32x32xf32>
    %cst_23 = arith.constant dense<0.000000e+00> : vector<32x128xf32>
    %27 = tpu.matmul %26, %25, %cst_23 {dimension_numbers = #tpu.dot_dimension_numbers<[1], [0], [0], [1], [0, 0, 1, 1], [], []>} : vector<32x32xf32>, vector<32x128xf32>, vector<32x128xf32> -> vector<32x128xf32>
    %c0_24 = arith.constant 0 : index
    %c0_25 = arith.constant 0 : index
    %28 = vector.load %arg10[%c0_24, %c0_25] : memref<128x128xf32, #tpu.memory_space<vmem>>, vector<128x128xf32>
    %cst_26 = arith.constant dense<0.000000e+00> : vector<32x128xf32>
    %29 = tpu.matmul %27, %28, %cst_26 {dimension_numbers = #tpu.dot_dimension_numbers<[1], [0], [0], [1], [0, 0, 1, 1], [], []>} : vector<32x128xf32>, vector<128x128xf32>, vector<32x128xf32> -> vector<32x128xf32>
    %c0_27 = arith.constant 0 : index
    %c0_28 = arith.constant 0 : index
    %30 = vector.load %arg7[%c0_27, %c0_28] : memref<32x128xf32, #tpu.memory_space<vmem>>, vector<32x128xf32>
    %c16_i32_29 = arith.constant 16 : i32
    %31 = tpu.dynamic_rotate %27 by %c16_i32_29 dim 0 : vector<32x128xf32>, i32 -> vector<32x128xf32>
    %32 = arith.mulf %30, %31 : vector<32x128xf32>
    %c0_30 = arith.constant 0 : index
    %c0_31 = arith.constant 0 : index
    %33 = vector.load %arg11[%c0_30, %c0_31] : memref<128x128xf32, #tpu.memory_space<vmem>>, vector<128x128xf32>
    %cst_32 = arith.constant dense<0.000000e+00> : vector<32x128xf32>
    %34 = tpu.matmul %32, %33, %cst_32 {dimension_numbers = #tpu.dot_dimension_numbers<[1], [0], [0], [1], [0, 0, 1, 1], [], []>} : vector<32x128xf32>, vector<128x128xf32>, vector<32x128xf32> -> vector<32x128xf32>
    %35 = arith.subf %29, %34 : vector<32x128xf32>
    %c0_33 = arith.constant 0 : index
    %c0_34 = arith.constant 0 : index
    %36 = vector.load %arg3[%c0_33, %c0_34] : memref<32x128xf32, #tpu.memory_space<vmem>>, vector<32x128xf32>
    %37 = arith.mulf %35, %36 : vector<32x128xf32>
    %c16_i32_35 = arith.constant 16 : i32
    %38 = tpu.dynamic_rotate %35 by %c16_i32_35 dim 0 : vector<32x128xf32>, i32 -> vector<32x128xf32>
    %c0_36 = arith.constant 0 : index
    %c0_37 = arith.constant 0 : index
    %39 = vector.load %arg5[%c0_36, %c0_37] : memref<32x128xf32, #tpu.memory_space<vmem>>, vector<32x128xf32>
    %40 = arith.mulf %38, %39 : vector<32x128xf32>
    %41 = arith.addf %37, %40 : vector<32x128xf32>
    %c0_38 = arith.constant 0 : index
    %c0_39 = arith.constant 0 : index
    %42 = vector.load %arg12[%c0_38, %c0_39] : memref<128x128xf32, #tpu.memory_space<vmem>>, vector<128x128xf32>
    %cst_40 = arith.constant dense<0.000000e+00> : vector<32x128xf32>
    %43 = tpu.matmul %41, %42, %cst_40 {dimension_numbers = #tpu.dot_dimension_numbers<[1], [0], [0], [1], [0, 0, 1, 1], [], []>} : vector<32x128xf32>, vector<128x128xf32>, vector<32x128xf32> -> vector<32x128xf32>
    %44 = vector.broadcast %0 : f32 to vector<32x128xf32>
    %45 = arith.mulf %44, %1 : vector<32x128xf32>
    %46 = arith.addf %43, %45 : vector<32x128xf32>
    %47 = arith.mulf %1, %46 : vector<32x128xf32>
    %48 = vector.shape_cast %47 : vector<32x128xf32> to vector<1x32x128xf32>
    %cst_41 = arith.constant dense<0.000000e+00> : vector<1xf32>
    %49 = vector.multi_reduction <add>, %48, %cst_41 [1, 2] : vector<1x32x128xf32> to vector<1xf32>
    %50 = vector.shape_cast %49 : vector<1xf32> to vector<1x1x1xf32>
    %51 = vector.extract %50[0, 0, 0] : f32 from vector<1x1x1xf32>
    %52 = arith.divf %7, %51 : f32
    %53 = vector.broadcast %52 : f32 to vector<32x128xf32>
    %54 = arith.mulf %53, %1 : vector<32x128xf32>
    %55 = arith.addf %2, %54 : vector<32x128xf32>
    %56 = vector.broadcast %52 : f32 to vector<32x128xf32>
    %57 = arith.mulf %56, %46 : vector<32x128xf32>
    %58 = arith.subf %1, %57 : vector<32x128xf32>
    %59 = arith.mulf %58, %58 : vector<32x128xf32>
    %60 = vector.shape_cast %59 : vector<32x128xf32> to vector<1x32x128xf32>
    %cst_42 = arith.constant dense<0.000000e+00> : vector<1xf32>
    %61 = vector.multi_reduction <add>, %60, %cst_42 [1, 2] : vector<1x32x128xf32> to vector<1xf32>
    %62 = vector.shape_cast %61 : vector<1xf32> to vector<1x1x1xf32>
    %63 = vector.extract %62[0, 0, 0] : f32 from vector<1x1x1xf32>
    %64 = arith.divf %63, %7 : f32
    %65 = vector.broadcast %64 : f32 to vector<32x128xf32>
    %66 = arith.mulf %65, %1 : vector<32x128xf32>
    %67 = arith.addf %58, %66 : vector<32x128xf32>
    %c1_i32 = arith.constant 1 : i32
    %c0_43 = arith.constant 0 : index
    %c0_44 = arith.constant 0 : index
    %68 = vector.load %arg3[%c0_43, %c0_44] : memref<32x128xf32, #tpu.memory_space<vmem>>, vector<32x128xf32>
    %69 = arith.mulf %67, %68 : vector<32x128xf32>
    %c16_i32_45 = arith.constant 16 : i32
    %70 = tpu.dynamic_rotate %67 by %c16_i32_45 dim 0 : vector<32x128xf32>, i32 -> vector<32x128xf32>
    %c0_46 = arith.constant 0 : index
    %c0_47 = arith.constant 0 : index
    %71 = vector.load %arg4[%c0_46, %c0_47] : memref<32x128xf32, #tpu.memory_space<vmem>>, vector<32x128xf32>
    %72 = arith.mulf %70, %71 : vector<32x128xf32>
    %73 = arith.addf %69, %72 : vector<32x128xf32>
    %c0_48 = arith.constant 0 : index
    %c0_49 = arith.constant 0 : index
    %74 = vector.load %arg8[%c0_48, %c0_49] : memref<32x32xf32, #tpu.memory_space<vmem>>, vector<32x32xf32>
    %cst_50 = arith.constant dense<0.000000e+00> : vector<32x128xf32>
    %75 = tpu.matmul %74, %73, %cst_50 {dimension_numbers = #tpu.dot_dimension_numbers<[1], [0], [0], [1], [0, 0, 1, 1], [], []>} : vector<32x32xf32>, vector<32x128xf32>, vector<32x128xf32> -> vector<32x128xf32>
    %c0_51 = arith.constant 0 : index
    %c0_52 = arith.constant 0 : index
    %76 = vector.load %arg10[%c0_51, %c0_52] : memref<128x128xf32, #tpu.memory_space<vmem>>, vector<128x128xf32>
    %cst_53 = arith.constant dense<0.000000e+00> : vector<32x128xf32>
    %77 = tpu.matmul %75, %76, %cst_53 {dimension_numbers = #tpu.dot_dimension_numbers<[1], [0], [0], [1], [0, 0, 1, 1], [], []>} : vector<32x128xf32>, vector<128x128xf32>, vector<32x128xf32> -> vector<32x128xf32>
    %c0_54 = arith.constant 0 : index
    %c0_55 = arith.constant 0 : index
    %78 = vector.load %arg7[%c0_54, %c0_55] : memref<32x128xf32, #tpu.memory_space<vmem>>, vector<32x128xf32>
    %c16_i32_56 = arith.constant 16 : i32
    %79 = tpu.dynamic_rotate %75 by %c16_i32_56 dim 0 : vector<32x128xf32>, i32 -> vector<32x128xf32>
    %80 = arith.mulf %78, %79 : vector<32x128xf32>
    %c0_57 = arith.constant 0 : index
    %c0_58 = arith.constant 0 : index
    %81 = vector.load %arg11[%c0_57, %c0_58] : memref<128x128xf32, #tpu.memory_space<vmem>>, vector<128x128xf32>
    %cst_59 = arith.constant dense<0.000000e+00> : vector<32x128xf32>
    %82 = tpu.matmul %80, %81, %cst_59 {dimension_numbers = #tpu.dot_dimension_numbers<[1], [0], [0], [1], [0, 0, 1, 1], [], []>} : vector<32x128xf32>, vector<128x128xf32>, vector<32x128xf32> -> vector<32x128xf32>
    %83 = arith.addf %77, %82 : vector<32x128xf32>
    %c0_60 = arith.constant 0 : index
    %c0_61 = arith.constant 0 : index
    %84 = vector.load %arg6[%c0_60, %c0_61] : memref<32x128xf32, #tpu.memory_space<vmem>>, vector<32x128xf32>
    %85 = arith.mulf %83, %84 : vector<32x128xf32>
    %c0_62 = arith.constant 0 : index
    %c0_63 = arith.constant 0 : index
    %86 = vector.load %arg9[%c0_62, %c0_63] : memref<32x32xf32, #tpu.memory_space<vmem>>, vector<32x32xf32>
    %cst_64 = arith.constant dense<0.000000e+00> : vector<32x128xf32>
    %87 = tpu.matmul %86, %85, %cst_64 {dimension_numbers = #tpu.dot_dimension_numbers<[1], [0], [0], [1], [0, 0, 1, 1], [], []>} : vector<32x32xf32>, vector<32x128xf32>, vector<32x128xf32> -> vector<32x128xf32>
    %c0_65 = arith.constant 0 : index
    %c0_66 = arith.constant 0 : index
    %88 = vector.load %arg10[%c0_65, %c0_66] : memref<128x128xf32, #tpu.memory_space<vmem>>, vector<128x128xf32>
    %cst_67 = arith.constant dense<0.000000e+00> : vector<32x128xf32>
    %89 = tpu.matmul %87, %88, %cst_67 {dimension_numbers = #tpu.dot_dimension_numbers<[1], [0], [0], [1], [0, 0, 1, 1], [], []>} : vector<32x128xf32>, vector<128x128xf32>, vector<32x128xf32> -> vector<32x128xf32>
    %c0_68 = arith.constant 0 : index
    %c0_69 = arith.constant 0 : index
    %90 = vector.load %arg7[%c0_68, %c0_69] : memref<32x128xf32, #tpu.memory_space<vmem>>, vector<32x128xf32>
    %c16_i32_70 = arith.constant 16 : i32
    %91 = tpu.dynamic_rotate %87 by %c16_i32_70 dim 0 : vector<32x128xf32>, i32 -> vector<32x128xf32>
    %92 = arith.mulf %90, %91 : vector<32x128xf32>
    %c0_71 = arith.constant 0 : index
    %c0_72 = arith.constant 0 : index
    %93 = vector.load %arg11[%c0_71, %c0_72] : memref<128x128xf32, #tpu.memory_space<vmem>>, vector<128x128xf32>
    %cst_73 = arith.constant dense<0.000000e+00> : vector<32x128xf32>
    %94 = tpu.matmul %92, %93, %cst_73 {dimension_numbers = #tpu.dot_dimension_numbers<[1], [0], [0], [1], [0, 0, 1, 1], [], []>} : vector<32x128xf32>, vector<128x128xf32>, vector<32x128xf32> -> vector<32x128xf32>
    %95 = arith.subf %89, %94 : vector<32x128xf32>
    %c0_74 = arith.constant 0 : index
    %c0_75 = arith.constant 0 : index
    %96 = vector.load %arg3[%c0_74, %c0_75] : memref<32x128xf32, #tpu.memory_space<vmem>>, vector<32x128xf32>
    %97 = arith.mulf %95, %96 : vector<32x128xf32>
    %c16_i32_76 = arith.constant 16 : i32
    %98 = tpu.dynamic_rotate %95 by %c16_i32_76 dim 0 : vector<32x128xf32>, i32 -> vector<32x128xf32>
    %c0_77 = arith.constant 0 : index
    %c0_78 = arith.constant 0 : index
    %99 = vector.load %arg5[%c0_77, %c0_78] : memref<32x128xf32, #tpu.memory_space<vmem>>, vector<32x128xf32>
    %100 = arith.mulf %98, %99 : vector<32x128xf32>
    %101 = arith.addf %97, %100 : vector<32x128xf32>
    %c0_79 = arith.constant 0 : index
    %c0_80 = arith.constant 0 : index
    %102 = vector.load %arg12[%c0_79, %c0_80] : memref<128x128xf32, #tpu.memory_space<vmem>>, vector<128x128xf32>
    %cst_81 = arith.constant dense<0.000000e+00> : vector<32x128xf32>
    %103 = tpu.matmul %101, %102, %cst_81 {dimension_numbers = #tpu.dot_dimension_numbers<[1], [0], [0], [1], [0, 0, 1, 1], [], []>} : vector<32x128xf32>, vector<128x128xf32>, vector<32x128xf32> -> vector<32x128xf32>
    %104 = vector.broadcast %0 : f32 to vector<32x128xf32>
    %105 = arith.mulf %104, %67 : vector<32x128xf32>
    %106 = arith.addf %103, %105 : vector<32x128xf32>
    %107 = arith.mulf %67, %106 : vector<32x128xf32>
    %108 = vector.shape_cast %107 : vector<32x128xf32> to vector<1x32x128xf32>
    %cst_82 = arith.constant dense<0.000000e+00> : vector<1xf32>
    %109 = vector.multi_reduction <add>, %108, %cst_82 [1, 2] : vector<1x32x128xf32> to vector<1xf32>
    %110 = vector.shape_cast %109 : vector<1xf32> to vector<1x1x1xf32>
    %111 = vector.extract %110[0, 0, 0] : f32 from vector<1x1x1xf32>
    %112 = arith.divf %63, %111 : f32
    %113 = vector.broadcast %112 : f32 to vector<32x128xf32>
    %114 = arith.mulf %113, %67 : vector<32x128xf32>
    %115 = arith.addf %55, %114 : vector<32x128xf32>
    %116 = vector.broadcast %112 : f32 to vector<32x128xf32>
    %117 = arith.mulf %116, %106 : vector<32x128xf32>
    %118 = arith.subf %58, %117 : vector<32x128xf32>
    %119 = arith.mulf %118, %118 : vector<32x128xf32>
    %120 = vector.shape_cast %119 : vector<32x128xf32> to vector<1x32x128xf32>
    %cst_83 = arith.constant dense<0.000000e+00> : vector<1xf32>
    %121 = vector.multi_reduction <add>, %120, %cst_83 [1, 2] : vector<1x32x128xf32> to vector<1xf32>
    %122 = vector.shape_cast %121 : vector<1xf32> to vector<1x1x1xf32>
    %123 = vector.extract %122[0, 0, 0] : f32 from vector<1x1x1xf32>
    %124 = arith.divf %123, %63 : f32
    %125 = vector.broadcast %124 : f32 to vector<32x128xf32>
    %126 = arith.mulf %125, %67 : vector<32x128xf32>
    %127 = arith.addf %118, %126 : vector<32x128xf32>
    %c2_i32 = arith.constant 2 : i32
    %c0_84 = arith.constant 0 : index
    %c0_85 = arith.constant 0 : index
    %128 = vector.load %arg3[%c0_84, %c0_85] : memref<32x128xf32, #tpu.memory_space<vmem>>, vector<32x128xf32>
    %129 = arith.mulf %127, %128 : vector<32x128xf32>
    %c16_i32_86 = arith.constant 16 : i32
    %130 = tpu.dynamic_rotate %127 by %c16_i32_86 dim 0 : vector<32x128xf32>, i32 -> vector<32x128xf32>
    %c0_87 = arith.constant 0 : index
    %c0_88 = arith.constant 0 : index
    %131 = vector.load %arg4[%c0_87, %c0_88] : memref<32x128xf32, #tpu.memory_space<vmem>>, vector<32x128xf32>
    %132 = arith.mulf %130, %131 : vector<32x128xf32>
    %133 = arith.addf %129, %132 : vector<32x128xf32>
    %c0_89 = arith.constant 0 : index
    %c0_90 = arith.constant 0 : index
    %134 = vector.load %arg8[%c0_89, %c0_90] : memref<32x32xf32, #tpu.memory_space<vmem>>, vector<32x32xf32>
    %cst_91 = arith.constant dense<0.000000e+00> : vector<32x128xf32>
    %135 = tpu.matmul %134, %133, %cst_91 {dimension_numbers = #tpu.dot_dimension_numbers<[1], [0], [0], [1], [0, 0, 1, 1], [], []>} : vector<32x32xf32>, vector<32x128xf32>, vector<32x128xf32> -> vector<32x128xf32>
    %c0_92 = arith.constant 0 : index
    %c0_93 = arith.constant 0 : index
    %136 = vector.load %arg10[%c0_92, %c0_93] : memref<128x128xf32, #tpu.memory_space<vmem>>, vector<128x128xf32>
    %cst_94 = arith.constant dense<0.000000e+00> : vector<32x128xf32>
    %137 = tpu.matmul %135, %136, %cst_94 {dimension_numbers = #tpu.dot_dimension_numbers<[1], [0], [0], [1], [0, 0, 1, 1], [], []>} : vector<32x128xf32>, vector<128x128xf32>, vector<32x128xf32> -> vector<32x128xf32>
    %c0_95 = arith.constant 0 : index
    %c0_96 = arith.constant 0 : index
    %138 = vector.load %arg7[%c0_95, %c0_96] : memref<32x128xf32, #tpu.memory_space<vmem>>, vector<32x128xf32>
    %c16_i32_97 = arith.constant 16 : i32
    %139 = tpu.dynamic_rotate %135 by %c16_i32_97 dim 0 : vector<32x128xf32>, i32 -> vector<32x128xf32>
    %140 = arith.mulf %138, %139 : vector<32x128xf32>
    %c0_98 = arith.constant 0 : index
    %c0_99 = arith.constant 0 : index
    %141 = vector.load %arg11[%c0_98, %c0_99] : memref<128x128xf32, #tpu.memory_space<vmem>>, vector<128x128xf32>
    %cst_100 = arith.constant dense<0.000000e+00> : vector<32x128xf32>
    %142 = tpu.matmul %140, %141, %cst_100 {dimension_numbers = #tpu.dot_dimension_numbers<[1], [0], [0], [1], [0, 0, 1, 1], [], []>} : vector<32x128xf32>, vector<128x128xf32>, vector<32x128xf32> -> vector<32x128xf32>
    %143 = arith.addf %137, %142 : vector<32x128xf32>
    %c0_101 = arith.constant 0 : index
    %c0_102 = arith.constant 0 : index
    %144 = vector.load %arg6[%c0_101, %c0_102] : memref<32x128xf32, #tpu.memory_space<vmem>>, vector<32x128xf32>
    %145 = arith.mulf %143, %144 : vector<32x128xf32>
    %c0_103 = arith.constant 0 : index
    %c0_104 = arith.constant 0 : index
    %146 = vector.load %arg9[%c0_103, %c0_104] : memref<32x32xf32, #tpu.memory_space<vmem>>, vector<32x32xf32>
    %cst_105 = arith.constant dense<0.000000e+00> : vector<32x128xf32>
    %147 = tpu.matmul %146, %145, %cst_105 {dimension_numbers = #tpu.dot_dimension_numbers<[1], [0], [0], [1], [0, 0, 1, 1], [], []>} : vector<32x32xf32>, vector<32x128xf32>, vector<32x128xf32> -> vector<32x128xf32>
    %c0_106 = arith.constant 0 : index
    %c0_107 = arith.constant 0 : index
    %148 = vector.load %arg10[%c0_106, %c0_107] : memref<128x128xf32, #tpu.memory_space<vmem>>, vector<128x128xf32>
    %cst_108 = arith.constant dense<0.000000e+00> : vector<32x128xf32>
    %149 = tpu.matmul %147, %148, %cst_108 {dimension_numbers = #tpu.dot_dimension_numbers<[1], [0], [0], [1], [0, 0, 1, 1], [], []>} : vector<32x128xf32>, vector<128x128xf32>, vector<32x128xf32> -> vector<32x128xf32>
    %c0_109 = arith.constant 0 : index
    %c0_110 = arith.constant 0 : index
    %150 = vector.load %arg7[%c0_109, %c0_110] : memref<32x128xf32, #tpu.memory_space<vmem>>, vector<32x128xf32>
    %c16_i32_111 = arith.constant 16 : i32
    %151 = tpu.dynamic_rotate %147 by %c16_i32_111 dim 0 : vector<32x128xf32>, i32 -> vector<32x128xf32>
    %152 = arith.mulf %150, %151 : vector<32x128xf32>
    %c0_112 = arith.constant 0 : index
    %c0_113 = arith.constant 0 : index
    %153 = vector.load %arg11[%c0_112, %c0_113] : memref<128x128xf32, #tpu.memory_space<vmem>>, vector<128x128xf32>
    %cst_114 = arith.constant dense<0.000000e+00> : vector<32x128xf32>
    %154 = tpu.matmul %152, %153, %cst_114 {dimension_numbers = #tpu.dot_dimension_numbers<[1], [0], [0], [1], [0, 0, 1, 1], [], []>} : vector<32x128xf32>, vector<128x128xf32>, vector<32x128xf32> -> vector<32x128xf32>
    %155 = arith.subf %149, %154 : vector<32x128xf32>
    %c0_115 = arith.constant 0 : index
    %c0_116 = arith.constant 0 : index
    %156 = vector.load %arg3[%c0_115, %c0_116] : memref<32x128xf32, #tpu.memory_space<vmem>>, vector<32x128xf32>
    %157 = arith.mulf %155, %156 : vector<32x128xf32>
    %c16_i32_117 = arith.constant 16 : i32
    %158 = tpu.dynamic_rotate %155 by %c16_i32_117 dim 0 : vector<32x128xf32>, i32 -> vector<32x128xf32>
    %c0_118 = arith.constant 0 : index
    %c0_119 = arith.constant 0 : index
    %159 = vector.load %arg5[%c0_118, %c0_119] : memref<32x128xf32, #tpu.memory_space<vmem>>, vector<32x128xf32>
    %160 = arith.mulf %158, %159 : vector<32x128xf32>
    %161 = arith.addf %157, %160 : vector<32x128xf32>
    %c0_120 = arith.constant 0 : index
    %c0_121 = arith.constant 0 : index
    %162 = vector.load %arg12[%c0_120, %c0_121] : memref<128x128xf32, #tpu.memory_space<vmem>>, vector<128x128xf32>
    %cst_122 = arith.constant dense<0.000000e+00> : vector<32x128xf32>
    %163 = tpu.matmul %161, %162, %cst_122 {dimension_numbers = #tpu.dot_dimension_numbers<[1], [0], [0], [1], [0, 0, 1, 1], [], []>} : vector<32x128xf32>, vector<128x128xf32>, vector<32x128xf32> -> vector<32x128xf32>
    %164 = vector.broadcast %0 : f32 to vector<32x128xf32>
    %165 = arith.mulf %164, %127 : vector<32x128xf32>
    %166 = arith.addf %163, %165 : vector<32x128xf32>
    %167 = arith.mulf %127, %166 : vector<32x128xf32>
    %168 = vector.shape_cast %167 : vector<32x128xf32> to vector<1x32x128xf32>
    %cst_123 = arith.constant dense<0.000000e+00> : vector<1xf32>
    %169 = vector.multi_reduction <add>, %168, %cst_123 [1, 2] : vector<1x32x128xf32> to vector<1xf32>
    %170 = vector.shape_cast %169 : vector<1xf32> to vector<1x1x1xf32>
    %171 = vector.extract %170[0, 0, 0] : f32 from vector<1x1x1xf32>
    %172 = arith.divf %123, %171 : f32
    %173 = vector.broadcast %172 : f32 to vector<32x128xf32>
    %174 = arith.mulf %173, %127 : vector<32x128xf32>
    %175 = arith.addf %115, %174 : vector<32x128xf32>
    %176 = vector.broadcast %172 : f32 to vector<32x128xf32>
    %177 = arith.mulf %176, %166 : vector<32x128xf32>
    %178 = arith.subf %118, %177 : vector<32x128xf32>
    %179 = arith.mulf %178, %178 : vector<32x128xf32>
    %180 = vector.shape_cast %179 : vector<32x128xf32> to vector<1x32x128xf32>
    %cst_124 = arith.constant dense<0.000000e+00> : vector<1xf32>
    %181 = vector.multi_reduction <add>, %180, %cst_124 [1, 2] : vector<1x32x128xf32> to vector<1xf32>
    %182 = vector.shape_cast %181 : vector<1xf32> to vector<1x1x1xf32>
    %183 = vector.extract %182[0, 0, 0] : f32 from vector<1x1x1xf32>
    %184 = arith.divf %183, %123 : f32
    %185 = vector.broadcast %184 : f32 to vector<32x128xf32>
    %186 = arith.mulf %185, %127 : vector<32x128xf32>
    %187 = arith.addf %178, %186 : vector<32x128xf32>
    %c3_i32 = arith.constant 3 : i32
    %c0_125 = arith.constant 0 : index
    %c0_126 = arith.constant 0 : index
    %188 = vector.load %arg3[%c0_125, %c0_126] : memref<32x128xf32, #tpu.memory_space<vmem>>, vector<32x128xf32>
    %189 = arith.mulf %187, %188 : vector<32x128xf32>
    %c16_i32_127 = arith.constant 16 : i32
    %190 = tpu.dynamic_rotate %187 by %c16_i32_127 dim 0 : vector<32x128xf32>, i32 -> vector<32x128xf32>
    %c0_128 = arith.constant 0 : index
    %c0_129 = arith.constant 0 : index
    %191 = vector.load %arg4[%c0_128, %c0_129] : memref<32x128xf32, #tpu.memory_space<vmem>>, vector<32x128xf32>
    %192 = arith.mulf %190, %191 : vector<32x128xf32>
    %193 = arith.addf %189, %192 : vector<32x128xf32>
    %c0_130 = arith.constant 0 : index
    %c0_131 = arith.constant 0 : index
    %194 = vector.load %arg8[%c0_130, %c0_131] : memref<32x32xf32, #tpu.memory_space<vmem>>, vector<32x32xf32>
    %cst_132 = arith.constant dense<0.000000e+00> : vector<32x128xf32>
    %195 = tpu.matmul %194, %193, %cst_132 {dimension_numbers = #tpu.dot_dimension_numbers<[1], [0], [0], [1], [0, 0, 1, 1], [], []>} : vector<32x32xf32>, vector<32x128xf32>, vector<32x128xf32> -> vector<32x128xf32>
    %c0_133 = arith.constant 0 : index
    %c0_134 = arith.constant 0 : index
    %196 = vector.load %arg10[%c0_133, %c0_134] : memref<128x128xf32, #tpu.memory_space<vmem>>, vector<128x128xf32>
    %cst_135 = arith.constant dense<0.000000e+00> : vector<32x128xf32>
    %197 = tpu.matmul %195, %196, %cst_135 {dimension_numbers = #tpu.dot_dimension_numbers<[1], [0], [0], [1], [0, 0, 1, 1], [], []>} : vector<32x128xf32>, vector<128x128xf32>, vector<32x128xf32> -> vector<32x128xf32>
    %c0_136 = arith.constant 0 : index
    %c0_137 = arith.constant 0 : index
    %198 = vector.load %arg7[%c0_136, %c0_137] : memref<32x128xf32, #tpu.memory_space<vmem>>, vector<32x128xf32>
    %c16_i32_138 = arith.constant 16 : i32
    %199 = tpu.dynamic_rotate %195 by %c16_i32_138 dim 0 : vector<32x128xf32>, i32 -> vector<32x128xf32>
    %200 = arith.mulf %198, %199 : vector<32x128xf32>
    %c0_139 = arith.constant 0 : index
    %c0_140 = arith.constant 0 : index
    %201 = vector.load %arg11[%c0_139, %c0_140] : memref<128x128xf32, #tpu.memory_space<vmem>>, vector<128x128xf32>
    %cst_141 = arith.constant dense<0.000000e+00> : vector<32x128xf32>
    %202 = tpu.matmul %200, %201, %cst_141 {dimension_numbers = #tpu.dot_dimension_numbers<[1], [0], [0], [1], [0, 0, 1, 1], [], []>} : vector<32x128xf32>, vector<128x128xf32>, vector<32x128xf32> -> vector<32x128xf32>
    %203 = arith.addf %197, %202 : vector<32x128xf32>
    %c0_142 = arith.constant 0 : index
    %c0_143 = arith.constant 0 : index
    %204 = vector.load %arg6[%c0_142, %c0_143] : memref<32x128xf32, #tpu.memory_space<vmem>>, vector<32x128xf32>
    %205 = arith.mulf %203, %204 : vector<32x128xf32>
    %c0_144 = arith.constant 0 : index
    %c0_145 = arith.constant 0 : index
    %206 = vector.load %arg9[%c0_144, %c0_145] : memref<32x32xf32, #tpu.memory_space<vmem>>, vector<32x32xf32>
    %cst_146 = arith.constant dense<0.000000e+00> : vector<32x128xf32>
    %207 = tpu.matmul %206, %205, %cst_146 {dimension_numbers = #tpu.dot_dimension_numbers<[1], [0], [0], [1], [0, 0, 1, 1], [], []>} : vector<32x32xf32>, vector<32x128xf32>, vector<32x128xf32> -> vector<32x128xf32>
    %c0_147 = arith.constant 0 : index
    %c0_148 = arith.constant 0 : index
    %208 = vector.load %arg10[%c0_147, %c0_148] : memref<128x128xf32, #tpu.memory_space<vmem>>, vector<128x128xf32>
    %cst_149 = arith.constant dense<0.000000e+00> : vector<32x128xf32>
    %209 = tpu.matmul %207, %208, %cst_149 {dimension_numbers = #tpu.dot_dimension_numbers<[1], [0], [0], [1], [0, 0, 1, 1], [], []>} : vector<32x128xf32>, vector<128x128xf32>, vector<32x128xf32> -> vector<32x128xf32>
    %c0_150 = arith.constant 0 : index
    %c0_151 = arith.constant 0 : index
    %210 = vector.load %arg7[%c0_150, %c0_151] : memref<32x128xf32, #tpu.memory_space<vmem>>, vector<32x128xf32>
    %c16_i32_152 = arith.constant 16 : i32
    %211 = tpu.dynamic_rotate %207 by %c16_i32_152 dim 0 : vector<32x128xf32>, i32 -> vector<32x128xf32>
    %212 = arith.mulf %210, %211 : vector<32x128xf32>
    %c0_153 = arith.constant 0 : index
    %c0_154 = arith.constant 0 : index
    %213 = vector.load %arg11[%c0_153, %c0_154] : memref<128x128xf32, #tpu.memory_space<vmem>>, vector<128x128xf32>
    %cst_155 = arith.constant dense<0.000000e+00> : vector<32x128xf32>
    %214 = tpu.matmul %212, %213, %cst_155 {dimension_numbers = #tpu.dot_dimension_numbers<[1], [0], [0], [1], [0, 0, 1, 1], [], []>} : vector<32x128xf32>, vector<128x128xf32>, vector<32x128xf32> -> vector<32x128xf32>
    %215 = arith.subf %209, %214 : vector<32x128xf32>
    %c0_156 = arith.constant 0 : index
    %c0_157 = arith.constant 0 : index
    %216 = vector.load %arg3[%c0_156, %c0_157] : memref<32x128xf32, #tpu.memory_space<vmem>>, vector<32x128xf32>
    %217 = arith.mulf %215, %216 : vector<32x128xf32>
    %c16_i32_158 = arith.constant 16 : i32
    %218 = tpu.dynamic_rotate %215 by %c16_i32_158 dim 0 : vector<32x128xf32>, i32 -> vector<32x128xf32>
    %c0_159 = arith.constant 0 : index
    %c0_160 = arith.constant 0 : index
    %219 = vector.load %arg5[%c0_159, %c0_160] : memref<32x128xf32, #tpu.memory_space<vmem>>, vector<32x128xf32>
    %220 = arith.mulf %218, %219 : vector<32x128xf32>
    %221 = arith.addf %217, %220 : vector<32x128xf32>
    %c0_161 = arith.constant 0 : index
    %c0_162 = arith.constant 0 : index
    %222 = vector.load %arg12[%c0_161, %c0_162] : memref<128x128xf32, #tpu.memory_space<vmem>>, vector<128x128xf32>
    %cst_163 = arith.constant dense<0.000000e+00> : vector<32x128xf32>
    %223 = tpu.matmul %221, %222, %cst_163 {dimension_numbers = #tpu.dot_dimension_numbers<[1], [0], [0], [1], [0, 0, 1, 1], [], []>} : vector<32x128xf32>, vector<128x128xf32>, vector<32x128xf32> -> vector<32x128xf32>
    %224 = vector.broadcast %0 : f32 to vector<32x128xf32>
    %225 = arith.mulf %224, %187 : vector<32x128xf32>
    %226 = arith.addf %223, %225 : vector<32x128xf32>
    %227 = arith.mulf %187, %226 : vector<32x128xf32>
    %228 = vector.shape_cast %227 : vector<32x128xf32> to vector<1x32x128xf32>
    %cst_164 = arith.constant dense<0.000000e+00> : vector<1xf32>
    %229 = vector.multi_reduction <add>, %228, %cst_164 [1, 2] : vector<1x32x128xf32> to vector<1xf32>
    %230 = vector.shape_cast %229 : vector<1xf32> to vector<1x1x1xf32>
    %231 = vector.extract %230[0, 0, 0] : f32 from vector<1x1x1xf32>
    %232 = arith.divf %183, %231 : f32
    %233 = vector.broadcast %232 : f32 to vector<32x128xf32>
    %234 = arith.mulf %233, %187 : vector<32x128xf32>
    %235 = arith.addf %175, %234 : vector<32x128xf32>
    %236 = vector.broadcast %232 : f32 to vector<32x128xf32>
    %237 = arith.mulf %236, %226 : vector<32x128xf32>
    %238 = arith.subf %178, %237 : vector<32x128xf32>
    %239 = arith.mulf %238, %238 : vector<32x128xf32>
    %240 = vector.shape_cast %239 : vector<32x128xf32> to vector<1x32x128xf32>
    %cst_165 = arith.constant dense<0.000000e+00> : vector<1xf32>
    %241 = vector.multi_reduction <add>, %240, %cst_165 [1, 2] : vector<1x32x128xf32> to vector<1xf32>
    %242 = vector.shape_cast %241 : vector<1xf32> to vector<1x1x1xf32>
    %243 = vector.extract %242[0, 0, 0] : f32 from vector<1x1x1xf32>
    %244 = arith.divf %243, %183 : f32
    %245 = vector.broadcast %244 : f32 to vector<32x128xf32>
    %246 = arith.mulf %245, %187 : vector<32x128xf32>
    %247 = arith.addf %238, %246 : vector<32x128xf32>
    %c4_i32 = arith.constant 4 : i32
    %c0_166 = arith.constant 0 : index
    %c0_167 = arith.constant 0 : index
    %248 = vector.load %arg3[%c0_166, %c0_167] : memref<32x128xf32, #tpu.memory_space<vmem>>, vector<32x128xf32>
    %249 = arith.mulf %247, %248 : vector<32x128xf32>
    %c16_i32_168 = arith.constant 16 : i32
    %250 = tpu.dynamic_rotate %247 by %c16_i32_168 dim 0 : vector<32x128xf32>, i32 -> vector<32x128xf32>
    %c0_169 = arith.constant 0 : index
    %c0_170 = arith.constant 0 : index
    %251 = vector.load %arg4[%c0_169, %c0_170] : memref<32x128xf32, #tpu.memory_space<vmem>>, vector<32x128xf32>
    %252 = arith.mulf %250, %251 : vector<32x128xf32>
    %253 = arith.addf %249, %252 : vector<32x128xf32>
    %c0_171 = arith.constant 0 : index
    %c0_172 = arith.constant 0 : index
    %254 = vector.load %arg8[%c0_171, %c0_172] : memref<32x32xf32, #tpu.memory_space<vmem>>, vector<32x32xf32>
    %cst_173 = arith.constant dense<0.000000e+00> : vector<32x128xf32>
    %255 = tpu.matmul %254, %253, %cst_173 {dimension_numbers = #tpu.dot_dimension_numbers<[1], [0], [0], [1], [0, 0, 1, 1], [], []>} : vector<32x32xf32>, vector<32x128xf32>, vector<32x128xf32> -> vector<32x128xf32>
    %c0_174 = arith.constant 0 : index
    %c0_175 = arith.constant 0 : index
    %256 = vector.load %arg10[%c0_174, %c0_175] : memref<128x128xf32, #tpu.memory_space<vmem>>, vector<128x128xf32>
    %cst_176 = arith.constant dense<0.000000e+00> : vector<32x128xf32>
    %257 = tpu.matmul %255, %256, %cst_176 {dimension_numbers = #tpu.dot_dimension_numbers<[1], [0], [0], [1], [0, 0, 1, 1], [], []>} : vector<32x128xf32>, vector<128x128xf32>, vector<32x128xf32> -> vector<32x128xf32>
    %c0_177 = arith.constant 0 : index
    %c0_178 = arith.constant 0 : index
    %258 = vector.load %arg7[%c0_177, %c0_178] : memref<32x128xf32, #tpu.memory_space<vmem>>, vector<32x128xf32>
    %c16_i32_179 = arith.constant 16 : i32
    %259 = tpu.dynamic_rotate %255 by %c16_i32_179 dim 0 : vector<32x128xf32>, i32 -> vector<32x128xf32>
    %260 = arith.mulf %258, %259 : vector<32x128xf32>
    %c0_180 = arith.constant 0 : index
    %c0_181 = arith.constant 0 : index
    %261 = vector.load %arg11[%c0_180, %c0_181] : memref<128x128xf32, #tpu.memory_space<vmem>>, vector<128x128xf32>
    %cst_182 = arith.constant dense<0.000000e+00> : vector<32x128xf32>
    %262 = tpu.matmul %260, %261, %cst_182 {dimension_numbers = #tpu.dot_dimension_numbers<[1], [0], [0], [1], [0, 0, 1, 1], [], []>} : vector<32x128xf32>, vector<128x128xf32>, vector<32x128xf32> -> vector<32x128xf32>
    %263 = arith.addf %257, %262 : vector<32x128xf32>
    %c0_183 = arith.constant 0 : index
    %c0_184 = arith.constant 0 : index
    %264 = vector.load %arg6[%c0_183, %c0_184] : memref<32x128xf32, #tpu.memory_space<vmem>>, vector<32x128xf32>
    %265 = arith.mulf %263, %264 : vector<32x128xf32>
    %c0_185 = arith.constant 0 : index
    %c0_186 = arith.constant 0 : index
    %266 = vector.load %arg9[%c0_185, %c0_186] : memref<32x32xf32, #tpu.memory_space<vmem>>, vector<32x32xf32>
    %cst_187 = arith.constant dense<0.000000e+00> : vector<32x128xf32>
    %267 = tpu.matmul %266, %265, %cst_187 {dimension_numbers = #tpu.dot_dimension_numbers<[1], [0], [0], [1], [0, 0, 1, 1], [], []>} : vector<32x32xf32>, vector<32x128xf32>, vector<32x128xf32> -> vector<32x128xf32>
    %c0_188 = arith.constant 0 : index
    %c0_189 = arith.constant 0 : index
    %268 = vector.load %arg10[%c0_188, %c0_189] : memref<128x128xf32, #tpu.memory_space<vmem>>, vector<128x128xf32>
    %cst_190 = arith.constant dense<0.000000e+00> : vector<32x128xf32>
    %269 = tpu.matmul %267, %268, %cst_190 {dimension_numbers = #tpu.dot_dimension_numbers<[1], [0], [0], [1], [0, 0, 1, 1], [], []>} : vector<32x128xf32>, vector<128x128xf32>, vector<32x128xf32> -> vector<32x128xf32>
    %c0_191 = arith.constant 0 : index
    %c0_192 = arith.constant 0 : index
    %270 = vector.load %arg7[%c0_191, %c0_192] : memref<32x128xf32, #tpu.memory_space<vmem>>, vector<32x128xf32>
    %c16_i32_193 = arith.constant 16 : i32
    %271 = tpu.dynamic_rotate %267 by %c16_i32_193 dim 0 : vector<32x128xf32>, i32 -> vector<32x128xf32>
    %272 = arith.mulf %270, %271 : vector<32x128xf32>
    %c0_194 = arith.constant 0 : index
    %c0_195 = arith.constant 0 : index
    %273 = vector.load %arg11[%c0_194, %c0_195] : memref<128x128xf32, #tpu.memory_space<vmem>>, vector<128x128xf32>
    %cst_196 = arith.constant dense<0.000000e+00> : vector<32x128xf32>
    %274 = tpu.matmul %272, %273, %cst_196 {dimension_numbers = #tpu.dot_dimension_numbers<[1], [0], [0], [1], [0, 0, 1, 1], [], []>} : vector<32x128xf32>, vector<128x128xf32>, vector<32x128xf32> -> vector<32x128xf32>
    %275 = arith.subf %269, %274 : vector<32x128xf32>
    %c0_197 = arith.constant 0 : index
    %c0_198 = arith.constant 0 : index
    %276 = vector.load %arg3[%c0_197, %c0_198] : memref<32x128xf32, #tpu.memory_space<vmem>>, vector<32x128xf32>
    %277 = arith.mulf %275, %276 : vector<32x128xf32>
    %c16_i32_199 = arith.constant 16 : i32
    %278 = tpu.dynamic_rotate %275 by %c16_i32_199 dim 0 : vector<32x128xf32>, i32 -> vector<32x128xf32>
    %c0_200 = arith.constant 0 : index
    %c0_201 = arith.constant 0 : index
    %279 = vector.load %arg5[%c0_200, %c0_201] : memref<32x128xf32, #tpu.memory_space<vmem>>, vector<32x128xf32>
    %280 = arith.mulf %278, %279 : vector<32x128xf32>
    %281 = arith.addf %277, %280 : vector<32x128xf32>
    %c0_202 = arith.constant 0 : index
    %c0_203 = arith.constant 0 : index
    %282 = vector.load %arg12[%c0_202, %c0_203] : memref<128x128xf32, #tpu.memory_space<vmem>>, vector<128x128xf32>
    %cst_204 = arith.constant dense<0.000000e+00> : vector<32x128xf32>
    %283 = tpu.matmul %281, %282, %cst_204 {dimension_numbers = #tpu.dot_dimension_numbers<[1], [0], [0], [1], [0, 0, 1, 1], [], []>} : vector<32x128xf32>, vector<128x128xf32>, vector<32x128xf32> -> vector<32x128xf32>
    %284 = vector.broadcast %0 : f32 to vector<32x128xf32>
    %285 = arith.mulf %284, %247 : vector<32x128xf32>
    %286 = arith.addf %283, %285 : vector<32x128xf32>
    %287 = arith.mulf %247, %286 : vector<32x128xf32>
    %288 = vector.shape_cast %287 : vector<32x128xf32> to vector<1x32x128xf32>
    %cst_205 = arith.constant dense<0.000000e+00> : vector<1xf32>
    %289 = vector.multi_reduction <add>, %288, %cst_205 [1, 2] : vector<1x32x128xf32> to vector<1xf32>
    %290 = vector.shape_cast %289 : vector<1xf32> to vector<1x1x1xf32>
    %291 = vector.extract %290[0, 0, 0] : f32 from vector<1x1x1xf32>
    %292 = arith.divf %243, %291 : f32
    %293 = vector.broadcast %292 : f32 to vector<32x128xf32>
    %294 = arith.mulf %293, %247 : vector<32x128xf32>
    %295 = arith.addf %235, %294 : vector<32x128xf32>
    %296 = vector.broadcast %292 : f32 to vector<32x128xf32>
    %297 = arith.mulf %296, %286 : vector<32x128xf32>
    %298 = arith.subf %238, %297 : vector<32x128xf32>
    %299 = arith.mulf %298, %298 : vector<32x128xf32>
    %300 = vector.shape_cast %299 : vector<32x128xf32> to vector<1x32x128xf32>
    %cst_206 = arith.constant dense<0.000000e+00> : vector<1xf32>
    %301 = vector.multi_reduction <add>, %300, %cst_206 [1, 2] : vector<1x32x128xf32> to vector<1xf32>
    %302 = vector.shape_cast %301 : vector<1xf32> to vector<1x1x1xf32>
    %303 = vector.extract %302[0, 0, 0] : f32 from vector<1x1x1xf32>
    %304 = arith.divf %303, %243 : f32
    %305 = vector.broadcast %304 : f32 to vector<32x128xf32>
    %306 = arith.mulf %305, %247 : vector<32x128xf32>
    %307 = arith.addf %298, %306 : vector<32x128xf32>
    %c5_i32 = arith.constant 5 : i32
    %c0_207 = arith.constant 0 : index
    %c0_208 = arith.constant 0 : index
    %308 = vector.load %arg3[%c0_207, %c0_208] : memref<32x128xf32, #tpu.memory_space<vmem>>, vector<32x128xf32>
    %309 = arith.mulf %307, %308 : vector<32x128xf32>
    %c16_i32_209 = arith.constant 16 : i32
    %310 = tpu.dynamic_rotate %307 by %c16_i32_209 dim 0 : vector<32x128xf32>, i32 -> vector<32x128xf32>
    %c0_210 = arith.constant 0 : index
    %c0_211 = arith.constant 0 : index
    %311 = vector.load %arg4[%c0_210, %c0_211] : memref<32x128xf32, #tpu.memory_space<vmem>>, vector<32x128xf32>
    %312 = arith.mulf %310, %311 : vector<32x128xf32>
    %313 = arith.addf %309, %312 : vector<32x128xf32>
    %c0_212 = arith.constant 0 : index
    %c0_213 = arith.constant 0 : index
    %314 = vector.load %arg8[%c0_212, %c0_213] : memref<32x32xf32, #tpu.memory_space<vmem>>, vector<32x32xf32>
    %cst_214 = arith.constant dense<0.000000e+00> : vector<32x128xf32>
    %315 = tpu.matmul %314, %313, %cst_214 {dimension_numbers = #tpu.dot_dimension_numbers<[1], [0], [0], [1], [0, 0, 1, 1], [], []>} : vector<32x32xf32>, vector<32x128xf32>, vector<32x128xf32> -> vector<32x128xf32>
    %c0_215 = arith.constant 0 : index
    %c0_216 = arith.constant 0 : index
    %316 = vector.load %arg10[%c0_215, %c0_216] : memref<128x128xf32, #tpu.memory_space<vmem>>, vector<128x128xf32>
    %cst_217 = arith.constant dense<0.000000e+00> : vector<32x128xf32>
    %317 = tpu.matmul %315, %316, %cst_217 {dimension_numbers = #tpu.dot_dimension_numbers<[1], [0], [0], [1], [0, 0, 1, 1], [], []>} : vector<32x128xf32>, vector<128x128xf32>, vector<32x128xf32> -> vector<32x128xf32>
    %c0_218 = arith.constant 0 : index
    %c0_219 = arith.constant 0 : index
    %318 = vector.load %arg7[%c0_218, %c0_219] : memref<32x128xf32, #tpu.memory_space<vmem>>, vector<32x128xf32>
    %c16_i32_220 = arith.constant 16 : i32
    %319 = tpu.dynamic_rotate %315 by %c16_i32_220 dim 0 : vector<32x128xf32>, i32 -> vector<32x128xf32>
    %320 = arith.mulf %318, %319 : vector<32x128xf32>
    %c0_221 = arith.constant 0 : index
    %c0_222 = arith.constant 0 : index
    %321 = vector.load %arg11[%c0_221, %c0_222] : memref<128x128xf32, #tpu.memory_space<vmem>>, vector<128x128xf32>
    %cst_223 = arith.constant dense<0.000000e+00> : vector<32x128xf32>
    %322 = tpu.matmul %320, %321, %cst_223 {dimension_numbers = #tpu.dot_dimension_numbers<[1], [0], [0], [1], [0, 0, 1, 1], [], []>} : vector<32x128xf32>, vector<128x128xf32>, vector<32x128xf32> -> vector<32x128xf32>
    %323 = arith.addf %317, %322 : vector<32x128xf32>
    %c0_224 = arith.constant 0 : index
    %c0_225 = arith.constant 0 : index
    %324 = vector.load %arg6[%c0_224, %c0_225] : memref<32x128xf32, #tpu.memory_space<vmem>>, vector<32x128xf32>
    %325 = arith.mulf %323, %324 : vector<32x128xf32>
    %c0_226 = arith.constant 0 : index
    %c0_227 = arith.constant 0 : index
    %326 = vector.load %arg9[%c0_226, %c0_227] : memref<32x32xf32, #tpu.memory_space<vmem>>, vector<32x32xf32>
    %cst_228 = arith.constant dense<0.000000e+00> : vector<32x128xf32>
    %327 = tpu.matmul %326, %325, %cst_228 {dimension_numbers = #tpu.dot_dimension_numbers<[1], [0], [0], [1], [0, 0, 1, 1], [], []>} : vector<32x32xf32>, vector<32x128xf32>, vector<32x128xf32> -> vector<32x128xf32>
    %c0_229 = arith.constant 0 : index
    %c0_230 = arith.constant 0 : index
    %328 = vector.load %arg10[%c0_229, %c0_230] : memref<128x128xf32, #tpu.memory_space<vmem>>, vector<128x128xf32>
    %cst_231 = arith.constant dense<0.000000e+00> : vector<32x128xf32>
    %329 = tpu.matmul %327, %328, %cst_231 {dimension_numbers = #tpu.dot_dimension_numbers<[1], [0], [0], [1], [0, 0, 1, 1], [], []>} : vector<32x128xf32>, vector<128x128xf32>, vector<32x128xf32> -> vector<32x128xf32>
    %c0_232 = arith.constant 0 : index
    %c0_233 = arith.constant 0 : index
    %330 = vector.load %arg7[%c0_232, %c0_233] : memref<32x128xf32, #tpu.memory_space<vmem>>, vector<32x128xf32>
    %c16_i32_234 = arith.constant 16 : i32
    %331 = tpu.dynamic_rotate %327 by %c16_i32_234 dim 0 : vector<32x128xf32>, i32 -> vector<32x128xf32>
    %332 = arith.mulf %330, %331 : vector<32x128xf32>
    %c0_235 = arith.constant 0 : index
    %c0_236 = arith.constant 0 : index
    %333 = vector.load %arg11[%c0_235, %c0_236] : memref<128x128xf32, #tpu.memory_space<vmem>>, vector<128x128xf32>
    %cst_237 = arith.constant dense<0.000000e+00> : vector<32x128xf32>
    %334 = tpu.matmul %332, %333, %cst_237 {dimension_numbers = #tpu.dot_dimension_numbers<[1], [0], [0], [1], [0, 0, 1, 1], [], []>} : vector<32x128xf32>, vector<128x128xf32>, vector<32x128xf32> -> vector<32x128xf32>
    %335 = arith.subf %329, %334 : vector<32x128xf32>
    %c0_238 = arith.constant 0 : index
    %c0_239 = arith.constant 0 : index
    %336 = vector.load %arg3[%c0_238, %c0_239] : memref<32x128xf32, #tpu.memory_space<vmem>>, vector<32x128xf32>
    %337 = arith.mulf %335, %336 : vector<32x128xf32>
    %c16_i32_240 = arith.constant 16 : i32
    %338 = tpu.dynamic_rotate %335 by %c16_i32_240 dim 0 : vector<32x128xf32>, i32 -> vector<32x128xf32>
    %c0_241 = arith.constant 0 : index
    %c0_242 = arith.constant 0 : index
    %339 = vector.load %arg5[%c0_241, %c0_242] : memref<32x128xf32, #tpu.memory_space<vmem>>, vector<32x128xf32>
    %340 = arith.mulf %338, %339 : vector<32x128xf32>
    %341 = arith.addf %337, %340 : vector<32x128xf32>
    %c0_243 = arith.constant 0 : index
    %c0_244 = arith.constant 0 : index
    %342 = vector.load %arg12[%c0_243, %c0_244] : memref<128x128xf32, #tpu.memory_space<vmem>>, vector<128x128xf32>
    %cst_245 = arith.constant dense<0.000000e+00> : vector<32x128xf32>
    %343 = tpu.matmul %341, %342, %cst_245 {dimension_numbers = #tpu.dot_dimension_numbers<[1], [0], [0], [1], [0, 0, 1, 1], [], []>} : vector<32x128xf32>, vector<128x128xf32>, vector<32x128xf32> -> vector<32x128xf32>
    %344 = vector.broadcast %0 : f32 to vector<32x128xf32>
    %345 = arith.mulf %344, %307 : vector<32x128xf32>
    %346 = arith.addf %343, %345 : vector<32x128xf32>
    %347 = arith.mulf %307, %346 : vector<32x128xf32>
    %348 = vector.shape_cast %347 : vector<32x128xf32> to vector<1x32x128xf32>
    %cst_246 = arith.constant dense<0.000000e+00> : vector<1xf32>
    %349 = vector.multi_reduction <add>, %348, %cst_246 [1, 2] : vector<1x32x128xf32> to vector<1xf32>
    %350 = vector.shape_cast %349 : vector<1xf32> to vector<1x1x1xf32>
    %351 = vector.extract %350[0, 0, 0] : f32 from vector<1x1x1xf32>
    %352 = arith.divf %303, %351 : f32
    %353 = vector.broadcast %352 : f32 to vector<32x128xf32>
    %354 = arith.mulf %353, %307 : vector<32x128xf32>
    %355 = arith.addf %295, %354 : vector<32x128xf32>
    %356 = vector.broadcast %352 : f32 to vector<32x128xf32>
    %357 = arith.mulf %356, %346 : vector<32x128xf32>
    %358 = arith.subf %298, %357 : vector<32x128xf32>
    %359 = arith.mulf %358, %358 : vector<32x128xf32>
    %360 = vector.shape_cast %359 : vector<32x128xf32> to vector<1x32x128xf32>
    %cst_247 = arith.constant dense<0.000000e+00> : vector<1xf32>
    %361 = vector.multi_reduction <add>, %360, %cst_247 [1, 2] : vector<1x32x128xf32> to vector<1xf32>
    %362 = vector.shape_cast %361 : vector<1xf32> to vector<1x1x1xf32>
    %363 = vector.extract %362[0, 0, 0] : f32 from vector<1x1x1xf32>
    %364 = arith.divf %363, %303 : f32
    %365 = vector.broadcast %364 : f32 to vector<32x128xf32>
    %366 = arith.mulf %365, %307 : vector<32x128xf32>
    %367 = arith.addf %358, %366 : vector<32x128xf32>
    %c6_i32 = arith.constant 6 : i32
    %c0_248 = arith.constant 0 : index
    %c0_249 = arith.constant 0 : index
    %368 = vector.load %arg3[%c0_248, %c0_249] : memref<32x128xf32, #tpu.memory_space<vmem>>, vector<32x128xf32>
    %369 = arith.mulf %367, %368 : vector<32x128xf32>
    %c16_i32_250 = arith.constant 16 : i32
    %370 = tpu.dynamic_rotate %367 by %c16_i32_250 dim 0 : vector<32x128xf32>, i32 -> vector<32x128xf32>
    %c0_251 = arith.constant 0 : index
    %c0_252 = arith.constant 0 : index
    %371 = vector.load %arg4[%c0_251, %c0_252] : memref<32x128xf32, #tpu.memory_space<vmem>>, vector<32x128xf32>
    %372 = arith.mulf %370, %371 : vector<32x128xf32>
    %373 = arith.addf %369, %372 : vector<32x128xf32>
    %c0_253 = arith.constant 0 : index
    %c0_254 = arith.constant 0 : index
    %374 = vector.load %arg8[%c0_253, %c0_254] : memref<32x32xf32, #tpu.memory_space<vmem>>, vector<32x32xf32>
    %cst_255 = arith.constant dense<0.000000e+00> : vector<32x128xf32>
    %375 = tpu.matmul %374, %373, %cst_255 {dimension_numbers = #tpu.dot_dimension_numbers<[1], [0], [0], [1], [0, 0, 1, 1], [], []>} : vector<32x32xf32>, vector<32x128xf32>, vector<32x128xf32> -> vector<32x128xf32>
    %c0_256 = arith.constant 0 : index
    %c0_257 = arith.constant 0 : index
    %376 = vector.load %arg10[%c0_256, %c0_257] : memref<128x128xf32, #tpu.memory_space<vmem>>, vector<128x128xf32>
    %cst_258 = arith.constant dense<0.000000e+00> : vector<32x128xf32>
    %377 = tpu.matmul %375, %376, %cst_258 {dimension_numbers = #tpu.dot_dimension_numbers<[1], [0], [0], [1], [0, 0, 1, 1], [], []>} : vector<32x128xf32>, vector<128x128xf32>, vector<32x128xf32> -> vector<32x128xf32>
    %c0_259 = arith.constant 0 : index
    %c0_260 = arith.constant 0 : index
    %378 = vector.load %arg7[%c0_259, %c0_260] : memref<32x128xf32, #tpu.memory_space<vmem>>, vector<32x128xf32>
    %c16_i32_261 = arith.constant 16 : i32
    %379 = tpu.dynamic_rotate %375 by %c16_i32_261 dim 0 : vector<32x128xf32>, i32 -> vector<32x128xf32>
    %380 = arith.mulf %378, %379 : vector<32x128xf32>
    %c0_262 = arith.constant 0 : index
    %c0_263 = arith.constant 0 : index
    %381 = vector.load %arg11[%c0_262, %c0_263] : memref<128x128xf32, #tpu.memory_space<vmem>>, vector<128x128xf32>
    %cst_264 = arith.constant dense<0.000000e+00> : vector<32x128xf32>
    %382 = tpu.matmul %380, %381, %cst_264 {dimension_numbers = #tpu.dot_dimension_numbers<[1], [0], [0], [1], [0, 0, 1, 1], [], []>} : vector<32x128xf32>, vector<128x128xf32>, vector<32x128xf32> -> vector<32x128xf32>
    %383 = arith.addf %377, %382 : vector<32x128xf32>
    %c0_265 = arith.constant 0 : index
    %c0_266 = arith.constant 0 : index
    %384 = vector.load %arg6[%c0_265, %c0_266] : memref<32x128xf32, #tpu.memory_space<vmem>>, vector<32x128xf32>
    %385 = arith.mulf %383, %384 : vector<32x128xf32>
    %c0_267 = arith.constant 0 : index
    %c0_268 = arith.constant 0 : index
    %386 = vector.load %arg9[%c0_267, %c0_268] : memref<32x32xf32, #tpu.memory_space<vmem>>, vector<32x32xf32>
    %cst_269 = arith.constant dense<0.000000e+00> : vector<32x128xf32>
    %387 = tpu.matmul %386, %385, %cst_269 {dimension_numbers = #tpu.dot_dimension_numbers<[1], [0], [0], [1], [0, 0, 1, 1], [], []>} : vector<32x32xf32>, vector<32x128xf32>, vector<32x128xf32> -> vector<32x128xf32>
    %c0_270 = arith.constant 0 : index
    %c0_271 = arith.constant 0 : index
    %388 = vector.load %arg10[%c0_270, %c0_271] : memref<128x128xf32, #tpu.memory_space<vmem>>, vector<128x128xf32>
    %cst_272 = arith.constant dense<0.000000e+00> : vector<32x128xf32>
    %389 = tpu.matmul %387, %388, %cst_272 {dimension_numbers = #tpu.dot_dimension_numbers<[1], [0], [0], [1], [0, 0, 1, 1], [], []>} : vector<32x128xf32>, vector<128x128xf32>, vector<32x128xf32> -> vector<32x128xf32>
    %c0_273 = arith.constant 0 : index
    %c0_274 = arith.constant 0 : index
    %390 = vector.load %arg7[%c0_273, %c0_274] : memref<32x128xf32, #tpu.memory_space<vmem>>, vector<32x128xf32>
    %c16_i32_275 = arith.constant 16 : i32
    %391 = tpu.dynamic_rotate %387 by %c16_i32_275 dim 0 : vector<32x128xf32>, i32 -> vector<32x128xf32>
    %392 = arith.mulf %390, %391 : vector<32x128xf32>
    %c0_276 = arith.constant 0 : index
    %c0_277 = arith.constant 0 : index
    %393 = vector.load %arg11[%c0_276, %c0_277] : memref<128x128xf32, #tpu.memory_space<vmem>>, vector<128x128xf32>
    %cst_278 = arith.constant dense<0.000000e+00> : vector<32x128xf32>
    %394 = tpu.matmul %392, %393, %cst_278 {dimension_numbers = #tpu.dot_dimension_numbers<[1], [0], [0], [1], [0, 0, 1, 1], [], []>} : vector<32x128xf32>, vector<128x128xf32>, vector<32x128xf32> -> vector<32x128xf32>
    %395 = arith.subf %389, %394 : vector<32x128xf32>
    %c0_279 = arith.constant 0 : index
    %c0_280 = arith.constant 0 : index
    %396 = vector.load %arg3[%c0_279, %c0_280] : memref<32x128xf32, #tpu.memory_space<vmem>>, vector<32x128xf32>
    %397 = arith.mulf %395, %396 : vector<32x128xf32>
    %c16_i32_281 = arith.constant 16 : i32
    %398 = tpu.dynamic_rotate %395 by %c16_i32_281 dim 0 : vector<32x128xf32>, i32 -> vector<32x128xf32>
    %c0_282 = arith.constant 0 : index
    %c0_283 = arith.constant 0 : index
    %399 = vector.load %arg5[%c0_282, %c0_283] : memref<32x128xf32, #tpu.memory_space<vmem>>, vector<32x128xf32>
    %400 = arith.mulf %398, %399 : vector<32x128xf32>
    %401 = arith.addf %397, %400 : vector<32x128xf32>
    %c0_284 = arith.constant 0 : index
    %c0_285 = arith.constant 0 : index
    %402 = vector.load %arg12[%c0_284, %c0_285] : memref<128x128xf32, #tpu.memory_space<vmem>>, vector<128x128xf32>
    %cst_286 = arith.constant dense<0.000000e+00> : vector<32x128xf32>
    %403 = tpu.matmul %401, %402, %cst_286 {dimension_numbers = #tpu.dot_dimension_numbers<[1], [0], [0], [1], [0, 0, 1, 1], [], []>} : vector<32x128xf32>, vector<128x128xf32>, vector<32x128xf32> -> vector<32x128xf32>
    %404 = vector.broadcast %0 : f32 to vector<32x128xf32>
    %405 = arith.mulf %404, %367 : vector<32x128xf32>
    %406 = arith.addf %403, %405 : vector<32x128xf32>
    %407 = arith.mulf %367, %406 : vector<32x128xf32>
    %408 = vector.shape_cast %407 : vector<32x128xf32> to vector<1x32x128xf32>
    %cst_287 = arith.constant dense<0.000000e+00> : vector<1xf32>
    %409 = vector.multi_reduction <add>, %408, %cst_287 [1, 2] : vector<1x32x128xf32> to vector<1xf32>
    %410 = vector.shape_cast %409 : vector<1xf32> to vector<1x1x1xf32>
    %411 = vector.extract %410[0, 0, 0] : f32 from vector<1x1x1xf32>
    %412 = arith.divf %363, %411 : f32
    %413 = vector.broadcast %412 : f32 to vector<32x128xf32>
    %414 = arith.mulf %413, %367 : vector<32x128xf32>
    %415 = arith.addf %355, %414 : vector<32x128xf32>
    %416 = vector.broadcast %412 : f32 to vector<32x128xf32>
    %417 = arith.mulf %416, %406 : vector<32x128xf32>
    %418 = arith.subf %358, %417 : vector<32x128xf32>
    %419 = arith.mulf %418, %418 : vector<32x128xf32>
    %420 = vector.shape_cast %419 : vector<32x128xf32> to vector<1x32x128xf32>
    %cst_288 = arith.constant dense<0.000000e+00> : vector<1xf32>
    %421 = vector.multi_reduction <add>, %420, %cst_288 [1, 2] : vector<1x32x128xf32> to vector<1xf32>
    %422 = vector.shape_cast %421 : vector<1xf32> to vector<1x1x1xf32>
    %423 = vector.extract %422[0, 0, 0] : f32 from vector<1x1x1xf32>
    %424 = arith.divf %423, %363 : f32
    %425 = vector.broadcast %424 : f32 to vector<32x128xf32>
    %426 = arith.mulf %425, %367 : vector<32x128xf32>
    %427 = arith.addf %418, %426 : vector<32x128xf32>
    %c7_i32 = arith.constant 7 : i32
    %c0_289 = arith.constant 0 : index
    %c0_290 = arith.constant 0 : index
    %428 = vector.load %arg3[%c0_289, %c0_290] : memref<32x128xf32, #tpu.memory_space<vmem>>, vector<32x128xf32>
    %429 = arith.mulf %427, %428 : vector<32x128xf32>
    %c16_i32_291 = arith.constant 16 : i32
    %430 = tpu.dynamic_rotate %427 by %c16_i32_291 dim 0 : vector<32x128xf32>, i32 -> vector<32x128xf32>
    %c0_292 = arith.constant 0 : index
    %c0_293 = arith.constant 0 : index
    %431 = vector.load %arg4[%c0_292, %c0_293] : memref<32x128xf32, #tpu.memory_space<vmem>>, vector<32x128xf32>
    %432 = arith.mulf %430, %431 : vector<32x128xf32>
    %433 = arith.addf %429, %432 : vector<32x128xf32>
    %c0_294 = arith.constant 0 : index
    %c0_295 = arith.constant 0 : index
    %434 = vector.load %arg8[%c0_294, %c0_295] : memref<32x32xf32, #tpu.memory_space<vmem>>, vector<32x32xf32>
    %cst_296 = arith.constant dense<0.000000e+00> : vector<32x128xf32>
    %435 = tpu.matmul %434, %433, %cst_296 {dimension_numbers = #tpu.dot_dimension_numbers<[1], [0], [0], [1], [0, 0, 1, 1], [], []>} : vector<32x32xf32>, vector<32x128xf32>, vector<32x128xf32> -> vector<32x128xf32>
    %c0_297 = arith.constant 0 : index
    %c0_298 = arith.constant 0 : index
    %436 = vector.load %arg10[%c0_297, %c0_298] : memref<128x128xf32, #tpu.memory_space<vmem>>, vector<128x128xf32>
    %cst_299 = arith.constant dense<0.000000e+00> : vector<32x128xf32>
    %437 = tpu.matmul %435, %436, %cst_299 {dimension_numbers = #tpu.dot_dimension_numbers<[1], [0], [0], [1], [0, 0, 1, 1], [], []>} : vector<32x128xf32>, vector<128x128xf32>, vector<32x128xf32> -> vector<32x128xf32>
    %c0_300 = arith.constant 0 : index
    %c0_301 = arith.constant 0 : index
    %438 = vector.load %arg7[%c0_300, %c0_301] : memref<32x128xf32, #tpu.memory_space<vmem>>, vector<32x128xf32>
    %c16_i32_302 = arith.constant 16 : i32
    %439 = tpu.dynamic_rotate %435 by %c16_i32_302 dim 0 : vector<32x128xf32>, i32 -> vector<32x128xf32>
    %440 = arith.mulf %438, %439 : vector<32x128xf32>
    %c0_303 = arith.constant 0 : index
    %c0_304 = arith.constant 0 : index
    %441 = vector.load %arg11[%c0_303, %c0_304] : memref<128x128xf32, #tpu.memory_space<vmem>>, vector<128x128xf32>
    %cst_305 = arith.constant dense<0.000000e+00> : vector<32x128xf32>
    %442 = tpu.matmul %440, %441, %cst_305 {dimension_numbers = #tpu.dot_dimension_numbers<[1], [0], [0], [1], [0, 0, 1, 1], [], []>} : vector<32x128xf32>, vector<128x128xf32>, vector<32x128xf32> -> vector<32x128xf32>
    %443 = arith.addf %437, %442 : vector<32x128xf32>
    %c0_306 = arith.constant 0 : index
    %c0_307 = arith.constant 0 : index
    %444 = vector.load %arg6[%c0_306, %c0_307] : memref<32x128xf32, #tpu.memory_space<vmem>>, vector<32x128xf32>
    %445 = arith.mulf %443, %444 : vector<32x128xf32>
    %c0_308 = arith.constant 0 : index
    %c0_309 = arith.constant 0 : index
    %446 = vector.load %arg9[%c0_308, %c0_309] : memref<32x32xf32, #tpu.memory_space<vmem>>, vector<32x32xf32>
    %cst_310 = arith.constant dense<0.000000e+00> : vector<32x128xf32>
    %447 = tpu.matmul %446, %445, %cst_310 {dimension_numbers = #tpu.dot_dimension_numbers<[1], [0], [0], [1], [0, 0, 1, 1], [], []>} : vector<32x32xf32>, vector<32x128xf32>, vector<32x128xf32> -> vector<32x128xf32>
    %c0_311 = arith.constant 0 : index
    %c0_312 = arith.constant 0 : index
    %448 = vector.load %arg10[%c0_311, %c0_312] : memref<128x128xf32, #tpu.memory_space<vmem>>, vector<128x128xf32>
    %cst_313 = arith.constant dense<0.000000e+00> : vector<32x128xf32>
    %449 = tpu.matmul %447, %448, %cst_313 {dimension_numbers = #tpu.dot_dimension_numbers<[1], [0], [0], [1], [0, 0, 1, 1], [], []>} : vector<32x128xf32>, vector<128x128xf32>, vector<32x128xf32> -> vector<32x128xf32>
    %c0_314 = arith.constant 0 : index
    %c0_315 = arith.constant 0 : index
    %450 = vector.load %arg7[%c0_314, %c0_315] : memref<32x128xf32, #tpu.memory_space<vmem>>, vector<32x128xf32>
    %c16_i32_316 = arith.constant 16 : i32
    %451 = tpu.dynamic_rotate %447 by %c16_i32_316 dim 0 : vector<32x128xf32>, i32 -> vector<32x128xf32>
    %452 = arith.mulf %450, %451 : vector<32x128xf32>
    %c0_317 = arith.constant 0 : index
    %c0_318 = arith.constant 0 : index
    %453 = vector.load %arg11[%c0_317, %c0_318] : memref<128x128xf32, #tpu.memory_space<vmem>>, vector<128x128xf32>
    %cst_319 = arith.constant dense<0.000000e+00> : vector<32x128xf32>
    %454 = tpu.matmul %452, %453, %cst_319 {dimension_numbers = #tpu.dot_dimension_numbers<[1], [0], [0], [1], [0, 0, 1, 1], [], []>} : vector<32x128xf32>, vector<128x128xf32>, vector<32x128xf32> -> vector<32x128xf32>
    %455 = arith.subf %449, %454 : vector<32x128xf32>
    %c0_320 = arith.constant 0 : index
    %c0_321 = arith.constant 0 : index
    %456 = vector.load %arg3[%c0_320, %c0_321] : memref<32x128xf32, #tpu.memory_space<vmem>>, vector<32x128xf32>
    %457 = arith.mulf %455, %456 : vector<32x128xf32>
    %c16_i32_322 = arith.constant 16 : i32
    %458 = tpu.dynamic_rotate %455 by %c16_i32_322 dim 0 : vector<32x128xf32>, i32 -> vector<32x128xf32>
    %c0_323 = arith.constant 0 : index
    %c0_324 = arith.constant 0 : index
    %459 = vector.load %arg5[%c0_323, %c0_324] : memref<32x128xf32, #tpu.memory_space<vmem>>, vector<32x128xf32>
    %460 = arith.mulf %458, %459 : vector<32x128xf32>
    %461 = arith.addf %457, %460 : vector<32x128xf32>
    %c0_325 = arith.constant 0 : index
    %c0_326 = arith.constant 0 : index
    %462 = vector.load %arg12[%c0_325, %c0_326] : memref<128x128xf32, #tpu.memory_space<vmem>>, vector<128x128xf32>
    %cst_327 = arith.constant dense<0.000000e+00> : vector<32x128xf32>
    %463 = tpu.matmul %461, %462, %cst_327 {dimension_numbers = #tpu.dot_dimension_numbers<[1], [0], [0], [1], [0, 0, 1, 1], [], []>} : vector<32x128xf32>, vector<128x128xf32>, vector<32x128xf32> -> vector<32x128xf32>
    %464 = vector.broadcast %0 : f32 to vector<32x128xf32>
    %465 = arith.mulf %464, %427 : vector<32x128xf32>
    %466 = arith.addf %463, %465 : vector<32x128xf32>
    %467 = arith.mulf %427, %466 : vector<32x128xf32>
    %468 = vector.shape_cast %467 : vector<32x128xf32> to vector<1x32x128xf32>
    %cst_328 = arith.constant dense<0.000000e+00> : vector<1xf32>
    %469 = vector.multi_reduction <add>, %468, %cst_328 [1, 2] : vector<1x32x128xf32> to vector<1xf32>
    %470 = vector.shape_cast %469 : vector<1xf32> to vector<1x1x1xf32>
    %471 = vector.extract %470[0, 0, 0] : f32 from vector<1x1x1xf32>
    %472 = arith.divf %423, %471 : f32
    %473 = vector.broadcast %472 : f32 to vector<32x128xf32>
    %474 = arith.mulf %473, %427 : vector<32x128xf32>
    %475 = arith.addf %415, %474 : vector<32x128xf32>
    %476 = vector.broadcast %472 : f32 to vector<32x128xf32>
    %477 = arith.mulf %476, %466 : vector<32x128xf32>
    %478 = arith.subf %418, %477 : vector<32x128xf32>
    %479 = arith.mulf %478, %478 : vector<32x128xf32>
    %480 = vector.shape_cast %479 : vector<32x128xf32> to vector<1x32x128xf32>
    %cst_329 = arith.constant dense<0.000000e+00> : vector<1xf32>
    %481 = vector.multi_reduction <add>, %480, %cst_329 [1, 2] : vector<1x32x128xf32> to vector<1xf32>
    %482 = vector.shape_cast %481 : vector<1xf32> to vector<1x1x1xf32>
    %483 = vector.extract %482[0, 0, 0] : f32 from vector<1x1x1xf32>
    %484 = arith.divf %483, %423 : f32
    %485 = vector.broadcast %484 : f32 to vector<32x128xf32>
    %486 = arith.mulf %485, %427 : vector<32x128xf32>
    %487 = arith.addf %478, %486 : vector<32x128xf32>
    %c8_i32 = arith.constant 8 : i32
    %c0_330 = arith.constant 0 : index
    %c0_331 = arith.constant 0 : index
    %488 = vector.load %arg3[%c0_330, %c0_331] : memref<32x128xf32, #tpu.memory_space<vmem>>, vector<32x128xf32>
    %489 = arith.mulf %487, %488 : vector<32x128xf32>
    %c16_i32_332 = arith.constant 16 : i32
    %490 = tpu.dynamic_rotate %487 by %c16_i32_332 dim 0 : vector<32x128xf32>, i32 -> vector<32x128xf32>
    %c0_333 = arith.constant 0 : index
    %c0_334 = arith.constant 0 : index
    %491 = vector.load %arg4[%c0_333, %c0_334] : memref<32x128xf32, #tpu.memory_space<vmem>>, vector<32x128xf32>
    %492 = arith.mulf %490, %491 : vector<32x128xf32>
    %493 = arith.addf %489, %492 : vector<32x128xf32>
    %c0_335 = arith.constant 0 : index
    %c0_336 = arith.constant 0 : index
    %494 = vector.load %arg8[%c0_335, %c0_336] : memref<32x32xf32, #tpu.memory_space<vmem>>, vector<32x32xf32>
    %cst_337 = arith.constant dense<0.000000e+00> : vector<32x128xf32>
    %495 = tpu.matmul %494, %493, %cst_337 {dimension_numbers = #tpu.dot_dimension_numbers<[1], [0], [0], [1], [0, 0, 1, 1], [], []>} : vector<32x32xf32>, vector<32x128xf32>, vector<32x128xf32> -> vector<32x128xf32>
    %c0_338 = arith.constant 0 : index
    %c0_339 = arith.constant 0 : index
    %496 = vector.load %arg10[%c0_338, %c0_339] : memref<128x128xf32, #tpu.memory_space<vmem>>, vector<128x128xf32>
    %cst_340 = arith.constant dense<0.000000e+00> : vector<32x128xf32>
    %497 = tpu.matmul %495, %496, %cst_340 {dimension_numbers = #tpu.dot_dimension_numbers<[1], [0], [0], [1], [0, 0, 1, 1], [], []>} : vector<32x128xf32>, vector<128x128xf32>, vector<32x128xf32> -> vector<32x128xf32>
    %c0_341 = arith.constant 0 : index
    %c0_342 = arith.constant 0 : index
    %498 = vector.load %arg7[%c0_341, %c0_342] : memref<32x128xf32, #tpu.memory_space<vmem>>, vector<32x128xf32>
    %c16_i32_343 = arith.constant 16 : i32
    %499 = tpu.dynamic_rotate %495 by %c16_i32_343 dim 0 : vector<32x128xf32>, i32 -> vector<32x128xf32>
    %500 = arith.mulf %498, %499 : vector<32x128xf32>
    %c0_344 = arith.constant 0 : index
    %c0_345 = arith.constant 0 : index
    %501 = vector.load %arg11[%c0_344, %c0_345] : memref<128x128xf32, #tpu.memory_space<vmem>>, vector<128x128xf32>
    %cst_346 = arith.constant dense<0.000000e+00> : vector<32x128xf32>
    %502 = tpu.matmul %500, %501, %cst_346 {dimension_numbers = #tpu.dot_dimension_numbers<[1], [0], [0], [1], [0, 0, 1, 1], [], []>} : vector<32x128xf32>, vector<128x128xf32>, vector<32x128xf32> -> vector<32x128xf32>
    %503 = arith.addf %497, %502 : vector<32x128xf32>
    %c0_347 = arith.constant 0 : index
    %c0_348 = arith.constant 0 : index
    %504 = vector.load %arg6[%c0_347, %c0_348] : memref<32x128xf32, #tpu.memory_space<vmem>>, vector<32x128xf32>
    %505 = arith.mulf %503, %504 : vector<32x128xf32>
    %c0_349 = arith.constant 0 : index
    %c0_350 = arith.constant 0 : index
    %506 = vector.load %arg9[%c0_349, %c0_350] : memref<32x32xf32, #tpu.memory_space<vmem>>, vector<32x32xf32>
    %cst_351 = arith.constant dense<0.000000e+00> : vector<32x128xf32>
    %507 = tpu.matmul %506, %505, %cst_351 {dimension_numbers = #tpu.dot_dimension_numbers<[1], [0], [0], [1], [0, 0, 1, 1], [], []>} : vector<32x32xf32>, vector<32x128xf32>, vector<32x128xf32> -> vector<32x128xf32>
    %c0_352 = arith.constant 0 : index
    %c0_353 = arith.constant 0 : index
    %508 = vector.load %arg10[%c0_352, %c0_353] : memref<128x128xf32, #tpu.memory_space<vmem>>, vector<128x128xf32>
    %cst_354 = arith.constant dense<0.000000e+00> : vector<32x128xf32>
    %509 = tpu.matmul %507, %508, %cst_354 {dimension_numbers = #tpu.dot_dimension_numbers<[1], [0], [0], [1], [0, 0, 1, 1], [], []>} : vector<32x128xf32>, vector<128x128xf32>, vector<32x128xf32> -> vector<32x128xf32>
    %c0_355 = arith.constant 0 : index
    %c0_356 = arith.constant 0 : index
    %510 = vector.load %arg7[%c0_355, %c0_356] : memref<32x128xf32, #tpu.memory_space<vmem>>, vector<32x128xf32>
    %c16_i32_357 = arith.constant 16 : i32
    %511 = tpu.dynamic_rotate %507 by %c16_i32_357 dim 0 : vector<32x128xf32>, i32 -> vector<32x128xf32>
    %512 = arith.mulf %510, %511 : vector<32x128xf32>
    %c0_358 = arith.constant 0 : index
    %c0_359 = arith.constant 0 : index
    %513 = vector.load %arg11[%c0_358, %c0_359] : memref<128x128xf32, #tpu.memory_space<vmem>>, vector<128x128xf32>
    %cst_360 = arith.constant dense<0.000000e+00> : vector<32x128xf32>
    %514 = tpu.matmul %512, %513, %cst_360 {dimension_numbers = #tpu.dot_dimension_numbers<[1], [0], [0], [1], [0, 0, 1, 1], [], []>} : vector<32x128xf32>, vector<128x128xf32>, vector<32x128xf32> -> vector<32x128xf32>
    %515 = arith.subf %509, %514 : vector<32x128xf32>
    %c0_361 = arith.constant 0 : index
    %c0_362 = arith.constant 0 : index
    %516 = vector.load %arg3[%c0_361, %c0_362] : memref<32x128xf32, #tpu.memory_space<vmem>>, vector<32x128xf32>
    %517 = arith.mulf %515, %516 : vector<32x128xf32>
    %c16_i32_363 = arith.constant 16 : i32
    %518 = tpu.dynamic_rotate %515 by %c16_i32_363 dim 0 : vector<32x128xf32>, i32 -> vector<32x128xf32>
    %c0_364 = arith.constant 0 : index
    %c0_365 = arith.constant 0 : index
    %519 = vector.load %arg5[%c0_364, %c0_365] : memref<32x128xf32, #tpu.memory_space<vmem>>, vector<32x128xf32>
    %520 = arith.mulf %518, %519 : vector<32x128xf32>
    %521 = arith.addf %517, %520 : vector<32x128xf32>
    %c0_366 = arith.constant 0 : index
    %c0_367 = arith.constant 0 : index
    %522 = vector.load %arg12[%c0_366, %c0_367] : memref<128x128xf32, #tpu.memory_space<vmem>>, vector<128x128xf32>
    %cst_368 = arith.constant dense<0.000000e+00> : vector<32x128xf32>
    %523 = tpu.matmul %521, %522, %cst_368 {dimension_numbers = #tpu.dot_dimension_numbers<[1], [0], [0], [1], [0, 0, 1, 1], [], []>} : vector<32x128xf32>, vector<128x128xf32>, vector<32x128xf32> -> vector<32x128xf32>
    %524 = vector.broadcast %0 : f32 to vector<32x128xf32>
    %525 = arith.mulf %524, %487 : vector<32x128xf32>
    %526 = arith.addf %523, %525 : vector<32x128xf32>
    %527 = arith.mulf %487, %526 : vector<32x128xf32>
    %528 = vector.shape_cast %527 : vector<32x128xf32> to vector<1x32x128xf32>
    %cst_369 = arith.constant dense<0.000000e+00> : vector<1xf32>
    %529 = vector.multi_reduction <add>, %528, %cst_369 [1, 2] : vector<1x32x128xf32> to vector<1xf32>
    %530 = vector.shape_cast %529 : vector<1xf32> to vector<1x1x1xf32>
    %531 = vector.extract %530[0, 0, 0] : f32 from vector<1x1x1xf32>
    %532 = arith.divf %483, %531 : f32
    %533 = vector.broadcast %532 : f32 to vector<32x128xf32>
    %534 = arith.mulf %533, %487 : vector<32x128xf32>
    %535 = arith.addf %475, %534 : vector<32x128xf32>
    %536 = vector.broadcast %532 : f32 to vector<32x128xf32>
    %537 = arith.mulf %536, %526 : vector<32x128xf32>
    %538 = arith.subf %478, %537 : vector<32x128xf32>
    %539 = arith.mulf %538, %538 : vector<32x128xf32>
    %540 = vector.shape_cast %539 : vector<32x128xf32> to vector<1x32x128xf32>
    %cst_370 = arith.constant dense<0.000000e+00> : vector<1xf32>
    %541 = vector.multi_reduction <add>, %540, %cst_370 [1, 2] : vector<1x32x128xf32> to vector<1xf32>
    %542 = vector.shape_cast %541 : vector<1xf32> to vector<1x1x1xf32>
    %543 = vector.extract %542[0, 0, 0] : f32 from vector<1x1x1xf32>
    %544 = arith.divf %543, %483 : f32
    %545 = vector.broadcast %544 : f32 to vector<32x128xf32>
    %546 = arith.mulf %545, %487 : vector<32x128xf32>
    %547 = arith.addf %538, %546 : vector<32x128xf32>
    %c9_i32 = arith.constant 9 : i32
    %c0_371 = arith.constant 0 : index
    %c0_372 = arith.constant 0 : index
    %548 = vector.load %arg3[%c0_371, %c0_372] : memref<32x128xf32, #tpu.memory_space<vmem>>, vector<32x128xf32>
    %549 = arith.mulf %547, %548 : vector<32x128xf32>
    %c16_i32_373 = arith.constant 16 : i32
    %550 = tpu.dynamic_rotate %547 by %c16_i32_373 dim 0 : vector<32x128xf32>, i32 -> vector<32x128xf32>
    %c0_374 = arith.constant 0 : index
    %c0_375 = arith.constant 0 : index
    %551 = vector.load %arg4[%c0_374, %c0_375] : memref<32x128xf32, #tpu.memory_space<vmem>>, vector<32x128xf32>
    %552 = arith.mulf %550, %551 : vector<32x128xf32>
    %553 = arith.addf %549, %552 : vector<32x128xf32>
    %c0_376 = arith.constant 0 : index
    %c0_377 = arith.constant 0 : index
    %554 = vector.load %arg8[%c0_376, %c0_377] : memref<32x32xf32, #tpu.memory_space<vmem>>, vector<32x32xf32>
    %cst_378 = arith.constant dense<0.000000e+00> : vector<32x128xf32>
    %555 = tpu.matmul %554, %553, %cst_378 {dimension_numbers = #tpu.dot_dimension_numbers<[1], [0], [0], [1], [0, 0, 1, 1], [], []>} : vector<32x32xf32>, vector<32x128xf32>, vector<32x128xf32> -> vector<32x128xf32>
    %c0_379 = arith.constant 0 : index
    %c0_380 = arith.constant 0 : index
    %556 = vector.load %arg10[%c0_379, %c0_380] : memref<128x128xf32, #tpu.memory_space<vmem>>, vector<128x128xf32>
    %cst_381 = arith.constant dense<0.000000e+00> : vector<32x128xf32>
    %557 = tpu.matmul %555, %556, %cst_381 {dimension_numbers = #tpu.dot_dimension_numbers<[1], [0], [0], [1], [0, 0, 1, 1], [], []>} : vector<32x128xf32>, vector<128x128xf32>, vector<32x128xf32> -> vector<32x128xf32>
    %c0_382 = arith.constant 0 : index
    %c0_383 = arith.constant 0 : index
    %558 = vector.load %arg7[%c0_382, %c0_383] : memref<32x128xf32, #tpu.memory_space<vmem>>, vector<32x128xf32>
    %c16_i32_384 = arith.constant 16 : i32
    %559 = tpu.dynamic_rotate %555 by %c16_i32_384 dim 0 : vector<32x128xf32>, i32 -> vector<32x128xf32>
    %560 = arith.mulf %558, %559 : vector<32x128xf32>
    %c0_385 = arith.constant 0 : index
    %c0_386 = arith.constant 0 : index
    %561 = vector.load %arg11[%c0_385, %c0_386] : memref<128x128xf32, #tpu.memory_space<vmem>>, vector<128x128xf32>
    %cst_387 = arith.constant dense<0.000000e+00> : vector<32x128xf32>
    %562 = tpu.matmul %560, %561, %cst_387 {dimension_numbers = #tpu.dot_dimension_numbers<[1], [0], [0], [1], [0, 0, 1, 1], [], []>} : vector<32x128xf32>, vector<128x128xf32>, vector<32x128xf32> -> vector<32x128xf32>
    %563 = arith.addf %557, %562 : vector<32x128xf32>
    %c0_388 = arith.constant 0 : index
    %c0_389 = arith.constant 0 : index
    %564 = vector.load %arg6[%c0_388, %c0_389] : memref<32x128xf32, #tpu.memory_space<vmem>>, vector<32x128xf32>
    %565 = arith.mulf %563, %564 : vector<32x128xf32>
    %c0_390 = arith.constant 0 : index
    %c0_391 = arith.constant 0 : index
    %566 = vector.load %arg9[%c0_390, %c0_391] : memref<32x32xf32, #tpu.memory_space<vmem>>, vector<32x32xf32>
    %cst_392 = arith.constant dense<0.000000e+00> : vector<32x128xf32>
    %567 = tpu.matmul %566, %565, %cst_392 {dimension_numbers = #tpu.dot_dimension_numbers<[1], [0], [0], [1], [0, 0, 1, 1], [], []>} : vector<32x32xf32>, vector<32x128xf32>, vector<32x128xf32> -> vector<32x128xf32>
    %c0_393 = arith.constant 0 : index
    %c0_394 = arith.constant 0 : index
    %568 = vector.load %arg10[%c0_393, %c0_394] : memref<128x128xf32, #tpu.memory_space<vmem>>, vector<128x128xf32>
    %cst_395 = arith.constant dense<0.000000e+00> : vector<32x128xf32>
    %569 = tpu.matmul %567, %568, %cst_395 {dimension_numbers = #tpu.dot_dimension_numbers<[1], [0], [0], [1], [0, 0, 1, 1], [], []>} : vector<32x128xf32>, vector<128x128xf32>, vector<32x128xf32> -> vector<32x128xf32>
    %c0_396 = arith.constant 0 : index
    %c0_397 = arith.constant 0 : index
    %570 = vector.load %arg7[%c0_396, %c0_397] : memref<32x128xf32, #tpu.memory_space<vmem>>, vector<32x128xf32>
    %c16_i32_398 = arith.constant 16 : i32
    %571 = tpu.dynamic_rotate %567 by %c16_i32_398 dim 0 : vector<32x128xf32>, i32 -> vector<32x128xf32>
    %572 = arith.mulf %570, %571 : vector<32x128xf32>
    %c0_399 = arith.constant 0 : index
    %c0_400 = arith.constant 0 : index
    %573 = vector.load %arg11[%c0_399, %c0_400] : memref<128x128xf32, #tpu.memory_space<vmem>>, vector<128x128xf32>
    %cst_401 = arith.constant dense<0.000000e+00> : vector<32x128xf32>
    %574 = tpu.matmul %572, %573, %cst_401 {dimension_numbers = #tpu.dot_dimension_numbers<[1], [0], [0], [1], [0, 0, 1, 1], [], []>} : vector<32x128xf32>, vector<128x128xf32>, vector<32x128xf32> -> vector<32x128xf32>
    %575 = arith.subf %569, %574 : vector<32x128xf32>
    %c0_402 = arith.constant 0 : index
    %c0_403 = arith.constant 0 : index
    %576 = vector.load %arg3[%c0_402, %c0_403] : memref<32x128xf32, #tpu.memory_space<vmem>>, vector<32x128xf32>
    %577 = arith.mulf %575, %576 : vector<32x128xf32>
    %c16_i32_404 = arith.constant 16 : i32
    %578 = tpu.dynamic_rotate %575 by %c16_i32_404 dim 0 : vector<32x128xf32>, i32 -> vector<32x128xf32>
    %c0_405 = arith.constant 0 : index
    %c0_406 = arith.constant 0 : index
    %579 = vector.load %arg5[%c0_405, %c0_406] : memref<32x128xf32, #tpu.memory_space<vmem>>, vector<32x128xf32>
    %580 = arith.mulf %578, %579 : vector<32x128xf32>
    %581 = arith.addf %577, %580 : vector<32x128xf32>
    %c0_407 = arith.constant 0 : index
    %c0_408 = arith.constant 0 : index
    %582 = vector.load %arg12[%c0_407, %c0_408] : memref<128x128xf32, #tpu.memory_space<vmem>>, vector<128x128xf32>
    %cst_409 = arith.constant dense<0.000000e+00> : vector<32x128xf32>
    %583 = tpu.matmul %581, %582, %cst_409 {dimension_numbers = #tpu.dot_dimension_numbers<[1], [0], [0], [1], [0, 0, 1, 1], [], []>} : vector<32x128xf32>, vector<128x128xf32>, vector<32x128xf32> -> vector<32x128xf32>
    %584 = vector.broadcast %0 : f32 to vector<32x128xf32>
    %585 = arith.mulf %584, %547 : vector<32x128xf32>
    %586 = arith.addf %583, %585 : vector<32x128xf32>
    %587 = arith.mulf %547, %586 : vector<32x128xf32>
    %588 = vector.shape_cast %587 : vector<32x128xf32> to vector<1x32x128xf32>
    %cst_410 = arith.constant dense<0.000000e+00> : vector<1xf32>
    %589 = vector.multi_reduction <add>, %588, %cst_410 [1, 2] : vector<1x32x128xf32> to vector<1xf32>
    %590 = vector.shape_cast %589 : vector<1xf32> to vector<1x1x1xf32>
    %591 = vector.extract %590[0, 0, 0] : f32 from vector<1x1x1xf32>
    %592 = arith.divf %543, %591 : f32
    %593 = vector.broadcast %592 : f32 to vector<32x128xf32>
    %594 = arith.mulf %593, %547 : vector<32x128xf32>
    %595 = arith.addf %535, %594 : vector<32x128xf32>
    %596 = vector.broadcast %592 : f32 to vector<32x128xf32>
    %597 = arith.mulf %596, %586 : vector<32x128xf32>
    %598 = arith.subf %538, %597 : vector<32x128xf32>
    %599 = arith.mulf %598, %598 : vector<32x128xf32>
    %600 = vector.shape_cast %599 : vector<32x128xf32> to vector<1x32x128xf32>
    %cst_411 = arith.constant dense<0.000000e+00> : vector<1xf32>
    %601 = vector.multi_reduction <add>, %600, %cst_411 [1, 2] : vector<1x32x128xf32> to vector<1xf32>
    %602 = vector.shape_cast %601 : vector<1xf32> to vector<1x1x1xf32>
    %603 = vector.extract %602[0, 0, 0] : f32 from vector<1x1x1xf32>
    %604 = arith.divf %603, %543 : f32
    %605 = vector.broadcast %604 : f32 to vector<32x128xf32>
    %606 = arith.mulf %605, %547 : vector<32x128xf32>
    %607 = arith.addf %598, %606 : vector<32x128xf32>
    %c0_412 = arith.constant 0 : index
    %c0_413 = arith.constant 0 : index
    %608 = vector.load %arg13[%c0_412, %c0_413] : memref<32x128xf32, #tpu.memory_space<vmem>>, vector<32x128xf32>
    tpu.vector_store %arg13[%c0_412, %c0_413], %595 {strides = array<i32>} : memref<32x128xf32, #tpu.memory_space<vmem>>, vector<32x128xf32>,
    return
  }
  func.func @transform_0(%arg0: i32) -> i32 {
    %c0_i32 = arith.constant 0 : i32
    %c0_i32_0 = arith.constant 0 : i32
    return %c0_i32 : i32
  }
  func.func @transform_1(%arg0: i32) -> (i32, i32) {
    %c0_i32 = arith.constant 0 : i32
    %c0_i32_0 = arith.constant 0 : i32
    %c0_i32_1 = arith.constant 0 : i32
    return %c0_i32, %c0_i32_0 : i32, i32
  }
  func.func @transform_2(%arg0: i32) -> (i32, i32) {
    %c0_i32 = arith.constant 0 : i32
    %c0_i32_0 = arith.constant 0 : i32
    %c0_i32_1 = arith.constant 0 : i32
    return %c0_i32, %c0_i32_0 : i32, i32
  }
  func.func @transform_3(%arg0: i32) -> (i32, i32) {
    %c0_i32 = arith.constant 0 : i32
    %c0_i32_0 = arith.constant 0 : i32
    %c0_i32_1 = arith.constant 0 : i32
    return %c0_i32, %c0_i32_0 : i32, i32
  }
  func.func @transform_4(%arg0: i32) -> (i32, i32) {
    %c0_i32 = arith.constant 0 : i32
    %c0_i32_0 = arith.constant 0 : i32
    %c0_i32_1 = arith.constant 0 : i32
    return %c0_i32, %c0_i32_0 : i32, i32
  }
  func.func @transform_5(%arg0: i32) -> (i32, i32) {
    %c0_i32 = arith.constant 0 : i32
    %c0_i32_0 = arith.constant 0 : i32
    %c0_i32_1 = arith.constant 0 : i32
    return %c0_i32, %c0_i32_0 : i32, i32
  }
  func.func @transform_6(%arg0: i32) -> (i32, i32) {
    %c0_i32 = arith.constant 0 : i32
    %c0_i32_0 = arith.constant 0 : i32
    %c0_i32_1 = arith.constant 0 : i32
    return %c0_i32, %c0_i32_0 : i32, i32
  }
  func.func @transform_7(%arg0: i32) -> (i32, i32) {
    %c0_i32 = arith.constant 0 : i32
    %c0_i32_0 = arith.constant 0 : i32
    %c0_i32_1 = arith.constant 0 : i32
    return %c0_i32, %c0_i32_0 : i32, i32
  }
  func.func @transform_8(%arg0: i32) -> (i32, i32) {
    %c0_i32 = arith.constant 0 : i32
    %c0_i32_0 = arith.constant 0 : i32
    %c0_i32_1 = arith.constant 0 : i32
    return %c0_i32, %c0_i32_0 : i32, i32
  }
  func.func @transform_9(%arg0: i32) -> (i32, i32) {
    %c0_i32 = arith.constant 0 : i32
    %c0_i32_0 = arith.constant 0 : i32
    %c0_i32_1 = arith.constant 0 : i32
    return %c0_i32, %c0_i32_0 : i32, i32
  }
  func.func @transform_10(%arg0: i32) -> (i32, i32) {
    %c0_i32 = arith.constant 0 : i32
    %c0_i32_0 = arith.constant 0 : i32
    %c0_i32_1 = arith.constant 0 : i32
    return %c0_i32, %c0_i32_0 : i32, i32
  }
  func.func @transform_11(%arg0: i32) -> (i32, i32) {
    %c0_i32 = arith.constant 0 : i32
    %c0_i32_0 = arith.constant 0 : i32
    %c0_i32_1 = arith.constant 0 : i32
    return %c0_i32, %c0_i32_0 : i32, i32
  }
  func.func @transform_12(%arg0: i32) -> (i32, i32) {
    %c0_i32 = arith.constant 0 : i32
    %c0_i32_0 = arith.constant 0 : i32
    %c0_i32_1 = arith.constant 0 : i32
    return %c0_i32, %c0_i32_0 : i32, i32
  }
}

</mosaic_0001>

<llo_original>
// kernel: neg.4
$region0: #{neg.4}
  #allocation0 [shape = 's32[1]{0}', space=sflag, size = 0x4, scoped, tag = 'scoped memory for neg.4']
  %s0 = inlined_call_operand.vmem [shape: f32[16,128], index: 0, kind: input, shape index: {}]
  %s1 = inlined_call_operand.vmem [shape: f32[16,128], index: 1, kind: output, shape index: {}]
  %v2 = vld [vmem:[%s0] sm:$0xff]
  %3 = xla_tuple %v2
  %4 = xla_tuple %3
  %v5 = vxor.u32 %v2, 2147483648
  %6 = xla_tuple %v5
  %7 = vst [vmem:[%s1] sm:$0xff] %v5
  %s8 = scalar_lea.vmem %s0, 8
  %v9 = vld [vmem:[%s8] sm:$0xff]
  %10 = xla_tuple %v9
  %11 = xla_tuple %10
  %v12 = vxor.u32 %v9, 2147483648
  %13 = xla_tuple %v12
  %s14 = scalar_lea.vmem %s1, 8
  %15 = vst [vmem:[%s14] sm:$0xff] %v12

// kernel: _lambda_.1
$region0: #{_lambda_.1}
  #allocation0 [shape = 'u32[]', space=smem, size = 0x4, offset = 0x4, fixed_abs, tag = 'smem constant byte address 0x4 - core index']
  #allocation1 [shape = 'u32[144,128]{1,0:T(1,128)}', space=vmem, size = 0x12000, scoped, tag = 'internal scratch']
  #allocation2 [shape = 'f32[1]{0:T(128)S(6)}', space=smem, size = 0x200, scoped, tag = 'scoped memory for _lambda_.1']
  %s0 = inlined_call_operand.<no memory space> [shape: f32[1], index: 0, kind: input, shape index: {}]
  %s1 = inlined_call_operand.vmem [shape: f32[32,128], index: 1, kind: input, shape index: {}]
  %s2 = inlined_call_operand.vmem [shape: f32[32,128], index: 2, kind: input, shape index: {}]
  %s3 = inlined_call_operand.vmem [shape: f32[32,128], index: 3, kind: input, shape index: {}]
  %s4 = inlined_call_operand.vmem [shape: f32[32,128], index: 4, kind: input, shape index: {}]
  %s5 = inlined_call_operand.vmem [shape: f32[32,128], index: 5, kind: input, shape index: {}]
  %s6 = inlined_call_operand.vmem [shape: f32[32,128], index: 6, kind: input, shape index: {}]
  %s7 = inlined_call_operand.vmem [shape: f32[32,32], index: 7, kind: input, shape index: {}]
  %s8 = inlined_call_operand.vmem [shape: f32[32,32], index: 8, kind: input, shape index: {}]
  %s9 = inlined_call_operand.vmem [shape: f32[128,128], index: 9, kind: input, shape index: {}]
  %s10 = inlined_call_operand.vmem [shape: f32[128,128], index: 10, kind: input, shape index: {}]
  %s11 = inlined_call_operand.vmem [shape: f32[128,128], index: 11, kind: input, shape index: {}]
  %s12 = inlined_call_operand.vmem [shape: f32[32,128], index: 12, kind: output, shape index: {}]
  %s13 = sld [smem:[#allocation0]]
  $region58: #{_lambda_.1} parent=0
    _
  %s15 = ssub.s32 1, %s13
  %s16 = scalar_select 0, %s15, %s13
  %17 = sst [smem:[#allocation2]] %s0
  // Predicated region
  $region2: #{_lambda_.1} parent=0 // pred_check
    _
  $region3: #{_lambda_.1} parent=0 // pred_check_branch
    %19 = sbr.rel (0) target = $region5
  $region4: #{_lambda_.1} parent=0 // pred_region
    _
  $region5: #{_lambda_.1} parent=0 // pred_fallthru
    _
  // Predicated region
  $region6: #{_lambda_.1} parent=0 // pred_check
    _
  $region7: #{_lambda_.1} parent=0 // pred_check_branch
    %21 = sbr.rel (0) target = $region9
  $region8: #{_lambda_.1} parent=0 // pred_region
    _
  $region9: #{_lambda_.1} parent=0 // pred_fallthru
    _
  // Predicated region
  $region10: #{_lambda_.1} parent=0 // pred_check
    _
  $region11: #{_lambda_.1} parent=0 // pred_check_branch
    %23 = sbr.rel (0) target = $region13
  $region12: #{_lambda_.1} parent=0 // pred_region
    _
  $region13: #{_lambda_.1} parent=0 // pred_fallthru
    _
  // Predicated region
  $region14: #{_lambda_.1} parent=0 // pred_check
    _
  $region15: #{_lambda_.1} parent=0 // pred_check_branch
    %25 = sbr.rel (0) target = $region17
  $region16: #{_lambda_.1} parent=0 // pred_region
    _
  $region17: #{_lambda_.1} parent=0 // pred_fallthru
    _
  // Predicated region
  $region18: #{_lambda_.1} parent=0 // pred_check
    _
  $region19: #{_lambda_.1} parent=0 // pred_check_branch
    %27 = sbr.rel (0) target = $region21
  $region20: #{_lambda_.1} parent=0 // pred_region
    _
  $region21: #{_lambda_.1} parent=0 // pred_fallthru
    _
  // Predicated region
  $region22: #{_lambda_.1} parent=0 // pred_check
    _
  $region23: #{_lambda_.1} parent=0 // pred_check_branch
    %29 = sbr.rel (0) target = $region25
  $region24: #{_lambda_.1} parent=0 // pred_region
    _
  $region25: #{_lambda_.1} parent=0 // pred_fallthru
    _
  // Predicated region
  $region26: #{_lambda_.1} parent=0 // pred_check
    _
  $region27: #{_lambda_.1} parent=0 // pred_check_branch
    %31 = sbr.rel (0) target = $region29
  $region28: #{_lambda_.1} parent=0 // pred_region
    _
  $region29: #{_lambda_.1} parent=0 // pred_fallthru
    _
  // Predicated region
  $region30: #{_lambda_.1} parent=0 // pred_check
    _
  $region31: #{_lambda_.1} parent=0 // pred_check_branch
    %33 = sbr.rel (0) target = $region33
  $region32: #{_lambda_.1} parent=0 // pred_region
    _
  $region33: #{_lambda_.1} parent=0 // pred_fallthru
    _
  // Predicated region
  $region34: #{_lambda_.1} parent=0 // pred_check
    _
  $region35: #{_lambda_.1} parent=0 // pred_check_branch
    %35 = sbr.rel (0) target = $region37
  $region36: #{_lambda_.1} parent=0 // pred_region
    _
  $region37: #{_lambda_.1} parent=0 // pred_fallthru
    _
  // Predicated region
  $region38: #{_lambda_.1} parent=0 // pred_check
    _
  $region39: #{_lambda_.1} parent=0 // pred_check_branch
    %37 = sbr.rel (0) target = $region41
  $region40: #{_lambda_.1} parent=0 // pred_region
    _
  $region41: #{_lambda_.1} parent=0 // pred_fallthru
    _
  // Predicated region
  $region42: #{_lambda_.1} parent=0 // pred_check
    _
  $region43: #{_lambda_.1} parent=0 // pred_check_branch
    %39 = sbr.rel (0) target = $region45
  $region44: #{_lambda_.1} parent=0 // pred_region
    _
  $region45: #{_lambda_.1} parent=0 // pred_fallthru
    _
  // Predicated region
  $region46: #{_lambda_.1} parent=0 // pred_check
    _
  $region47: #{_lambda_.1} parent=0 // pred_check_branch
    %41 = sbr.rel (0) target = $region49
  $region48: #{_lambda_.1} parent=0 // pred_region
    _
  $region49: #{_lambda_.1} parent=0 // pred_fallthru
    _
  %s42 = sld [smem:[#allocation2]]
  %v43 = vld [vmem:[%s1] sm:$0xff]
  %v44 = vld [vmem:[%s1 + $0x8] sm:$0xff]
  %v45 = vld [vmem:[%s1 + $0x10] sm:$0xff]
  %v46 = vld [vmem:[%s1 + $0x18] sm:$0xff]
  %v47 = vmul.f32 %v43, %v43
  %v48 = vmul.f32 %v44, %v44
  %v49 = vmul.f32 %v45, %v45
  %v50 = vmul.f32 %v46, %v46
  %v51 = vadd.f32 %v47, %v48
  %v52 = vadd.f32 %v51, %v49
  %v53 = vadd.f32 %v52, %v50
  %54 = vadd.xlane.f32.xlu0 %v53
  %v55 = vpop.xlane.xlu0 %54
  %v56 = vrot.slane %v55, 4
  %v57 = vadd.f32 %v55, %v56
  %v58 = vrot.slane %v57, 2
  %v59 = vadd.f32 %v57, %v58
  %v60 = vrot.slane %v59, 1
  %v61 = vadd.f32 %v59, %v60
  %s62 = vtos %v61
  %v63 = vld [vmem:[%s2] sm:$0xff]
  %v64 = vld [vmem:[%s2 + $0x8] sm:$0xff]
  %v65 = vld [vmem:[%s2 + $0x10] sm:$0xff]
  %v66 = vld [vmem:[%s2 + $0x18] sm:$0xff]
  %v67 = vmul.f32 %v43, %v63
  %v68 = vmul.f32 %v44, %v64
  %v69 = vmul.f32 %v45, %v65
  %v70 = vmul.f32 %v46, %v66
  %v71 = vld [vmem:[%s3] sm:$0xff]
  %v72 = vld [vmem:[%s3 + $0x8] sm:$0xff]
  %v73 = vld [vmem:[%s3 + $0x10] sm:$0xff]
  %v74 = vld [vmem:[%s3 + $0x18] sm:$0xff]
  %v75 = vmul.f32 %v45, %v71
  %v76 = vmul.f32 %v46, %v72
  %v77 = vmul.f32 %v43, %v73
  %v78 = vmul.f32 %v44, %v74
  %v79 = vadd.f32 %v67, %v75
  %v80 = vadd.f32 %v68, %v76
  %v81 = vadd.f32 %v69, %v77
  %v82 = vadd.f32 %v70, %v78
  %v83 = vld [vmem:[%s7] sm:$0xff]
  %v84 = vld [vmem:[%s7 + $0x8] sm:$0xff]
  %v85 = vld [vmem:[%s7 + $0x10] sm:$0xff]
  %v86 = vld [vmem:[%s7 + $0x18] sm:$0xff]
  %vm87 = vcmask 261120
  %v89 = vsel %vm87, %v83, 0
  %v92 = vsel %vm87, %v84, 0
  %v95 = vsel %vm87, %v85, 0
  %v98 = vsel %vm87, %v86, 0
  %100 = vmatprep.subr.mxu0 0.0
  %101 = vmatpush1.msra.mxu0 0.0
  %102 = vmatprep.subr.mxu0 0.0
  %103 = vmatpush1.msra.mxu0 0.0
  %104 = vmatprep.subr.mxu0 0.0
  %105 = vmatpush1.msra.mxu0 0.0
  %106 = vmatprep.subr.mxu0 0.0
  %107 = vmatpush1.msra.mxu0 0.0
  %108 = vmatprep.subr.mxu0 0.0
  %109 = vmatpush1.msra.mxu0 0.0
  %110 = vmatprep.subr.mxu0 0.0
  %111 = vmatpush1.msra.mxu0 0.0
  %112 = vmatprep.subr.mxu0 0.0
  %113 = vmatpush1.msra.mxu0 0.0
  %114 = vmatprep.subr.mxu0 0.0
  %115 = vmatpush1.msra.mxu0 0.0
  %116 = vmatprep.subr.mxu0 0.0
  %117 = vmatpush1.msra.mxu0 0.0
  %118 = vmatprep.subr.mxu0 0.0
  %119 = vmatpush1.msra.mxu0 0.0
  %120 = vmatprep.subr.mxu0 0.0
  %121 = vmatpush1.msra.mxu0 0.0
  %122 = vmatprep.subr.mxu0 0.0
  %123 = vmatpush1.msra.mxu0 0.0
  %124 = vmatprep.subr.mxu0 0.0
  %125 = vmatpush1.msra.mxu0 %v82
  %126 = vmatprep.subr.mxu0 0.0
  %127 = vmatpush1.msra.mxu0 %v81
  %128 = vmatprep.subr.mxu0 0.0
  %129 = vmatpush1.msra.mxu0 %v80
  %130 = vmatprep.subr.mxu0 0.0
  %131 = vmatpush1.msra.mxu0 %v79
  %132 = vmatprep.subr.mxu0 0.0
  %133 = vmatpush2.msra.mxu0 0.0
  %134 = vmatprep.subr.mxu0 0.0
  %135 = vmatpush2.msra.mxu0 0.0
  %136 = vmatprep.subr.mxu0 0.0
  %137 = vmatpush2.msra.mxu0 0.0
  %138 = vmatprep.subr.mxu0 0.0
  %139 = vmatpush2.msra.mxu0 0.0
  %140 = vmatprep.subr.mxu0 0.0
  %141 = vmatpush2.msra.mxu0 0.0
  %142 = vmatprep.subr.mxu0 0.0
  %143 = vmatpush2.msra.mxu0 0.0
  %144 = vmatprep.subr.mxu0 0.0
  %145 = vmatpush2.msra.mxu0 0.0
  %146 = vmatprep.subr.mxu0 0.0
  %147 = vmatpush2.msra.mxu0 0.0
  %148 = vmatprep.subr.mxu0 0.0
  %149 = vmatpush2.msra.mxu0 0.0
  %150 = vmatprep.subr.mxu0 0.0
  %151 = vmatpush2.msra.mxu0 0.0
  %152 = vmatprep.subr.mxu0 0.0
  %153 = vmatpush2.msra.mxu0 0.0
  %154 = vmatprep.subr.mxu0 0.0
  %155 = vmatpush2.msra.mxu0 0.0
  %156 = vmatprep.subr.mxu0 0.0
  %157 = vmatpush2.msra.mxu0 0.0
  %158 = vmatprep.subr.mxu0 0.0
  %159 = vmatpush2.msra.mxu0 0.0
  %160 = vmatprep.subr.mxu0 0.0
  %161 = vmatpush2.msra.mxu0 0.0
  %162 = vmatprep.subr.mxu0 0.0
  %163 = vmatpush2.msra.mxu0 0.0
  %164 = vmatprep.mubr.f32.mxu0 0.0
  %165 = vmatmul.mubr.f32.gmra.mxu0 %v89
  %v166 = vpop.f32.mrf.mxu0
  %v167 = vadd.f32 0.0, %v166
  %v168 = vpop.f32.mrf.mxu0
  %169 = vmatprep.mubr.f32.mxu0 0.0
  %170 = vmatmul.mubr.f32.gmra.mxu0 %v92
  %v171 = vpop.f32.mrf.mxu0
  %v172 = vadd.f32 0.0, %v171
  %v173 = vpop.f32.mrf.mxu0
  %174 = vmatprep.mubr.f32.mxu0 0.0
  %175 = vmatmul.mubr.f32.gmra.mxu0 %v95
  %v176 = vpop.f32.mrf.mxu0
  %v177 = vadd.f32 0.0, %v176
  %v178 = vpop.f32.mrf.mxu0
  %179 = vmatprep.mubr.f32.mxu0 0.0
  %180 = vmatmul.mubr.f32.gmra.mxu0 %v98
  %v181 = vpop.f32.mrf.mxu0
  %v182 = vadd.f32 0.0, %v181
  %v183 = vpop.f32.mrf.mxu0
  %184 = vdwg.mxu0
  %v185 = vld [vmem:[%s9] sm:$0xff]
  %v186 = vld [vmem:[%s9 + $0x8] sm:$0xff]
  %v187 = vld [vmem:[%s9 + $0x10] sm:$0xff]
  %v188 = vld [vmem:[%s9 + $0x18] sm:$0xff]
  %v189 = vld [vmem:[%s9 + $0x20] sm:$0xff]
  %v190 = vld [vmem:[%s9 + $0x28] sm:$0xff]
  %v191 = vld [vmem:[%s9 + $0x30] sm:$0xff]
  %v192 = vld [vmem:[%s9 + $0x38] sm:$0xff]
  %v193 = vld [vmem:[%s9 + $0x40] sm:$0xff]
  %v194 = vld [vmem:[%s9 + $0x48] sm:$0xff]
  %v195 = vld [vmem:[%s9 + $0x50] sm:$0xff]
  %v196 = vld [vmem:[%s9 + $0x58] sm:$0xff]
  %v197 = vld [vmem:[%s9 + $0x60] sm:$0xff]
  %v198 = vld [vmem:[%s9 + $0x68] sm:$0xff]
  %v199 = vld [vmem:[%s9 + $0x70] sm:$0xff]
  %v200 = vld [vmem:[%s9 + $0x78] sm:$0xff]
  %v201 = vld [vmem:[%s6] sm:$0xff]
  %v202 = vld [vmem:[%s6 + $0x8] sm:$0xff]
  %v203 = vld [vmem:[%s6 + $0x10] sm:$0xff]
  %v204 = vld [vmem:[%s6 + $0x18] sm:$0xff]
  %v205 = vmul.f32 %v201, %v177
  %v206 = vmul.f32 %v202, %v182
  %v207 = vmul.f32 %v203, %v167
  %v208 = vmul.f32 %v204, %v172
  %v209 = vld [vmem:[%s10] sm:$0xff]
  %v210 = vld [vmem:[%s10 + $0x8] sm:$0xff]
  %v211 = vld [vmem:[%s10 + $0x10] sm:$0xff]
  %v212 = vld [vmem:[%s10 + $0x18] sm:$0xff]
  %v213 = vld [vmem:[%s10 + $0x20] sm:$0xff]
  %v214 = vld [vmem:[%s10 + $0x28] sm:$0xff]
  %v215 = vld [vmem:[%s10 + $0x30] sm:$0xff]
  %v216 = vld [vmem:[%s10 + $0x38] sm:$0xff]
  %v217 = vld [vmem:[%s10 + $0x40] sm:$0xff]
  %v218 = vld [vmem:[%s10 + $0x48] sm:$0xff]
  %v219 = vld [vmem:[%s10 + $0x50] sm:$0xff]
  %v220 = vld [vmem:[%s10 + $0x58] sm:$0xff]
  %v221 = vld [vmem:[%s10 + $0x60] sm:$0xff]
  %v222 = vld [vmem:[%s10 + $0x68] sm:$0xff]
  %v223 = vld [vmem:[%s10 + $0x70] sm:$0xff]
  %v224 = vld [vmem:[%s10 + $0x78] sm:$0xff]
  %225 = vmatprep.subr.mxu0 0.0
  %226 = vmatpush1.msra.mxu0 %v224
  %227 = vmatprep.subr.mxu0 0.0
  %228 = vmatpush1.msra.mxu0 %v223
  %229 = vmatprep.subr.mxu0 0.0
  %230 = vmatpush1.msra.mxu0 %v222
  %231 = vmatprep.subr.mxu0 0.0
  %232 = vmatpush1.msra.mxu0 %v221
  %233 = vmatprep.subr.mxu0 0.0
  %234 = vmatpush1.msra.mxu0 %v220
  %235 = vmatprep.subr.mxu0 0.0
  %236 = vmatpush1.msra.mxu0 %v219
  %237 = vmatprep.subr.mxu0 0.0
  %238 = vmatpush1.msra.mxu0 %v218
  %239 = vmatprep.subr.mxu0 0.0
  %240 = vmatpush1.msra.mxu0 %v217
  %241 = vmatprep.subr.mxu0 0.0
  %242 = vmatpush1.msra.mxu0 %v216
  %243 = vmatprep.subr.mxu0 0.0
  %244 = vmatpush1.msra.mxu0 %v215
  %245 = vmatprep.subr.mxu0 0.0
  %246 = vmatpush1.msra.mxu0 %v214
  %247 = vmatprep.subr.mxu0 0.0
  %248 = vmatpush1.msra.mxu0 %v213
  %249 = vmatprep.subr.mxu0 0.0
  %250 = vmatpush1.msra.mxu0 %v212
  %251 = vmatprep.subr.mxu0 0.0
  %252 = vmatpush1.msra.mxu0 %v211
  %253 = vmatprep.subr.mxu0 0.0
  %254 = vmatpush1.msra.mxu0 %v210
  %255 = vmatprep.subr.mxu0 0.0
  %256 = vmatpush1.msra.mxu0 %v209
  %257 = vmatprep.subr.mxu0 0.0
  %258 = vmatpush2.msra.mxu0 0.0
  %259 = vmatprep.subr.mxu0 0.0
  %260 = vmatpush2.msra.mxu0 0.0
  %261 = vmatprep.subr.mxu0 0.0
  %262 = vmatpush2.msra.mxu0 0.0
  %263 = vmatprep.subr.mxu0 0.0
  %264 = vmatpush2.msra.mxu0 0.0
  %265 = vmatprep.subr.mxu0 0.0
  %266 = vmatpush2.msra.mxu0 0.0
  %267 = vmatprep.subr.mxu0 0.0
  %268 = vmatpush2.msra.mxu0 0.0
  %269 = vmatprep.subr.mxu0 0.0
  %270 = vmatpush2.msra.mxu0 0.0
  %271 = vmatprep.subr.mxu0 0.0
  %272 = vmatpush2.msra.mxu0 0.0
  %273 = vmatprep.subr.mxu0 0.0
  %274 = vmatpush2.msra.mxu0 0.0
  %275 = vmatprep.subr.mxu0 0.0
  %276 = vmatpush2.msra.mxu0 0.0
  %277 = vmatprep.subr.mxu0 0.0
  %278 = vmatpush2.msra.mxu0 0.0
  %279 = vmatprep.subr.mxu0 0.0
  %280 = vmatpush2.msra.mxu0 0.0
  %281 = vmatprep.subr.mxu0 0.0
  %282 = vmatpush2.msra.mxu0 0.0
  %283 = vmatprep.subr.mxu0 0.0
  %284 = vmatpush2.msra.mxu0 0.0
  %285 = vmatprep.subr.mxu0 0.0
  %286 = vmatpush2.msra.mxu0 0.0
  %287 = vmatprep.subr.mxu0 0.0
  %288 = vmatpush2.msra.mxu0 0.0
  %289 = vmatprep.mubr.f32.mxu0 0.0
  %290 = vmatmul.mubr.f32.gmra.mxu0 %v205
  %v291 = vpop.f32.mrf.mxu0
  %v292 = vadd.f32 0.0, %v291
  %v293 = vpop.f32.mrf.mxu0
  %294 = vmatprep.mubr.f32.mxu0 0.0
  %295 = vmatmul.mubr.f32.gmra.mxu0 %v206
  %v296 = vpop.f32.mrf.mxu0
  %v297 = vadd.f32 0.0, %v296
  %v298 = vpop.f32.mrf.mxu0
  %299 = vmatprep.mubr.f32.mxu0 0.0
  %300 = vmatmul.mubr.f32.gmra.mxu0 %v207
  %v301 = vpop.f32.mrf.mxu0
  %v302 = vadd.f32 0.0, %v301
  %v303 = vpop.f32.mrf.mxu0
  %304 = vmatprep.mubr.f32.mxu0 0.0
  %305 = vmatmul.mubr.f32.gmra.mxu0 %v208
  %v306 = vpop.f32.mrf.mxu0
  %v307 = vadd.f32 0.0, %v306
  %v308 = vpop.f32.mrf.mxu0
  %309 = vdwg.mxu0
  %310 = vmatprep.subr.mxu0 0.0
  %311 = vmatpush1.msra.mxu0 %v200
  %312 = vmatprep.subr.mxu0 0.0
  %313 = vmatpush1.msra.mxu0 %v199
  %314 = vmatprep.subr.mxu0 0.0
  %315 = vmatpush1.msra.mxu0 %v198
  %316 = vmatprep.subr.mxu0 0.0
  %317 = vmatpush1.msra.mxu0 %v197
  %318 = vmatprep.subr.mxu0 0.0
  %319 = vmatpush1.msra.mxu0 %v196
  %320 = vmatprep.subr.mxu0 0.0
  %321 = vmatpush1.msra.mxu0 %v195
  %322 = vmatprep.subr.mxu0 0.0
  %323 = vmatpush1.msra.mxu0 %v194
  %324 = vmatprep.subr.mxu0 0.0
  %325 = vmatpush1.msra.mxu0 %v193
  %326 = vmatprep.subr.mxu0 0.0
  %327 = vmatpush1.msra.mxu0 %v192
  %328 = vmatprep.subr.mxu0 0.0
  %329 = vmatpush1.msra.mxu0 %v191
  %330 = vmatprep.subr.mxu0 0.0
  %331 = vmatpush1.msra.mxu0 %v190
  %332 = vmatprep.subr.mxu0 0.0
  %333 = vmatpush1.msra.mxu0 %v189
  %334 = vmatprep.subr.mxu0 0.0
  %335 = vmatpush1.msra.mxu0 %v188
  %336 = vmatprep.subr.mxu0 0.0
  %337 = vmatpush1.msra.mxu0 %v187
  %338 = vmatprep.subr.mxu0 0.0
  %339 = vmatpush1.msra.mxu0 %v186
  %340 = vmatprep.subr.mxu0 0.0
  %341 = vmatpush1.msra.mxu0 %v185
  %342 = vmatprep.subr.mxu0 0.0
  %343 = vmatpush2.msra.mxu0 0.0
  %344 = vmatprep.subr.mxu0 0.0
  %345 = vmatpush2.msra.mxu0 0.0
  %346 = vmatprep.subr.mxu0 0.0
  %347 = vmatpush2.msra.mxu0 0.0
  %348 = vmatprep.subr.mxu0 0.0
  %349 = vmatpush2.msra.mxu0 0.0
  %350 = vmatprep.subr.mxu0 0.0
  %351 = vmatpush2.msra.mxu0 0.0
  %352 = vmatprep.subr.mxu0 0.0
  %353 = vmatpush2.msra.mxu0 0.0
  %354 = vmatprep.subr.mxu0 0.0
  %355 = vmatpush2.msra.mxu0 0.0
  %356 = vmatprep.subr.mxu0 0.0
  %357 = vmatpush2.msra.mxu0 0.0
  %358 = vmatprep.subr.mxu0 0.0
  %359 = vmatpush2.msra.mxu0 0.0
  %360 = vmatprep.subr.mxu0 0.0
  %361 = vmatpush2.msra.mxu0 0.0
  %362 = vmatprep.subr.mxu0 0.0
  %363 = vmatpush2.msra.mxu0 0.0
  %364 = vmatprep.subr.mxu0 0.0
  %365 = vmatpush2.msra.mxu0 0.0
  %366 = vmatprep.subr.mxu0 0.0
  %367 = vmatpush2.msra.mxu0 0.0
  %368 = vmatprep.subr.mxu0 0.0
  %369 = vmatpush2.msra.mxu0 0.0
  %370 = vmatprep.subr.mxu0 0.0
  %371 = vmatpush2.msra.mxu0 0.0
  %372 = vmatprep.subr.mxu0 0.0
  %373 = vmatpush2.msra.mxu0 0.0
  %374 = vmatprep.mubr.f32.mxu0 0.0
  %375 = vmatmul.mubr.f32.gmra.mxu0 %v167
  %v376 = vpop.f32.mrf.mxu0
  %v377 = vadd.f32 %v292, %v376
  %v378 = vpop.f32.mrf.mxu0
  %379 = vmatprep.mubr.f32.mxu0 0.0
  %380 = vmatmul.mubr.f32.gmra.mxu0 %v172
  %v381 = vpop.f32.mrf.mxu0
  %v382 = vadd.f32 %v297, %v381
  %v383 = vpop.f32.mrf.mxu0
  %384 = vmatprep.mubr.f32.mxu0 0.0
  %385 = vmatmul.mubr.f32.gmra.mxu0 %v177
  %v386 = vpop.f32.mrf.mxu0
  %v387 = vadd.f32 %v302, %v386
  %v388 = vpop.f32.mrf.mxu0
  %389 = vmatprep.mubr.f32.mxu0 0.0
  %390 = vmatmul.mubr.f32.gmra.mxu0 %v182
  %v391 = vpop.f32.mrf.mxu0
  %v392 = vadd.f32 %v307, %v391
  %v393 = vpop.f32.mrf.mxu0
  %394 = vdwg.mxu0
  %v395 = vld [vmem:[%s5] sm:$0xff]
  %v396 = vld [vmem:[%s5 + $0x8] sm:$0xff]
  %v397 = vld [vmem:[%s5 + $0x10] sm:$0xff]
  %v398 = vld [vmem:[%s5 + $0x18] sm:$0xff]
  %v399 = vmul.f32 %v377, %v395
  %v400 = vmul.f32 %v382, %v396
  %v401 = vmul.f32 %v387, %v397
  %v402 = vmul.f32 %v392, %v398
  %v403 = vld [vmem:[%s8] sm:$0xff]
  %v404 = vld [vmem:[%s8 + $0x8] sm:$0xff]
  %v405 = vld [vmem:[%s8 + $0x10] sm:$0xff]
  %v406 = vld [vmem:[%s8 + $0x18] sm:$0xff]
  %v408 = vsel %vm87, %v403, 0
  %v411 = vsel %vm87, %v404, 0
  %v414 = vsel %vm87, %v405, 0
  %v417 = vsel %vm87, %v406, 0
  %419 = vmatprep.subr.mxu0 0.0
  %420 = vmatpush1.msra.mxu0 0.0
  %421 = vmatprep.subr.mxu0 0.0
  %422 = vmatpush1.msra.mxu0 0.0
  %423 = vmatprep.subr.mxu0 0.0
  %424 = vmatpush1.msra.mxu0 0.0
  %425 = vmatprep.subr.mxu0 0.0
  %426 = vmatpush1.msra.mxu0 0.0
  %427 = vmatprep.subr.mxu0 0.0
  %428 = vmatpush1.msra.mxu0 0.0
  %429 = vmatprep.subr.mxu0 0.0
  %430 = vmatpush1.msra.mxu0 0.0
  %431 = vmatprep.subr.mxu0 0.0
  %432 = vmatpush1.msra.mxu0 0.0
  %433 = vmatprep.subr.mxu0 0.0
  %434 = vmatpush1.msra.mxu0 0.0
  %435 = vmatprep.subr.mxu0 0.0
  %436 = vmatpush1.msra.mxu0 0.0
  %437 = vmatprep.subr.mxu0 0.0
  %438 = vmatpush1.msra.mxu0 0.0
  %439 = vmatprep.subr.mxu0 0.0
  %440 = vmatpush1.msra.mxu0 0.0
  %441 = vmatprep.subr.mxu0 0.0
  %442 = vmatpush1.msra.mxu0 0.0
  %443 = vmatprep.subr.mxu0 0.0
  %444 = vmatpush1.msra.mxu0 %v402
  %445 = vmatprep.subr.mxu0 0.0
  %446 = vmatpush1.msra.mxu0 %v401
  %447 = vmatprep.subr.mxu0 0.0
  %448 = vmatpush1.msra.mxu0 %v400
  %449 = vmatprep.subr.mxu0 0.0
  %450 = vmatpush1.msra.mxu0 %v399
  %451 = vmatprep.subr.mxu0 0.0
  %452 = vmatpush2.msra.mxu0 0.0
  %453 = vmatprep.subr.mxu0 0.0
  %454 = vmatpush2.msra.mxu0 0.0
  %455 = vmatprep.subr.mxu0 0.0
  %456 = vmatpush2.msra.mxu0 0.0
  %457 = vmatprep.subr.mxu0 0.0
  %458 = vmatpush2.msra.mxu0 0.0
  %459 = vmatprep.subr.mxu0 0.0
  %460 = vmatpush2.msra.mxu0 0.0
  %461 = vmatprep.subr.mxu0 0.0
  %462 = vmatpush2.msra.mxu0 0.0
  %463 = vmatprep.subr.mxu0 0.0
  %464 = vmatpush2.msra.mxu0 0.0
  %465 = vmatprep.subr.mxu0 0.0
  %466 = vmatpush2.msra.mxu0 0.0
  %467 = vmatprep.subr.mxu0 0.0
  %468 = vmatpush2.msra.mxu0 0.0
  %469 = vmatprep.subr.mxu0 0.0
  %470 = vmatpush2.msra.mxu0 0.0
  %471 = vmatprep.subr.mxu0 0.0
  %472 = vmatpush2.msra.mxu0 0.0
  %473 = vmatprep.subr.mxu0 0.0
  %474 = vmatpush2.msra.mxu0 0.0
  %475 = vmatprep.subr.mxu0 0.0
  %476 = vmatpush2.msra.mxu0 0.0
  %477 = vmatprep.subr.mxu0 0.0
  %478 = vmatpush2.msra.mxu0 0.0
  %479 = vmatprep.subr.mxu0 0.0
  %480 = vmatpush2.msra.mxu0 0.0
  %481 = vmatprep.subr.mxu0 0.0
  %482 = vmatpush2.msra.mxu0 0.0
  %483 = vmatprep.mubr.f32.mxu0 0.0
  %484 = vmatmul.mubr.f32.gmra.mxu0 %v408
  %v485 = vpop.f32.mrf.mxu0
  %v486 = vadd.f32 0.0, %v485
  %v487 = vpop.f32.mrf.mxu0
  %488 = vmatprep.mubr.f32.mxu0 0.0
  %489 = vmatmul.mubr.f32.gmra.mxu0 %v411
  %v490 = vpop.f32.mrf.mxu0
  %v491 = vadd.f32 0.0, %v490
  %v492 = vpop.f32.mrf.mxu0
  %493 = vmatprep.mubr.f32.mxu0 0.0
  %494 = vmatmul.mubr.f32.gmra.mxu0 %v414
  %v495 = vpop.f32.mrf.mxu0
  %v496 = vadd.f32 0.0, %v495
  %v497 = vpop.f32.mrf.mxu0
  %498 = vmatprep.mubr.f32.mxu0 0.0
  %499 = vmatmul.mubr.f32.gmra.mxu0 %v417
  %v500 = vpop.f32.mrf.mxu0
  %v501 = vadd.f32 0.0, %v500
  %v502 = vpop.f32.mrf.mxu0
  %503 = vdwg.mxu0
  %504 = vmatprep.subr.mxu0 0.0
  %505 = vmatpush1.msra.mxu0 %v200
  %506 = vmatprep.subr.mxu0 0.0
  %507 = vmatpush1.msra.mxu0 %v199
  %508 = vmatprep.subr.mxu0 0.0
  %509 = vmatpush1.msra.mxu0 %v198
  %510 = vmatprep.subr.mxu0 0.0
  %511 = vmatpush1.msra.mxu0 %v197
  %512 = vmatprep.subr.mxu0 0.0
  %513 = vmatpush1.msra.mxu0 %v196
  %514 = vmatprep.subr.mxu0 0.0
  %515 = vmatpush1.msra.mxu0 %v195
  %516 = vmatprep.subr.mxu0 0.0
  %517 = vmatpush1.msra.mxu0 %v194
  %518 = vmatprep.subr.mxu0 0.0
  %519 = vmatpush1.msra.mxu0 %v193
  %520 = vmatprep.subr.mxu0 0.0
  %521 = vmatpush1.msra.mxu0 %v192
  %522 = vmatprep.subr.mxu0 0.0
  %523 = vmatpush1.msra.mxu0 %v191
  %524 = vmatprep.subr.mxu0 0.0
  %525 = vmatpush1.msra.mxu0 %v190
  %526 = vmatprep.subr.mxu0 0.0
  %527 = vmatpush1.msra.mxu0 %v189
  %528 = vmatprep.subr.mxu0 0.0
  %529 = vmatpush1.msra.mxu0 %v188
  %530 = vmatprep.subr.mxu0 0.0
  %531 = vmatpush1.msra.mxu0 %v187
  %532 = vmatprep.subr.mxu0 0.0
  %533 = vmatpush1.msra.mxu0 %v186
  %534 = vmatprep.subr.mxu0 0.0
  %535 = vmatpush1.msra.mxu0 %v185
  %536 = vmatprep.subr.mxu0 0.0
  %537 = vmatpush2.msra.mxu0 0.0
  %538 = vmatprep.subr.mxu0 0.0
  %539 = vmatpush2.msra.mxu0 0.0
  %540 = vmatprep.subr.mxu0 0.0
  %541 = vmatpush2.msra.mxu0 0.0
  %542 = vmatprep.subr.mxu0 0.0
  %543 = vmatpush2.msra.mxu0 0.0
  %544 = vmatprep.subr.mxu0 0.0
  %545 = vmatpush2.msra.mxu0 0.0
  %546 = vmatprep.subr.mxu0 0.0
  %547 = vmatpush2.msra.mxu0 0.0
  %548 = vmatprep.subr.mxu0 0.0
  %549 = vmatpush2.msra.mxu0 0.0
  %550 = vmatprep.subr.mxu0 0.0
  %551 = vmatpush2.msra.mxu0 0.0
  %552 = vmatprep.subr.mxu0 0.0
  %553 = vmatpush2.msra.mxu0 0.0
  %554 = vmatprep.subr.mxu0 0.0
  %555 = vmatpush2.msra.mxu0 0.0
  %556 = vmatprep.subr.mxu0 0.0
  %557 = vmatpush2.msra.mxu0 0.0
  %558 = vmatprep.subr.mxu0 0.0
  %559 = vmatpush2.msra.mxu0 0.0
  %560 = vmatprep.subr.mxu0 0.0
  %561 = vmatpush2.msra.mxu0 0.0
  %562 = vmatprep.subr.mxu0 0.0
  %563 = vmatpush2.msra.mxu0 0.0
  %564 = vmatprep.subr.mxu0 0.0
  %565 = vmatpush2.msra.mxu0 0.0
  %566 = vmatprep.subr.mxu0 0.0
  %567 = vmatpush2.msra.mxu0 0.0
  %568 = vmatprep.mubr.f32.mxu0 0.0
  %569 = vmatmul.mubr.f32.gmra.mxu0 %v486
  %v570 = vpop.f32.mrf.mxu0
  %v571 = vadd.f32 0.0, %v570
  %v572 = vpop.f32.mrf.mxu0
  %573 = vmatprep.mubr.f32.mxu0 0.0
  %574 = vmatmul.mubr.f32.gmra.mxu0 %v491
  %v575 = vpop.f32.mrf.mxu0
  %v576 = vadd.f32 0.0, %v575
  %v577 = vpop.f32.mrf.mxu0
  %578 = vmatprep.mubr.f32.mxu0 0.0
  %579 = vmatmul.mubr.f32.gmra.mxu0 %v496
  %v580 = vpop.f32.mrf.mxu0
  %v581 = vadd.f32 0.0, %v580
  %v582 = vpop.f32.mrf.mxu0
  %583 = vmatprep.mubr.f32.mxu0 0.0
  %584 = vmatmul.mubr.f32.gmra.mxu0 %v501
  %v585 = vpop.f32.mrf.mxu0
  %v586 = vadd.f32 0.0, %v585
  %v587 = vpop.f32.mrf.mxu0
  %588 = vdwg.mxu0
  %v589 = vmul.f32 %v201, %v496
  %v590 = vmul.f32 %v202, %v501
  %v591 = vmul.f32 %v203, %v486
  %v592 = vmul.f32 %v204, %v491
  %593 = vmatprep.subr.mxu0 0.0
  %594 = vmatpush1.msra.mxu0 %v224
  %595 = vmatprep.subr.mxu0 0.0
  %596 = vmatpush1.msra.mxu0 %v223
  %597 = vmatprep.subr.mxu0 0.0
  %598 = vmatpush1.msra.mxu0 %v222
  %599 = vmatprep.subr.mxu0 0.0
  %600 = vmatpush1.msra.mxu0 %v221
  %601 = vmatprep.subr.mxu0 0.0
  %602 = vmatpush1.msra.mxu0 %v220
  %603 = vmatprep.subr.mxu0 0.0
  %604 = vmatpush1.msra.mxu0 %v219
  %605 = vmatprep.subr.mxu0 0.0
  %606 = vmatpush1.msra.mxu0 %v218
  %607 = vmatprep.subr.mxu0 0.0
  %608 = vmatpush1.msra.mxu0 %v217
  %609 = vmatprep.subr.mxu0 0.0
  %610 = vmatpush1.msra.mxu0 %v216
  %611 = vmatprep.subr.mxu0 0.0
  %612 = vmatpush1.msra.mxu0 %v215
  %613 = vmatprep.subr.mxu0 0.0
  %614 = vmatpush1.msra.mxu0 %v214
  %615 = vmatprep.subr.mxu0 0.0
  %616 = vmatpush1.msra.mxu0 %v213
  %617 = vmatprep.subr.mxu0 0.0
  %618 = vmatpush1.msra.mxu0 %v212
  %619 = vmatprep.subr.mxu0 0.0
  %620 = vmatpush1.msra.mxu0 %v211
  %621 = vmatprep.subr.mxu0 0.0
  %622 = vmatpush1.msra.mxu0 %v210
  %623 = vmatprep.subr.mxu0 0.0
  %624 = vmatpush1.msra.mxu0 %v209
  %625 = vmatprep.subr.mxu0 0.0
  %626 = vmatpush2.msra.mxu0 0.0
  %627 = vmatprep.subr.mxu0 0.0
  %628 = vmatpush2.msra.mxu0 0.0
  %629 = vmatprep.subr.mxu0 0.0
  %630 = vmatpush2.msra.mxu0 0.0
  %631 = vmatprep.subr.mxu0 0.0
  %632 = vmatpush2.msra.mxu0 0.0
  %633 = vmatprep.subr.mxu0 0.0
  %634 = vmatpush2.msra.mxu0 0.0
  %635 = vmatprep.subr.mxu0 0.0
  %636 = vmatpush2.msra.mxu0 0.0
  %637 = vmatprep.subr.mxu0 0.0
  %638 = vmatpush2.msra.mxu0 0.0
  %639 = vmatprep.subr.mxu0 0.0
  %640 = vmatpush2.msra.mxu0 0.0
  %641 = vmatprep.subr.mxu0 0.0
  %642 = vmatpush2.msra.mxu0 0.0
  %643 = vmatprep.subr.mxu0 0.0
  %644 = vmatpush2.msra.mxu0 0.0
  %645 = vmatprep.subr.mxu0 0.0
  %646 = vmatpush2.msra.mxu0 0.0
  %647 = vmatprep.subr.mxu0 0.0
  %648 = vmatpush2.msra.mxu0 0.0
  %649 = vmatprep.subr.mxu0 0.0
  %650 = vmatpush2.msra.mxu0 0.0
  %651 = vmatprep.subr.mxu0 0.0
  %652 = vmatpush2.msra.mxu0 0.0
  %653 = vmatprep.subr.mxu0 0.0
  %654 = vmatpush2.msra.mxu0 0.0
  %655 = vmatprep.subr.mxu0 0.0
  %656 = vmatpush2.msra.mxu0 0.0
  %657 = vmatprep.mubr.f32.mxu0 0.0
  %658 = vmatmul.mubr.f32.gmra.mxu0 %v589
  %v659 = vpop.f32.mrf.mxu0
  %v660 = vadd.f32 0.0, %v659
  %v661 = vpop.f32.mrf.mxu0
  %662 = vmatprep.mubr.f32.mxu0 0.0
  %663 = vmatmul.mubr.f32.gmra.mxu0 %v590
  %v664 = vpop.f32.mrf.mxu0
  %v665 = vadd.f32 0.0, %v664
  %v666 = vpop.f32.mrf.mxu0
  %667 = vmatprep.mubr.f32.mxu0 0.0
  %668 = vmatmul.mubr.f32.gmra.mxu0 %v591
  %v669 = vpop.f32.mrf.mxu0
  %v670 = vadd.f32 0.0, %v669
  %v671 = vpop.f32.mrf.mxu0
  %672 = vmatprep.mubr.f32.mxu0 0.0
  %673 = vmatmul.mubr.f32.gmra.mxu0 %v592
  %v674 = vpop.f32.mrf.mxu0
  %v675 = vadd.f32 0.0, %v674
  %v676 = vpop.f32.mrf.mxu0
  %677 = vdwg.mxu0
  %v678 = vsub.f32 %v571, %v660
  %v679 = vsub.f32 %v576, %v665
  %v680 = vsub.f32 %v581, %v670
  %v681 = vsub.f32 %v586, %v675
  %v682 = vmul.f32 %v678, %v63
  %v683 = vmul.f32 %v679, %v64
  %v684 = vmul.f32 %v680, %v65
  %v685 = vmul.f32 %v681, %v66
  %v686 = vld [vmem:[%s4] sm:$0xff]
  %v687 = vld [vmem:[%s4 + $0x8] sm:$0xff]
  %v688 = vld [vmem:[%s4 + $0x10] sm:$0xff]
  %v689 = vld [vmem:[%s4 + $0x18] sm:$0xff]
  %v690 = vmul.f32 %v680, %v686
  %v691 = vmul.f32 %v681, %v687
  %v692 = vmul.f32 %v678, %v688
  %v693 = vmul.f32 %v679, %v689
  %v694 = vadd.f32 %v682, %v690
  %v695 = vadd.f32 %v683, %v691
  %v696 = vadd.f32 %v684, %v692
  %v697 = vadd.f32 %v685, %v693
  %v698 = vld [vmem:[%s11] sm:$0xff]
  %v699 = vld [vmem:[%s11 + $0x8] sm:$0xff]
  %v700 = vld [vmem:[%s11 + $0x10] sm:$0xff]
  %v701 = vld [vmem:[%s11 + $0x18] sm:$0xff]
  %v702 = vld [vmem:[%s11 + $0x20] sm:$0xff]
  %v703 = vld [vmem:[%s11 + $0x28] sm:$0xff]
  %v704 = vld [vmem:[%s11 + $0x30] sm:$0xff]
  %v705 = vld [vmem:[%s11 + $0x38] sm:$0xff]
  %v706 = vld [vmem:[%s11 + $0x40] sm:$0xff]
  %v707 = vld [vmem:[%s11 + $0x48] sm:$0xff]
  %v708 = vld [vmem:[%s11 + $0x50] sm:$0xff]
  %v709 = vld [vmem:[%s11 + $0x58] sm:$0xff]
  %v710 = vld [vmem:[%s11 + $0x60] sm:$0xff]
  %v711 = vld [vmem:[%s11 + $0x68] sm:$0xff]
  %v712 = vld [vmem:[%s11 + $0x70] sm:$0xff]
  %v713 = vld [vmem:[%s11 + $0x78] sm:$0xff]
  %v714 = vstv %s42
  %v715 = vmul.f32 %v714, %v43
  %v716 = vmul.f32 %v714, %v44
  %v717 = vmul.f32 %v714, %v45
  %v718 = vmul.f32 %v714, %v46
  %719 = vmatprep.subr.mxu0 0.0
  %720 = vmatpush1.msra.mxu0 %v713
  %721 = vmatprep.subr.mxu0 0.0
  %722 = vmatpush1.msra.mxu0 %v712
  %723 = vmatprep.subr.mxu0 0.0
  %724 = vmatpush1.msra.mxu0 %v711
  %725 = vmatprep.subr.mxu0 0.0
  %726 = vmatpush1.msra.mxu0 %v710
  %727 = vmatprep.subr.mxu0 0.0
  %728 = vmatpush1.msra.mxu0 %v709
  %729 = vmatprep.subr.mxu0 0.0
  %730 = vmatpush1.msra.mxu0 %v708
  %731 = vmatprep.subr.mxu0 0.0
  %732 = vmatpush1.msra.mxu0 %v707
  %733 = vmatprep.subr.mxu0 0.0
  %734 = vmatpush1.msra.mxu0 %v706
  %735 = vmatprep.subr.mxu0 0.0
  %736 = vmatpush1.msra.mxu0 %v705
  %737 = vmatprep.subr.mxu0 0.0
  %738 = vmatpush1.msra.mxu0 %v704
  %739 = vmatprep.subr.mxu0 0.0
  %740 = vmatpush1.msra.mxu0 %v703
  %741 = vmatprep.subr.mxu0 0.0
  %742 = vmatpush1.msra.mxu0 %v702
  %743 = vmatprep.subr.mxu0 0.0
  %744 = vmatpush1.msra.mxu0 %v701
  %745 = vmatprep.subr.mxu0 0.0
  %746 = vmatpush1.msra.mxu0 %v700
  %747 = vmatprep.subr.mxu0 0.0
  %748 = vmatpush1.msra.mxu0 %v699
  %749 = vmatprep.subr.mxu0 0.0
  %750 = vmatpush1.msra.mxu0 %v698
  %751 = vmatprep.subr.mxu0 0.0
  %752 = vmatpush2.msra.mxu0 0.0
  %753 = vmatprep.subr.mxu0 0.0
  %754 = vmatpush2.msra.mxu0 0.0
  %755 = vmatprep.subr.mxu0 0.0
  %756 = vmatpush2.msra.mxu0 0.0
  %757 = vmatprep.subr.mxu0 0.0
  %758 = vmatpush2.msra.mxu0 0.0
  %759 = vmatprep.subr.mxu0 0.0
  %760 = vmatpush2.msra.mxu0 0.0
  %761 = vmatprep.subr.mxu0 0.0
  %762 = vmatpush2.msra.mxu0 0.0
  %763 = vmatprep.subr.mxu0 0.0
  %764 = vmatpush2.msra.mxu0 0.0
  %765 = vmatprep.subr.mxu0 0.0
  %766 = vmatpush2.msra.mxu0 0.0
  %767 = vmatprep.subr.mxu0 0.0
  %768 = vmatpush2.msra.mxu0 0.0
  %769 = vmatprep.subr.mxu0 0.0
  %770 = vmatpush2.msra.mxu0 0.0
  %771 = vmatprep.subr.mxu0 0.0
  %772 = vmatpush2.msra.mxu0 0.0
  %773 = vmatprep.subr.mxu0 0.0
  %774 = vmatpush2.msra.mxu0 0.0
  %775 = vmatprep.subr.mxu0 0.0
  %776 = vmatpush2.msra.mxu0 0.0
  %777 = vmatprep.subr.mxu0 0.0
  %778 = vmatpush2.msra.mxu0 0.0
  %779 = vmatprep.subr.mxu0 0.0
  %780 = vmatpush2.msra.mxu0 0.0
  %781 = vmatprep.subr.mxu0 0.0
  %782 = vmatpush2.msra.mxu0 0.0
  %783 = vmatprep.mubr.f32.mxu0 0.0
  %784 = vmatmul.mubr.f32.gmra.mxu0 %v694
  %v785 = vpop.f32.mrf.mxu0
  %v786 = vadd.f32 %v715, %v785
  %v787 = vpop.f32.mrf.mxu0
  %788 = vmatprep.mubr.f32.mxu0 0.0
  %789 = vmatmul.mubr.f32.gmra.mxu0 %v695
  %v790 = vpop.f32.mrf.mxu0
  %v791 = vadd.f32 %v716, %v790
  %v792 = vpop.f32.mrf.mxu0
  %793 = vmatprep.mubr.f32.mxu0 0.0
  %794 = vmatmul.mubr.f32.gmra.mxu0 %v696
  %v795 = vpop.f32.mrf.mxu0
  %v796 = vadd.f32 %v717, %v795
  %v797 = vpop.f32.mrf.mxu0
  %798 = vmatprep.mubr.f32.mxu0 0.0
  %799 = vmatmul.mubr.f32.gmra.mxu0 %v697
  %v800 = vpop.f32.mrf.mxu0
  %v801 = vadd.f32 %v718, %v800
  %v802 = vpop.f32.mrf.mxu0
  %803 = vdwg.mxu0
  %v804 = vmul.f32 %v43, %v786
  %v805 = vmul.f32 %v44, %v791
  %v806 = vmul.f32 %v45, %v796
  %v807 = vmul.f32 %v46, %v801
  %v808 = vadd.f32 %v804, %v805
  %v809 = vadd.f32 %v808, %v806
  %v810 = vadd.f32 %v809, %v807
  %811 = vadd.xlane.f32.xlu0 %v810
  %v812 = vpop.xlane.xlu0 %811
  %v813 = vrot.slane %v812, 4
  %v814 = vadd.f32 %v812, %v813
  %v815 = vrot.slane %v814, 2
  %v816 = vadd.f32 %v814, %v815
  %v817 = vrot.slane %v816, 1
  %v818 = vadd.f32 %v816, %v817
  %s819 = vtos %v818
  %v820 = vstv %s819
  %v821 = vrcp.pop %v820
  %s822 = vtos %v821
  %s823 = smul.f32 %s62, %s822
  %v824 = vstv %s823
  %v825 = vmul.f32 %v824, %v43
  %v826 = vmul.f32 %v824, %v44
  %v827 = vmul.f32 %v824, %v45
  %v828 = vmul.f32 %v824, %v46
  %v829 = vadd.f32 %v825, 0.0
  %v830 = vadd.f32 %v826, 0.0
  %v831 = vadd.f32 %v827, 0.0
  %v832 = vadd.f32 %v828, 0.0
  %v833 = vmul.f32 %v824, %v786
  %v834 = vmul.f32 %v824, %v791
  %v835 = vmul.f32 %v824, %v796
  %v836 = vmul.f32 %v824, %v801
  %v837 = vsub.f32 %v43, %v833
  %v838 = vsub.f32 %v44, %v834
  %v839 = vsub.f32 %v45, %v835
  %v840 = vsub.f32 %v46, %v836
  %v841 = vmul.f32 %v837, %v837
  %v842 = vmul.f32 %v838, %v838
  %v843 = vmul.f32 %v839, %v839
  %v844 = vmul.f32 %v840, %v840
  %v845 = vadd.f32 %v841, %v842
  %v846 = vadd.f32 %v845, %v843
  %v847 = vadd.f32 %v846, %v844
  %848 = vadd.xlane.f32.xlu0 %v847
  %v849 = vpop.xlane.xlu0 %848
  %v850 = vrot.slane %v849, 4
  %v851 = vadd.f32 %v849, %v850
  %v852 = vrot.slane %v851, 2
  %v853 = vadd.f32 %v851, %v852
  %v854 = vrot.slane %v853, 1
  %v855 = vadd.f32 %v853, %v854
  %s856 = vtos %v855
  %v857 = vstv %s62
  %v858 = vrcp.pop %v857
  %s859 = vtos %v858
  %s860 = smul.f32 %s856, %s859
  %v861 = vstv %s860
  %v862 = vmul.f32 %v861, %v43
  %v863 = vmul.f32 %v861, %v44
  %v864 = vmul.f32 %v861, %v45
  %v865 = vmul.f32 %v861, %v46
  %v866 = vadd.f32 %v837, %v862
  %v867 = vadd.f32 %v838, %v863
  %v868 = vadd.f32 %v839, %v864
  %v869 = vadd.f32 %v840, %v865
  %v870 = vmul.f32 %v866, %v63
  %v871 = vmul.f32 %v867, %v64
  %v872 = vmul.f32 %v868, %v65
  %v873 = vmul.f32 %v869, %v66
  %v874 = vmul.f32 %v868, %v71
  %v875 = vmul.f32 %v869, %v72
  %v876 = vmul.f32 %v866, %v73
  %v877 = vmul.f32 %v867, %v74
  %v878 = vadd.f32 %v870, %v874
  %v879 = vadd.f32 %v871, %v875
  %v880 = vadd.f32 %v872, %v876
  %v881 = vadd.f32 %v873, %v877
  %882 = vmatprep.subr.mxu0 0.0
  %883 = vmatpush1.msra.mxu0 0.0
  %884 = vmatprep.subr.mxu0 0.0
  %885 = vmatpush1.msra.mxu0 0.0
  %886 = vmatprep.subr.mxu0 0.0
  %887 = vmatpush1.msra.mxu0 0.0
  %888 = vmatprep.subr.mxu0 0.0
  %889 = vmatpush1.msra.mxu0 0.0
  %890 = vmatprep.subr.mxu0 0.0
  %891 = vmatpush1.msra.mxu0 0.0
  %892 = vmatprep.subr.mxu0 0.0
  %893 = vmatpush1.msra.mxu0 0.0
  %894 = vmatprep.subr.mxu0 0.0
  %895 = vmatpush1.msra.mxu0 0.0
  %896 = vmatprep.subr.mxu0 0.0
  %897 = vmatpush1.msra.mxu0 0.0
  %898 = vmatprep.subr.mxu0 0.0
  %899 = vmatpush1.msra.mxu0 0.0
  %900 = vmatprep.subr.mxu0 0.0
  %901 = vmatpush1.msra.mxu0 0.0
  %902 = vmatprep.subr.mxu0 0.0
  %903 = vmatpush1.msra.mxu0 0.0
  %904 = vmatprep.subr.mxu0 0.0
  %905 = vmatpush1.msra.mxu0 0.0
  %906 = vmatprep.subr.mxu0 0.0
  %907 = vmatpush1.msra.mxu0 %v881
  %908 = vmatprep.subr.mxu0 0.0
  %909 = vmatpush1.msra.mxu0 %v880
  %910 = vmatprep.subr.mxu0 0.0
  %911 = vmatpush1.msra.mxu0 %v879
  %912 = vmatprep.subr.mxu0 0.0
  %913 = vmatpush1.msra.mxu0 %v878
  %914 = vmatprep.subr.mxu0 0.0
  %915 = vmatpush2.msra.mxu0 0.0
  %916 = vmatprep.subr.mxu0 0.0
  %917 = vmatpush2.msra.mxu0 0.0
  %918 = vmatprep.subr.mxu0 0.0
  %919 = vmatpush2.msra.mxu0 0.0
  %920 = vmatprep.subr.mxu0 0.0
  %921 = vmatpush2.msra.mxu0 0.0
  %922 = vmatprep.subr.mxu0 0.0
  %923 = vmatpush2.msra.mxu0 0.0
  %924 = vmatprep.subr.mxu0 0.0
  %925 = vmatpush2.msra.mxu0 0.0
  %926 = vmatprep.subr.mxu0 0.0
  %927 = vmatpush2.msra.mxu0 0.0
  %928 = vmatprep.subr.mxu0 0.0
  %929 = vmatpush2.msra.mxu0 0.0
  %930 = vmatprep.subr.mxu0 0.0
  %931 = vmatpush2.msra.mxu0 0.0
  %932 = vmatprep.subr.mxu0 0.0
  %933 = vmatpush2.msra.mxu0 0.0
  %934 = vmatprep.subr.mxu0 0.0
  %935 = vmatpush2.msra.mxu0 0.0
  %936 = vmatprep.subr.mxu0 0.0
  %937 = vmatpush2.msra.mxu0 0.0
  %938 = vmatprep.subr.mxu0 0.0
  %939 = vmatpush2.msra.mxu0 0.0
  %940 = vmatprep.subr.mxu0 0.0
  %941 = vmatpush2.msra.mxu0 0.0
  %942 = vmatprep.subr.mxu0 0.0
  %943 = vmatpush2.msra.mxu0 0.0
  %944 = vmatprep.subr.mxu0 0.0
  %945 = vmatpush2.msra.mxu0 0.0
  %946 = vmatprep.mubr.f32.mxu0 0.0
  %947 = vmatmul.mubr.f32.gmra.mxu0 %v89
  %v948 = vpop.f32.mrf.mxu0
  %v949 = vadd.f32 0.0, %v948
  %v950 = vpop.f32.mrf.mxu0
  %951 = vmatprep.mubr.f32.mxu0 0.0
  %952 = vmatmul.mubr.f32.gmra.mxu0 %v92
  %v953 = vpop.f32.mrf.mxu0
  %v954 = vadd.f32 0.0, %v953
  %v955 = vpop.f32.mrf.mxu0
  %956 = vmatprep.mubr.f32.mxu0 0.0
  %957 = vmatmul.mubr.f32.gmra.mxu0 %v95
  %v958 = vpop.f32.mrf.mxu0
  %v959 = vadd.f32 0.0, %v958
  %v960 = vpop.f32.mrf.mxu0
  %961 = vmatprep.mubr.f32.mxu0 0.0
  %962 = vmatmul.mubr.f32.gmra.mxu0 %v98
  %v963 = vpop.f32.mrf.mxu0
  %v964 = vadd.f32 0.0, %v963
  %v965 = vpop.f32.mrf.mxu0
  %966 = vdwg.mxu0
  %v967 = vmul.f32 %v201, %v959
  %v968 = vmul.f32 %v202, %v964
  %v969 = vmul.f32 %v203, %v949
  %v970 = vmul.f32 %v204, %v954
  %971 = vmatprep.subr.mxu0 0.0
  %972 = vmatpush1.msra.mxu0 %v224
  %973 = vmatprep.subr.mxu0 0.0
  %974 = vmatpush1.msra.mxu0 %v223
  %975 = vmatprep.subr.mxu0 0.0
  %976 = vmatpush1.msra.mxu0 %v222
  %977 = vmatprep.subr.mxu0 0.0
  %978 = vmatpush1.msra.mxu0 %v221
  %979 = vmatprep.subr.mxu0 0.0
  %980 = vmatpush1.msra.mxu0 %v220
  %981 = vmatprep.subr.mxu0 0.0
  %982 = vmatpush1.msra.mxu0 %v219
  %983 = vmatprep.subr.mxu0 0.0
  %984 = vmatpush1.msra.mxu0 %v218
  %985 = vmatprep.subr.mxu0 0.0
  %986 = vmatpush1.msra.mxu0 %v217
  %987 = vmatprep.subr.mxu0 0.0
  %988 = vmatpush1.msra.mxu0 %v216
  %989 = vmatprep.subr.mxu0 0.0
  %990 = vmatpush1.msra.mxu0 %v215
  %991 = vmatprep.subr.mxu0 0.0
  %992 = vmatpush1.msra.mxu0 %v214
  %993 = vmatprep.subr.mxu0 0.0
  %994 = vmatpush1.msra.mxu0 %v213
  %995 = vmatprep.subr.mxu0 0.0
  %996 = vmatpush1.msra.mxu0 %v212
  %997 = vmatprep.subr.mxu0 0.0
  %998 = vmatpush1.msra.mxu0 %v211
  %999 = vmatprep.subr.mxu0 0.0
  %1000 = vmatpush1.msra.mxu0 %v210
  %1001 = vmatprep.subr.mxu0 0.0
  %1002 = vmatpush1.msra.mxu0 %v209
  %1003 = vmatprep.subr.mxu0 0.0
  %1004 = vmatpush2.msra.mxu0 0.0
  %1005 = vmatprep.subr.mxu0 0.0
  %1006 = vmatpush2.msra.mxu0 0.0
  %1007 = vmatprep.subr.mxu0 0.0
  %1008 = vmatpush2.msra.mxu0 0.0
  %1009 = vmatprep.subr.mxu0 0.0
  %1010 = vmatpush2.msra.mxu0 0.0
  %1011 = vmatprep.subr.mxu0 0.0
  %1012 = vmatpush2.msra.mxu0 0.0
  %1013 = vmatprep.subr.mxu0 0.0
  %1014 = vmatpush2.msra.mxu0 0.0
  %1015 = vmatprep.subr.mxu0 0.0
  %1016 = vmatpush2.msra.mxu0 0.0
  %1017 = vmatprep.subr.mxu0 0.0
  %1018 = vmatpush2.msra.mxu0 0.0
  %1019 = vmatprep.subr.mxu0 0.0
  %1020 = vmatpush2.msra.mxu0 0.0
  %1021 = vmatprep.subr.mxu0 0.0
  %1022 = vmatpush2.msra.mxu0 0.0
  %1023 = vmatprep.subr.mxu0 0.0
  %1024 = vmatpush2.msra.mxu0 0.0
  %1025 = vmatprep.subr.mxu0 0.0
  %1026 = vmatpush2.msra.mxu0 0.0
  %1027 = vmatprep.subr.mxu0 0.0
  %1028 = vmatpush2.msra.mxu0 0.0
  %1029 = vmatprep.subr.mxu0 0.0
  %1030 = vmatpush2.msra.mxu0 0.0
  %1031 = vmatprep.subr.mxu0 0.0
  %1032 = vmatpush2.msra.mxu0 0.0
  %1033 = vmatprep.subr.mxu0 0.0
  %1034 = vmatpush2.msra.mxu0 0.0
  %1035 = vmatprep.mubr.f32.mxu0 0.0
  %1036 = vmatmul.mubr.f32.gmra.mxu0 %v967
  %v1037 = vpop.f32.mrf.mxu0
  %v1038 = vadd.f32 0.0, %v1037
  %v1039 = vpop.f32.mrf.mxu0
  %1040 = vmatprep.mubr.f32.mxu0 0.0
  %1041 = vmatmul.mubr.f32.gmra.mxu0 %v968
  %v1042 = vpop.f32.mrf.mxu0
  %v1043 = vadd.f32 0.0, %v1042
  %v1044 = vpop.f32.mrf.mxu0
  %1045 = vmatprep.mubr.f32.mxu0 0.0
  %1046 = vmatmul.mubr.f32.gmra.mxu0 %v969
  %v1047 = vpop.f32.mrf.mxu0
  %v1048 = vadd.f32 0.0, %v1047
  %v1049 = vpop.f32.mrf.mxu0
  %1050 = vmatprep.mubr.f32.mxu0 0.0
  %1051 = vmatmul.mubr.f32.gmra.mxu0 %v970
  %v1052 = vpop.f32.mrf.mxu0
  %v1053 = vadd.f32 0.0, %v1052
  %v1054 = vpop.f32.mrf.mxu0
  %1055 = vdwg.mxu0
  %1056 = vmatprep.subr.mxu0 0.0
  %1057 = vmatpush1.msra.mxu0 %v200
  %1058 = vmatprep.subr.mxu0 0.0
  %1059 = vmatpush1.msra.mxu0 %v199
  %1060 = vmatprep.subr.mxu0 0.0
  %1061 = vmatpush1.msra.mxu0 %v198
  %1062 = vmatprep.subr.mxu0 0.0
  %1063 = vmatpush1.msra.mxu0 %v197
  %1064 = vmatprep.subr.mxu0 0.0
  %1065 = vmatpush1.msra.mxu0 %v196
  %1066 = vmatprep.subr.mxu0 0.0
  %1067 = vmatpush1.msra.mxu0 %v195
  %1068 = vmatprep.subr.mxu0 0.0
  %1069 = vmatpush1.msra.mxu0 %v194
  %1070 = vmatprep.subr.mxu0 0.0
  %1071 = vmatpush1.msra.mxu0 %v193
  %1072 = vmatprep.subr.mxu0 0.0
  %1073 = vmatpush1.msra.mxu0 %v192
  %1074 = vmatprep.subr.mxu0 0.0
  %1075 = vmatpush1.msra.mxu0 %v191
  %1076 = vmatprep.subr.mxu0 0.0
  %1077 = vmatpush1.msra.mxu0 %v190
  %1078 = vmatprep.subr.mxu0 0.0
  %1079 = vmatpush1.msra.mxu0 %v189
  %1080 = vmatprep.subr.mxu0 0.0
  %1081 = vmatpush1.msra.mxu0 %v188
  %1082 = vmatprep.subr.mxu0 0.0
  %1083 = vmatpush1.msra.mxu0 %v187
  %1084 = vmatprep.subr.mxu0 0.0
  %1085 = vmatpush1.msra.mxu0 %v186
  %1086 = vmatprep.subr.mxu0 0.0
  %1087 = vmatpush1.msra.mxu0 %v185
  %1088 = vmatprep.subr.mxu0 0.0
  %1089 = vmatpush2.msra.mxu0 0.0
  %1090 = vmatprep.subr.mxu0 0.0
  %1091 = vmatpush2.msra.mxu0 0.0
  %1092 = vmatprep.subr.mxu0 0.0
  %1093 = vmatpush2.msra.mxu0 0.0
  %1094 = vmatprep.subr.mxu0 0.0
  %1095 = vmatpush2.msra.mxu0 0.0
  %1096 = vmatprep.subr.mxu0 0.0
  %1097 = vmatpush2.msra.mxu0 0.0
  %1098 = vmatprep.subr.mxu0 0.0
  %1099 = vmatpush2.msra.mxu0 0.0
  %1100 = vmatprep.subr.mxu0 0.0
  %1101 = vmatpush2.msra.mxu0 0.0
  %1102 = vmatprep.subr.mxu0 0.0
  %1103 = vmatpush2.msra.mxu0 0.0
  %1104 = vmatprep.subr.mxu0 0.0
  %1105 = vmatpush2.msra.mxu0 0.0
  %1106 = vmatprep.subr.mxu0 0.0
  %1107 = vmatpush2.msra.mxu0 0.0
  %1108 = vmatprep.subr.mxu0 0.0
  %1109 = vmatpush2.msra.mxu0 0.0
  %1110 = vmatprep.subr.mxu0 0.0
  %1111 = vmatpush2.msra.mxu0 0.0
  %1112 = vmatprep.subr.mxu0 0.0
  %1113 = vmatpush2.msra.mxu0 0.0
  %1114 = vmatprep.subr.mxu0 0.0
  %1115 = vmatpush2.msra.mxu0 0.0
  %1116 = vmatprep.subr.mxu0 0.0
  %1117 = vmatpush2.msra.mxu0 0.0
  %1118 = vmatprep.subr.mxu0 0.0
  %1119 = vmatpush2.msra.mxu0 0.0
  %1120 = vmatprep.mubr.f32.mxu0 0.0
  %1121 = vmatmul.mubr.f32.gmra.mxu0 %v949
  %v1122 = vpop.f32.mrf.mxu0
  %v1123 = vadd.f32 %v1038, %v1122
  %v1124 = vpop.f32.mrf.mxu0
  %1125 = vmatprep.mubr.f32.mxu0 0.0
  %1126 = vmatmul.mubr.f32.gmra.mxu0 %v954
  %v1127 = vpop.f32.mrf.mxu0
  %v1128 = vadd.f32 %v1043, %v1127
  %v1129 = vpop.f32.mrf.mxu0
  %1130 = vmatprep.mubr.f32.mxu0 0.0
  %1131 = vmatmul.mubr.f32.gmra.mxu0 %v959
  %v1132 = vpop.f32.mrf.mxu0
  %v1133 = vadd.f32 %v1048, %v1132
  %v1134 = vpop.f32.mrf.mxu0
  %1135 = vmatprep.mubr.f32.mxu0 0.0
  %1136 = vmatmul.mubr.f32.gmra.mxu0 %v964
  %v1137 = vpop.f32.mrf.mxu0
  %v1138 = vadd.f32 %v1053, %v1137
  %v1139 = vpop.f32.mrf.mxu0
  %1140 = vdwg.mxu0
  %v1141 = vmul.f32 %v1123, %v395
  %v1142 = vmul.f32 %v1128, %v396
  %v1143 = vmul.f32 %v1133, %v397
  %v1144 = vmul.f32 %v1138, %v398
  %1145 = vmatprep.subr.mxu0 0.0
  %1146 = vmatpush1.msra.mxu0 0.0
  %1147 = vmatprep.subr.mxu0 0.0
  %1148 = vmatpush1.msra.mxu0 0.0
  %1149 = vmatprep.subr.mxu0 0.0
  %1150 = vmatpush1.msra.mxu0 0.0
  %1151 = vmatprep.subr.mxu0 0.0
  %1152 = vmatpush1.msra.mxu0 0.0
  %1153 = vmatprep.subr.mxu0 0.0
  %1154 = vmatpush1.msra.mxu0 0.0
  %1155 = vmatprep.subr.mxu0 0.0
  %1156 = vmatpush1.msra.mxu0 0.0
  %1157 = vmatprep.subr.mxu0 0.0
  %1158 = vmatpush1.msra.mxu0 0.0
  %1159 = vmatprep.subr.mxu0 0.0
  %1160 = vmatpush1.msra.mxu0 0.0
  %1161 = vmatprep.subr.mxu0 0.0
  %1162 = vmatpush1.msra.mxu0 0.0
  %1163 = vmatprep.subr.mxu0 0.0
  %1164 = vmatpush1.msra.mxu0 0.0
  %1165 = vmatprep.subr.mxu0 0.0
  %1166 = vmatpush1.msra.mxu0 0.0
  %1167 = vmatprep.subr.mxu0 0.0
  %1168 = vmatpush1.msra.mxu0 0.0
  %1169 = vmatprep.subr.mxu0 0.0
  %1170 = vmatpush1.msra.mxu0 %v1144
  %1171 = vmatprep.subr.mxu0 0.0
  %1172 = vmatpush1.msra.mxu0 %v1143
  %1173 = vmatprep.subr.mxu0 0.0
  %1174 = vmatpush1.msra.mxu0 %v1142
  %1175 = vmatprep.subr.mxu0 0.0
  %1176 = vmatpush1.msra.mxu0 %v1141
  %1177 = vmatprep.subr.mxu0 0.0
  %1178 = vmatpush2.msra.mxu0 0.0
  %1179 = vmatprep.subr.mxu0 0.0
  %1180 = vmatpush2.msra.mxu0 0.0
  %1181 = vmatprep.subr.mxu0 0.0
  %1182 = vmatpush2.msra.mxu0 0.0
  %1183 = vmatprep.subr.mxu0 0.0
  %1184 = vmatpush2.msra.mxu0 0.0
  %1185 = vmatprep.subr.mxu0 0.0
  %1186 = vmatpush2.msra.mxu0 0.0
  %1187 = vmatprep.subr.mxu0 0.0
  %1188 = vmatpush2.msra.mxu0 0.0
  %1189 = vmatprep.subr.mxu0 0.0
  %1190 = vmatpush2.msra.mxu0 0.0
  %1191 = vmatprep.subr.mxu0 0.0
  %1192 = vmatpush2.msra.mxu0 0.0
  %1193 = vmatprep.subr.mxu0 0.0
  %1194 = vmatpush2.msra.mxu0 0.0
  %1195 = vmatprep.subr.mxu0 0.0
  %1196 = vmatpush2.msra.mxu0 0.0
  %1197 = vmatprep.subr.mxu0 0.0
  %1198 = vmatpush2.msra.mxu0 0.0
  %1199 = vmatprep.subr.mxu0 0.0
  %1200 = vmatpush2.msra.mxu0 0.0
  %1201 = vmatprep.subr.mxu0 0.0
  %1202 = vmatpush2.msra.mxu0 0.0
  %1203 = vmatprep.subr.mxu0 0.0
  %1204 = vmatpush2.msra.mxu0 0.0
  %1205 = vmatprep.subr.mxu0 0.0
  %1206 = vmatpush2.msra.mxu0 0.0
  %1207 = vmatprep.subr.mxu0 0.0
  %1208 = vmatpush2.msra.mxu0 0.0
  %1209 = vmatprep.mubr.f32.mxu0 0.0
  %1210 = vmatmul.mubr.f32.gmra.mxu0 %v408
  %v1211 = vpop.f32.mrf.mxu0
  %v1212 = vadd.f32 0.0, %v1211
  %v1213 = vpop.f32.mrf.mxu0
  %1214 = vmatprep.mubr.f32.mxu0 0.0
  %1215 = vmatmul.mubr.f32.gmra.mxu0 %v411
  %v1216 = vpop.f32.mrf.mxu0
  %v1217 = vadd.f32 0.0, %v1216
  %v1218 = vpop.f32.mrf.mxu0
  %1219 = vmatprep.mubr.f32.mxu0 0.0
  %1220 = vmatmul.mubr.f32.gmra.mxu0 %v414
  %v1221 = vpop.f32.mrf.mxu0
  %v1222 = vadd.f32 0.0, %v1221
  %v1223 = vpop.f32.mrf.mxu0
  %1224 = vmatprep.mubr.f32.mxu0 0.0
  %1225 = vmatmul.mubr.f32.gmra.mxu0 %v417
  %v1226 = vpop.f32.mrf.mxu0
  %v1227 = vadd.f32 0.0, %v1226
  %v1228 = vpop.f32.mrf.mxu0
  %1229 = vdwg.mxu0
  %1230 = vmatprep.subr.mxu0 0.0
  %1231 = vmatpush1.msra.mxu0 %v200
  %1232 = vmatprep.subr.mxu0 0.0
  %1233 = vmatpush1.msra.mxu0 %v199
  %1234 = vmatprep.subr.mxu0 0.0
  %1235 = vmatpush1.msra.mxu0 %v198
  %1236 = vmatprep.subr.mxu0 0.0
  %1237 = vmatpush1.msra.mxu0 %v197
  %1238 = vmatprep.subr.mxu0 0.0
  %1239 = vmatpush1.msra.mxu0 %v196
  %1240 = vmatprep.subr.mxu0 0.0
  %1241 = vmatpush1.msra.mxu0 %v195
  %1242 = vmatprep.subr.mxu0 0.0
  %1243 = vmatpush1.msra.mxu0 %v194
  %1244 = vmatprep.subr.mxu0 0.0
  %1245 = vmatpush1.msra.mxu0 %v193
  %1246 = vmatprep.subr.mxu0 0.0
  %1247 = vmatpush1.msra.mxu0 %v192
  %1248 = vmatprep.subr.mxu0 0.0
  %1249 = vmatpush1.msra.mxu0 %v191
  %1250 = vmatprep.subr.mxu0 0.0
  %1251 = vmatpush1.msra.mxu0 %v190
  %1252 = vmatprep.subr.mxu0 0.0
  %1253 = vmatpush1.msra.mxu0 %v189
  %1254 = vmatprep.subr.mxu0 0.0
  %1255 = vmatpush1.msra.mxu0 %v188
  %1256 = vmatprep.subr.mxu0 0.0
  %1257 = vmatpush1.msra.mxu0 %v187
  %1258 = vmatprep.subr.mxu0 0.0
  %1259 = vmatpush1.msra.mxu0 %v186
  %1260 = vmatprep.subr.mxu0 0.0
  %1261 = vmatpush1.msra.mxu0 %v185
  %1262 = vmatprep.subr.mxu0 0.0
  %1263 = vmatpush2.msra.mxu0 0.0
  %1264 = vmatprep.subr.mxu0 0.0
  %1265 = vmatpush2.msra.mxu0 0.0
  %1266 = vmatprep.subr.mxu0 0.0
  %1267 = vmatpush2.msra.mxu0 0.0
  %1268 = vmatprep.subr.mxu0 0.0
  %1269 = vmatpush2.msra.mxu0 0.0
  %1270 = vmatprep.subr.mxu0 0.0
  %1271 = vmatpush2.msra.mxu0 0.0
  %1272 = vmatprep.subr.mxu0 0.0
  %1273 = vmatpush2.msra.mxu0 0.0
  %1274 = vmatprep.subr.mxu0 0.0
  %1275 = vmatpush2.msra.mxu0 0.0
  %1276 = vmatprep.subr.mxu0 0.0
  %1277 = vmatpush2.msra.mxu0 0.0
  %1278 = vmatprep.subr.mxu0 0.0
  %1279 = vmatpush2.msra.mxu0 0.0
  %1280 = vmatprep.subr.mxu0 0.0
  %1281 = vmatpush2.msra.mxu0 0.0
  %1282 = vmatprep.subr.mxu0 0.0
  %1283 = vmatpush2.msra.mxu0 0.0
  %1284 = vmatprep.subr.mxu0 0.0
  %1285 = vmatpush2.msra.mxu0 0.0
  %1286 = vmatprep.subr.mxu0 0.0
  %1287 = vmatpush2.msra.mxu0 0.0
  %1288 = vmatprep.subr.mxu0 0.0
  %1289 = vmatpush2.msra.mxu0 0.0
  %1290 = vmatprep.subr.mxu0 0.0
  %1291 = vmatpush2.msra.mxu0 0.0
  %1292 = vmatprep.subr.mxu0 0.0
  %1293 = vmatpush2.msra.mxu0 0.0
  %1294 = vmatprep.mubr.f32.mxu0 0.0
  %1295 = vmatmul.mubr.f32.gmra.mxu0 %v1212
  %v1296 = vpop.f32.mrf.mxu0
  %v1297 = vadd.f32 0.0, %v1296
  %v1298 = vpop.f32.mrf.mxu0
  %1299 = vmatprep.mubr.f32.mxu0 0.0
  %1300 = vmatmul.mubr.f32.gmra.mxu0 %v1217
  %v1301 = vpop.f32.mrf.mxu0
  %v1302 = vadd.f32 0.0, %v1301
  %v1303 = vpop.f32.mrf.mxu0
  %1304 = vmatprep.mubr.f32.mxu0 0.0
  %1305 = vmatmul.mubr.f32.gmra.mxu0 %v1222
  %v1306 = vpop.f32.mrf.mxu0
  %v1307 = vadd.f32 0.0, %v1306
  %v1308 = vpop.f32.mrf.mxu0
  %1309 = vmatprep.mubr.f32.mxu0 0.0
  %1310 = vmatmul.mubr.f32.gmra.mxu0 %v1227
  %v1311 = vpop.f32.mrf.mxu0
  %v1312 = vadd.f32 0.0, %v1311
  %v1313 = vpop.f32.mrf.mxu0
  %1314 = vdwg.mxu0
  %v1315 = vmul.f32 %v201, %v1222
  %v1316 = vmul.f32 %v202, %v1227
  %v1317 = vmul.f32 %v203, %v1212
  %v1318 = vmul.f32 %v204, %v1217
  %1319 = vmatprep.subr.mxu0 0.0
  %1320 = vmatpush1.msra.mxu0 %v224
  %1321 = vmatprep.subr.mxu0 0.0
  %1322 = vmatpush1.msra.mxu0 %v223
  %1323 = vmatprep.subr.mxu0 0.0
  %1324 = vmatpush1.msra.mxu0 %v222
  %1325 = vmatprep.subr.mxu0 0.0
  %1326 = vmatpush1.msra.mxu0 %v221
  %1327 = vmatprep.subr.mxu0 0.0
  %1328 = vmatpush1.msra.mxu0 %v220
  %1329 = vmatprep.subr.mxu0 0.0
  %1330 = vmatpush1.msra.mxu0 %v219
  %1331 = vmatprep.subr.mxu0 0.0
  %1332 = vmatpush1.msra.mxu0 %v218
  %1333 = vmatprep.subr.mxu0 0.0
  %1334 = vmatpush1.msra.mxu0 %v217
  %1335 = vmatprep.subr.mxu0 0.0
  %1336 = vmatpush1.msra.mxu0 %v216
  %1337 = vmatprep.subr.mxu0 0.0
  %1338 = vmatpush1.msra.mxu0 %v215
  %1339 = vmatprep.subr.mxu0 0.0
  %1340 = vmatpush1.msra.mxu0 %v214
  %1341 = vmatprep.subr.mxu0 0.0
  %1342 = vmatpush1.msra.mxu0 %v213
  %1343 = vmatprep.subr.mxu0 0.0
  %1344 = vmatpush1.msra.mxu0 %v212
  %1345 = vmatprep.subr.mxu0 0.0
  %1346 = vmatpush1.msra.mxu0 %v211
  %1347 = vmatprep.subr.mxu0 0.0
  %1348 = vmatpush1.msra.mxu0 %v210
  %1349 = vmatprep.subr.mxu0 0.0
  %1350 = vmatpush1.msra.mxu0 %v209
  %1351 = vmatprep.subr.mxu0 0.0
  %1352 = vmatpush2.msra.mxu0 0.0
  %1353 = vmatprep.subr.mxu0 0.0
  %1354 = vmatpush2.msra.mxu0 0.0
  %1355 = vmatprep.subr.mxu0 0.0
  %1356 = vmatpush2.msra.mxu0 0.0
  %1357 = vmatprep.subr.mxu0 0.0
  %1358 = vmatpush2.msra.mxu0 0.0
  %1359 = vmatprep.subr.mxu0 0.0
  %1360 = vmatpush2.msra.mxu0 0.0
  %1361 = vmatprep.subr.mxu0 0.0
  %1362 = vmatpush2.msra.mxu0 0.0
  %1363 = vmatprep.subr.mxu0 0.0
  %1364 = vmatpush2.msra.mxu0 0.0
  %1365 = vmatprep.subr.mxu0 0.0
  %1366 = vmatpush2.msra.mxu0 0.0
  %1367 = vmatprep.subr.mxu0 0.0
  %1368 = vmatpush2.msra.mxu0 0.0
  %1369 = vmatprep.subr.mxu0 0.0
  %1370 = vmatpush2.msra.mxu0 0.0
  %1371 = vmatprep.subr.mxu0 0.0
  %1372 = vmatpush2.msra.mxu0 0.0
  %1373 = vmatprep.subr.mxu0 0.0
  %1374 = vmatpush2.msra.mxu0 0.0
  %1375 = vmatprep.subr.mxu0 0.0
  %1376 = vmatpush2.msra.mxu0 0.0
  %1377 = vmatprep.subr.mxu0 0.0
  %1378 = vmatpush2.msra.mxu0 0.0
  %1379 = vmatprep.subr.mxu0 0.0
  %1380 = vmatpush2.msra.mxu0 0.0
  %1381 = vmatprep.subr.mxu0 0.0
  %1382 = vmatpush2.msra.mxu0 0.0
  %1383 = vmatprep.mubr.f32.mxu0 0.0
  %1384 = vmatmul.mubr.f32.gmra.mxu0 %v1315
  %v1385 = vpop.f32.mrf.mxu0
  %v1386 = vadd.f32 0.0, %v1385
  %v1387 = vpop.f32.mrf.mxu0
  %1388 = vmatprep.mubr.f32.mxu0 0.0
  %1389 = vmatmul.mubr.f32.gmra.mxu0 %v1316
  %v1390 = vpop.f32.mrf.mxu0
  %v1391 = vadd.f32 0.0, %v1390
  %v1392 = vpop.f32.mrf.mxu0
  %1393 = vmatprep.mubr.f32.mxu0 0.0
  %1394 = vmatmul.mubr.f32.gmra.mxu0 %v1317
  %v1395 = vpop.f32.mrf.mxu0
  %v1396 = vadd.f32 0.0, %v1395
  %v1397 = vpop.f32.mrf.mxu0
  %1398 = vmatprep.mubr.f32.mxu0 0.0
  %1399 = vmatmul.mubr.f32.gmra.mxu0 %v1318
  %v1400 = vpop.f32.mrf.mxu0
  %v1401 = vadd.f32 0.0, %v1400
  %v1402 = vpop.f32.mrf.mxu0
  %1403 = vdwg.mxu0
  %v1404 = vsub.f32 %v1297, %v1386
  %v1405 = vsub.f32 %v1302, %v1391
  %v1406 = vsub.f32 %v1307, %v1396
  %v1407 = vsub.f32 %v1312, %v1401
  %v1408 = vmul.f32 %v1404, %v63
  %v1409 = vmul.f32 %v1405, %v64
  %v1410 = vmul.f32 %v1406, %v65
  %v1411 = vmul.f32 %v1407, %v66
  %v1412 = vmul.f32 %v1406, %v686
  %v1413 = vmul.f32 %v1407, %v687
  %v1414 = vmul.f32 %v1404, %v688
  %v1415 = vmul.f32 %v1405, %v689
  %v1416 = vadd.f32 %v1408, %v1412
  %v1417 = vadd.f32 %v1409, %v1413
  %v1418 = vadd.f32 %v1410, %v1414
  %v1419 = vadd.f32 %v1411, %v1415
  %v1420 = vmul.f32 %v714, %v866
  %v1421 = vmul.f32 %v714, %v867
  %v1422 = vmul.f32 %v714, %v868
  %v1423 = vmul.f32 %v714, %v869
  %1424 = vmatprep.subr.mxu0 0.0
  %1425 = vmatpush1.msra.mxu0 %v713
  %1426 = vmatprep.subr.mxu0 0.0
  %1427 = vmatpush1.msra.mxu0 %v712
  %1428 = vmatprep.subr.mxu0 0.0
  %1429 = vmatpush1.msra.mxu0 %v711
  %1430 = vmatprep.subr.mxu0 0.0
  %1431 = vmatpush1.msra.mxu0 %v710
  %1432 = vmatprep.subr.mxu0 0.0
  %1433 = vmatpush1.msra.mxu0 %v709
  %1434 = vmatprep.subr.mxu0 0.0
  %1435 = vmatpush1.msra.mxu0 %v708
  %1436 = vmatprep.subr.mxu0 0.0
  %1437 = vmatpush1.msra.mxu0 %v707
  %1438 = vmatprep.subr.mxu0 0.0
  %1439 = vmatpush1.msra.mxu0 %v706
  %1440 = vmatprep.subr.mxu0 0.0
  %1441 = vmatpush1.msra.mxu0 %v705
  %1442 = vmatprep.subr.mxu0 0.0
  %1443 = vmatpush1.msra.mxu0 %v704
  %1444 = vmatprep.subr.mxu0 0.0
  %1445 = vmatpush1.msra.mxu0 %v703
  %1446 = vmatprep.subr.mxu0 0.0
  %1447 = vmatpush1.msra.mxu0 %v702
  %1448 = vmatprep.subr.mxu0 0.0
  %1449 = vmatpush1.msra.mxu0 %v701
  %1450 = vmatprep.subr.mxu0 0.0
  %1451 = vmatpush1.msra.mxu0 %v700
  %1452 = vmatprep.subr.mxu0 0.0
  %1453 = vmatpush1.msra.mxu0 %v699
  %1454 = vmatprep.subr.mxu0 0.0
  %1455 = vmatpush1.msra.mxu0 %v698
  %1456 = vmatprep.subr.mxu0 0.0
  %1457 = vmatpush2.msra.mxu0 0.0
  %1458 = vmatprep.subr.mxu0 0.0
  %1459 = vmatpush2.msra.mxu0 0.0
  %1460 = vmatprep.subr.mxu0 0.0
  %1461 = vmatpush2.msra.mxu0 0.0
  %1462 = vmatprep.subr.mxu0 0.0
  %1463 = vmatpush2.msra.mxu0 0.0
  %1464 = vmatprep.subr.mxu0 0.0
  %1465 = vmatpush2.msra.mxu0 0.0
  %1466 = vmatprep.subr.mxu0 0.0
  %1467 = vmatpush2.msra.mxu0 0.0
  %1468 = vmatprep.subr.mxu0 0.0
  %1469 = vmatpush2.msra.mxu0 0.0
  %1470 = vmatprep.subr.mxu0 0.0
  %1471 = vmatpush2.msra.mxu0 0.0
  %1472 = vmatprep.subr.mxu0 0.0
  %1473 = vmatpush2.msra.mxu0 0.0
  %1474 = vmatprep.subr.mxu0 0.0
  %1475 = vmatpush2.msra.mxu0 0.0
  %1476 = vmatprep.subr.mxu0 0.0
  %1477 = vmatpush2.msra.mxu0 0.0
  %1478 = vmatprep.subr.mxu0 0.0
  %1479 = vmatpush2.msra.mxu0 0.0
  %1480 = vmatprep.subr.mxu0 0.0
  %1481 = vmatpush2.msra.mxu0 0.0
  %1482 = vmatprep.subr.mxu0 0.0
  %1483 = vmatpush2.msra.mxu0 0.0
  %1484 = vmatprep.subr.mxu0 0.0
  %1485 = vmatpush2.msra.mxu0 0.0
  %1486 = vmatprep.subr.mxu0 0.0
  %1487 = vmatpush2.msra.mxu0 0.0
  %1488 = vmatprep.mubr.f32.mxu0 0.0
  %1489 = vmatmul.mubr.f32.gmra.mxu0 %v1416
  %v1490 = vpop.f32.mrf.mxu0
  %v1491 = vadd.f32 %v1420, %v1490
  %v1492 = vpop.f32.mrf.mxu0
  %1493 = vmatprep.mubr.f32.mxu0 0.0
  %1494 = vmatmul.mubr.f32.gmra.mxu0 %v1417
  %v1495 = vpop.f32.mrf.mxu0
  %v1496 = vadd.f32 %v1421, %v1495
  %v1497 = vpop.f32.mrf.mxu0
  %1498 = vmatprep.mubr.f32.mxu0 0.0
  %1499 = vmatmul.mubr.f32.gmra.mxu0 %v1418
  %v1500 = vpop.f32.mrf.mxu0
  %v1501 = vadd.f32 %v1422, %v1500
  %v1502 = vpop.f32.mrf.mxu0
  %1503 = vmatprep.mubr.f32.mxu0 0.0
  %1504 = vmatmul.mubr.f32.gmra.mxu0 %v1419
  %v1505 = vpop.f32.mrf.mxu0
  %v1506 = vadd.f32 %v1423, %v1505
  %v1507 = vpop.f32.mrf.mxu0
  %1508 = vdwg.mxu0
  %v1509 = vmul.f32 %v866, %v1491
  %v1510 = vmul.f32 %v867, %v1496
  %v1511 = vmul.f32 %v868, %v1501
  %v1512 = vmul.f32 %v869, %v1506
  %v1513 = vadd.f32 %v1509, %v1510
  %v1514 = vadd.f32 %v1513, %v1511
  %v1515 = vadd.f32 %v1514, %v1512
  %1516 = vadd.xlane.f32.xlu0 %v1515
  %v1517 = vpop.xlane.xlu0 %1516
  %v1518 = vrot.slane %v1517, 4
  %v1519 = vadd.f32 %v1517, %v1518
  %v1520 = vrot.slane %v1519, 2
  %v1521 = vadd.f32 %v1519, %v1520
  %v1522 = vrot.slane %v1521, 1
  %v1523 = vadd.f32 %v1521, %v1522
  %s1524 = vtos %v1523
  %v1525 = vstv %s1524
  %v1526 = vrcp.pop %v1525
  %s1527 = vtos %v1526
  %s1528 = smul.f32 %s856, %s1527
  %v1529 = vstv %s1528
  %v1530 = vmul.f32 %v1529, %v866
  %v1531 = vmul.f32 %v1529, %v867
  %v1532 = vmul.f32 %v1529, %v868
  %v1533 = vmul.f32 %v1529, %v869
  %v1534 = vadd.f32 %v829, %v1530
  %v1535 = vadd.f32 %v830, %v1531
  %v1536 = vadd.f32 %v831, %v1532
  %v1537 = vadd.f32 %v832, %v1533
  %v1538 = vmul.f32 %v1529, %v1491
  %v1539 = vmul.f32 %v1529, %v1496
  %v1540 = vmul.f32 %v1529, %v1501
  %v1541 = vmul.f32 %v1529, %v1506
  %v1542 = vsub.f32 %v837, %v1538
  %v1543 = vsub.f32 %v838, %v1539
  %v1544 = vsub.f32 %v839, %v1540
  %v1545 = vsub.f32 %v840, %v1541
  %v1546 = vmul.f32 %v1542, %v1542
  %v1547 = vmul.f32 %v1543, %v1543
  %v1548 = vmul.f32 %v1544, %v1544
  %v1549 = vmul.f32 %v1545, %v1545
  %v1550 = vadd.f32 %v1546, %v1547
  %v1551 = vadd.f32 %v1550, %v1548
  %v1552 = vadd.f32 %v1551, %v1549
  %1553 = vadd.xlane.f32.xlu0 %v1552
  %v1554 = vpop.xlane.xlu0 %1553
  %v1555 = vrot.slane %v1554, 4
  %v1556 = vadd.f32 %v1554, %v1555
  %v1557 = vrot.slane %v1556, 2
  %v1558 = vadd.f32 %v1556, %v1557
  %v1559 = vrot.slane %v1558, 1
  %v1560 = vadd.f32 %v1558, %v1559
  %s1561 = vtos %v1560
  %v1562 = vstv %s856
  %v1563 = vrcp.pop %v1562
  %s1564 = vtos %v1563
  %s1565 = smul.f32 %s1561, %s1564
  %v1566 = vstv %s1565
  %v1567 = vmul.f32 %v1566, %v866
  %v1568 = vmul.f32 %v1566, %v867
  %v1569 = vmul.f32 %v1566, %v868
  %v1570 = vmul.f32 %v1566, %v869
  %v1571 = vadd.f32 %v1542, %v1567
  %v1572 = vadd.f32 %v1543, %v1568
  %v1573 = vadd.f32 %v1544, %v1569
  %v1574 = vadd.f32 %v1545, %v1570
  %v1575 = vmul.f32 %v1571, %v63
  %v1576 = vmul.f32 %v1572, %v64
  %v1577 = vmul.f32 %v1573, %v65
  %v1578 = vmul.f32 %v1574, %v66
  %v1579 = vmul.f32 %v1573, %v71
  %v1580 = vmul.f32 %v1574, %v72
  %v1581 = vmul.f32 %v1571, %v73
  %v1582 = vmul.f32 %v1572, %v74
  %v1583 = vadd.f32 %v1575, %v1579
  %v1584 = vadd.f32 %v1576, %v1580
  %v1585 = vadd.f32 %v1577, %v1581
  %v1586 = vadd.f32 %v1578, %v1582
  %1587 = vmatprep.subr.mxu0 0.0
  %1588 = vmatpush1.msra.mxu0 0.0
  %1589 = vmatprep.subr.mxu0 0.0
  %1590 = vmatpush1.msra.mxu0 0.0
  %1591 = vmatprep.subr.mxu0 0.0
  %1592 = vmatpush1.msra.mxu0 0.0
  %1593 = vmatprep.subr.mxu0 0.0
  %1594 = vmatpush1.msra.mxu0 0.0
  %1595 = vmatprep.subr.mxu0 0.0
  %1596 = vmatpush1.msra.mxu0 0.0
  %1597 = vmatprep.subr.mxu0 0.0
  %1598 = vmatpush1.msra.mxu0 0.0
  %1599 = vmatprep.subr.mxu0 0.0
  %1600 = vmatpush1.msra.mxu0 0.0
  %1601 = vmatprep.subr.mxu0 0.0
  %1602 = vmatpush1.msra.mxu0 0.0
  %1603 = vmatprep.subr.mxu0 0.0
  %1604 = vmatpush1.msra.mxu0 0.0
  %1605 = vmatprep.subr.mxu0 0.0
  %1606 = vmatpush1.msra.mxu0 0.0
  %1607 = vmatprep.subr.mxu0 0.0
  %1608 = vmatpush1.msra.mxu0 0.0
  %1609 = vmatprep.subr.mxu0 0.0
  %1610 = vmatpush1.msra.mxu0 0.0
  %1611 = vmatprep.subr.mxu0 0.0
  %1612 = vmatpush1.msra.mxu0 %v1586
  %1613 = vmatprep.subr.mxu0 0.0
  %1614 = vmatpush1.msra.mxu0 %v1585
  %1615 = vmatprep.subr.mxu0 0.0
  %1616 = vmatpush1.msra.mxu0 %v1584
  %1617 = vmatprep.subr.mxu0 0.0
  %1618 = vmatpush1.msra.mxu0 %v1583
  %1619 = vmatprep.subr.mxu0 0.0
  %1620 = vmatpush2.msra.mxu0 0.0
  %1621 = vmatprep.subr.mxu0 0.0
  %1622 = vmatpush2.msra.mxu0 0.0
  %1623 = vmatprep.subr.mxu0 0.0
  %1624 = vmatpush2.msra.mxu0 0.0
  %1625 = vmatprep.subr.mxu0 0.0
  %1626 = vmatpush2.msra.mxu0 0.0
  %1627 = vmatprep.subr.mxu0 0.0
  %1628 = vmatpush2.msra.mxu0 0.0
  %1629 = vmatprep.subr.mxu0 0.0
  %1630 = vmatpush2.msra.mxu0 0.0
  %1631 = vmatprep.subr.mxu0 0.0
  %1632 = vmatpush2.msra.mxu0 0.0
  %1633 = vmatprep.subr.mxu0 0.0
  %1634 = vmatpush2.msra.mxu0 0.0
  %1635 = vmatprep.subr.mxu0 0.0
  %1636 = vmatpush2.msra.mxu0 0.0
  %1637 = vmatprep.subr.mxu0 0.0
  %1638 = vmatpush2.msra.mxu0 0.0
  %1639 = vmatprep.subr.mxu0 0.0
  %1640 = vmatpush2.msra.mxu0 0.0
  %1641 = vmatprep.subr.mxu0 0.0
  %1642 = vmatpush2.msra.mxu0 0.0
  %1643 = vmatprep.subr.mxu0 0.0
  %1644 = vmatpush2.msra.mxu0 0.0
  %1645 = vmatprep.subr.mxu0 0.0
  %1646 = vmatpush2.msra.mxu0 0.0
  %1647 = vmatprep.subr.mxu0 0.0
  %1648 = vmatpush2.msra.mxu0 0.0
  %1649 = vmatprep.subr.mxu0 0.0
  %1650 = vmatpush2.msra.mxu0 0.0
  %1651 = vmatprep.mubr.f32.mxu0 0.0
  %1652 = vmatmul.mubr.f32.gmra.mxu0 %v89
  %v1653 = vpop.f32.mrf.mxu0
  %v1654 = vadd.f32 0.0, %v1653
  %v1655 = vpop.f32.mrf.mxu0
  %1656 = vmatprep.mubr.f32.mxu0 0.0
  %1657 = vmatmul.mubr.f32.gmra.mxu0 %v92
  %v1658 = vpop.f32.mrf.mxu0
  %v1659 = vadd.f32 0.0, %v1658
  %v1660 = vpop.f32.mrf.mxu0
  %1661 = vmatprep.mubr.f32.mxu0 0.0
  %1662 = vmatmul.mubr.f32.gmra.mxu0 %v95
  %v1663 = vpop.f32.mrf.mxu0
  %v1664 = vadd.f32 0.0, %v1663
  %v1665 = vpop.f32.mrf.mxu0
  %1666 = vmatprep.mubr.f32.mxu0 0.0
  %1667 = vmatmul.mubr.f32.gmra.mxu0 %v98
  %v1668 = vpop.f32.mrf.mxu0
  %v1669 = vadd.f32 0.0, %v1668
  %v1670 = vpop.f32.mrf.mxu0
  %1671 = vdwg.mxu0
  %v1672 = vmul.f32 %v201, %v1664
  %v1673 = vmul.f32 %v202, %v1669
  %v1674 = vmul.f32 %v203, %v1654
  %v1675 = vmul.f32 %v204, %v1659
  %1676 = vmatprep.subr.mxu0 0.0
  %1677 = vmatpush1.msra.mxu0 %v224
  %1678 = vmatprep.subr.mxu0 0.0
  %1679 = vmatpush1.msra.mxu0 %v223
  %1680 = vmatprep.subr.mxu0 0.0
  %1681 = vmatpush1.msra.mxu0 %v222
  %1682 = vmatprep.subr.mxu0 0.0
  %1683 = vmatpush1.msra.mxu0 %v221
  %1684 = vmatprep.subr.mxu0 0.0
  %1685 = vmatpush1.msra.mxu0 %v220
  %1686 = vmatprep.subr.mxu0 0.0
  %1687 = vmatpush1.msra.mxu0 %v219
  %1688 = vmatprep.subr.mxu0 0.0
  %1689 = vmatpush1.msra.mxu0 %v218
  %1690 = vmatprep.subr.mxu0 0.0
  %1691 = vmatpush1.msra.mxu0 %v217
  %1692 = vmatprep.subr.mxu0 0.0
  %1693 = vmatpush1.msra.mxu0 %v216
  %1694 = vmatprep.subr.mxu0 0.0
  %1695 = vmatpush1.msra.mxu0 %v215
  %1696 = vmatprep.subr.mxu0 0.0
  %1697 = vmatpush1.msra.mxu0 %v214
  %1698 = vmatprep.subr.mxu0 0.0
  %1699 = vmatpush1.msra.mxu0 %v213
  %1700 = vmatprep.subr.mxu0 0.0
  %1701 = vmatpush1.msra.mxu0 %v212
  %1702 = vmatprep.subr.mxu0 0.0
  %1703 = vmatpush1.msra.mxu0 %v211
  %1704 = vmatprep.subr.mxu0 0.0
  %1705 = vmatpush1.msra.mxu0 %v210
  %1706 = vmatprep.subr.mxu0 0.0
  %1707 = vmatpush1.msra.mxu0 %v209
  %1708 = vmatprep.subr.mxu0 0.0
  %1709 = vmatpush2.msra.mxu0 0.0
  %1710 = vmatprep.subr.mxu0 0.0
  %1711 = vmatpush2.msra.mxu0 0.0
  %1712 = vmatprep.subr.mxu0 0.0
  %1713 = vmatpush2.msra.mxu0 0.0
  %1714 = vmatprep.subr.mxu0 0.0
  %1715 = vmatpush2.msra.mxu0 0.0
  %1716 = vmatprep.subr.mxu0 0.0
  %1717 = vmatpush2.msra.mxu0 0.0
  %1718 = vmatprep.subr.mxu0 0.0
  %1719 = vmatpush2.msra.mxu0 0.0
  %1720 = vmatprep.subr.mxu0 0.0
  %1721 = vmatpush2.msra.mxu0 0.0
  %1722 = vmatprep.subr.mxu0 0.0
  %1723 = vmatpush2.msra.mxu0 0.0
  %1724 = vmatprep.subr.mxu0 0.0
  %1725 = vmatpush2.msra.mxu0 0.0
  %1726 = vmatprep.subr.mxu0 0.0
  %1727 = vmatpush2.msra.mxu0 0.0
  %1728 = vmatprep.subr.mxu0 0.0
  %1729 = vmatpush2.msra.mxu0 0.0
  %1730 = vmatprep.subr.mxu0 0.0
  %1731 = vmatpush2.msra.mxu0 0.0
  %1732 = vmatprep.subr.mxu0 0.0
  %1733 = vmatpush2.msra.mxu0 0.0
  %1734 = vmatprep.subr.mxu0 0.0
  %1735 = vmatpush2.msra.mxu0 0.0
  %1736 = vmatprep.subr.mxu0 0.0
  %1737 = vmatpush2.msra.mxu0 0.0
  %1738 = vmatprep.subr.mxu0 0.0
  %1739 = vmatpush2.msra.mxu0 0.0
  %1740 = vmatprep.mubr.f32.mxu0 0.0
  %1741 = vmatmul.mubr.f32.gmra.mxu0 %v1672
  %v1742 = vpop.f32.mrf.mxu0
  %v1743 = vadd.f32 0.0, %v1742
  %v1744 = vpop.f32.mrf.mxu0
  %1745 = vmatprep.mubr.f32.mxu0 0.0
  %1746 = vmatmul.mubr.f32.gmra.mxu0 %v1673
  %v1747 = vpop.f32.mrf.mxu0
  %v1748 = vadd.f32 0.0, %v1747
  %v1749 = vpop.f32.mrf.mxu0
  %1750 = vmatprep.mubr.f32.mxu0 0.0
  %1751 = vmatmul.mubr.f32.gmra.mxu0 %v1674
  %v1752 = vpop.f32.mrf.mxu0
  %v1753 = vadd.f32 0.0, %v1752
  %v1754 = vpop.f32.mrf.mxu0
  %1755 = vmatprep.mubr.f32.mxu0 0.0
  %1756 = vmatmul.mubr.f32.gmra.mxu0 %v1675
  %v1757 = vpop.f32.mrf.mxu0
  %v1758 = vadd.f32 0.0, %v1757
  %v1759 = vpop.f32.mrf.mxu0
  %1760 = vdwg.mxu0
  %1761 = vmatprep.subr.mxu0 0.0
  %1762 = vmatpush1.msra.mxu0 %v200
  %1763 = vmatprep.subr.mxu0 0.0
  %1764 = vmatpush1.msra.mxu0 %v199
  %1765 = vmatprep.subr.mxu0 0.0
  %1766 = vmatpush1.msra.mxu0 %v198
  %1767 = vmatprep.subr.mxu0 0.0
  %1768 = vmatpush1.msra.mxu0 %v197
  %1769 = vmatprep.subr.mxu0 0.0
  %1770 = vmatpush1.msra.mxu0 %v196
  %1771 = vmatprep.subr.mxu0 0.0
  %1772 = vmatpush1.msra.mxu0 %v195
  %1773 = vmatprep.subr.mxu0 0.0
  %1774 = vmatpush1.msra.mxu0 %v194
  %1775 = vmatprep.subr.mxu0 0.0
  %1776 = vmatpush1.msra.mxu0 %v193
  %1777 = vmatprep.subr.mxu0 0.0
  %1778 = vmatpush1.msra.mxu0 %v192
  %1779 = vmatprep.subr.mxu0 0.0
  %1780 = vmatpush1.msra.mxu0 %v191
  %1781 = vmatprep.subr.mxu0 0.0
  %1782 = vmatpush1.msra.mxu0 %v190
  %1783 = vmatprep.subr.mxu0 0.0
  %1784 = vmatpush1.msra.mxu0 %v189
  %1785 = vmatprep.subr.mxu0 0.0
  %1786 = vmatpush1.msra.mxu0 %v188
  %1787 = vmatprep.subr.mxu0 0.0
  %1788 = vmatpush1.msra.mxu0 %v187
  %1789 = vmatprep.subr.mxu0 0.0
  %1790 = vmatpush1.msra.mxu0 %v186
  %1791 = vmatprep.subr.mxu0 0.0
  %1792 = vmatpush1.msra.mxu0 %v185
  %1793 = vmatprep.subr.mxu0 0.0
  %1794 = vmatpush2.msra.mxu0 0.0
  %1795 = vmatprep.subr.mxu0 0.0
  %1796 = vmatpush2.msra.mxu0 0.0
  %1797 = vmatprep.subr.mxu0 0.0
  %1798 = vmatpush2.msra.mxu0 0.0
  %1799 = vmatprep.subr.mxu0 0.0
  %1800 = vmatpush2.msra.mxu0 0.0
  %1801 = vmatprep.subr.mxu0 0.0
  %1802 = vmatpush2.msra.mxu0 0.0
  %1803 = vmatprep.subr.mxu0 0.0
  %1804 = vmatpush2.msra.mxu0 0.0
  %1805 = vmatprep.subr.mxu0 0.0
  %1806 = vmatpush2.msra.mxu0 0.0
  %1807 = vmatprep.subr.mxu0 0.0
  %1808 = vmatpush2.msra.mxu0 0.0
  %1809 = vmatprep.subr.mxu0 0.0
  %1810 = vmatpush2.msra.mxu0 0.0
  %1811 = vmatprep.subr.mxu0 0.0
  %1812 = vmatpush2.msra.mxu0 0.0
  %1813 = vmatprep.subr.mxu0 0.0
  %1814 = vmatpush2.msra.mxu0 0.0
  %1815 = vmatprep.subr.mxu0 0.0
  %1816 = vmatpush2.msra.mxu0 0.0
  %1817 = vmatprep.subr.mxu0 0.0
  %1818 = vmatpush2.msra.mxu0 0.0
  %1819 = vmatprep.subr.mxu0 0.0
  %1820 = vmatpush2.msra.mxu0 0.0
  %1821 = vmatprep.subr.mxu0 0.0
  %1822 = vmatpush2.msra.mxu0 0.0
  %1823 = vmatprep.subr.mxu0 0.0
  %1824 = vmatpush2.msra.mxu0 0.0
  %1825 = vmatprep.mubr.f32.mxu0 0.0
  %1826 = vmatmul.mubr.f32.gmra.mxu0 %v1654
  %v1827 = vpop.f32.mrf.mxu0
  %v1828 = vadd.f32 %v1743, %v1827
  %v1829 = vpop.f32.mrf.mxu0
  %1830 = vmatprep.mubr.f32.mxu0 0.0
  %1831 = vmatmul.mubr.f32.gmra.mxu0 %v1659
  %v1832 = vpop.f32.mrf.mxu0
  %v1833 = vadd.f32 %v1748, %v1832
  %v1834 = vpop.f32.mrf.mxu0
  %1835 = vmatprep.mubr.f32.mxu0 0.0
  %1836 = vmatmul.mubr.f32.gmra.mxu0 %v1664
  %v1837 = vpop.f32.mrf.mxu0
  %v1838 = vadd.f32 %v1753, %v1837
  %v1839 = vpop.f32.mrf.mxu0
  %1840 = vmatprep.mubr.f32.mxu0 0.0
  %1841 = vmatmul.mubr.f32.gmra.mxu0 %v1669
  %v1842 = vpop.f32.mrf.mxu0
  %v1843 = vadd.f32 %v1758, %v1842
  %v1844 = vpop.f32.mrf.mxu0
  %1845 = vdwg.mxu0
  %v1846 = vmul.f32 %v1828, %v395
  %v1847 = vmul.f32 %v1833, %v396
  %v1848 = vmul.f32 %v1838, %v397
  %v1849 = vmul.f32 %v1843, %v398
  %1850 = vmatprep.subr.mxu0 0.0
  %1851 = vmatpush1.msra.mxu0 0.0
  %1852 = vmatprep.subr.mxu0 0.0
  %1853 = vmatpush1.msra.mxu0 0.0
  %1854 = vmatprep.subr.mxu0 0.0
  %1855 = vmatpush1.msra.mxu0 0.0
  %1856 = vmatprep.subr.mxu0 0.0
  %1857 = vmatpush1.msra.mxu0 0.0
  %1858 = vmatprep.subr.mxu0 0.0
  %1859 = vmatpush1.msra.mxu0 0.0
  %1860 = vmatprep.subr.mxu0 0.0
  %1861 = vmatpush1.msra.mxu0 0.0
  %1862 = vmatprep.subr.mxu0 0.0
  %1863 = vmatpush1.msra.mxu0 0.0
  %1864 = vmatprep.subr.mxu0 0.0
  %1865 = vmatpush1.msra.mxu0 0.0
  %1866 = vmatprep.subr.mxu0 0.0
  %1867 = vmatpush1.msra.mxu0 0.0
  %1868 = vmatprep.subr.mxu0 0.0
  %1869 = vmatpush1.msra.mxu0 0.0
  %1870 = vmatprep.subr.mxu0 0.0
  %1871 = vmatpush1.msra.mxu0 0.0
  %1872 = vmatprep.subr.mxu0 0.0
  %1873 = vmatpush1.msra.mxu0 0.0
  %1874 = vmatprep.subr.mxu0 0.0
  %1875 = vmatpush1.msra.mxu0 %v1849
  %1876 = vmatprep.subr.mxu0 0.0
  %1877 = vmatpush1.msra.mxu0 %v1848
  %1878 = vmatprep.subr.mxu0 0.0
  %1879 = vmatpush1.msra.mxu0 %v1847
  %1880 = vmatprep.subr.mxu0 0.0
  %1881 = vmatpush1.msra.mxu0 %v1846
  %1882 = vmatprep.subr.mxu0 0.0
  %1883 = vmatpush2.msra.mxu0 0.0
  %1884 = vmatprep.subr.mxu0 0.0
  %1885 = vmatpush2.msra.mxu0 0.0
  %1886 = vmatprep.subr.mxu0 0.0
  %1887 = vmatpush2.msra.mxu0 0.0
  %1888 = vmatprep.subr.mxu0 0.0
  %1889 = vmatpush2.msra.mxu0 0.0
  %1890 = vmatprep.subr.mxu0 0.0
  %1891 = vmatpush2.msra.mxu0 0.0
  %1892 = vmatprep.subr.mxu0 0.0
  %1893 = vmatpush2.msra.mxu0 0.0
  %1894 = vmatprep.subr.mxu0 0.0
  %1895 = vmatpush2.msra.mxu0 0.0
  %1896 = vmatprep.subr.mxu0 0.0
  %1897 = vmatpush2.msra.mxu0 0.0
  %1898 = vmatprep.subr.mxu0 0.0
  %1899 = vmatpush2.msra.mxu0 0.0
  %1900 = vmatprep.subr.mxu0 0.0
  %1901 = vmatpush2.msra.mxu0 0.0
  %1902 = vmatprep.subr.mxu0 0.0
  %1903 = vmatpush2.msra.mxu0 0.0
  %1904 = vmatprep.subr.mxu0 0.0
  %1905 = vmatpush2.msra.mxu0 0.0
  %1906 = vmatprep.subr.mxu0 0.0
  %1907 = vmatpush2.msra.mxu0 0.0
  %1908 = vmatprep.subr.mxu0 0.0
  %1909 = vmatpush2.msra.mxu0 0.0
  %1910 = vmatprep.subr.mxu0 0.0
  %1911 = vmatpush2.msra.mxu0 0.0
  %1912 = vmatprep.subr.mxu0 0.0
  %1913 = vmatpush2.msra.mxu0 0.0
  %1914 = vmatprep.mubr.f32.mxu0 0.0
  %1915 = vmatmul.mubr.f32.gmra.mxu0 %v408
  %v1916 = vpop.f32.mrf.mxu0
  %v1917 = vadd.f32 0.0, %v1916
  %v1918 = vpop.f32.mrf.mxu0
  %1919 = vmatprep.mubr.f32.mxu0 0.0
  %1920 = vmatmul.mubr.f32.gmra.mxu0 %v411
  %v1921 = vpop.f32.mrf.mxu0
  %v1922 = vadd.f32 0.0, %v1921
  %v1923 = vpop.f32.mrf.mxu0
  %1924 = vmatprep.mubr.f32.mxu0 0.0
  %1925 = vmatmul.mubr.f32.gmra.mxu0 %v414
  %v1926 = vpop.f32.mrf.mxu0
  %v1927 = vadd.f32 0.0, %v1926
  %v1928 = vpop.f32.mrf.mxu0
  %1929 = vmatprep.mubr.f32.mxu0 0.0
  %1930 = vmatmul.mubr.f32.gmra.mxu0 %v417
  %v1931 = vpop.f32.mrf.mxu0
  %v1932 = vadd.f32 0.0, %v1931
  %v1933 = vpop.f32.mrf.mxu0
  %1934 = vdwg.mxu0
  %1935 = vmatprep.subr.mxu0 0.0
  %1936 = vmatpush1.msra.mxu0 %v200
  %1937 = vmatprep.subr.mxu0 0.0
  %1938 = vmatpush1.msra.mxu0 %v199
  %1939 = vmatprep.subr.mxu0 0.0
  %1940 = vmatpush1.msra.mxu0 %v198
  %1941 = vmatprep.subr.mxu0 0.0
  %1942 = vmatpush1.msra.mxu0 %v197
  %1943 = vmatprep.subr.mxu0 0.0
  %1944 = vmatpush1.msra.mxu0 %v196
  %1945 = vmatprep.subr.mxu0 0.0
  %1946 = vmatpush1.msra.mxu0 %v195
  %1947 = vmatprep.subr.mxu0 0.0
  %1948 = vmatpush1.msra.mxu0 %v194
  %1949 = vmatprep.subr.mxu0 0.0
  %1950 = vmatpush1.msra.mxu0 %v193
  %1951 = vmatprep.subr.mxu0 0.0
  %1952 = vmatpush1.msra.mxu0 %v192
  %1953 = vmatprep.subr.mxu0 0.0
  %1954 = vmatpush1.msra.mxu0 %v191
  %1955 = vmatprep.subr.mxu0 0.0
  %1956 = vmatpush1.msra.mxu0 %v190
  %1957 = vmatprep.subr.mxu0 0.0
  %1958 = vmatpush1.msra.mxu0 %v189
  %1959 = vmatprep.subr.mxu0 0.0
  %1960 = vmatpush1.msra.mxu0 %v188
  %1961 = vmatprep.subr.mxu0 0.0
  %1962 = vmatpush1.msra.mxu0 %v187
  %1963 = vmatprep.subr.mxu0 0.0
  %1964 = vmatpush1.msra.mxu0 %v186
  %1965 = vmatprep.subr.mxu0 0.0
  %1966 = vmatpush1.msra.mxu0 %v185
  %1967 = vmatprep.subr.mxu0 0.0
  %1968 = vmatpush2.msra.mxu0 0.0
  %1969 = vmatprep.subr.mxu0 0.0
  %1970 = vmatpush2.msra.mxu0 0.0
  %1971 = vmatprep.subr.mxu0 0.0
  %1972 = vmatpush2.msra.mxu0 0.0
  %1973 = vmatprep.subr.mxu0 0.0
  %1974 = vmatpush2.msra.mxu0 0.0
  %1975 = vmatprep.subr.mxu0 0.0
  %1976 = vmatpush2.msra.mxu0 0.0
  %1977 = vmatprep.subr.mxu0 0.0
  %1978 = vmatpush2.msra.mxu0 0.0
  %1979 = vmatprep.subr.mxu0 0.0
  %1980 = vmatpush2.msra.mxu0 0.0
  %1981 = vmatprep.subr.mxu0 0.0
  %1982 = vmatpush2.msra.mxu0 0.0
  %1983 = vmatprep.subr.mxu0 0.0
  %1984 = vmatpush2.msra.mxu0 0.0
  %1985 = vmatprep.subr.mxu0 0.0
  %1986 = vmatpush2.msra.mxu0 0.0
  %1987 = vmatprep.subr.mxu0 0.0
  %1988 = vmatpush2.msra.mxu0 0.0
  %1989 = vmatprep.subr.mxu0 0.0
  %1990 = vmatpush2.msra.mxu0 0.0
  %1991 = vmatprep.subr.mxu0 0.0
  %1992 = vmatpush2.msra.mxu0 0.0
  %1993 = vmatprep.subr.mxu0 0.0
  %1994 = vmatpush2.msra.mxu0 0.0
  %1995 = vmatprep.subr.mxu0 0.0
  %1996 = vmatpush2.msra.mxu0 0.0
  %1997 = vmatprep.subr.mxu0 0.0
  %1998 = vmatpush2.msra.mxu0 0.0
  %1999 = vmatprep.mubr.f32.mxu0 0.0
  %2000 = vmatmul.mubr.f32.gmra.mxu0 %v1917
  %v2001 = vpop.f32.mrf.mxu0
  %v2002 = vadd.f32 0.0, %v2001
  %v2003 = vpop.f32.mrf.mxu0
  %2004 = vmatprep.mubr.f32.mxu0 0.0
  %2005 = vmatmul.mubr.f32.gmra.mxu0 %v1922
  %v2006 = vpop.f32.mrf.mxu0
  %v2007 = vadd.f32 0.0, %v2006
  %v2008 = vpop.f32.mrf.mxu0
  %2009 = vmatprep.mubr.f32.mxu0 0.0
  %2010 = vmatmul.mubr.f32.gmra.mxu0 %v1927
  %v2011 = vpop.f32.mrf.mxu0
  %v2012 = vadd.f32 0.0, %v2011
  %v2013 = vpop.f32.mrf.mxu0
  %2014 = vmatprep.mubr.f32.mxu0 0.0
  %2015 = vmatmul.mubr.f32.gmra.mxu0 %v1932
  %v2016 = vpop.f32.mrf.mxu0
  %v2017 = vadd.f32 0.0, %v2016
  %v2018 = vpop.f32.mrf.mxu0
  %2019 = vdwg.mxu0
  %v2020 = vmul.f32 %v201, %v1927
  %v2021 = vmul.f32 %v202, %v1932
  %v2022 = vmul.f32 %v203, %v1917
  %v2023 = vmul.f32 %v204, %v1922
  %2024 = vmatprep.subr.mxu0 0.0
  %2025 = vmatpush1.msra.mxu0 %v224
  %2026 = vmatprep.subr.mxu0 0.0
  %2027 = vmatpush1.msra.mxu0 %v223
  %2028 = vmatprep.subr.mxu0 0.0
  %2029 = vmatpush1.msra.mxu0 %v222
  %2030 = vmatprep.subr.mxu0 0.0
  %2031 = vmatpush1.msra.mxu0 %v221
  %2032 = vmatprep.subr.mxu0 0.0
  %2033 = vmatpush1.msra.mxu0 %v220
  %2034 = vmatprep.subr.mxu0 0.0
  %2035 = vmatpush1.msra.mxu0 %v219
  %2036 = vmatprep.subr.mxu0 0.0
  %2037 = vmatpush1.msra.mxu0 %v218
  %2038 = vmatprep.subr.mxu0 0.0
  %2039 = vmatpush1.msra.mxu0 %v217
  %2040 = vmatprep.subr.mxu0 0.0
  %2041 = vmatpush1.msra.mxu0 %v216
  %2042 = vmatprep.subr.mxu0 0.0
  %2043 = vmatpush1.msra.mxu0 %v215
  %2044 = vmatprep.subr.mxu0 0.0
  %2045 = vmatpush1.msra.mxu0 %v214
  %2046 = vmatprep.subr.mxu0 0.0
  %2047 = vmatpush1.msra.mxu0 %v213
  %2048 = vmatprep.subr.mxu0 0.0
  %2049 = vmatpush1.msra.mxu0 %v212
  %2050 = vmatprep.subr.mxu0 0.0
  %2051 = vmatpush1.msra.mxu0 %v211
  %2052 = vmatprep.subr.mxu0 0.0
  %2053 = vmatpush1.msra.mxu0 %v210
  %2054 = vmatprep.subr.mxu0 0.0
  %2055 = vmatpush1.msra.mxu0 %v209
  %2056 = vmatprep.subr.mxu0 0.0
  %2057 = vmatpush2.msra.mxu0 0.0
  %2058 = vmatprep.subr.mxu0 0.0
  %2059 = vmatpush2.msra.mxu0 0.0
  %2060 = vmatprep.subr.mxu0 0.0
  %2061 = vmatpush2.msra.mxu0 0.0
  %2062 = vmatprep.subr.mxu0 0.0
  %2063 = vmatpush2.msra.mxu0 0.0
  %2064 = vmatprep.subr.mxu0 0.0
  %2065 = vmatpush2.msra.mxu0 0.0
  %2066 = vmatprep.subr.mxu0 0.0
  %2067 = vmatpush2.msra.mxu0 0.0
  %2068 = vmatprep.subr.mxu0 0.0
  %2069 = vmatpush2.msra.mxu0 0.0
  %2070 = vmatprep.subr.mxu0 0.0
  %2071 = vmatpush2.msra.mxu0 0.0
  %2072 = vmatprep.subr.mxu0 0.0
  %2073 = vmatpush2.msra.mxu0 0.0
  %2074 = vmatprep.subr.mxu0 0.0
  %2075 = vmatpush2.msra.mxu0 0.0
  %2076 = vmatprep.subr.mxu0 0.0
  %2077 = vmatpush2.msra.mxu0 0.0
  %2078 = vmatprep.subr.mxu0 0.0
  %2079 = vmatpush2.msra.mxu0 0.0
  %2080 = vmatprep.subr.mxu0 0.0
  %2081 = vmatpush2.msra.mxu0 0.0
  %2082 = vmatprep.subr.mxu0 0.0
  %2083 = vmatpush2.msra.mxu0 0.0
  %2084 = vmatprep.subr.mxu0 0.0
  %2085 = vmatpush2.msra.mxu0 0.0
  %2086 = vmatprep.subr.mxu0 0.0
  %2087 = vmatpush2.msra.mxu0 0.0
  %2088 = vmatprep.mubr.f32.mxu0 0.0
  %2089 = vmatmul.mubr.f32.gmra.mxu0 %v2020
  %v2090 = vpop.f32.mrf.mxu0
  %v2091 = vadd.f32 0.0, %v2090
  %v2092 = vpop.f32.mrf.mxu0
  %2093 = vmatprep.mubr.f32.mxu0 0.0
  %2094 = vmatmul.mubr.f32.gmra.mxu0 %v2021
  %v2095 = vpop.f32.mrf.mxu0
  %v2096 = vadd.f32 0.0, %v2095
  %v2097 = vpop.f32.mrf.mxu0
  %2098 = vmatprep.mubr.f32.mxu0 0.0
  %2099 = vmatmul.mubr.f32.gmra.mxu0 %v2022
  %v2100 = vpop.f32.mrf.mxu0
  %v2101 = vadd.f32 0.0, %v2100
  %v2102 = vpop.f32.mrf.mxu0
  %2103 = vmatprep.mubr.f32.mxu0 0.0
  %2104 = vmatmul.mubr.f32.gmra.mxu0 %v2023
  %v2105 = vpop.f32.mrf.mxu0
  %v2106 = vadd.f32 0.0, %v2105
  %v2107 = vpop.f32.mrf.mxu0
  %2108 = vdwg.mxu0
  %v2109 = vsub.f32 %v2002, %v2091
  %v2110 = vsub.f32 %v2007, %v2096
  %v2111 = vsub.f32 %v2012, %v2101
  %v2112 = vsub.f32 %v2017, %v2106
  %v2113 = vmul.f32 %v2109, %v63
  %v2114 = vmul.f32 %v2110, %v64
  %v2115 = vmul.f32 %v2111, %v65
  %v2116 = vmul.f32 %v2112, %v66
  %v2117 = vmul.f32 %v2111, %v686
  %v2118 = vmul.f32 %v2112, %v687
  %v2119 = vmul.f32 %v2109, %v688
  %v2120 = vmul.f32 %v2110, %v689
  %v2121 = vadd.f32 %v2113, %v2117
  %v2122 = vadd.f32 %v2114, %v2118
  %v2123 = vadd.f32 %v2115, %v2119
  %v2124 = vadd.f32 %v2116, %v2120
  %v2125 = vmul.f32 %v714, %v1571
  %v2126 = vmul.f32 %v714, %v1572
  %v2127 = vmul.f32 %v714, %v1573
  %v2128 = vmul.f32 %v714, %v1574
  %2129 = vmatprep.subr.mxu0 0.0
  %2130 = vmatpush1.msra.mxu0 %v713
  %2131 = vmatprep.subr.mxu0 0.0
  %2132 = vmatpush1.msra.mxu0 %v712
  %2133 = vmatprep.subr.mxu0 0.0
  %2134 = vmatpush1.msra.mxu0 %v711
  %2135 = vmatprep.subr.mxu0 0.0
  %2136 = vmatpush1.msra.mxu0 %v710
  %2137 = vmatprep.subr.mxu0 0.0
  %2138 = vmatpush1.msra.mxu0 %v709
  %2139 = vmatprep.subr.mxu0 0.0
  %2140 = vmatpush1.msra.mxu0 %v708
  %2141 = vmatprep.subr.mxu0 0.0
  %2142 = vmatpush1.msra.mxu0 %v707
  %2143 = vmatprep.subr.mxu0 0.0
  %2144 = vmatpush1.msra.mxu0 %v706
  %2145 = vmatprep.subr.mxu0 0.0
  %2146 = vmatpush1.msra.mxu0 %v705
  %2147 = vmatprep.subr.mxu0 0.0
  %2148 = vmatpush1.msra.mxu0 %v704
  %2149 = vmatprep.subr.mxu0 0.0
  %2150 = vmatpush1.msra.mxu0 %v703
  %2151 = vmatprep.subr.mxu0 0.0
  %2152 = vmatpush1.msra.mxu0 %v702
  %2153 = vmatprep.subr.mxu0 0.0
  %2154 = vmatpush1.msra.mxu0 %v701
  %2155 = vmatprep.subr.mxu0 0.0
  %2156 = vmatpush1.msra.mxu0 %v700
  %2157 = vmatprep.subr.mxu0 0.0
  %2158 = vmatpush1.msra.mxu0 %v699
  %2159 = vmatprep.subr.mxu0 0.0
  %2160 = vmatpush1.msra.mxu0 %v698
  %2161 = vmatprep.subr.mxu0 0.0
  %2162 = vmatpush2.msra.mxu0 0.0
  %2163 = vmatprep.subr.mxu0 0.0
  %2164 = vmatpush2.msra.mxu0 0.0
  %2165 = vmatprep.subr.mxu0 0.0
  %2166 = vmatpush2.msra.mxu0 0.0
  %2167 = vmatprep.subr.mxu0 0.0
  %2168 = vmatpush2.msra.mxu0 0.0
  %2169 = vmatprep.subr.mxu0 0.0
  %2170 = vmatpush2.msra.mxu0 0.0
  %2171 = vmatprep.subr.mxu0 0.0
  %2172 = vmatpush2.msra.mxu0 0.0
  %2173 = vmatprep.subr.mxu0 0.0
  %2174 = vmatpush2.msra.mxu0 0.0
  %2175 = vmatprep.subr.mxu0 0.0
  %2176 = vmatpush2.msra.mxu0 0.0
  %2177 = vmatprep.subr.mxu0 0.0
  %2178 = vmatpush2.msra.mxu0 0.0
  %2179 = vmatprep.subr.mxu0 0.0
  %2180 = vmatpush2.msra.mxu0 0.0
  %2181 = vmatprep.subr.mxu0 0.0
  %2182 = vmatpush2.msra.mxu0 0.0
  %2183 = vmatprep.subr.mxu0 0.0
  %2184 = vmatpush2.msra.mxu0 0.0
  %2185 = vmatprep.subr.mxu0 0.0
  %2186 = vmatpush2.msra.mxu0 0.0
  %2187 = vmatprep.subr.mxu0 0.0
  %2188 = vmatpush2.msra.mxu0 0.0
  %2189 = vmatprep.subr.mxu0 0.0
  %2190 = vmatpush2.msra.mxu0 0.0
  %2191 = vmatprep.subr.mxu0 0.0
  %2192 = vmatpush2.msra.mxu0 0.0
  %2193 = vmatprep.mubr.f32.mxu0 0.0
  %2194 = vmatmul.mubr.f32.gmra.mxu0 %v2121
  %v2195 = vpop.f32.mrf.mxu0
  %v2196 = vadd.f32 %v2125, %v2195
  %v2197 = vpop.f32.mrf.mxu0
  %2198 = vmatprep.mubr.f32.mxu0 0.0
  %2199 = vmatmul.mubr.f32.gmra.mxu0 %v2122
  %v2200 = vpop.f32.mrf.mxu0
  %v2201 = vadd.f32 %v2126, %v2200
  %v2202 = vpop.f32.mrf.mxu0
  %2203 = vmatprep.mubr.f32.mxu0 0.0
  %2204 = vmatmul.mubr.f32.gmra.mxu0 %v2123
  %v2205 = vpop.f32.mrf.mxu0
  %v2206 = vadd.f32 %v2127, %v2205
  %v2207 = vpop.f32.mrf.mxu0
  %2208 = vmatprep.mubr.f32.mxu0 0.0
  %2209 = vmatmul.mubr.f32.gmra.mxu0 %v2124
  %v2210 = vpop.f32.mrf.mxu0
  %v2211 = vadd.f32 %v2128, %v2210
  %v2212 = vpop.f32.mrf.mxu0
  %2213 = vdwg.mxu0
  %v2214 = vmul.f32 %v1571, %v2196
  %v2215 = vmul.f32 %v1572, %v2201
  %v2216 = vmul.f32 %v1573, %v2206
  %v2217 = vmul.f32 %v1574, %v2211
  %v2218 = vadd.f32 %v2214, %v2215
  %v2219 = vadd.f32 %v2218, %v2216
  %v2220 = vadd.f32 %v2219, %v2217
  %2221 = vadd.xlane.f32.xlu0 %v2220
  %v2222 = vpop.xlane.xlu0 %2221
  %v2223 = vrot.slane %v2222, 4
  %v2224 = vadd.f32 %v2222, %v2223
  %v2225 = vrot.slane %v2224, 2
  %v2226 = vadd.f32 %v2224, %v2225
  %v2227 = vrot.slane %v2226, 1
  %v2228 = vadd.f32 %v2226, %v2227
  %s2229 = vtos %v2228
  %v2230 = vstv %s2229
  %v2231 = vrcp.pop %v2230
  %s2232 = vtos %v2231
  %s2233 = smul.f32 %s1561, %s2232
  %v2234 = vstv %s2233
  %v2235 = vmul.f32 %v2234, %v1571
  %v2236 = vmul.f32 %v2234, %v1572
  %v2237 = vmul.f32 %v2234, %v1573
  %v2238 = vmul.f32 %v2234, %v1574
  %v2239 = vadd.f32 %v1534, %v2235
  %v2240 = vadd.f32 %v1535, %v2236
  %v2241 = vadd.f32 %v1536, %v2237
  %v2242 = vadd.f32 %v1537, %v2238
  %v2243 = vmul.f32 %v2234, %v2196
  %v2244 = vmul.f32 %v2234, %v2201
  %v2245 = vmul.f32 %v2234, %v2206
  %v2246 = vmul.f32 %v2234, %v2211
  %v2247 = vsub.f32 %v1542, %v2243
  %v2248 = vsub.f32 %v1543, %v2244
  %v2249 = vsub.f32 %v1544, %v2245
  %v2250 = vsub.f32 %v1545, %v2246
  %v2251 = vmul.f32 %v2247, %v2247
  %v2252 = vmul.f32 %v2248, %v2248
  %v2253 = vmul.f32 %v2249, %v2249
  %v2254 = vmul.f32 %v2250, %v2250
  %v2255 = vadd.f32 %v2251, %v2252
  %v2256 = vadd.f32 %v2255, %v2253
  %v2257 = vadd.f32 %v2256, %v2254
  %2258 = vadd.xlane.f32.xlu0 %v2257
  %v2259 = vpop.xlane.xlu0 %2258
  %v2260 = vrot.slane %v2259, 4
  %v2261 = vadd.f32 %v2259, %v2260
  %v2262 = vrot.slane %v2261, 2
  %v2263 = vadd.f32 %v2261, %v2262
  %v2264 = vrot.slane %v2263, 1
  %v2265 = vadd.f32 %v2263, %v2264
  %s2266 = vtos %v2265
  %v2267 = vstv %s1561
  %v2268 = vrcp.pop %v2267
  %s2269 = vtos %v2268
  %s2270 = smul.f32 %s2266, %s2269
  %v2271 = vstv %s2270
  %v2272 = vmul.f32 %v2271, %v1571
  %v2273 = vmul.f32 %v2271, %v1572
  %v2274 = vmul.f32 %v2271, %v1573
  %v2275 = vmul.f32 %v2271, %v1574
  %v2276 = vadd.f32 %v2247, %v2272
  %v2277 = vadd.f32 %v2248, %v2273
  %v2278 = vadd.f32 %v2249, %v2274
  %v2279 = vadd.f32 %v2250, %v2275
  %v2280 = vmul.f32 %v2276, %v63
  %v2281 = vmul.f32 %v2277, %v64
  %v2282 = vmul.f32 %v2278, %v65
  %v2283 = vmul.f32 %v2279, %v66
  %v2284 = vmul.f32 %v2278, %v71
  %v2285 = vmul.f32 %v2279, %v72
  %v2286 = vmul.f32 %v2276, %v73
  %v2287 = vmul.f32 %v2277, %v74
  %v2288 = vadd.f32 %v2280, %v2284
  %v2289 = vadd.f32 %v2281, %v2285
  %v2290 = vadd.f32 %v2282, %v2286
  %v2291 = vadd.f32 %v2283, %v2287
  %2292 = vmatprep.subr.mxu0 0.0
  %2293 = vmatpush1.msra.mxu0 0.0
  %2294 = vmatprep.subr.mxu0 0.0
  %2295 = vmatpush1.msra.mxu0 0.0
  %2296 = vmatprep.subr.mxu0 0.0
  %2297 = vmatpush1.msra.mxu0 0.0
  %2298 = vmatprep.subr.mxu0 0.0
  %2299 = vmatpush1.msra.mxu0 0.0
  %2300 = vmatprep.subr.mxu0 0.0
  %2301 = vmatpush1.msra.mxu0 0.0
  %2302 = vmatprep.subr.mxu0 0.0
  %2303 = vmatpush1.msra.mxu0 0.0
  %2304 = vmatprep.subr.mxu0 0.0
  %2305 = vmatpush1.msra.mxu0 0.0
  %2306 = vmatprep.subr.mxu0 0.0
  %2307 = vmatpush1.msra.mxu0 0.0
  %2308 = vmatprep.subr.mxu0 0.0
  %2309 = vmatpush1.msra.mxu0 0.0
  %2310 = vmatprep.subr.mxu0 0.0
  %2311 = vmatpush1.msra.mxu0 0.0
  %2312 = vmatprep.subr.mxu0 0.0
  %2313 = vmatpush1.msra.mxu0 0.0
  %2314 = vmatprep.subr.mxu0 0.0
  %2315 = vmatpush1.msra.mxu0 0.0
  %2316 = vmatprep.subr.mxu0 0.0
  %2317 = vmatpush1.msra.mxu0 %v2291
  %2318 = vmatprep.subr.mxu0 0.0
  %2319 = vmatpush1.msra.mxu0 %v2290
  %2320 = vmatprep.subr.mxu0 0.0
  %2321 = vmatpush1.msra.mxu0 %v2289
  %2322 = vmatprep.subr.mxu0 0.0
  %2323 = vmatpush1.msra.mxu0 %v2288
  %2324 = vmatprep.subr.mxu0 0.0
  %2325 = vmatpush2.msra.mxu0 0.0
  %2326 = vmatprep.subr.mxu0 0.0
  %2327 = vmatpush2.msra.mxu0 0.0
  %2328 = vmatprep.subr.mxu0 0.0
  %2329 = vmatpush2.msra.mxu0 0.0
  %2330 = vmatprep.subr.mxu0 0.0
  %2331 = vmatpush2.msra.mxu0 0.0
  %2332 = vmatprep.subr.mxu0 0.0
  %2333 = vmatpush2.msra.mxu0 0.0
  %2334 = vmatprep.subr.mxu0 0.0
  %2335 = vmatpush2.msra.mxu0 0.0
  %2336 = vmatprep.subr.mxu0 0.0
  %2337 = vmatpush2.msra.mxu0 0.0
  %2338 = vmatprep.subr.mxu0 0.0
  %2339 = vmatpush2.msra.mxu0 0.0
  %2340 = vmatprep.subr.mxu0 0.0
  %2341 = vmatpush2.msra.mxu0 0.0
  %2342 = vmatprep.subr.mxu0 0.0
  %2343 = vmatpush2.msra.mxu0 0.0
  %2344 = vmatprep.subr.mxu0 0.0
  %2345 = vmatpush2.msra.mxu0 0.0
  %2346 = vmatprep.subr.mxu0 0.0
  %2347 = vmatpush2.msra.mxu0 0.0
  %2348 = vmatprep.subr.mxu0 0.0
  %2349 = vmatpush2.msra.mxu0 0.0
  %2350 = vmatprep.subr.mxu0 0.0
  %2351 = vmatpush2.msra.mxu0 0.0
  %2352 = vmatprep.subr.mxu0 0.0
  %2353 = vmatpush2.msra.mxu0 0.0
  %2354 = vmatprep.subr.mxu0 0.0
  %2355 = vmatpush2.msra.mxu0 0.0
  %2356 = vmatprep.mubr.f32.mxu0 0.0
  %2357 = vmatmul.mubr.f32.gmra.mxu0 %v89
  %v2358 = vpop.f32.mrf.mxu0
  %v2359 = vadd.f32 0.0, %v2358
  %v2360 = vpop.f32.mrf.mxu0
  %2361 = vmatprep.mubr.f32.mxu0 0.0
  %2362 = vmatmul.mubr.f32.gmra.mxu0 %v92
  %v2363 = vpop.f32.mrf.mxu0
  %v2364 = vadd.f32 0.0, %v2363
  %v2365 = vpop.f32.mrf.mxu0
  %2366 = vmatprep.mubr.f32.mxu0 0.0
  %2367 = vmatmul.mubr.f32.gmra.mxu0 %v95
  %v2368 = vpop.f32.mrf.mxu0
  %v2369 = vadd.f32 0.0, %v2368
  %v2370 = vpop.f32.mrf.mxu0
  %2371 = vmatprep.mubr.f32.mxu0 0.0
  %2372 = vmatmul.mubr.f32.gmra.mxu0 %v98
  %v2373 = vpop.f32.mrf.mxu0
  %v2374 = vadd.f32 0.0, %v2373
  %v2375 = vpop.f32.mrf.mxu0
  %2376 = vdwg.mxu0
  %v2377 = vmul.f32 %v201, %v2369
  %v2378 = vmul.f32 %v202, %v2374
  %v2379 = vmul.f32 %v203, %v2359
  %v2380 = vmul.f32 %v204, %v2364
  %2381 = vmatprep.subr.mxu0 0.0
  %2382 = vmatpush1.msra.mxu0 %v224
  %2383 = vmatprep.subr.mxu0 0.0
  %2384 = vmatpush1.msra.mxu0 %v223
  %2385 = vmatprep.subr.mxu0 0.0
  %2386 = vmatpush1.msra.mxu0 %v222
  %2387 = vmatprep.subr.mxu0 0.0
  %2388 = vmatpush1.msra.mxu0 %v221
  %2389 = vmatprep.subr.mxu0 0.0
  %2390 = vmatpush1.msra.mxu0 %v220
  %2391 = vmatprep.subr.mxu0 0.0
  %2392 = vmatpush1.msra.mxu0 %v219
  %2393 = vmatprep.subr.mxu0 0.0
  %2394 = vmatpush1.msra.mxu0 %v218
  %2395 = vmatprep.subr.mxu0 0.0
  %2396 = vmatpush1.msra.mxu0 %v217
  %2397 = vmatprep.subr.mxu0 0.0
  %2398 = vmatpush1.msra.mxu0 %v216
  %2399 = vmatprep.subr.mxu0 0.0
  %2400 = vmatpush1.msra.mxu0 %v215
  %2401 = vmatprep.subr.mxu0 0.0
  %2402 = vmatpush1.msra.mxu0 %v214
  %2403 = vmatprep.subr.mxu0 0.0
  %2404 = vmatpush1.msra.mxu0 %v213
  %2405 = vmatprep.subr.mxu0 0.0
  %2406 = vmatpush1.msra.mxu0 %v212
  %2407 = vmatprep.subr.mxu0 0.0
  %2408 = vmatpush1.msra.mxu0 %v211
  %2409 = vmatprep.subr.mxu0 0.0
  %2410 = vmatpush1.msra.mxu0 %v210
  %2411 = vmatprep.subr.mxu0 0.0
  %2412 = vmatpush1.msra.mxu0 %v209
  %2413 = vmatprep.subr.mxu0 0.0
  %2414 = vmatpush2.msra.mxu0 0.0
  %2415 = vmatprep.subr.mxu0 0.0
  %2416 = vmatpush2.msra.mxu0 0.0
  %2417 = vmatprep.subr.mxu0 0.0
  %2418 = vmatpush2.msra.mxu0 0.0
  %2419 = vmatprep.subr.mxu0 0.0
  %2420 = vmatpush2.msra.mxu0 0.0
  %2421 = vmatprep.subr.mxu0 0.0
  %2422 = vmatpush2.msra.mxu0 0.0
  %2423 = vmatprep.subr.mxu0 0.0
  %2424 = vmatpush2.msra.mxu0 0.0
  %2425 = vmatprep.subr.mxu0 0.0
  %2426 = vmatpush2.msra.mxu0 0.0
  %2427 = vmatprep.subr.mxu0 0.0
  %2428 = vmatpush2.msra.mxu0 0.0
  %2429 = vmatprep.subr.mxu0 0.0
  %2430 = vmatpush2.msra.mxu0 0.0
  %2431 = vmatprep.subr.mxu0 0.0
  %2432 = vmatpush2.msra.mxu0 0.0
  %2433 = vmatprep.subr.mxu0 0.0
  %2434 = vmatpush2.msra.mxu0 0.0
  %2435 = vmatprep.subr.mxu0 0.0
  %2436 = vmatpush2.msra.mxu0 0.0
  %2437 = vmatprep.subr.mxu0 0.0
  %2438 = vmatpush2.msra.mxu0 0.0
  %2439 = vmatprep.subr.mxu0 0.0
  %2440 = vmatpush2.msra.mxu0 0.0
  %2441 = vmatprep.subr.mxu0 0.0
  %2442 = vmatpush2.msra.mxu0 0.0
  %2443 = vmatprep.subr.mxu0 0.0
  %2444 = vmatpush2.msra.mxu0 0.0
  %2445 = vmatprep.mubr.f32.mxu0 0.0
  %2446 = vmatmul.mubr.f32.gmra.mxu0 %v2377
  %v2447 = vpop.f32.mrf.mxu0
  %v2448 = vadd.f32 0.0, %v2447
  %v2449 = vpop.f32.mrf.mxu0
  %2450 = vmatprep.mubr.f32.mxu0 0.0
  %2451 = vmatmul.mubr.f32.gmra.mxu0 %v2378
  %v2452 = vpop.f32.mrf.mxu0
  %v2453 = vadd.f32 0.0, %v2452
  %v2454 = vpop.f32.mrf.mxu0
  %2455 = vmatprep.mubr.f32.mxu0 0.0
  %2456 = vmatmul.mubr.f32.gmra.mxu0 %v2379
  %v2457 = vpop.f32.mrf.mxu0
  %v2458 = vadd.f32 0.0, %v2457
  %v2459 = vpop.f32.mrf.mxu0
  %2460 = vmatprep.mubr.f32.mxu0 0.0
  %2461 = vmatmul.mubr.f32.gmra.mxu0 %v2380
  %v2462 = vpop.f32.mrf.mxu0
  %v2463 = vadd.f32 0.0, %v2462
  %v2464 = vpop.f32.mrf.mxu0
  %2465 = vdwg.mxu0
  %2466 = vmatprep.subr.mxu0 0.0
  %2467 = vmatpush1.msra.mxu0 %v200
  %2468 = vmatprep.subr.mxu0 0.0
  %2469 = vmatpush1.msra.mxu0 %v199
  %2470 = vmatprep.subr.mxu0 0.0
  %2471 = vmatpush1.msra.mxu0 %v198
  %2472 = vmatprep.subr.mxu0 0.0
  %2473 = vmatpush1.msra.mxu0 %v197
  %2474 = vmatprep.subr.mxu0 0.0
  %2475 = vmatpush1.msra.mxu0 %v196
  %2476 = vmatprep.subr.mxu0 0.0
  %2477 = vmatpush1.msra.mxu0 %v195
  %2478 = vmatprep.subr.mxu0 0.0
  %2479 = vmatpush1.msra.mxu0 %v194
  %2480 = vmatprep.subr.mxu0 0.0
  %2481 = vmatpush1.msra.mxu0 %v193
  %2482 = vmatprep.subr.mxu0 0.0
  %2483 = vmatpush1.msra.mxu0 %v192
  %2484 = vmatprep.subr.mxu0 0.0
  %2485 = vmatpush1.msra.mxu0 %v191
  %2486 = vmatprep.subr.mxu0 0.0
  %2487 = vmatpush1.msra.mxu0 %v190
  %2488 = vmatprep.subr.mxu0 0.0
  %2489 = vmatpush1.msra.mxu0 %v189
  %2490 = vmatprep.subr.mxu0 0.0
  %2491 = vmatpush1.msra.mxu0 %v188
  %2492 = vmatprep.subr.mxu0 0.0
  %2493 = vmatpush1.msra.mxu0 %v187
  %2494 = vmatprep.subr.mxu0 0.0
  %2495 = vmatpush1.msra.mxu0 %v186
  %2496 = vmatprep.subr.mxu0 0.0
  %2497 = vmatpush1.msra.mxu0 %v185
  %2498 = vmatprep.subr.mxu0 0.0
  %2499 = vmatpush2.msra.mxu0 0.0
  %2500 = vmatprep.subr.mxu0 0.0
  %2501 = vmatpush2.msra.mxu0 0.0
  %2502 = vmatprep.subr.mxu0 0.0
  %2503 = vmatpush2.msra.mxu0 0.0
  %2504 = vmatprep.subr.mxu0 0.0
  %2505 = vmatpush2.msra.mxu0 0.0
  %2506 = vmatprep.subr.mxu0 0.0
  %2507 = vmatpush2.msra.mxu0 0.0
  %2508 = vmatprep.subr.mxu0 0.0
  %2509 = vmatpush2.msra.mxu0 0.0
  %2510 = vmatprep.subr.mxu0 0.0
  %2511 = vmatpush2.msra.mxu0 0.0
  %2512 = vmatprep.subr.mxu0 0.0
  %2513 = vmatpush2.msra.mxu0 0.0
  %2514 = vmatprep.subr.mxu0 0.0
  %2515 = vmatpush2.msra.mxu0 0.0
  %2516 = vmatprep.subr.mxu0 0.0
  %2517 = vmatpush2.msra.mxu0 0.0
  %2518 = vmatprep.subr.mxu0 0.0
  %2519 = vmatpush2.msra.mxu0 0.0
  %2520 = vmatprep.subr.mxu0 0.0
  %2521 = vmatpush2.msra.mxu0 0.0
  %2522 = vmatprep.subr.mxu0 0.0
  %2523 = vmatpush2.msra.mxu0 0.0
  %2524 = vmatprep.subr.mxu0 0.0
  %2525 = vmatpush2.msra.mxu0 0.0
  %2526 = vmatprep.subr.mxu0 0.0
  %2527 = vmatpush2.msra.mxu0 0.0
  %2528 = vmatprep.subr.mxu0 0.0
  %2529 = vmatpush2.msra.mxu0 0.0
  %2530 = vmatprep.mubr.f32.mxu0 0.0
  %2531 = vmatmul.mubr.f32.gmra.mxu0 %v2359
  %v2532 = vpop.f32.mrf.mxu0
  %v2533 = vadd.f32 %v2448, %v2532
  %v2534 = vpop.f32.mrf.mxu0
  %2535 = vmatprep.mubr.f32.mxu0 0.0
  %2536 = vmatmul.mubr.f32.gmra.mxu0 %v2364
  %v2537 = vpop.f32.mrf.mxu0
  %v2538 = vadd.f32 %v2453, %v2537
  %v2539 = vpop.f32.mrf.mxu0
  %2540 = vmatprep.mubr.f32.mxu0 0.0
  %2541 = vmatmul.mubr.f32.gmra.mxu0 %v2369
  %v2542 = vpop.f32.mrf.mxu0
  %v2543 = vadd.f32 %v2458, %v2542
  %v2544 = vpop.f32.mrf.mxu0
  %2545 = vmatprep.mubr.f32.mxu0 0.0
  %2546 = vmatmul.mubr.f32.gmra.mxu0 %v2374
  %v2547 = vpop.f32.mrf.mxu0
  %v2548 = vadd.f32 %v2463, %v2547
  %v2549 = vpop.f32.mrf.mxu0
  %2550 = vdwg.mxu0
  %v2551 = vmul.f32 %v2533, %v395
  %v2552 = vmul.f32 %v2538, %v396
  %v2553 = vmul.f32 %v2543, %v397
  %v2554 = vmul.f32 %v2548, %v398
  %2555 = vmatprep.subr.mxu0 0.0
  %2556 = vmatpush1.msra.mxu0 0.0
  %2557 = vmatprep.subr.mxu0 0.0
  %2558 = vmatpush1.msra.mxu0 0.0
  %2559 = vmatprep.subr.mxu0 0.0
  %2560 = vmatpush1.msra.mxu0 0.0
  %2561 = vmatprep.subr.mxu0 0.0
  %2562 = vmatpush1.msra.mxu0 0.0
  %2563 = vmatprep.subr.mxu0 0.0
  %2564 = vmatpush1.msra.mxu0 0.0
  %2565 = vmatprep.subr.mxu0 0.0
  %2566 = vmatpush1.msra.mxu0 0.0
  %2567 = vmatprep.subr.mxu0 0.0
  %2568 = vmatpush1.msra.mxu0 0.0
  %2569 = vmatprep.subr.mxu0 0.0
  %2570 = vmatpush1.msra.mxu0 0.0
  %2571 = vmatprep.subr.mxu0 0.0
  %2572 = vmatpush1.msra.mxu0 0.0
  %2573 = vmatprep.subr.mxu0 0.0
  %2574 = vmatpush1.msra.mxu0 0.0
  %2575 = vmatprep.subr.mxu0 0.0
  %2576 = vmatpush1.msra.mxu0 0.0
  %2577 = vmatprep.subr.mxu0 0.0
  %2578 = vmatpush1.msra.mxu0 0.0
  %2579 = vmatprep.subr.mxu0 0.0
  %2580 = vmatpush1.msra.mxu0 %v2554
  %2581 = vmatprep.subr.mxu0 0.0
  %2582 = vmatpush1.msra.mxu0 %v2553
  %2583 = vmatprep.subr.mxu0 0.0
  %2584 = vmatpush1.msra.mxu0 %v2552
  %2585 = vmatprep.subr.mxu0 0.0
  %2586 = vmatpush1.msra.mxu0 %v2551
  %2587 = vmatprep.subr.mxu0 0.0
  %2588 = vmatpush2.msra.mxu0 0.0
  %2589 = vmatprep.subr.mxu0 0.0
  %2590 = vmatpush2.msra.mxu0 0.0
  %2591 = vmatprep.subr.mxu0 0.0
  %2592 = vmatpush2.msra.mxu0 0.0
  %2593 = vmatprep.subr.mxu0 0.0
  %2594 = vmatpush2.msra.mxu0 0.0
  %2595 = vmatprep.subr.mxu0 0.0
  %2596 = vmatpush2.msra.mxu0 0.0
  %2597 = vmatprep.subr.mxu0 0.0
  %2598 = vmatpush2.msra.mxu0 0.0
  %2599 = vmatprep.subr.mxu0 0.0
  %2600 = vmatpush2.msra.mxu0 0.0
  %2601 = vmatprep.subr.mxu0 0.0
  %2602 = vmatpush2.msra.mxu0 0.0
  %2603 = vmatprep.subr.mxu0 0.0
  %2604 = vmatpush2.msra.mxu0 0.0
  %2605 = vmatprep.subr.mxu0 0.0
  %2606 = vmatpush2.msra.mxu0 0.0
  %2607 = vmatprep.subr.mxu0 0.0
  %2608 = vmatpush2.msra.mxu0 0.0
  %2609 = vmatprep.subr.mxu0 0.0
  %2610 = vmatpush2.msra.mxu0 0.0
  %2611 = vmatprep.subr.mxu0 0.0
  %2612 = vmatpush2.msra.mxu0 0.0
  %2613 = vmatprep.subr.mxu0 0.0
  %2614 = vmatpush2.msra.mxu0 0.0
  %2615 = vmatprep.subr.mxu0 0.0
  %2616 = vmatpush2.msra.mxu0 0.0
  %2617 = vmatprep.subr.mxu0 0.0
  %2618 = vmatpush2.msra.mxu0 0.0
  %2619 = vmatprep.mubr.f32.mxu0 0.0
  %2620 = vmatmul.mubr.f32.gmra.mxu0 %v408
  %v2621 = vpop.f32.mrf.mxu0
  %v2622 = vadd.f32 0.0, %v2621
  %v2623 = vpop.f32.mrf.mxu0
  %2624 = vmatprep.mubr.f32.mxu0 0.0
  %2625 = vmatmul.mubr.f32.gmra.mxu0 %v411
  %v2626 = vpop.f32.mrf.mxu0
  %v2627 = vadd.f32 0.0, %v2626
  %v2628 = vpop.f32.mrf.mxu0
  %2629 = vmatprep.mubr.f32.mxu0 0.0
  %2630 = vmatmul.mubr.f32.gmra.mxu0 %v414
  %v2631 = vpop.f32.mrf.mxu0
  %v2632 = vadd.f32 0.0, %v2631
  %v2633 = vpop.f32.mrf.mxu0
  %2634 = vmatprep.mubr.f32.mxu0 0.0
  %2635 = vmatmul.mubr.f32.gmra.mxu0 %v417
  %v2636 = vpop.f32.mrf.mxu0
  %v2637 = vadd.f32 0.0, %v2636
  %v2638 = vpop.f32.mrf.mxu0
  %2639 = vdwg.mxu0
  %2640 = vmatprep.subr.mxu0 0.0
  %2641 = vmatpush1.msra.mxu0 %v200
  %2642 = vmatprep.subr.mxu0 0.0
  %2643 = vmatpush1.msra.mxu0 %v199
  %2644 = vmatprep.subr.mxu0 0.0
  %2645 = vmatpush1.msra.mxu0 %v198
  %2646 = vmatprep.subr.mxu0 0.0
  %2647 = vmatpush1.msra.mxu0 %v197
  %2648 = vmatprep.subr.mxu0 0.0
  %2649 = vmatpush1.msra.mxu0 %v196
  %2650 = vmatprep.subr.mxu0 0.0
  %2651 = vmatpush1.msra.mxu0 %v195
  %2652 = vmatprep.subr.mxu0 0.0
  %2653 = vmatpush1.msra.mxu0 %v194
  %2654 = vmatprep.subr.mxu0 0.0
  %2655 = vmatpush1.msra.mxu0 %v193
  %2656 = vmatprep.subr.mxu0 0.0
  %2657 = vmatpush1.msra.mxu0 %v192
  %2658 = vmatprep.subr.mxu0 0.0
  %2659 = vmatpush1.msra.mxu0 %v191
  %2660 = vmatprep.subr.mxu0 0.0
  %2661 = vmatpush1.msra.mxu0 %v190
  %2662 = vmatprep.subr.mxu0 0.0
  %2663 = vmatpush1.msra.mxu0 %v189
  %2664 = vmatprep.subr.mxu0 0.0
  %2665 = vmatpush1.msra.mxu0 %v188
  %2666 = vmatprep.subr.mxu0 0.0
  %2667 = vmatpush1.msra.mxu0 %v187
  %2668 = vmatprep.subr.mxu0 0.0
  %2669 = vmatpush1.msra.mxu0 %v186
  %2670 = vmatprep.subr.mxu0 0.0
  %2671 = vmatpush1.msra.mxu0 %v185
  %2672 = vmatprep.subr.mxu0 0.0
  %2673 = vmatpush2.msra.mxu0 0.0
  %2674 = vmatprep.subr.mxu0 0.0
  %2675 = vmatpush2.msra.mxu0 0.0
  %2676 = vmatprep.subr.mxu0 0.0
  %2677 = vmatpush2.msra.mxu0 0.0
  %2678 = vmatprep.subr.mxu0 0.0
  %2679 = vmatpush2.msra.mxu0 0.0
  %2680 = vmatprep.subr.mxu0 0.0
  %2681 = vmatpush2.msra.mxu0 0.0
  %2682 = vmatprep.subr.mxu0 0.0
  %2683 = vmatpush2.msra.mxu0 0.0
  %2684 = vmatprep.subr.mxu0 0.0
  %2685 = vmatpush2.msra.mxu0 0.0
  %2686 = vmatprep.subr.mxu0 0.0
  %2687 = vmatpush2.msra.mxu0 0.0
  %2688 = vmatprep.subr.mxu0 0.0
  %2689 = vmatpush2.msra.mxu0 0.0
  %2690 = vmatprep.subr.mxu0 0.0
  %2691 = vmatpush2.msra.mxu0 0.0
  %2692 = vmatprep.subr.mxu0 0.0
  %2693 = vmatpush2.msra.mxu0 0.0
  %2694 = vmatprep.subr.mxu0 0.0
  %2695 = vmatpush2.msra.mxu0 0.0
  %2696 = vmatprep.subr.mxu0 0.0
  %2697 = vmatpush2.msra.mxu0 0.0
  %2698 = vmatprep.subr.mxu0 0.0
  %2699 = vmatpush2.msra.mxu0 0.0
  %2700 = vmatprep.subr.mxu0 0.0
  %2701 = vmatpush2.msra.mxu0 0.0
  %2702 = vmatprep.subr.mxu0 0.0
  %2703 = vmatpush2.msra.mxu0 0.0
  %2704 = vmatprep.mubr.f32.mxu0 0.0
  %2705 = vmatmul.mubr.f32.gmra.mxu0 %v2622
  %v2706 = vpop.f32.mrf.mxu0
  %v2707 = vadd.f32 0.0, %v2706
  %v2708 = vpop.f32.mrf.mxu0
  %2709 = vmatprep.mubr.f32.mxu0 0.0
  %2710 = vmatmul.mubr.f32.gmra.mxu0 %v2627
  %v2711 = vpop.f32.mrf.mxu0
  %v2712 = vadd.f32 0.0, %v2711
  %v2713 = vpop.f32.mrf.mxu0
  %2714 = vmatprep.mubr.f32.mxu0 0.0
  %2715 = vmatmul.mubr.f32.gmra.mxu0 %v2632
  %v2716 = vpop.f32.mrf.mxu0
  %v2717 = vadd.f32 0.0, %v2716
  %v2718 = vpop.f32.mrf.mxu0
  %2719 = vmatprep.mubr.f32.mxu0 0.0
  %2720 = vmatmul.mubr.f32.gmra.mxu0 %v2637
  %v2721 = vpop.f32.mrf.mxu0
  %v2722 = vadd.f32 0.0, %v2721
  %v2723 = vpop.f32.mrf.mxu0
  %2724 = vdwg.mxu0
  %v2725 = vmul.f32 %v201, %v2632
  %v2726 = vmul.f32 %v202, %v2637
  %v2727 = vmul.f32 %v203, %v2622
  %v2728 = vmul.f32 %v204, %v2627
  %2729 = vmatprep.subr.mxu0 0.0
  %2730 = vmatpush1.msra.mxu0 %v224
  %2731 = vmatprep.subr.mxu0 0.0
  %2732 = vmatpush1.msra.mxu0 %v223
  %2733 = vmatprep.subr.mxu0 0.0
  %2734 = vmatpush1.msra.mxu0 %v222
  %2735 = vmatprep.subr.mxu0 0.0
  %2736 = vmatpush1.msra.mxu0 %v221
  %2737 = vmatprep.subr.mxu0 0.0
  %2738 = vmatpush1.msra.mxu0 %v220
  %2739 = vmatprep.subr.mxu0 0.0
  %2740 = vmatpush1.msra.mxu0 %v219
  %2741 = vmatprep.subr.mxu0 0.0
  %2742 = vmatpush1.msra.mxu0 %v218
  %2743 = vmatprep.subr.mxu0 0.0
  %2744 = vmatpush1.msra.mxu0 %v217
  %2745 = vmatprep.subr.mxu0 0.0
  %2746 = vmatpush1.msra.mxu0 %v216
  %2747 = vmatprep.subr.mxu0 0.0
  %2748 = vmatpush1.msra.mxu0 %v215
  %2749 = vmatprep.subr.mxu0 0.0
  %2750 = vmatpush1.msra.mxu0 %v214
  %2751 = vmatprep.subr.mxu0 0.0
  %2752 = vmatpush1.msra.mxu0 %v213
  %2753 = vmatprep.subr.mxu0 0.0
  %2754 = vmatpush1.msra.mxu0 %v212
  %2755 = vmatprep.subr.mxu0 0.0
  %2756 = vmatpush1.msra.mxu0 %v211
  %2757 = vmatprep.subr.mxu0 0.0
  %2758 = vmatpush1.msra.mxu0 %v210
  %2759 = vmatprep.subr.mxu0 0.0
  %2760 = vmatpush1.msra.mxu0 %v209
  %2761 = vmatprep.subr.mxu0 0.0
  %2762 = vmatpush2.msra.mxu0 0.0
  %2763 = vmatprep.subr.mxu0 0.0
  %2764 = vmatpush2.msra.mxu0 0.0
  %2765 = vmatprep.subr.mxu0 0.0
  %2766 = vmatpush2.msra.mxu0 0.0
  %2767 = vmatprep.subr.mxu0 0.0
  %2768 = vmatpush2.msra.mxu0 0.0
  %2769 = vmatprep.subr.mxu0 0.0
  %2770 = vmatpush2.msra.mxu0 0.0
  %2771 = vmatprep.subr.mxu0 0.0
  %2772 = vmatpush2.msra.mxu0 0.0
  %2773 = vmatprep.subr.mxu0 0.0
  %2774 = vmatpush2.msra.mxu0 0.0
  %2775 = vmatprep.subr.mxu0 0.0
  %2776 = vmatpush2.msra.mxu0 0.0
  %2777 = vmatprep.subr.mxu0 0.0
  %2778 = vmatpush2.msra.mxu0 0.0
  %2779 = vmatprep.subr.mxu0 0.0
  %2780 = vmatpush2.msra.mxu0 0.0
  %2781 = vmatprep.subr.mxu0 0.0
  %2782 = vmatpush2.msra.mxu0 0.0
  %2783 = vmatprep.subr.mxu0 0.0
  %2784 = vmatpush2.msra.mxu0 0.0
  %2785 = vmatprep.subr.mxu0 0.0
  %2786 = vmatpush2.msra.mxu0 0.0
  %2787 = vmatprep.subr.mxu0 0.0
  %2788 = vmatpush2.msra.mxu0 0.0
  %2789 = vmatprep.subr.mxu0 0.0
  %2790 = vmatpush2.msra.mxu0 0.0
  %2791 = vmatprep.subr.mxu0 0.0
  %2792 = vmatpush2.msra.mxu0 0.0
  %2793 = vmatprep.mubr.f32.mxu0 0.0
  %2794 = vmatmul.mubr.f32.gmra.mxu0 %v2725
  %v2795 = vpop.f32.mrf.mxu0
  %v2796 = vadd.f32 0.0, %v2795
  %v2797 = vpop.f32.mrf.mxu0
  %2798 = vmatprep.mubr.f32.mxu0 0.0
  %2799 = vmatmul.mubr.f32.gmra.mxu0 %v2726
  %v2800 = vpop.f32.mrf.mxu0
  %v2801 = vadd.f32 0.0, %v2800
  %v2802 = vpop.f32.mrf.mxu0
  %2803 = vmatprep.mubr.f32.mxu0 0.0
  %2804 = vmatmul.mubr.f32.gmra.mxu0 %v2727
  %v2805 = vpop.f32.mrf.mxu0
  %v2806 = vadd.f32 0.0, %v2805
  %v2807 = vpop.f32.mrf.mxu0
  %2808 = vmatprep.mubr.f32.mxu0 0.0
  %2809 = vmatmul.mubr.f32.gmra.mxu0 %v2728
  %v2810 = vpop.f32.mrf.mxu0
  %v2811 = vadd.f32 0.0, %v2810
  %v2812 = vpop.f32.mrf.mxu0
  %2813 = vdwg.mxu0
  %v2814 = vsub.f32 %v2707, %v2796
  %v2815 = vsub.f32 %v2712, %v2801
  %v2816 = vsub.f32 %v2717, %v2806
  %v2817 = vsub.f32 %v2722, %v2811
  %v2818 = vmul.f32 %v2814, %v63
  %v2819 = vmul.f32 %v2815, %v64
  %v2820 = vmul.f32 %v2816, %v65
  %v2821 = vmul.f32 %v2817, %v66
  %v2822 = vmul.f32 %v2816, %v686
  %v2823 = vmul.f32 %v2817, %v687
  %v2824 = vmul.f32 %v2814, %v688
  %v2825 = vmul.f32 %v2815, %v689
  %v2826 = vadd.f32 %v2818, %v2822
  %v2827 = vadd.f32 %v2819, %v2823
  %v2828 = vadd.f32 %v2820, %v2824
  %v2829 = vadd.f32 %v2821, %v2825
  %v2830 = vmul.f32 %v714, %v2276
  %v2831 = vmul.f32 %v714, %v2277
  %v2832 = vmul.f32 %v714, %v2278
  %v2833 = vmul.f32 %v714, %v2279
  %2834 = vmatprep.subr.mxu0 0.0
  %2835 = vmatpush1.msra.mxu0 %v713
  %2836 = vmatprep.subr.mxu0 0.0
  %2837 = vmatpush1.msra.mxu0 %v712
  %2838 = vmatprep.subr.mxu0 0.0
  %2839 = vmatpush1.msra.mxu0 %v711
  %2840 = vmatprep.subr.mxu0 0.0
  %2841 = vmatpush1.msra.mxu0 %v710
  %2842 = vmatprep.subr.mxu0 0.0
  %2843 = vmatpush1.msra.mxu0 %v709
  %2844 = vmatprep.subr.mxu0 0.0
  %2845 = vmatpush1.msra.mxu0 %v708
  %2846 = vmatprep.subr.mxu0 0.0
  %2847 = vmatpush1.msra.mxu0 %v707
  %2848 = vmatprep.subr.mxu0 0.0
  %2849 = vmatpush1.msra.mxu0 %v706
  %2850 = vmatprep.subr.mxu0 0.0
  %2851 = vmatpush1.msra.mxu0 %v705
  %2852 = vmatprep.subr.mxu0 0.0
  %2853 = vmatpush1.msra.mxu0 %v704
  %2854 = vmatprep.subr.mxu0 0.0
  %2855 = vmatpush1.msra.mxu0 %v703
  %2856 = vmatprep.subr.mxu0 0.0
  %2857 = vmatpush1.msra.mxu0 %v702
  %2858 = vmatprep.subr.mxu0 0.0
  %2859 = vmatpush1.msra.mxu0 %v701
  %2860 = vmatprep.subr.mxu0 0.0
  %2861 = vmatpush1.msra.mxu0 %v700
  %2862 = vmatprep.subr.mxu0 0.0
  %2863 = vmatpush1.msra.mxu0 %v699
  %2864 = vmatprep.subr.mxu0 0.0
  %2865 = vmatpush1.msra.mxu0 %v698
  %2866 = vmatprep.subr.mxu0 0.0
  %2867 = vmatpush2.msra.mxu0 0.0
  %2868 = vmatprep.subr.mxu0 0.0
  %2869 = vmatpush2.msra.mxu0 0.0
  %2870 = vmatprep.subr.mxu0 0.0
  %2871 = vmatpush2.msra.mxu0 0.0
  %2872 = vmatprep.subr.mxu0 0.0
  %2873 = vmatpush2.msra.mxu0 0.0
  %2874 = vmatprep.subr.mxu0 0.0
  %2875 = vmatpush2.msra.mxu0 0.0
  %2876 = vmatprep.subr.mxu0 0.0
  %2877 = vmatpush2.msra.mxu0 0.0
  %2878 = vmatprep.subr.mxu0 0.0
  %2879 = vmatpush2.msra.mxu0 0.0
  %2880 = vmatprep.subr.mxu0 0.0
  %2881 = vmatpush2.msra.mxu0 0.0
  %2882 = vmatprep.subr.mxu0 0.0
  %2883 = vmatpush2.msra.mxu0 0.0
  %2884 = vmatprep.subr.mxu0 0.0
  %2885 = vmatpush2.msra.mxu0 0.0
  %2886 = vmatprep.subr.mxu0 0.0
  %2887 = vmatpush2.msra.mxu0 0.0
  %2888 = vmatprep.subr.mxu0 0.0
  %2889 = vmatpush2.msra.mxu0 0.0
  %2890 = vmatprep.subr.mxu0 0.0
  %2891 = vmatpush2.msra.mxu0 0.0
  %2892 = vmatprep.subr.mxu0 0.0
  %2893 = vmatpush2.msra.mxu0 0.0
  %2894 = vmatprep.subr.mxu0 0.0
  %2895 = vmatpush2.msra.mxu0 0.0
  %2896 = vmatprep.subr.mxu0 0.0
  %2897 = vmatpush2.msra.mxu0 0.0
  %2898 = vmatprep.mubr.f32.mxu0 0.0
  %2899 = vmatmul.mubr.f32.gmra.mxu0 %v2826
  %v2900 = vpop.f32.mrf.mxu0
  %v2901 = vadd.f32 %v2830, %v2900
  %v2902 = vpop.f32.mrf.mxu0
  %2903 = vmatprep.mubr.f32.mxu0 0.0
  %2904 = vmatmul.mubr.f32.gmra.mxu0 %v2827
  %v2905 = vpop.f32.mrf.mxu0
  %v2906 = vadd.f32 %v2831, %v2905
  %v2907 = vpop.f32.mrf.mxu0
  %2908 = vmatprep.mubr.f32.mxu0 0.0
  %2909 = vmatmul.mubr.f32.gmra.mxu0 %v2828
  %v2910 = vpop.f32.mrf.mxu0
  %v2911 = vadd.f32 %v2832, %v2910
  %v2912 = vpop.f32.mrf.mxu0
  %2913 = vmatprep.mubr.f32.mxu0 0.0
  %2914 = vmatmul.mubr.f32.gmra.mxu0 %v2829
  %v2915 = vpop.f32.mrf.mxu0
  %v2916 = vadd.f32 %v2833, %v2915
  %v2917 = vpop.f32.mrf.mxu0
  %2918 = vdwg.mxu0
  %v2919 = vmul.f32 %v2276, %v2901
  %v2920 = vmul.f32 %v2277, %v2906
  %v2921 = vmul.f32 %v2278, %v2911
  %v2922 = vmul.f32 %v2279, %v2916
  %v2923 = vadd.f32 %v2919, %v2920
  %v2924 = vadd.f32 %v2923, %v2921
  %v2925 = vadd.f32 %v2924, %v2922
  %2926 = vadd.xlane.f32.xlu0 %v2925
  %v2927 = vpop.xlane.xlu0 %2926
  %v2928 = vrot.slane %v2927, 4
  %v2929 = vadd.f32 %v2927, %v2928
  %v2930 = vrot.slane %v2929, 2
  %v2931 = vadd.f32 %v2929, %v2930
  %v2932 = vrot.slane %v2931, 1
  %v2933 = vadd.f32 %v2931, %v2932
  %s2934 = vtos %v2933
  %v2935 = vstv %s2934
  %v2936 = vrcp.pop %v2935
  %s2937 = vtos %v2936
  %s2938 = smul.f32 %s2266, %s2937
  %v2939 = vstv %s2938
  %v2940 = vmul.f32 %v2939, %v2276
  %v2941 = vmul.f32 %v2939, %v2277
  %v2942 = vmul.f32 %v2939, %v2278
  %v2943 = vmul.f32 %v2939, %v2279
  %v2944 = vadd.f32 %v2239, %v2940
  %v2945 = vadd.f32 %v2240, %v2941
  %v2946 = vadd.f32 %v2241, %v2942
  %v2947 = vadd.f32 %v2242, %v2943
  %v2948 = vmul.f32 %v2939, %v2901
  %v2949 = vmul.f32 %v2939, %v2906
  %v2950 = vmul.f32 %v2939, %v2911
  %v2951 = vmul.f32 %v2939, %v2916
  %v2952 = vsub.f32 %v2247, %v2948
  %v2953 = vsub.f32 %v2248, %v2949
  %v2954 = vsub.f32 %v2249, %v2950
  %v2955 = vsub.f32 %v2250, %v2951
  %v2956 = vmul.f32 %v2952, %v2952
  %v2957 = vmul.f32 %v2953, %v2953
  %v2958 = vmul.f32 %v2954, %v2954
  %v2959 = vmul.f32 %v2955, %v2955
  %v2960 = vadd.f32 %v2956, %v2957
  %v2961 = vadd.f32 %v2960, %v2958
  %v2962 = vadd.f32 %v2961, %v2959
  %2963 = vadd.xlane.f32.xlu0 %v2962
  %v2964 = vpop.xlane.xlu0 %2963
  %v2965 = vrot.slane %v2964, 4
  %v2966 = vadd.f32 %v2964, %v2965
  %v2967 = vrot.slane %v2966, 2
  %v2968 = vadd.f32 %v2966, %v2967
  %v2969 = vrot.slane %v2968, 1
  %v2970 = vadd.f32 %v2968, %v2969
  %s2971 = vtos %v2970
  %v2972 = vstv %s2266
  %v2973 = vrcp.pop %v2972
  %s2974 = vtos %v2973
  %s2975 = smul.f32 %s2971, %s2974
  %v2976 = vstv %s2975
  %v2977 = vmul.f32 %v2976, %v2276
  %v2978 = vmul.f32 %v2976, %v2277
  %v2979 = vmul.f32 %v2976, %v2278
  %v2980 = vmul.f32 %v2976, %v2279
  %v2981 = vadd.f32 %v2952, %v2977
  %v2982 = vadd.f32 %v2953, %v2978
  %v2983 = vadd.f32 %v2954, %v2979
  %v2984 = vadd.f32 %v2955, %v2980
  %v2985 = vmul.f32 %v2981, %v63
  %v2986 = vmul.f32 %v2982, %v64
  %v2987 = vmul.f32 %v2983, %v65
  %v2988 = vmul.f32 %v2984, %v66
  %v2989 = vmul.f32 %v2983, %v71
  %v2990 = vmul.f32 %v2984, %v72
  %v2991 = vmul.f32 %v2981, %v73
  %v2992 = vmul.f32 %v2982, %v74
  %v2993 = vadd.f32 %v2985, %v2989
  %v2994 = vadd.f32 %v2986, %v2990
  %v2995 = vadd.f32 %v2987, %v2991
  %v2996 = vadd.f32 %v2988, %v2992
  %2997 = vmatprep.subr.mxu0 0.0
  %2998 = vmatpush1.msra.mxu0 0.0
  %2999 = vmatprep.subr.mxu0 0.0
  %3000 = vmatpush1.msra.mxu0 0.0
  %3001 = vmatprep.subr.mxu0 0.0
  %3002 = vmatpush1.msra.mxu0 0.0
  %3003 = vmatprep.subr.mxu0 0.0
  %3004 = vmatpush1.msra.mxu0 0.0
  %3005 = vmatprep.subr.mxu0 0.0
  %3006 = vmatpush1.msra.mxu0 0.0
  %3007 = vmatprep.subr.mxu0 0.0
  %3008 = vmatpush1.msra.mxu0 0.0
  %3009 = vmatprep.subr.mxu0 0.0
  %3010 = vmatpush1.msra.mxu0 0.0
  %3011 = vmatprep.subr.mxu0 0.0
  %3012 = vmatpush1.msra.mxu0 0.0
  %3013 = vmatprep.subr.mxu0 0.0
  %3014 = vmatpush1.msra.mxu0 0.0
  %3015 = vmatprep.subr.mxu0 0.0
  %3016 = vmatpush1.msra.mxu0 0.0
  %3017 = vmatprep.subr.mxu0 0.0
  %3018 = vmatpush1.msra.mxu0 0.0
  %3019 = vmatprep.subr.mxu0 0.0
  %3020 = vmatpush1.msra.mxu0 0.0
  %3021 = vmatprep.subr.mxu0 0.0
  %3022 = vmatpush1.msra.mxu0 %v2996
  %3023 = vmatprep.subr.mxu0 0.0
  %3024 = vmatpush1.msra.mxu0 %v2995
  %3025 = vmatprep.subr.mxu0 0.0
  %3026 = vmatpush1.msra.mxu0 %v2994
  %3027 = vmatprep.subr.mxu0 0.0
  %3028 = vmatpush1.msra.mxu0 %v2993
  %3029 = vmatprep.subr.mxu0 0.0
  %3030 = vmatpush2.msra.mxu0 0.0
  %3031 = vmatprep.subr.mxu0 0.0
  %3032 = vmatpush2.msra.mxu0 0.0
  %3033 = vmatprep.subr.mxu0 0.0
  %3034 = vmatpush2.msra.mxu0 0.0
  %3035 = vmatprep.subr.mxu0 0.0
  %3036 = vmatpush2.msra.mxu0 0.0
  %3037 = vmatprep.subr.mxu0 0.0
  %3038 = vmatpush2.msra.mxu0 0.0
  %3039 = vmatprep.subr.mxu0 0.0
  %3040 = vmatpush2.msra.mxu0 0.0
  %3041 = vmatprep.subr.mxu0 0.0
  %3042 = vmatpush2.msra.mxu0 0.0
  %3043 = vmatprep.subr.mxu0 0.0
  %3044 = vmatpush2.msra.mxu0 0.0
  %3045 = vmatprep.subr.mxu0 0.0
  %3046 = vmatpush2.msra.mxu0 0.0
  %3047 = vmatprep.subr.mxu0 0.0
  %3048 = vmatpush2.msra.mxu0 0.0
  %3049 = vmatprep.subr.mxu0 0.0
  %3050 = vmatpush2.msra.mxu0 0.0
  %3051 = vmatprep.subr.mxu0 0.0
  %3052 = vmatpush2.msra.mxu0 0.0
  %3053 = vmatprep.subr.mxu0 0.0
  %3054 = vmatpush2.msra.mxu0 0.0
  %3055 = vmatprep.subr.mxu0 0.0
  %3056 = vmatpush2.msra.mxu0 0.0
  %3057 = vmatprep.subr.mxu0 0.0
  %3058 = vmatpush2.msra.mxu0 0.0
  %3059 = vmatprep.subr.mxu0 0.0
  %3060 = vmatpush2.msra.mxu0 0.0
  %3061 = vmatprep.mubr.f32.mxu0 0.0
  %3062 = vmatmul.mubr.f32.gmra.mxu0 %v89
  %v3063 = vpop.f32.mrf.mxu0
  %v3064 = vadd.f32 0.0, %v3063
  %v3065 = vpop.f32.mrf.mxu0
  %3066 = vmatprep.mubr.f32.mxu0 0.0
  %3067 = vmatmul.mubr.f32.gmra.mxu0 %v92
  %v3068 = vpop.f32.mrf.mxu0
  %v3069 = vadd.f32 0.0, %v3068
  %v3070 = vpop.f32.mrf.mxu0
  %3071 = vmatprep.mubr.f32.mxu0 0.0
  %3072 = vmatmul.mubr.f32.gmra.mxu0 %v95
  %v3073 = vpop.f32.mrf.mxu0
  %v3074 = vadd.f32 0.0, %v3073
  %v3075 = vpop.f32.mrf.mxu0
  %3076 = vmatprep.mubr.f32.mxu0 0.0
  %3077 = vmatmul.mubr.f32.gmra.mxu0 %v98
  %v3078 = vpop.f32.mrf.mxu0
  %v3079 = vadd.f32 0.0, %v3078
  %v3080 = vpop.f32.mrf.mxu0
  %3081 = vdwg.mxu0
  %v3082 = vmul.f32 %v201, %v3074
  %v3083 = vmul.f32 %v202, %v3079
  %v3084 = vmul.f32 %v203, %v3064
  %v3085 = vmul.f32 %v204, %v3069
  %3086 = vmatprep.subr.mxu0 0.0
  %3087 = vmatpush1.msra.mxu0 %v224
  %3088 = vmatprep.subr.mxu0 0.0
  %3089 = vmatpush1.msra.mxu0 %v223
  %3090 = vmatprep.subr.mxu0 0.0
  %3091 = vmatpush1.msra.mxu0 %v222
  %3092 = vmatprep.subr.mxu0 0.0
  %3093 = vmatpush1.msra.mxu0 %v221
  %3094 = vmatprep.subr.mxu0 0.0
  %3095 = vmatpush1.msra.mxu0 %v220
  %3096 = vmatprep.subr.mxu0 0.0
  %3097 = vmatpush1.msra.mxu0 %v219
  %3098 = vmatprep.subr.mxu0 0.0
  %3099 = vmatpush1.msra.mxu0 %v218
  %3100 = vmatprep.subr.mxu0 0.0
  %3101 = vmatpush1.msra.mxu0 %v217
  %3102 = vmatprep.subr.mxu0 0.0
  %3103 = vmatpush1.msra.mxu0 %v216
  %3104 = vmatprep.subr.mxu0 0.0
  %3105 = vmatpush1.msra.mxu0 %v215
  %3106 = vmatprep.subr.mxu0 0.0
  %3107 = vmatpush1.msra.mxu0 %v214
  %3108 = vmatprep.subr.mxu0 0.0
  %3109 = vmatpush1.msra.mxu0 %v213
  %3110 = vmatprep.subr.mxu0 0.0
  %3111 = vmatpush1.msra.mxu0 %v212
  %3112 = vmatprep.subr.mxu0 0.0
  %3113 = vmatpush1.msra.mxu0 %v211
  %3114 = vmatprep.subr.mxu0 0.0
  %3115 = vmatpush1.msra.mxu0 %v210
  %3116 = vmatprep.subr.mxu0 0.0
  %3117 = vmatpush1.msra.mxu0 %v209
  %3118 = vmatprep.subr.mxu0 0.0
  %3119 = vmatpush2.msra.mxu0 0.0
  %3120 = vmatprep.subr.mxu0 0.0
  %3121 = vmatpush2.msra.mxu0 0.0
  %3122 = vmatprep.subr.mxu0 0.0
  %3123 = vmatpush2.msra.mxu0 0.0
  %3124 = vmatprep.subr.mxu0 0.0
  %3125 = vmatpush2.msra.mxu0 0.0
  %3126 = vmatprep.subr.mxu0 0.0
  %3127 = vmatpush2.msra.mxu0 0.0
  %3128 = vmatprep.subr.mxu0 0.0
  %3129 = vmatpush2.msra.mxu0 0.0
  %3130 = vmatprep.subr.mxu0 0.0
  %3131 = vmatpush2.msra.mxu0 0.0
  %3132 = vmatprep.subr.mxu0 0.0
  %3133 = vmatpush2.msra.mxu0 0.0
  %3134 = vmatprep.subr.mxu0 0.0
  %3135 = vmatpush2.msra.mxu0 0.0
  %3136 = vmatprep.subr.mxu0 0.0
  %3137 = vmatpush2.msra.mxu0 0.0
  %3138 = vmatprep.subr.mxu0 0.0
  %3139 = vmatpush2.msra.mxu0 0.0
  %3140 = vmatprep.subr.mxu0 0.0
  %3141 = vmatpush2.msra.mxu0 0.0
  %3142 = vmatprep.subr.mxu0 0.0
  %3143 = vmatpush2.msra.mxu0 0.0
  %3144 = vmatprep.subr.mxu0 0.0
  %3145 = vmatpush2.msra.mxu0 0.0
  %3146 = vmatprep.subr.mxu0 0.0
  %3147 = vmatpush2.msra.mxu0 0.0
  %3148 = vmatprep.subr.mxu0 0.0
  %3149 = vmatpush2.msra.mxu0 0.0
  %3150 = vmatprep.mubr.f32.mxu0 0.0
  %3151 = vmatmul.mubr.f32.gmra.mxu0 %v3082
  %v3152 = vpop.f32.mrf.mxu0
  %v3153 = vadd.f32 0.0, %v3152
  %v3154 = vpop.f32.mrf.mxu0
  %3155 = vmatprep.mubr.f32.mxu0 0.0
  %3156 = vmatmul.mubr.f32.gmra.mxu0 %v3083
  %v3157 = vpop.f32.mrf.mxu0
  %v3158 = vadd.f32 0.0, %v3157
  %v3159 = vpop.f32.mrf.mxu0
  %3160 = vmatprep.mubr.f32.mxu0 0.0
  %3161 = vmatmul.mubr.f32.gmra.mxu0 %v3084
  %v3162 = vpop.f32.mrf.mxu0
  %v3163 = vadd.f32 0.0, %v3162
  %v3164 = vpop.f32.mrf.mxu0
  %3165 = vmatprep.mubr.f32.mxu0 0.0
  %3166 = vmatmul.mubr.f32.gmra.mxu0 %v3085
  %v3167 = vpop.f32.mrf.mxu0
  %v3168 = vadd.f32 0.0, %v3167
  %v3169 = vpop.f32.mrf.mxu0
  %3170 = vdwg.mxu0
  %3171 = vmatprep.subr.mxu0 0.0
  %3172 = vmatpush1.msra.mxu0 %v200
  %3173 = vmatprep.subr.mxu0 0.0
  %3174 = vmatpush1.msra.mxu0 %v199
  %3175 = vmatprep.subr.mxu0 0.0
  %3176 = vmatpush1.msra.mxu0 %v198
  %3177 = vmatprep.subr.mxu0 0.0
  %3178 = vmatpush1.msra.mxu0 %v197
  %3179 = vmatprep.subr.mxu0 0.0
  %3180 = vmatpush1.msra.mxu0 %v196
  %3181 = vmatprep.subr.mxu0 0.0
  %3182 = vmatpush1.msra.mxu0 %v195
  %3183 = vmatprep.subr.mxu0 0.0
  %3184 = vmatpush1.msra.mxu0 %v194
  %3185 = vmatprep.subr.mxu0 0.0
  %3186 = vmatpush1.msra.mxu0 %v193
  %3187 = vmatprep.subr.mxu0 0.0
  %3188 = vmatpush1.msra.mxu0 %v192
  %3189 = vmatprep.subr.mxu0 0.0
  %3190 = vmatpush1.msra.mxu0 %v191
  %3191 = vmatprep.subr.mxu0 0.0
  %3192 = vmatpush1.msra.mxu0 %v190
  %3193 = vmatprep.subr.mxu0 0.0
  %3194 = vmatpush1.msra.mxu0 %v189
  %3195 = vmatprep.subr.mxu0 0.0
  %3196 = vmatpush1.msra.mxu0 %v188
  %3197 = vmatprep.subr.mxu0 0.0
  %3198 = vmatpush1.msra.mxu0 %v187
  %3199 = vmatprep.subr.mxu0 0.0
  %3200 = vmatpush1.msra.mxu0 %v186
  %3201 = vmatprep.subr.mxu0 0.0
  %3202 = vmatpush1.msra.mxu0 %v185
  %3203 = vmatprep.subr.mxu0 0.0
  %3204 = vmatpush2.msra.mxu0 0.0
  %3205 = vmatprep.subr.mxu0 0.0
  %3206 = vmatpush2.msra.mxu0 0.0
  %3207 = vmatprep.subr.mxu0 0.0
  %3208 = vmatpush2.msra.mxu0 0.0
  %3209 = vmatprep.subr.mxu0 0.0
  %3210 = vmatpush2.msra.mxu0 0.0
  %3211 = vmatprep.subr.mxu0 0.0
  %3212 = vmatpush2.msra.mxu0 0.0
  %3213 = vmatprep.subr.mxu0 0.0
  %3214 = vmatpush2.msra.mxu0 0.0
  %3215 = vmatprep.subr.mxu0 0.0
  %3216 = vmatpush2.msra.mxu0 0.0
  %3217 = vmatprep.subr.mxu0 0.0
  %3218 = vmatpush2.msra.mxu0 0.0
  %3219 = vmatprep.subr.mxu0 0.0
  %3220 = vmatpush2.msra.mxu0 0.0
  %3221 = vmatprep.subr.mxu0 0.0
  %3222 = vmatpush2.msra.mxu0 0.0
  %3223 = vmatprep.subr.mxu0 0.0
  %3224 = vmatpush2.msra.mxu0 0.0
  %3225 = vmatprep.subr.mxu0 0.0
  %3226 = vmatpush2.msra.mxu0 0.0
  %3227 = vmatprep.subr.mxu0 0.0
  %3228 = vmatpush2.msra.mxu0 0.0
  %3229 = vmatprep.subr.mxu0 0.0
  %3230 = vmatpush2.msra.mxu0 0.0
  %3231 = vmatprep.subr.mxu0 0.0
  %3232 = vmatpush2.msra.mxu0 0.0
  %3233 = vmatprep.subr.mxu0 0.0
  %3234 = vmatpush2.msra.mxu0 0.0
  %3235 = vmatprep.mubr.f32.mxu0 0.0
  %3236 = vmatmul.mubr.f32.gmra.mxu0 %v3064
  %v3237 = vpop.f32.mrf.mxu0
  %v3238 = vadd.f32 %v3153, %v3237
  %v3239 = vpop.f32.mrf.mxu0
  %3240 = vmatprep.mubr.f32.mxu0 0.0
  %3241 = vmatmul.mubr.f32.gmra.mxu0 %v3069
  %v3242 = vpop.f32.mrf.mxu0
  %v3243 = vadd.f32 %v3158, %v3242
  %v3244 = vpop.f32.mrf.mxu0
  %3245 = vmatprep.mubr.f32.mxu0 0.0
  %3246 = vmatmul.mubr.f32.gmra.mxu0 %v3074
  %v3247 = vpop.f32.mrf.mxu0
  %v3248 = vadd.f32 %v3163, %v3247
  %v3249 = vpop.f32.mrf.mxu0
  %3250 = vmatprep.mubr.f32.mxu0 0.0
  %3251 = vmatmul.mubr.f32.gmra.mxu0 %v3079
  %v3252 = vpop.f32.mrf.mxu0
  %v3253 = vadd.f32 %v3168, %v3252
  %v3254 = vpop.f32.mrf.mxu0
  %3255 = vdwg.mxu0
  %v3256 = vmul.f32 %v3238, %v395
  %v3257 = vmul.f32 %v3243, %v396
  %v3258 = vmul.f32 %v3248, %v397
  %v3259 = vmul.f32 %v3253, %v398
  %3260 = vmatprep.subr.mxu0 0.0
  %3261 = vmatpush1.msra.mxu0 0.0
  %3262 = vmatprep.subr.mxu0 0.0
  %3263 = vmatpush1.msra.mxu0 0.0
  %3264 = vmatprep.subr.mxu0 0.0
  %3265 = vmatpush1.msra.mxu0 0.0
  %3266 = vmatprep.subr.mxu0 0.0
  %3267 = vmatpush1.msra.mxu0 0.0
  %3268 = vmatprep.subr.mxu0 0.0
  %3269 = vmatpush1.msra.mxu0 0.0
  %3270 = vmatprep.subr.mxu0 0.0
  %3271 = vmatpush1.msra.mxu0 0.0
  %3272 = vmatprep.subr.mxu0 0.0
  %3273 = vmatpush1.msra.mxu0 0.0
  %3274 = vmatprep.subr.mxu0 0.0
  %3275 = vmatpush1.msra.mxu0 0.0
  %3276 = vmatprep.subr.mxu0 0.0
  %3277 = vmatpush1.msra.mxu0 0.0
  %3278 = vmatprep.subr.mxu0 0.0
  %3279 = vmatpush1.msra.mxu0 0.0
  %3280 = vmatprep.subr.mxu0 0.0
  %3281 = vmatpush1.msra.mxu0 0.0
  %3282 = vmatprep.subr.mxu0 0.0
  %3283 = vmatpush1.msra.mxu0 0.0
  %3284 = vmatprep.subr.mxu0 0.0
  %3285 = vmatpush1.msra.mxu0 %v3259
  %3286 = vmatprep.subr.mxu0 0.0
  %3287 = vmatpush1.msra.mxu0 %v3258
  %3288 = vmatprep.subr.mxu0 0.0
  %3289 = vmatpush1.msra.mxu0 %v3257
  %3290 = vmatprep.subr.mxu0 0.0
  %3291 = vmatpush1.msra.mxu0 %v3256
  %3292 = vmatprep.subr.mxu0 0.0
  %3293 = vmatpush2.msra.mxu0 0.0
  %3294 = vmatprep.subr.mxu0 0.0
  %3295 = vmatpush2.msra.mxu0 0.0
  %3296 = vmatprep.subr.mxu0 0.0
  %3297 = vmatpush2.msra.mxu0 0.0
  %3298 = vmatprep.subr.mxu0 0.0
  %3299 = vmatpush2.msra.mxu0 0.0
  %3300 = vmatprep.subr.mxu0 0.0
  %3301 = vmatpush2.msra.mxu0 0.0
  %3302 = vmatprep.subr.mxu0 0.0
  %3303 = vmatpush2.msra.mxu0 0.0
  %3304 = vmatprep.subr.mxu0 0.0
  %3305 = vmatpush2.msra.mxu0 0.0
  %3306 = vmatprep.subr.mxu0 0.0
  %3307 = vmatpush2.msra.mxu0 0.0
  %3308 = vmatprep.subr.mxu0 0.0
  %3309 = vmatpush2.msra.mxu0 0.0
  %3310 = vmatprep.subr.mxu0 0.0
  %3311 = vmatpush2.msra.mxu0 0.0
  %3312 = vmatprep.subr.mxu0 0.0
  %3313 = vmatpush2.msra.mxu0 0.0
  %3314 = vmatprep.subr.mxu0 0.0
  %3315 = vmatpush2.msra.mxu0 0.0
  %3316 = vmatprep.subr.mxu0 0.0
  %3317 = vmatpush2.msra.mxu0 0.0
  %3318 = vmatprep.subr.mxu0 0.0
  %3319 = vmatpush2.msra.mxu0 0.0
  %3320 = vmatprep.subr.mxu0 0.0
  %3321 = vmatpush2.msra.mxu0 0.0
  %3322 = vmatprep.subr.mxu0 0.0
  %3323 = vmatpush2.msra.mxu0 0.0
  %3324 = vmatprep.mubr.f32.mxu0 0.0
  %3325 = vmatmul.mubr.f32.gmra.mxu0 %v408
  %v3326 = vpop.f32.mrf.mxu0
  %v3327 = vadd.f32 0.0, %v3326
  %v3328 = vpop.f32.mrf.mxu0
  %3329 = vmatprep.mubr.f32.mxu0 0.0
  %3330 = vmatmul.mubr.f32.gmra.mxu0 %v411
  %v3331 = vpop.f32.mrf.mxu0
  %v3332 = vadd.f32 0.0, %v3331
  %v3333 = vpop.f32.mrf.mxu0
  %3334 = vmatprep.mubr.f32.mxu0 0.0
  %3335 = vmatmul.mubr.f32.gmra.mxu0 %v414
  %v3336 = vpop.f32.mrf.mxu0
  %v3337 = vadd.f32 0.0, %v3336
  %v3338 = vpop.f32.mrf.mxu0
  %3339 = vmatprep.mubr.f32.mxu0 0.0
  %3340 = vmatmul.mubr.f32.gmra.mxu0 %v417
  %v3341 = vpop.f32.mrf.mxu0
  %v3342 = vadd.f32 0.0, %v3341
  %v3343 = vpop.f32.mrf.mxu0
  %3344 = vdwg.mxu0
  %3345 = vmatprep.subr.mxu0 0.0
  %3346 = vmatpush1.msra.mxu0 %v200
  %3347 = vmatprep.subr.mxu0 0.0
  %3348 = vmatpush1.msra.mxu0 %v199
  %3349 = vmatprep.subr.mxu0 0.0
  %3350 = vmatpush1.msra.mxu0 %v198
  %3351 = vmatprep.subr.mxu0 0.0
  %3352 = vmatpush1.msra.mxu0 %v197
  %3353 = vmatprep.subr.mxu0 0.0
  %3354 = vmatpush1.msra.mxu0 %v196
  %3355 = vmatprep.subr.mxu0 0.0
  %3356 = vmatpush1.msra.mxu0 %v195
  %3357 = vmatprep.subr.mxu0 0.0
  %3358 = vmatpush1.msra.mxu0 %v194
  %3359 = vmatprep.subr.mxu0 0.0
  %3360 = vmatpush1.msra.mxu0 %v193
  %3361 = vmatprep.subr.mxu0 0.0
  %3362 = vmatpush1.msra.mxu0 %v192
  %3363 = vmatprep.subr.mxu0 0.0
  %3364 = vmatpush1.msra.mxu0 %v191
  %3365 = vmatprep.subr.mxu0 0.0
  %3366 = vmatpush1.msra.mxu0 %v190
  %3367 = vmatprep.subr.mxu0 0.0
  %3368 = vmatpush1.msra.mxu0 %v189
  %3369 = vmatprep.subr.mxu0 0.0
  %3370 = vmatpush1.msra.mxu0 %v188
  %3371 = vmatprep.subr.mxu0 0.0
  %3372 = vmatpush1.msra.mxu0 %v187
  %3373 = vmatprep.subr.mxu0 0.0
  %3374 = vmatpush1.msra.mxu0 %v186
  %3375 = vmatprep.subr.mxu0 0.0
  %3376 = vmatpush1.msra.mxu0 %v185
  %3377 = vmatprep.subr.mxu0 0.0
  %3378 = vmatpush2.msra.mxu0 0.0
  %3379 = vmatprep.subr.mxu0 0.0
  %3380 = vmatpush2.msra.mxu0 0.0
  %3381 = vmatprep.subr.mxu0 0.0
  %3382 = vmatpush2.msra.mxu0 0.0
  %3383 = vmatprep.subr.mxu0 0.0
  %3384 = vmatpush2.msra.mxu0 0.0
  %3385 = vmatprep.subr.mxu0 0.0
  %3386 = vmatpush2.msra.mxu0 0.0
  %3387 = vmatprep.subr.mxu0 0.0
  %3388 = vmatpush2.msra.mxu0 0.0
  %3389 = vmatprep.subr.mxu0 0.0
  %3390 = vmatpush2.msra.mxu0 0.0
  %3391 = vmatprep.subr.mxu0 0.0
  %3392 = vmatpush2.msra.mxu0 0.0
  %3393 = vmatprep.subr.mxu0 0.0
  %3394 = vmatpush2.msra.mxu0 0.0
  %3395 = vmatprep.subr.mxu0 0.0
  %3396 = vmatpush2.msra.mxu0 0.0
  %3397 = vmatprep.subr.mxu0 0.0
  %3398 = vmatpush2.msra.mxu0 0.0
  %3399 = vmatprep.subr.mxu0 0.0
  %3400 = vmatpush2.msra.mxu0 0.0
  %3401 = vmatprep.subr.mxu0 0.0
  %3402 = vmatpush2.msra.mxu0 0.0
  %3403 = vmatprep.subr.mxu0 0.0
  %3404 = vmatpush2.msra.mxu0 0.0
  %3405 = vmatprep.subr.mxu0 0.0
  %3406 = vmatpush2.msra.mxu0 0.0
  %3407 = vmatprep.subr.mxu0 0.0
  %3408 = vmatpush2.msra.mxu0 0.0
  %3409 = vmatprep.mubr.f32.mxu0 0.0
  %3410 = vmatmul.mubr.f32.gmra.mxu0 %v3327
  %v3411 = vpop.f32.mrf.mxu0
  %v3412 = vadd.f32 0.0, %v3411
  %v3413 = vpop.f32.mrf.mxu0
  %3414 = vmatprep.mubr.f32.mxu0 0.0
  %3415 = vmatmul.mubr.f32.gmra.mxu0 %v3332
  %v3416 = vpop.f32.mrf.mxu0
  %v3417 = vadd.f32 0.0, %v3416
  %v3418 = vpop.f32.mrf.mxu0
  %3419 = vmatprep.mubr.f32.mxu0 0.0
  %3420 = vmatmul.mubr.f32.gmra.mxu0 %v3337
  %v3421 = vpop.f32.mrf.mxu0
  %v3422 = vadd.f32 0.0, %v3421
  %v3423 = vpop.f32.mrf.mxu0
  %3424 = vmatprep.mubr.f32.mxu0 0.0
  %3425 = vmatmul.mubr.f32.gmra.mxu0 %v3342
  %v3426 = vpop.f32.mrf.mxu0
  %v3427 = vadd.f32 0.0, %v3426
  %v3428 = vpop.f32.mrf.mxu0
  %3429 = vdwg.mxu0
  %v3430 = vmul.f32 %v201, %v3337
  %v3431 = vmul.f32 %v202, %v3342
  %v3432 = vmul.f32 %v203, %v3327
  %v3433 = vmul.f32 %v204, %v3332
  %3434 = vmatprep.subr.mxu0 0.0
  %3435 = vmatpush1.msra.mxu0 %v224
  %3436 = vmatprep.subr.mxu0 0.0
  %3437 = vmatpush1.msra.mxu0 %v223
  %3438 = vmatprep.subr.mxu0 0.0
  %3439 = vmatpush1.msra.mxu0 %v222
  %3440 = vmatprep.subr.mxu0 0.0
  %3441 = vmatpush1.msra.mxu0 %v221
  %3442 = vmatprep.subr.mxu0 0.0
  %3443 = vmatpush1.msra.mxu0 %v220
  %3444 = vmatprep.subr.mxu0 0.0
  %3445 = vmatpush1.msra.mxu0 %v219
  %3446 = vmatprep.subr.mxu0 0.0
  %3447 = vmatpush1.msra.mxu0 %v218
  %3448 = vmatprep.subr.mxu0 0.0
  %3449 = vmatpush1.msra.mxu0 %v217
  %3450 = vmatprep.subr.mxu0 0.0
  %3451 = vmatpush1.msra.mxu0 %v216
  %3452 = vmatprep.subr.mxu0 0.0
  %3453 = vmatpush1.msra.mxu0 %v215
  %3454 = vmatprep.subr.mxu0 0.0
  %3455 = vmatpush1.msra.mxu0 %v214
  %3456 = vmatprep.subr.mxu0 0.0
  %3457 = vmatpush1.msra.mxu0 %v213
  %3458 = vmatprep.subr.mxu0 0.0
  %3459 = vmatpush1.msra.mxu0 %v212
  %3460 = vmatprep.subr.mxu0 0.0
  %3461 = vmatpush1.msra.mxu0 %v211
  %3462 = vmatprep.subr.mxu0 0.0
  %3463 = vmatpush1.msra.mxu0 %v210
  %3464 = vmatprep.subr.mxu0 0.0
  %3465 = vmatpush1.msra.mxu0 %v209
  %3466 = vmatprep.subr.mxu0 0.0
  %3467 = vmatpush2.msra.mxu0 0.0
  %3468 = vmatprep.subr.mxu0 0.0
  %3469 = vmatpush2.msra.mxu0 0.0
  %3470 = vmatprep.subr.mxu0 0.0
  %3471 = vmatpush2.msra.mxu0 0.0
  %3472 = vmatprep.subr.mxu0 0.0
  %3473 = vmatpush2.msra.mxu0 0.0
  %3474 = vmatprep.subr.mxu0 0.0
  %3475 = vmatpush2.msra.mxu0 0.0
  %3476 = vmatprep.subr.mxu0 0.0
  %3477 = vmatpush2.msra.mxu0 0.0
  %3478 = vmatprep.subr.mxu0 0.0
  %3479 = vmatpush2.msra.mxu0 0.0
  %3480 = vmatprep.subr.mxu0 0.0
  %3481 = vmatpush2.msra.mxu0 0.0
  %3482 = vmatprep.subr.mxu0 0.0
  %3483 = vmatpush2.msra.mxu0 0.0
  %3484 = vmatprep.subr.mxu0 0.0
  %3485 = vmatpush2.msra.mxu0 0.0
  %3486 = vmatprep.subr.mxu0 0.0
  %3487 = vmatpush2.msra.mxu0 0.0
  %3488 = vmatprep.subr.mxu0 0.0
  %3489 = vmatpush2.msra.mxu0 0.0
  %3490 = vmatprep.subr.mxu0 0.0
  %3491 = vmatpush2.msra.mxu0 0.0
  %3492 = vmatprep.subr.mxu0 0.0
  %3493 = vmatpush2.msra.mxu0 0.0
  %3494 = vmatprep.subr.mxu0 0.0
  %3495 = vmatpush2.msra.mxu0 0.0
  %3496 = vmatprep.subr.mxu0 0.0
  %3497 = vmatpush2.msra.mxu0 0.0
  %3498 = vmatprep.mubr.f32.mxu0 0.0
  %3499 = vmatmul.mubr.f32.gmra.mxu0 %v3430
  %v3500 = vpop.f32.mrf.mxu0
  %v3501 = vadd.f32 0.0, %v3500
  %v3502 = vpop.f32.mrf.mxu0
  %3503 = vmatprep.mubr.f32.mxu0 0.0
  %3504 = vmatmul.mubr.f32.gmra.mxu0 %v3431
  %v3505 = vpop.f32.mrf.mxu0
  %v3506 = vadd.f32 0.0, %v3505
  %v3507 = vpop.f32.mrf.mxu0
  %3508 = vmatprep.mubr.f32.mxu0 0.0
  %3509 = vmatmul.mubr.f32.gmra.mxu0 %v3432
  %v3510 = vpop.f32.mrf.mxu0
  %v3511 = vadd.f32 0.0, %v3510
  %v3512 = vpop.f32.mrf.mxu0
  %3513 = vmatprep.mubr.f32.mxu0 0.0
  %3514 = vmatmul.mubr.f32.gmra.mxu0 %v3433
  %v3515 = vpop.f32.mrf.mxu0
  %v3516 = vadd.f32 0.0, %v3515
  %v3517 = vpop.f32.mrf.mxu0
  %3518 = vdwg.mxu0
  %v3519 = vsub.f32 %v3412, %v3501
  %v3520 = vsub.f32 %v3417, %v3506
  %v3521 = vsub.f32 %v3422, %v3511
  %v3522 = vsub.f32 %v3427, %v3516
  %v3523 = vmul.f32 %v3519, %v63
  %v3524 = vmul.f32 %v3520, %v64
  %v3525 = vmul.f32 %v3521, %v65
  %v3526 = vmul.f32 %v3522, %v66
  %v3527 = vmul.f32 %v3521, %v686
  %v3528 = vmul.f32 %v3522, %v687
  %v3529 = vmul.f32 %v3519, %v688
  %v3530 = vmul.f32 %v3520, %v689
  %v3531 = vadd.f32 %v3523, %v3527
  %v3532 = vadd.f32 %v3524, %v3528
  %v3533 = vadd.f32 %v3525, %v3529
  %v3534 = vadd.f32 %v3526, %v3530
  %v3535 = vmul.f32 %v714, %v2981
  %v3536 = vmul.f32 %v714, %v2982
  %v3537 = vmul.f32 %v714, %v2983
  %v3538 = vmul.f32 %v714, %v2984
  %3539 = vmatprep.subr.mxu0 0.0
  %3540 = vmatpush1.msra.mxu0 %v713
  %3541 = vmatprep.subr.mxu0 0.0
  %3542 = vmatpush1.msra.mxu0 %v712
  %3543 = vmatprep.subr.mxu0 0.0
  %3544 = vmatpush1.msra.mxu0 %v711
  %3545 = vmatprep.subr.mxu0 0.0
  %3546 = vmatpush1.msra.mxu0 %v710
  %3547 = vmatprep.subr.mxu0 0.0
  %3548 = vmatpush1.msra.mxu0 %v709
  %3549 = vmatprep.subr.mxu0 0.0
  %3550 = vmatpush1.msra.mxu0 %v708
  %3551 = vmatprep.subr.mxu0 0.0
  %3552 = vmatpush1.msra.mxu0 %v707
  %3553 = vmatprep.subr.mxu0 0.0
  %3554 = vmatpush1.msra.mxu0 %v706
  %3555 = vmatprep.subr.mxu0 0.0
  %3556 = vmatpush1.msra.mxu0 %v705
  %3557 = vmatprep.subr.mxu0 0.0
  %3558 = vmatpush1.msra.mxu0 %v704
  %3559 = vmatprep.subr.mxu0 0.0
  %3560 = vmatpush1.msra.mxu0 %v703
  %3561 = vmatprep.subr.mxu0 0.0
  %3562 = vmatpush1.msra.mxu0 %v702
  %3563 = vmatprep.subr.mxu0 0.0
  %3564 = vmatpush1.msra.mxu0 %v701
  %3565 = vmatprep.subr.mxu0 0.0
  %3566 = vmatpush1.msra.mxu0 %v700
  %3567 = vmatprep.subr.mxu0 0.0
  %3568 = vmatpush1.msra.mxu0 %v699
  %3569 = vmatprep.subr.mxu0 0.0
  %3570 = vmatpush1.msra.mxu0 %v698
  %3571 = vmatprep.subr.mxu0 0.0
  %3572 = vmatpush2.msra.mxu0 0.0
  %3573 = vmatprep.subr.mxu0 0.0
  %3574 = vmatpush2.msra.mxu0 0.0
  %3575 = vmatprep.subr.mxu0 0.0
  %3576 = vmatpush2.msra.mxu0 0.0
  %3577 = vmatprep.subr.mxu0 0.0
  %3578 = vmatpush2.msra.mxu0 0.0
  %3579 = vmatprep.subr.mxu0 0.0
  %3580 = vmatpush2.msra.mxu0 0.0
  %3581 = vmatprep.subr.mxu0 0.0
  %3582 = vmatpush2.msra.mxu0 0.0
  %3583 = vmatprep.subr.mxu0 0.0
  %3584 = vmatpush2.msra.mxu0 0.0
  %3585 = vmatprep.subr.mxu0 0.0
  %3586 = vmatpush2.msra.mxu0 0.0
  %3587 = vmatprep.subr.mxu0 0.0
  %3588 = vmatpush2.msra.mxu0 0.0
  %3589 = vmatprep.subr.mxu0 0.0
  %3590 = vmatpush2.msra.mxu0 0.0
  %3591 = vmatprep.subr.mxu0 0.0
  %3592 = vmatpush2.msra.mxu0 0.0
  %3593 = vmatprep.subr.mxu0 0.0
  %3594 = vmatpush2.msra.mxu0 0.0
  %3595 = vmatprep.subr.mxu0 0.0
  %3596 = vmatpush2.msra.mxu0 0.0
  %3597 = vmatprep.subr.mxu0 0.0
  %3598 = vmatpush2.msra.mxu0 0.0
  %3599 = vmatprep.subr.mxu0 0.0
  %3600 = vmatpush2.msra.mxu0 0.0
  %3601 = vmatprep.subr.mxu0 0.0
  %3602 = vmatpush2.msra.mxu0 0.0
  %3603 = vmatprep.mubr.f32.mxu0 0.0
  %3604 = vmatmul.mubr.f32.gmra.mxu0 %v3531
  %v3605 = vpop.f32.mrf.mxu0
  %v3606 = vadd.f32 %v3535, %v3605
  %v3607 = vpop.f32.mrf.mxu0
  %3608 = vmatprep.mubr.f32.mxu0 0.0
  %3609 = vmatmul.mubr.f32.gmra.mxu0 %v3532
  %v3610 = vpop.f32.mrf.mxu0
  %v3611 = vadd.f32 %v3536, %v3610
  %v3612 = vpop.f32.mrf.mxu0
  %3613 = vmatprep.mubr.f32.mxu0 0.0
  %3614 = vmatmul.mubr.f32.gmra.mxu0 %v3533
  %v3615 = vpop.f32.mrf.mxu0
  %v3616 = vadd.f32 %v3537, %v3615
  %v3617 = vpop.f32.mrf.mxu0
  %3618 = vmatprep.mubr.f32.mxu0 0.0
  %3619 = vmatmul.mubr.f32.gmra.mxu0 %v3534
  %v3620 = vpop.f32.mrf.mxu0
  %v3621 = vadd.f32 %v3538, %v3620
  %v3622 = vpop.f32.mrf.mxu0
  %3623 = vdwg.mxu0
  %v3624 = vmul.f32 %v2981, %v3606
  %v3625 = vmul.f32 %v2982, %v3611
  %v3626 = vmul.f32 %v2983, %v3616
  %v3627 = vmul.f32 %v2984, %v3621
  %v3628 = vadd.f32 %v3624, %v3625
  %v3629 = vadd.f32 %v3628, %v3626
  %v3630 = vadd.f32 %v3629, %v3627
  %3631 = vadd.xlane.f32.xlu0 %v3630
  %v3632 = vpop.xlane.xlu0 %3631
  %v3633 = vrot.slane %v3632, 4
  %v3634 = vadd.f32 %v3632, %v3633
  %v3635 = vrot.slane %v3634, 2
  %v3636 = vadd.f32 %v3634, %v3635
  %v3637 = vrot.slane %v3636, 1
  %v3638 = vadd.f32 %v3636, %v3637
  %s3639 = vtos %v3638
  %v3640 = vstv %s3639
  %v3641 = vrcp.pop %v3640
  %s3642 = vtos %v3641
  %s3643 = smul.f32 %s2971, %s3642
  %v3644 = vstv %s3643
  %v3645 = vmul.f32 %v3644, %v2981
  %v3646 = vmul.f32 %v3644, %v2982
  %v3647 = vmul.f32 %v3644, %v2983
  %v3648 = vmul.f32 %v3644, %v2984
  %v3649 = vadd.f32 %v2944, %v3645
  %v3650 = vadd.f32 %v2945, %v3646
  %v3651 = vadd.f32 %v2946, %v3647
  %v3652 = vadd.f32 %v2947, %v3648
  %v3653 = vmul.f32 %v3644, %v3606
  %v3654 = vmul.f32 %v3644, %v3611
  %v3655 = vmul.f32 %v3644, %v3616
  %v3656 = vmul.f32 %v3644, %v3621
  %v3657 = vsub.f32 %v2952, %v3653
  %v3658 = vsub.f32 %v2953, %v3654
  %v3659 = vsub.f32 %v2954, %v3655
  %v3660 = vsub.f32 %v2955, %v3656
  %v3661 = vmul.f32 %v3657, %v3657
  %v3662 = vmul.f32 %v3658, %v3658
  %v3663 = vmul.f32 %v3659, %v3659
  %v3664 = vmul.f32 %v3660, %v3660
  %v3665 = vadd.f32 %v3661, %v3662
  %v3666 = vadd.f32 %v3665, %v3663
  %v3667 = vadd.f32 %v3666, %v3664
  %3668 = vadd.xlane.f32.xlu0 %v3667
  %v3669 = vpop.xlane.xlu0 %3668
  %v3670 = vrot.slane %v3669, 4
  %v3671 = vadd.f32 %v3669, %v3670
  %v3672 = vrot.slane %v3671, 2
  %v3673 = vadd.f32 %v3671, %v3672
  %v3674 = vrot.slane %v3673, 1
  %v3675 = vadd.f32 %v3673, %v3674
  %s3676 = vtos %v3675
  %v3677 = vstv %s2971
  %v3678 = vrcp.pop %v3677
  %s3679 = vtos %v3678
  %s3680 = smul.f32 %s3676, %s3679
  %v3681 = vstv %s3680
  %v3682 = vmul.f32 %v3681, %v2981
  %v3683 = vmul.f32 %v3681, %v2982
  %v3684 = vmul.f32 %v3681, %v2983
  %v3685 = vmul.f32 %v3681, %v2984
  %v3686 = vadd.f32 %v3657, %v3682
  %v3687 = vadd.f32 %v3658, %v3683
  %v3688 = vadd.f32 %v3659, %v3684
  %v3689 = vadd.f32 %v3660, %v3685
  %v3690 = vmul.f32 %v3686, %v63
  %v3691 = vmul.f32 %v3687, %v64
  %v3692 = vmul.f32 %v3688, %v65
  %v3693 = vmul.f32 %v3689, %v66
  %v3694 = vmul.f32 %v3688, %v71
  %v3695 = vmul.f32 %v3689, %v72
  %v3696 = vmul.f32 %v3686, %v73
  %v3697 = vmul.f32 %v3687, %v74
  %v3698 = vadd.f32 %v3690, %v3694
  %v3699 = vadd.f32 %v3691, %v3695
  %v3700 = vadd.f32 %v3692, %v3696
  %v3701 = vadd.f32 %v3693, %v3697
  %3702 = vmatprep.subr.mxu0 0.0
  %3703 = vmatpush1.msra.mxu0 0.0
  %3704 = vmatprep.subr.mxu0 0.0
  %3705 = vmatpush1.msra.mxu0 0.0
  %3706 = vmatprep.subr.mxu0 0.0
  %3707 = vmatpush1.msra.mxu0 0.0
  %3708 = vmatprep.subr.mxu0 0.0
  %3709 = vmatpush1.msra.mxu0 0.0
  %3710 = vmatprep.subr.mxu0 0.0
  %3711 = vmatpush1.msra.mxu0 0.0
  %3712 = vmatprep.subr.mxu0 0.0
  %3713 = vmatpush1.msra.mxu0 0.0
  %3714 = vmatprep.subr.mxu0 0.0
  %3715 = vmatpush1.msra.mxu0 0.0
  %3716 = vmatprep.subr.mxu0 0.0
  %3717 = vmatpush1.msra.mxu0 0.0
  %3718 = vmatprep.subr.mxu0 0.0
  %3719 = vmatpush1.msra.mxu0 0.0
  %3720 = vmatprep.subr.mxu0 0.0
  %3721 = vmatpush1.msra.mxu0 0.0
  %3722 = vmatprep.subr.mxu0 0.0
  %3723 = vmatpush1.msra.mxu0 0.0
  %3724 = vmatprep.subr.mxu0 0.0
  %3725 = vmatpush1.msra.mxu0 0.0
  %3726 = vmatprep.subr.mxu0 0.0
  %3727 = vmatpush1.msra.mxu0 %v3701
  %3728 = vmatprep.subr.mxu0 0.0
  %3729 = vmatpush1.msra.mxu0 %v3700
  %3730 = vmatprep.subr.mxu0 0.0
  %3731 = vmatpush1.msra.mxu0 %v3699
  %3732 = vmatprep.subr.mxu0 0.0
  %3733 = vmatpush1.msra.mxu0 %v3698
  %3734 = vmatprep.subr.mxu0 0.0
  %3735 = vmatpush2.msra.mxu0 0.0
  %3736 = vmatprep.subr.mxu0 0.0
  %3737 = vmatpush2.msra.mxu0 0.0
  %3738 = vmatprep.subr.mxu0 0.0
  %3739 = vmatpush2.msra.mxu0 0.0
  %3740 = vmatprep.subr.mxu0 0.0
  %3741 = vmatpush2.msra.mxu0 0.0
  %3742 = vmatprep.subr.mxu0 0.0
  %3743 = vmatpush2.msra.mxu0 0.0
  %3744 = vmatprep.subr.mxu0 0.0
  %3745 = vmatpush2.msra.mxu0 0.0
  %3746 = vmatprep.subr.mxu0 0.0
  %3747 = vmatpush2.msra.mxu0 0.0
  %3748 = vmatprep.subr.mxu0 0.0
  %3749 = vmatpush2.msra.mxu0 0.0
  %3750 = vmatprep.subr.mxu0 0.0
  %3751 = vmatpush2.msra.mxu0 0.0
  %3752 = vmatprep.subr.mxu0 0.0
  %3753 = vmatpush2.msra.mxu0 0.0
  %3754 = vmatprep.subr.mxu0 0.0
  %3755 = vmatpush2.msra.mxu0 0.0
  %3756 = vmatprep.subr.mxu0 0.0
  %3757 = vmatpush2.msra.mxu0 0.0
  %3758 = vmatprep.subr.mxu0 0.0
  %3759 = vmatpush2.msra.mxu0 0.0
  %3760 = vmatprep.subr.mxu0 0.0
  %3761 = vmatpush2.msra.mxu0 0.0
  %3762 = vmatprep.subr.mxu0 0.0
  %3763 = vmatpush2.msra.mxu0 0.0
  %3764 = vmatprep.subr.mxu0 0.0
  %3765 = vmatpush2.msra.mxu0 0.0
  %3766 = vmatprep.mubr.f32.mxu0 0.0
  %3767 = vmatmul.mubr.f32.gmra.mxu0 %v89
  %v3768 = vpop.f32.mrf.mxu0
  %v3769 = vadd.f32 0.0, %v3768
  %v3770 = vpop.f32.mrf.mxu0
  %3771 = vmatprep.mubr.f32.mxu0 0.0
  %3772 = vmatmul.mubr.f32.gmra.mxu0 %v92
  %v3773 = vpop.f32.mrf.mxu0
  %v3774 = vadd.f32 0.0, %v3773
  %v3775 = vpop.f32.mrf.mxu0
  %3776 = vmatprep.mubr.f32.mxu0 0.0
  %3777 = vmatmul.mubr.f32.gmra.mxu0 %v95
  %v3778 = vpop.f32.mrf.mxu0
  %v3779 = vadd.f32 0.0, %v3778
  %v3780 = vpop.f32.mrf.mxu0
  %3781 = vmatprep.mubr.f32.mxu0 0.0
  %3782 = vmatmul.mubr.f32.gmra.mxu0 %v98
  %v3783 = vpop.f32.mrf.mxu0
  %v3784 = vadd.f32 0.0, %v3783
  %v3785 = vpop.f32.mrf.mxu0
  %3786 = vdwg.mxu0
  %v3787 = vmul.f32 %v201, %v3779
  %v3788 = vmul.f32 %v202, %v3784
  %v3789 = vmul.f32 %v203, %v3769
  %v3790 = vmul.f32 %v204, %v3774
  %3791 = vmatprep.subr.mxu0 0.0
  %3792 = vmatpush1.msra.mxu0 %v224
  %3793 = vmatprep.subr.mxu0 0.0
  %3794 = vmatpush1.msra.mxu0 %v223
  %3795 = vmatprep.subr.mxu0 0.0
  %3796 = vmatpush1.msra.mxu0 %v222
  %3797 = vmatprep.subr.mxu0 0.0
  %3798 = vmatpush1.msra.mxu0 %v221
  %3799 = vmatprep.subr.mxu0 0.0
  %3800 = vmatpush1.msra.mxu0 %v220
  %3801 = vmatprep.subr.mxu0 0.0
  %3802 = vmatpush1.msra.mxu0 %v219
  %3803 = vmatprep.subr.mxu0 0.0
  %3804 = vmatpush1.msra.mxu0 %v218
  %3805 = vmatprep.subr.mxu0 0.0
  %3806 = vmatpush1.msra.mxu0 %v217
  %3807 = vmatprep.subr.mxu0 0.0
  %3808 = vmatpush1.msra.mxu0 %v216
  %3809 = vmatprep.subr.mxu0 0.0
  %3810 = vmatpush1.msra.mxu0 %v215
  %3811 = vmatprep.subr.mxu0 0.0
  %3812 = vmatpush1.msra.mxu0 %v214
  %3813 = vmatprep.subr.mxu0 0.0
  %3814 = vmatpush1.msra.mxu0 %v213
  %3815 = vmatprep.subr.mxu0 0.0
  %3816 = vmatpush1.msra.mxu0 %v212
  %3817 = vmatprep.subr.mxu0 0.0
  %3818 = vmatpush1.msra.mxu0 %v211
  %3819 = vmatprep.subr.mxu0 0.0
  %3820 = vmatpush1.msra.mxu0 %v210
  %3821 = vmatprep.subr.mxu0 0.0
  %3822 = vmatpush1.msra.mxu0 %v209
  %3823 = vmatprep.subr.mxu0 0.0
  %3824 = vmatpush2.msra.mxu0 0.0
  %3825 = vmatprep.subr.mxu0 0.0
  %3826 = vmatpush2.msra.mxu0 0.0
  %3827 = vmatprep.subr.mxu0 0.0
  %3828 = vmatpush2.msra.mxu0 0.0
  %3829 = vmatprep.subr.mxu0 0.0
  %3830 = vmatpush2.msra.mxu0 0.0
  %3831 = vmatprep.subr.mxu0 0.0
  %3832 = vmatpush2.msra.mxu0 0.0
  %3833 = vmatprep.subr.mxu0 0.0
  %3834 = vmatpush2.msra.mxu0 0.0
  %3835 = vmatprep.subr.mxu0 0.0
  %3836 = vmatpush2.msra.mxu0 0.0
  %3837 = vmatprep.subr.mxu0 0.0
  %3838 = vmatpush2.msra.mxu0 0.0
  %3839 = vmatprep.subr.mxu0 0.0
  %3840 = vmatpush2.msra.mxu0 0.0
  %3841 = vmatprep.subr.mxu0 0.0
  %3842 = vmatpush2.msra.mxu0 0.0
  %3843 = vmatprep.subr.mxu0 0.0
  %3844 = vmatpush2.msra.mxu0 0.0
  %3845 = vmatprep.subr.mxu0 0.0
  %3846 = vmatpush2.msra.mxu0 0.0
  %3847 = vmatprep.subr.mxu0 0.0
  %3848 = vmatpush2.msra.mxu0 0.0
  %3849 = vmatprep.subr.mxu0 0.0
  %3850 = vmatpush2.msra.mxu0 0.0
  %3851 = vmatprep.subr.mxu0 0.0
  %3852 = vmatpush2.msra.mxu0 0.0
  %3853 = vmatprep.subr.mxu0 0.0
  %3854 = vmatpush2.msra.mxu0 0.0
  %3855 = vmatprep.mubr.f32.mxu0 0.0
  %3856 = vmatmul.mubr.f32.gmra.mxu0 %v3787
  %v3857 = vpop.f32.mrf.mxu0
  %v3858 = vadd.f32 0.0, %v3857
  %v3859 = vpop.f32.mrf.mxu0
  %3860 = vmatprep.mubr.f32.mxu0 0.0
  %3861 = vmatmul.mubr.f32.gmra.mxu0 %v3788
  %v3862 = vpop.f32.mrf.mxu0
  %v3863 = vadd.f32 0.0, %v3862
  %v3864 = vpop.f32.mrf.mxu0
  %3865 = vmatprep.mubr.f32.mxu0 0.0
  %3866 = vmatmul.mubr.f32.gmra.mxu0 %v3789
  %v3867 = vpop.f32.mrf.mxu0
  %v3868 = vadd.f32 0.0, %v3867
  %v3869 = vpop.f32.mrf.mxu0
  %3870 = vmatprep.mubr.f32.mxu0 0.0
  %3871 = vmatmul.mubr.f32.gmra.mxu0 %v3790
  %v3872 = vpop.f32.mrf.mxu0
  %v3873 = vadd.f32 0.0, %v3872
  %v3874 = vpop.f32.mrf.mxu0
  %3875 = vdwg.mxu0
  %3876 = vmatprep.subr.mxu0 0.0
  %3877 = vmatpush1.msra.mxu0 %v200
  %3878 = vmatprep.subr.mxu0 0.0
  %3879 = vmatpush1.msra.mxu0 %v199
  %3880 = vmatprep.subr.mxu0 0.0
  %3881 = vmatpush1.msra.mxu0 %v198
  %3882 = vmatprep.subr.mxu0 0.0
  %3883 = vmatpush1.msra.mxu0 %v197
  %3884 = vmatprep.subr.mxu0 0.0
  %3885 = vmatpush1.msra.mxu0 %v196
  %3886 = vmatprep.subr.mxu0 0.0
  %3887 = vmatpush1.msra.mxu0 %v195
  %3888 = vmatprep.subr.mxu0 0.0
  %3889 = vmatpush1.msra.mxu0 %v194
  %3890 = vmatprep.subr.mxu0 0.0
  %3891 = vmatpush1.msra.mxu0 %v193
  %3892 = vmatprep.subr.mxu0 0.0
  %3893 = vmatpush1.msra.mxu0 %v192
  %3894 = vmatprep.subr.mxu0 0.0
  %3895 = vmatpush1.msra.mxu0 %v191
  %3896 = vmatprep.subr.mxu0 0.0
  %3897 = vmatpush1.msra.mxu0 %v190
  %3898 = vmatprep.subr.mxu0 0.0
  %3899 = vmatpush1.msra.mxu0 %v189
  %3900 = vmatprep.subr.mxu0 0.0
  %3901 = vmatpush1.msra.mxu0 %v188
  %3902 = vmatprep.subr.mxu0 0.0
  %3903 = vmatpush1.msra.mxu0 %v187
  %3904 = vmatprep.subr.mxu0 0.0
  %3905 = vmatpush1.msra.mxu0 %v186
  %3906 = vmatprep.subr.mxu0 0.0
  %3907 = vmatpush1.msra.mxu0 %v185
  %3908 = vmatprep.subr.mxu0 0.0
  %3909 = vmatpush2.msra.mxu0 0.0
  %3910 = vmatprep.subr.mxu0 0.0
  %3911 = vmatpush2.msra.mxu0 0.0
  %3912 = vmatprep.subr.mxu0 0.0
  %3913 = vmatpush2.msra.mxu0 0.0
  %3914 = vmatprep.subr.mxu0 0.0
  %3915 = vmatpush2.msra.mxu0 0.0
  %3916 = vmatprep.subr.mxu0 0.0
  %3917 = vmatpush2.msra.mxu0 0.0
  %3918 = vmatprep.subr.mxu0 0.0
  %3919 = vmatpush2.msra.mxu0 0.0
  %3920 = vmatprep.subr.mxu0 0.0
  %3921 = vmatpush2.msra.mxu0 0.0
  %3922 = vmatprep.subr.mxu0 0.0
  %3923 = vmatpush2.msra.mxu0 0.0
  %3924 = vmatprep.subr.mxu0 0.0
  %3925 = vmatpush2.msra.mxu0 0.0
  %3926 = vmatprep.subr.mxu0 0.0
  %3927 = vmatpush2.msra.mxu0 0.0
  %3928 = vmatprep.subr.mxu0 0.0
  %3929 = vmatpush2.msra.mxu0 0.0
  %3930 = vmatprep.subr.mxu0 0.0
  %3931 = vmatpush2.msra.mxu0 0.0
  %3932 = vmatprep.subr.mxu0 0.0
  %3933 = vmatpush2.msra.mxu0 0.0
  %3934 = vmatprep.subr.mxu0 0.0
  %3935 = vmatpush2.msra.mxu0 0.0
  %3936 = vmatprep.subr.mxu0 0.0
  %3937 = vmatpush2.msra.mxu0 0.0
  %3938 = vmatprep.subr.mxu0 0.0
  %3939 = vmatpush2.msra.mxu0 0.0
  %3940 = vmatprep.mubr.f32.mxu0 0.0
  %3941 = vmatmul.mubr.f32.gmra.mxu0 %v3769
  %v3942 = vpop.f32.mrf.mxu0
  %v3943 = vadd.f32 %v3858, %v3942
  %v3944 = vpop.f32.mrf.mxu0
  %3945 = vmatprep.mubr.f32.mxu0 0.0
  %3946 = vmatmul.mubr.f32.gmra.mxu0 %v3774
  %v3947 = vpop.f32.mrf.mxu0
  %v3948 = vadd.f32 %v3863, %v3947
  %v3949 = vpop.f32.mrf.mxu0
  %3950 = vmatprep.mubr.f32.mxu0 0.0
  %3951 = vmatmul.mubr.f32.gmra.mxu0 %v3779
  %v3952 = vpop.f32.mrf.mxu0
  %v3953 = vadd.f32 %v3868, %v3952
  %v3954 = vpop.f32.mrf.mxu0
  %3955 = vmatprep.mubr.f32.mxu0 0.0
  %3956 = vmatmul.mubr.f32.gmra.mxu0 %v3784
  %v3957 = vpop.f32.mrf.mxu0
  %v3958 = vadd.f32 %v3873, %v3957
  %v3959 = vpop.f32.mrf.mxu0
  %3960 = vdwg.mxu0
  %v3961 = vmul.f32 %v3943, %v395
  %v3962 = vmul.f32 %v3948, %v396
  %v3963 = vmul.f32 %v3953, %v397
  %v3964 = vmul.f32 %v3958, %v398
  %3965 = vmatprep.subr.mxu0 0.0
  %3966 = vmatpush1.msra.mxu0 0.0
  %3967 = vmatprep.subr.mxu0 0.0
  %3968 = vmatpush1.msra.mxu0 0.0
  %3969 = vmatprep.subr.mxu0 0.0
  %3970 = vmatpush1.msra.mxu0 0.0
  %3971 = vmatprep.subr.mxu0 0.0
  %3972 = vmatpush1.msra.mxu0 0.0
  %3973 = vmatprep.subr.mxu0 0.0
  %3974 = vmatpush1.msra.mxu0 0.0
  %3975 = vmatprep.subr.mxu0 0.0
  %3976 = vmatpush1.msra.mxu0 0.0
  %3977 = vmatprep.subr.mxu0 0.0
  %3978 = vmatpush1.msra.mxu0 0.0
  %3979 = vmatprep.subr.mxu0 0.0
  %3980 = vmatpush1.msra.mxu0 0.0
  %3981 = vmatprep.subr.mxu0 0.0
  %3982 = vmatpush1.msra.mxu0 0.0
  %3983 = vmatprep.subr.mxu0 0.0
  %3984 = vmatpush1.msra.mxu0 0.0
  %3985 = vmatprep.subr.mxu0 0.0
  %3986 = vmatpush1.msra.mxu0 0.0
  %3987 = vmatprep.subr.mxu0 0.0
  %3988 = vmatpush1.msra.mxu0 0.0
  %3989 = vmatprep.subr.mxu0 0.0
  %3990 = vmatpush1.msra.mxu0 %v3964
  %3991 = vmatprep.subr.mxu0 0.0
  %3992 = vmatpush1.msra.mxu0 %v3963
  %3993 = vmatprep.subr.mxu0 0.0
  %3994 = vmatpush1.msra.mxu0 %v3962
  %3995 = vmatprep.subr.mxu0 0.0
  %3996 = vmatpush1.msra.mxu0 %v3961
  %3997 = vmatprep.subr.mxu0 0.0
  %3998 = vmatpush2.msra.mxu0 0.0
  %3999 = vmatprep.subr.mxu0 0.0
  %4000 = vmatpush2.msra.mxu0 0.0
  %4001 = vmatprep.subr.mxu0 0.0
  %4002 = vmatpush2.msra.mxu0 0.0
  %4003 = vmatprep.subr.mxu0 0.0
  %4004 = vmatpush2.msra.mxu0 0.0
  %4005 = vmatprep.subr.mxu0 0.0
  %4006 = vmatpush2.msra.mxu0 0.0
  %4007 = vmatprep.subr.mxu0 0.0
  %4008 = vmatpush2.msra.mxu0 0.0
  %4009 = vmatprep.subr.mxu0 0.0
  %4010 = vmatpush2.msra.mxu0 0.0
  %4011 = vmatprep.subr.mxu0 0.0
  %4012 = vmatpush2.msra.mxu0 0.0
  %4013 = vmatprep.subr.mxu0 0.0
  %4014 = vmatpush2.msra.mxu0 0.0
  %4015 = vmatprep.subr.mxu0 0.0
  %4016 = vmatpush2.msra.mxu0 0.0
  %4017 = vmatprep.subr.mxu0 0.0
  %4018 = vmatpush2.msra.mxu0 0.0
  %4019 = vmatprep.subr.mxu0 0.0
  %4020 = vmatpush2.msra.mxu0 0.0
  %4021 = vmatprep.subr.mxu0 0.0
  %4022 = vmatpush2.msra.mxu0 0.0
  %4023 = vmatprep.subr.mxu0 0.0
  %4024 = vmatpush2.msra.mxu0 0.0
  %4025 = vmatprep.subr.mxu0 0.0
  %4026 = vmatpush2.msra.mxu0 0.0
  %4027 = vmatprep.subr.mxu0 0.0
  %4028 = vmatpush2.msra.mxu0 0.0
  %4029 = vmatprep.mubr.f32.mxu0 0.0
  %4030 = vmatmul.mubr.f32.gmra.mxu0 %v408
  %v4031 = vpop.f32.mrf.mxu0
  %v4032 = vadd.f32 0.0, %v4031
  %v4033 = vpop.f32.mrf.mxu0
  %4034 = vmatprep.mubr.f32.mxu0 0.0
  %4035 = vmatmul.mubr.f32.gmra.mxu0 %v411
  %v4036 = vpop.f32.mrf.mxu0
  %v4037 = vadd.f32 0.0, %v4036
  %v4038 = vpop.f32.mrf.mxu0
  %4039 = vmatprep.mubr.f32.mxu0 0.0
  %4040 = vmatmul.mubr.f32.gmra.mxu0 %v414
  %v4041 = vpop.f32.mrf.mxu0
  %v4042 = vadd.f32 0.0, %v4041
  %v4043 = vpop.f32.mrf.mxu0
  %4044 = vmatprep.mubr.f32.mxu0 0.0
  %4045 = vmatmul.mubr.f32.gmra.mxu0 %v417
  %v4046 = vpop.f32.mrf.mxu0
  %v4047 = vadd.f32 0.0, %v4046
  %v4048 = vpop.f32.mrf.mxu0
  %4049 = vdwg.mxu0
  %4050 = vmatprep.subr.mxu0 0.0
  %4051 = vmatpush1.msra.mxu0 %v200
  %4052 = vmatprep.subr.mxu0 0.0
  %4053 = vmatpush1.msra.mxu0 %v199
  %4054 = vmatprep.subr.mxu0 0.0
  %4055 = vmatpush1.msra.mxu0 %v198
  %4056 = vmatprep.subr.mxu0 0.0
  %4057 = vmatpush1.msra.mxu0 %v197
  %4058 = vmatprep.subr.mxu0 0.0
  %4059 = vmatpush1.msra.mxu0 %v196
  %4060 = vmatprep.subr.mxu0 0.0
  %4061 = vmatpush1.msra.mxu0 %v195
  %4062 = vmatprep.subr.mxu0 0.0
  %4063 = vmatpush1.msra.mxu0 %v194
  %4064 = vmatprep.subr.mxu0 0.0
  %4065 = vmatpush1.msra.mxu0 %v193
  %4066 = vmatprep.subr.mxu0 0.0
  %4067 = vmatpush1.msra.mxu0 %v192
  %4068 = vmatprep.subr.mxu0 0.0
  %4069 = vmatpush1.msra.mxu0 %v191
  %4070 = vmatprep.subr.mxu0 0.0
  %4071 = vmatpush1.msra.mxu0 %v190
  %4072 = vmatprep.subr.mxu0 0.0
  %4073 = vmatpush1.msra.mxu0 %v189
  %4074 = vmatprep.subr.mxu0 0.0
  %4075 = vmatpush1.msra.mxu0 %v188
  %4076 = vmatprep.subr.mxu0 0.0
  %4077 = vmatpush1.msra.mxu0 %v187
  %4078 = vmatprep.subr.mxu0 0.0
  %4079 = vmatpush1.msra.mxu0 %v186
  %4080 = vmatprep.subr.mxu0 0.0
  %4081 = vmatpush1.msra.mxu0 %v185
  %4082 = vmatprep.subr.mxu0 0.0
  %4083 = vmatpush2.msra.mxu0 0.0
  %4084 = vmatprep.subr.mxu0 0.0
  %4085 = vmatpush2.msra.mxu0 0.0
  %4086 = vmatprep.subr.mxu0 0.0
  %4087 = vmatpush2.msra.mxu0 0.0
  %4088 = vmatprep.subr.mxu0 0.0
  %4089 = vmatpush2.msra.mxu0 0.0
  %4090 = vmatprep.subr.mxu0 0.0
  %4091 = vmatpush2.msra.mxu0 0.0
  %4092 = vmatprep.subr.mxu0 0.0
  %4093 = vmatpush2.msra.mxu0 0.0
  %4094 = vmatprep.subr.mxu0 0.0
  %4095 = vmatpush2.msra.mxu0 0.0
  %4096 = vmatprep.subr.mxu0 0.0
  %4097 = vmatpush2.msra.mxu0 0.0
  %4098 = vmatprep.subr.mxu0 0.0
  %4099 = vmatpush2.msra.mxu0 0.0
  %4100 = vmatprep.subr.mxu0 0.0
  %4101 = vmatpush2.msra.mxu0 0.0
  %4102 = vmatprep.subr.mxu0 0.0
  %4103 = vmatpush2.msra.mxu0 0.0
  %4104 = vmatprep.subr.mxu0 0.0
  %4105 = vmatpush2.msra.mxu0 0.0
  %4106 = vmatprep.subr.mxu0 0.0
  %4107 = vmatpush2.msra.mxu0 0.0
  %4108 = vmatprep.subr.mxu0 0.0
  %4109 = vmatpush2.msra.mxu0 0.0
  %4110 = vmatprep.subr.mxu0 0.0
  %4111 = vmatpush2.msra.mxu0 0.0
  %4112 = vmatprep.subr.mxu0 0.0
  %4113 = vmatpush2.msra.mxu0 0.0
  %4114 = vmatprep.mubr.f32.mxu0 0.0
  %4115 = vmatmul.mubr.f32.gmra.mxu0 %v4032
  %v4116 = vpop.f32.mrf.mxu0
  %v4117 = vadd.f32 0.0, %v4116
  %v4118 = vpop.f32.mrf.mxu0
  %4119 = vmatprep.mubr.f32.mxu0 0.0
  %4120 = vmatmul.mubr.f32.gmra.mxu0 %v4037
  %v4121 = vpop.f32.mrf.mxu0
  %v4122 = vadd.f32 0.0, %v4121
  %v4123 = vpop.f32.mrf.mxu0
  %4124 = vmatprep.mubr.f32.mxu0 0.0
  %4125 = vmatmul.mubr.f32.gmra.mxu0 %v4042
  %v4126 = vpop.f32.mrf.mxu0
  %v4127 = vadd.f32 0.0, %v4126
  %v4128 = vpop.f32.mrf.mxu0
  %4129 = vmatprep.mubr.f32.mxu0 0.0
  %4130 = vmatmul.mubr.f32.gmra.mxu0 %v4047
  %v4131 = vpop.f32.mrf.mxu0
  %v4132 = vadd.f32 0.0, %v4131
  %v4133 = vpop.f32.mrf.mxu0
  %4134 = vdwg.mxu0
  %v4135 = vmul.f32 %v201, %v4042
  %v4136 = vmul.f32 %v202, %v4047
  %v4137 = vmul.f32 %v203, %v4032
  %v4138 = vmul.f32 %v204, %v4037
  %4139 = vmatprep.subr.mxu0 0.0
  %4140 = vmatpush1.msra.mxu0 %v224
  %4141 = vmatprep.subr.mxu0 0.0
  %4142 = vmatpush1.msra.mxu0 %v223
  %4143 = vmatprep.subr.mxu0 0.0
  %4144 = vmatpush1.msra.mxu0 %v222
  %4145 = vmatprep.subr.mxu0 0.0
  %4146 = vmatpush1.msra.mxu0 %v221
  %4147 = vmatprep.subr.mxu0 0.0
  %4148 = vmatpush1.msra.mxu0 %v220
  %4149 = vmatprep.subr.mxu0 0.0
  %4150 = vmatpush1.msra.mxu0 %v219
  %4151 = vmatprep.subr.mxu0 0.0
  %4152 = vmatpush1.msra.mxu0 %v218
  %4153 = vmatprep.subr.mxu0 0.0
  %4154 = vmatpush1.msra.mxu0 %v217
  %4155 = vmatprep.subr.mxu0 0.0
  %4156 = vmatpush1.msra.mxu0 %v216
  %4157 = vmatprep.subr.mxu0 0.0
  %4158 = vmatpush1.msra.mxu0 %v215
  %4159 = vmatprep.subr.mxu0 0.0
  %4160 = vmatpush1.msra.mxu0 %v214
  %4161 = vmatprep.subr.mxu0 0.0
  %4162 = vmatpush1.msra.mxu0 %v213
  %4163 = vmatprep.subr.mxu0 0.0
  %4164 = vmatpush1.msra.mxu0 %v212
  %4165 = vmatprep.subr.mxu0 0.0
  %4166 = vmatpush1.msra.mxu0 %v211
  %4167 = vmatprep.subr.mxu0 0.0
  %4168 = vmatpush1.msra.mxu0 %v210
  %4169 = vmatprep.subr.mxu0 0.0
  %4170 = vmatpush1.msra.mxu0 %v209
  %4171 = vmatprep.subr.mxu0 0.0
  %4172 = vmatpush2.msra.mxu0 0.0
  %4173 = vmatprep.subr.mxu0 0.0
  %4174 = vmatpush2.msra.mxu0 0.0
  %4175 = vmatprep.subr.mxu0 0.0
  %4176 = vmatpush2.msra.mxu0 0.0
  %4177 = vmatprep.subr.mxu0 0.0
  %4178 = vmatpush2.msra.mxu0 0.0
  %4179 = vmatprep.subr.mxu0 0.0
  %4180 = vmatpush2.msra.mxu0 0.0
  %4181 = vmatprep.subr.mxu0 0.0
  %4182 = vmatpush2.msra.mxu0 0.0
  %4183 = vmatprep.subr.mxu0 0.0
  %4184 = vmatpush2.msra.mxu0 0.0
  %4185 = vmatprep.subr.mxu0 0.0
  %4186 = vmatpush2.msra.mxu0 0.0
  %4187 = vmatprep.subr.mxu0 0.0
  %4188 = vmatpush2.msra.mxu0 0.0
  %4189 = vmatprep.subr.mxu0 0.0
  %4190 = vmatpush2.msra.mxu0 0.0
  %4191 = vmatprep.subr.mxu0 0.0
  %4192 = vmatpush2.msra.mxu0 0.0
  %4193 = vmatprep.subr.mxu0 0.0
  %4194 = vmatpush2.msra.mxu0 0.0
  %4195 = vmatprep.subr.mxu0 0.0
  %4196 = vmatpush2.msra.mxu0 0.0
  %4197 = vmatprep.subr.mxu0 0.0
  %4198 = vmatpush2.msra.mxu0 0.0
  %4199 = vmatprep.subr.mxu0 0.0
  %4200 = vmatpush2.msra.mxu0 0.0
  %4201 = vmatprep.subr.mxu0 0.0
  %4202 = vmatpush2.msra.mxu0 0.0
  %4203 = vmatprep.mubr.f32.mxu0 0.0
  %4204 = vmatmul.mubr.f32.gmra.mxu0 %v4135
  %v4205 = vpop.f32.mrf.mxu0
  %v4206 = vadd.f32 0.0, %v4205
  %v4207 = vpop.f32.mrf.mxu0
  %4208 = vmatprep.mubr.f32.mxu0 0.0
  %4209 = vmatmul.mubr.f32.gmra.mxu0 %v4136
  %v4210 = vpop.f32.mrf.mxu0
  %v4211 = vadd.f32 0.0, %v4210
  %v4212 = vpop.f32.mrf.mxu0
  %4213 = vmatprep.mubr.f32.mxu0 0.0
  %4214 = vmatmul.mubr.f32.gmra.mxu0 %v4137
  %v4215 = vpop.f32.mrf.mxu0
  %v4216 = vadd.f32 0.0, %v4215
  %v4217 = vpop.f32.mrf.mxu0
  %4218 = vmatprep.mubr.f32.mxu0 0.0
  %4219 = vmatmul.mubr.f32.gmra.mxu0 %v4138
  %v4220 = vpop.f32.mrf.mxu0
  %v4221 = vadd.f32 0.0, %v4220
  %v4222 = vpop.f32.mrf.mxu0
  %4223 = vdwg.mxu0
  %v4224 = vsub.f32 %v4117, %v4206
  %v4225 = vsub.f32 %v4122, %v4211
  %v4226 = vsub.f32 %v4127, %v4216
  %v4227 = vsub.f32 %v4132, %v4221
  %v4228 = vmul.f32 %v4224, %v63
  %v4229 = vmul.f32 %v4225, %v64
  %v4230 = vmul.f32 %v4226, %v65
  %v4231 = vmul.f32 %v4227, %v66
  %v4232 = vmul.f32 %v4226, %v686
  %v4233 = vmul.f32 %v4227, %v687
  %v4234 = vmul.f32 %v4224, %v688
  %v4235 = vmul.f32 %v4225, %v689
  %v4236 = vadd.f32 %v4228, %v4232
  %v4237 = vadd.f32 %v4229, %v4233
  %v4238 = vadd.f32 %v4230, %v4234
  %v4239 = vadd.f32 %v4231, %v4235
  %v4240 = vmul.f32 %v714, %v3686
  %v4241 = vmul.f32 %v714, %v3687
  %v4242 = vmul.f32 %v714, %v3688
  %v4243 = vmul.f32 %v714, %v3689
  %4244 = vmatprep.subr.mxu0 0.0
  %4245 = vmatpush1.msra.mxu0 %v713
  %4246 = vmatprep.subr.mxu0 0.0
  %4247 = vmatpush1.msra.mxu0 %v712
  %4248 = vmatprep.subr.mxu0 0.0
  %4249 = vmatpush1.msra.mxu0 %v711
  %4250 = vmatprep.subr.mxu0 0.0
  %4251 = vmatpush1.msra.mxu0 %v710
  %4252 = vmatprep.subr.mxu0 0.0
  %4253 = vmatpush1.msra.mxu0 %v709
  %4254 = vmatprep.subr.mxu0 0.0
  %4255 = vmatpush1.msra.mxu0 %v708
  %4256 = vmatprep.subr.mxu0 0.0
  %4257 = vmatpush1.msra.mxu0 %v707
  %4258 = vmatprep.subr.mxu0 0.0
  %4259 = vmatpush1.msra.mxu0 %v706
  %4260 = vmatprep.subr.mxu0 0.0
  %4261 = vmatpush1.msra.mxu0 %v705
  %4262 = vmatprep.subr.mxu0 0.0
  %4263 = vmatpush1.msra.mxu0 %v704
  %4264 = vmatprep.subr.mxu0 0.0
  %4265 = vmatpush1.msra.mxu0 %v703
  %4266 = vmatprep.subr.mxu0 0.0
  %4267 = vmatpush1.msra.mxu0 %v702
  %4268 = vmatprep.subr.mxu0 0.0
  %4269 = vmatpush1.msra.mxu0 %v701
  %4270 = vmatprep.subr.mxu0 0.0
  %4271 = vmatpush1.msra.mxu0 %v700
  %4272 = vmatprep.subr.mxu0 0.0
  %4273 = vmatpush1.msra.mxu0 %v699
  %4274 = vmatprep.subr.mxu0 0.0
  %4275 = vmatpush1.msra.mxu0 %v698
  %4276 = vmatprep.subr.mxu0 0.0
  %4277 = vmatpush2.msra.mxu0 0.0
  %4278 = vmatprep.subr.mxu0 0.0
  %4279 = vmatpush2.msra.mxu0 0.0
  %4280 = vmatprep.subr.mxu0 0.0
  %4281 = vmatpush2.msra.mxu0 0.0
  %4282 = vmatprep.subr.mxu0 0.0
  %4283 = vmatpush2.msra.mxu0 0.0
  %4284 = vmatprep.subr.mxu0 0.0
  %4285 = vmatpush2.msra.mxu0 0.0
  %4286 = vmatprep.subr.mxu0 0.0
  %4287 = vmatpush2.msra.mxu0 0.0
  %4288 = vmatprep.subr.mxu0 0.0
  %4289 = vmatpush2.msra.mxu0 0.0
  %4290 = vmatprep.subr.mxu0 0.0
  %4291 = vmatpush2.msra.mxu0 0.0
  %4292 = vmatprep.subr.mxu0 0.0
  %4293 = vmatpush2.msra.mxu0 0.0
  %4294 = vmatprep.subr.mxu0 0.0
  %4295 = vmatpush2.msra.mxu0 0.0
  %4296 = vmatprep.subr.mxu0 0.0
  %4297 = vmatpush2.msra.mxu0 0.0
  %4298 = vmatprep.subr.mxu0 0.0
  %4299 = vmatpush2.msra.mxu0 0.0
  %4300 = vmatprep.subr.mxu0 0.0
  %4301 = vmatpush2.msra.mxu0 0.0
  %4302 = vmatprep.subr.mxu0 0.0
  %4303 = vmatpush2.msra.mxu0 0.0
  %4304 = vmatprep.subr.mxu0 0.0
  %4305 = vmatpush2.msra.mxu0 0.0
  %4306 = vmatprep.subr.mxu0 0.0
  %4307 = vmatpush2.msra.mxu0 0.0
  %4308 = vmatprep.mubr.f32.mxu0 0.0
  %4309 = vmatmul.mubr.f32.gmra.mxu0 %v4236
  %v4310 = vpop.f32.mrf.mxu0
  %v4311 = vadd.f32 %v4240, %v4310
  %v4312 = vpop.f32.mrf.mxu0
  %4313 = vmatprep.mubr.f32.mxu0 0.0
  %4314 = vmatmul.mubr.f32.gmra.mxu0 %v4237
  %v4315 = vpop.f32.mrf.mxu0
  %v4316 = vadd.f32 %v4241, %v4315
  %v4317 = vpop.f32.mrf.mxu0
  %4318 = vmatprep.mubr.f32.mxu0 0.0
  %4319 = vmatmul.mubr.f32.gmra.mxu0 %v4238
  %v4320 = vpop.f32.mrf.mxu0
  %v4321 = vadd.f32 %v4242, %v4320
  %v4322 = vpop.f32.mrf.mxu0
  %4323 = vmatprep.mubr.f32.mxu0 0.0
  %4324 = vmatmul.mubr.f32.gmra.mxu0 %v4239
  %v4325 = vpop.f32.mrf.mxu0
  %v4326 = vadd.f32 %v4243, %v4325
  %v4327 = vpop.f32.mrf.mxu0
  %4328 = vdwg.mxu0
  %v4329 = vmul.f32 %v3686, %v4311
  %v4330 = vmul.f32 %v3687, %v4316
  %v4331 = vmul.f32 %v3688, %v4321
  %v4332 = vmul.f32 %v3689, %v4326
  %v4333 = vadd.f32 %v4329, %v4330
  %v4334 = vadd.f32 %v4333, %v4331
  %v4335 = vadd.f32 %v4334, %v4332
  %4336 = vadd.xlane.f32.xlu0 %v4335
  %v4337 = vpop.xlane.xlu0 %4336
  %v4338 = vrot.slane %v4337, 4
  %v4339 = vadd.f32 %v4337, %v4338
  %v4340 = vrot.slane %v4339, 2
  %v4341 = vadd.f32 %v4339, %v4340
  %v4342 = vrot.slane %v4341, 1
  %v4343 = vadd.f32 %v4341, %v4342
  %s4344 = vtos %v4343
  %v4345 = vstv %s4344
  %v4346 = vrcp.pop %v4345
  %s4347 = vtos %v4346
  %s4348 = smul.f32 %s3676, %s4347
  %v4349 = vstv %s4348
  %v4350 = vmul.f32 %v4349, %v3686
  %v4351 = vmul.f32 %v4349, %v3687
  %v4352 = vmul.f32 %v4349, %v3688
  %v4353 = vmul.f32 %v4349, %v3689
  %v4354 = vadd.f32 %v3649, %v4350
  %v4355 = vadd.f32 %v3650, %v4351
  %v4356 = vadd.f32 %v3651, %v4352
  %v4357 = vadd.f32 %v3652, %v4353
  %v4358 = vmul.f32 %v4349, %v4311
  %v4359 = vmul.f32 %v4349, %v4316
  %v4360 = vmul.f32 %v4349, %v4321
  %v4361 = vmul.f32 %v4349, %v4326
  %v4362 = vsub.f32 %v3657, %v4358
  %v4363 = vsub.f32 %v3658, %v4359
  %v4364 = vsub.f32 %v3659, %v4360
  %v4365 = vsub.f32 %v3660, %v4361
  %v4366 = vmul.f32 %v4362, %v4362
  %v4367 = vmul.f32 %v4363, %v4363
  %v4368 = vmul.f32 %v4364, %v4364
  %v4369 = vmul.f32 %v4365, %v4365
  %v4370 = vadd.f32 %v4366, %v4367
  %v4371 = vadd.f32 %v4370, %v4368
  %v4372 = vadd.f32 %v4371, %v4369
  %4373 = vadd.xlane.f32.xlu0 %v4372
  %v4374 = vpop.xlane.xlu0 %4373
  %v4375 = vrot.slane %v4374, 4
  %v4376 = vadd.f32 %v4374, %v4375
  %v4377 = vrot.slane %v4376, 2
  %v4378 = vadd.f32 %v4376, %v4377
  %v4379 = vrot.slane %v4378, 1
  %v4380 = vadd.f32 %v4378, %v4379
  %s4381 = vtos %v4380
  %v4382 = vstv %s3676
  %v4383 = vrcp.pop %v4382
  %s4384 = vtos %v4383
  %s4385 = smul.f32 %s4381, %s4384
  %v4386 = vstv %s4385
  %v4387 = vmul.f32 %v4386, %v3686
  %v4388 = vmul.f32 %v4386, %v3687
  %v4389 = vmul.f32 %v4386, %v3688
  %v4390 = vmul.f32 %v4386, %v3689
  %v4391 = vadd.f32 %v4362, %v4387
  %v4392 = vadd.f32 %v4363, %v4388
  %v4393 = vadd.f32 %v4364, %v4389
  %v4394 = vadd.f32 %v4365, %v4390
  %v4395 = vmul.f32 %v4391, %v63
  %v4396 = vmul.f32 %v4392, %v64
  %v4397 = vmul.f32 %v4393, %v65
  %v4398 = vmul.f32 %v4394, %v66
  %v4399 = vmul.f32 %v4393, %v71
  %v4400 = vmul.f32 %v4394, %v72
  %v4401 = vmul.f32 %v4391, %v73
  %v4402 = vmul.f32 %v4392, %v74
  %v4403 = vadd.f32 %v4395, %v4399
  %v4404 = vadd.f32 %v4396, %v4400
  %v4405 = vadd.f32 %v4397, %v4401
  %v4406 = vadd.f32 %v4398, %v4402
  %4407 = vmatprep.subr.mxu0 0.0
  %4408 = vmatpush1.msra.mxu0 0.0
  %4409 = vmatprep.subr.mxu0 0.0
  %4410 = vmatpush1.msra.mxu0 0.0
  %4411 = vmatprep.subr.mxu0 0.0
  %4412 = vmatpush1.msra.mxu0 0.0
  %4413 = vmatprep.subr.mxu0 0.0
  %4414 = vmatpush1.msra.mxu0 0.0
  %4415 = vmatprep.subr.mxu0 0.0
  %4416 = vmatpush1.msra.mxu0 0.0
  %4417 = vmatprep.subr.mxu0 0.0
  %4418 = vmatpush1.msra.mxu0 0.0
  %4419 = vmatprep.subr.mxu0 0.0
  %4420 = vmatpush1.msra.mxu0 0.0
  %4421 = vmatprep.subr.mxu0 0.0
  %4422 = vmatpush1.msra.mxu0 0.0
  %4423 = vmatprep.subr.mxu0 0.0
  %4424 = vmatpush1.msra.mxu0 0.0
  %4425 = vmatprep.subr.mxu0 0.0
  %4426 = vmatpush1.msra.mxu0 0.0
  %4427 = vmatprep.subr.mxu0 0.0
  %4428 = vmatpush1.msra.mxu0 0.0
  %4429 = vmatprep.subr.mxu0 0.0
  %4430 = vmatpush1.msra.mxu0 0.0
  %4431 = vmatprep.subr.mxu0 0.0
  %4432 = vmatpush1.msra.mxu0 %v4406
  %4433 = vmatprep.subr.mxu0 0.0
  %4434 = vmatpush1.msra.mxu0 %v4405
  %4435 = vmatprep.subr.mxu0 0.0
  %4436 = vmatpush1.msra.mxu0 %v4404
  %4437 = vmatprep.subr.mxu0 0.0
  %4438 = vmatpush1.msra.mxu0 %v4403
  %4439 = vmatprep.subr.mxu0 0.0
  %4440 = vmatpush2.msra.mxu0 0.0
  %4441 = vmatprep.subr.mxu0 0.0
  %4442 = vmatpush2.msra.mxu0 0.0
  %4443 = vmatprep.subr.mxu0 0.0
  %4444 = vmatpush2.msra.mxu0 0.0
  %4445 = vmatprep.subr.mxu0 0.0
  %4446 = vmatpush2.msra.mxu0 0.0
  %4447 = vmatprep.subr.mxu0 0.0
  %4448 = vmatpush2.msra.mxu0 0.0
  %4449 = vmatprep.subr.mxu0 0.0
  %4450 = vmatpush2.msra.mxu0 0.0
  %4451 = vmatprep.subr.mxu0 0.0
  %4452 = vmatpush2.msra.mxu0 0.0
  %4453 = vmatprep.subr.mxu0 0.0
  %4454 = vmatpush2.msra.mxu0 0.0
  %4455 = vmatprep.subr.mxu0 0.0
  %4456 = vmatpush2.msra.mxu0 0.0
  %4457 = vmatprep.subr.mxu0 0.0
  %4458 = vmatpush2.msra.mxu0 0.0
  %4459 = vmatprep.subr.mxu0 0.0
  %4460 = vmatpush2.msra.mxu0 0.0
  %4461 = vmatprep.subr.mxu0 0.0
  %4462 = vmatpush2.msra.mxu0 0.0
  %4463 = vmatprep.subr.mxu0 0.0
  %4464 = vmatpush2.msra.mxu0 0.0
  %4465 = vmatprep.subr.mxu0 0.0
  %4466 = vmatpush2.msra.mxu0 0.0
  %4467 = vmatprep.subr.mxu0 0.0
  %4468 = vmatpush2.msra.mxu0 0.0
  %4469 = vmatprep.subr.mxu0 0.0
  %4470 = vmatpush2.msra.mxu0 0.0
  %4471 = vmatprep.mubr.f32.mxu0 0.0
  %4472 = vmatmul.mubr.f32.gmra.mxu0 %v89
  %v4473 = vpop.f32.mrf.mxu0
  %v4474 = vadd.f32 0.0, %v4473
  %v4475 = vpop.f32.mrf.mxu0
  %4476 = vmatprep.mubr.f32.mxu0 0.0
  %4477 = vmatmul.mubr.f32.gmra.mxu0 %v92
  %v4478 = vpop.f32.mrf.mxu0
  %v4479 = vadd.f32 0.0, %v4478
  %v4480 = vpop.f32.mrf.mxu0
  %4481 = vmatprep.mubr.f32.mxu0 0.0
  %4482 = vmatmul.mubr.f32.gmra.mxu0 %v95
  %v4483 = vpop.f32.mrf.mxu0
  %v4484 = vadd.f32 0.0, %v4483
  %v4485 = vpop.f32.mrf.mxu0
  %4486 = vmatprep.mubr.f32.mxu0 0.0
  %4487 = vmatmul.mubr.f32.gmra.mxu0 %v98
  %v4488 = vpop.f32.mrf.mxu0
  %v4489 = vadd.f32 0.0, %v4488
  %v4490 = vpop.f32.mrf.mxu0
  %4491 = vdwg.mxu0
  %v4492 = vmul.f32 %v201, %v4484
  %v4493 = vmul.f32 %v202, %v4489
  %v4494 = vmul.f32 %v203, %v4474
  %v4495 = vmul.f32 %v204, %v4479
  %4496 = vmatprep.subr.mxu0 0.0
  %4497 = vmatpush1.msra.mxu0 %v224
  %4498 = vmatprep.subr.mxu0 0.0
  %4499 = vmatpush1.msra.mxu0 %v223
  %4500 = vmatprep.subr.mxu0 0.0
  %4501 = vmatpush1.msra.mxu0 %v222
  %4502 = vmatprep.subr.mxu0 0.0
  %4503 = vmatpush1.msra.mxu0 %v221
  %4504 = vmatprep.subr.mxu0 0.0
  %4505 = vmatpush1.msra.mxu0 %v220
  %4506 = vmatprep.subr.mxu0 0.0
  %4507 = vmatpush1.msra.mxu0 %v219
  %4508 = vmatprep.subr.mxu0 0.0
  %4509 = vmatpush1.msra.mxu0 %v218
  %4510 = vmatprep.subr.mxu0 0.0
  %4511 = vmatpush1.msra.mxu0 %v217
  %4512 = vmatprep.subr.mxu0 0.0
  %4513 = vmatpush1.msra.mxu0 %v216
  %4514 = vmatprep.subr.mxu0 0.0
  %4515 = vmatpush1.msra.mxu0 %v215
  %4516 = vmatprep.subr.mxu0 0.0
  %4517 = vmatpush1.msra.mxu0 %v214
  %4518 = vmatprep.subr.mxu0 0.0
  %4519 = vmatpush1.msra.mxu0 %v213
  %4520 = vmatprep.subr.mxu0 0.0
  %4521 = vmatpush1.msra.mxu0 %v212
  %4522 = vmatprep.subr.mxu0 0.0
  %4523 = vmatpush1.msra.mxu0 %v211
  %4524 = vmatprep.subr.mxu0 0.0
  %4525 = vmatpush1.msra.mxu0 %v210
  %4526 = vmatprep.subr.mxu0 0.0
  %4527 = vmatpush1.msra.mxu0 %v209
  %4528 = vmatprep.subr.mxu0 0.0
  %4529 = vmatpush2.msra.mxu0 0.0
  %4530 = vmatprep.subr.mxu0 0.0
  %4531 = vmatpush2.msra.mxu0 0.0
  %4532 = vmatprep.subr.mxu0 0.0
  %4533 = vmatpush2.msra.mxu0 0.0
  %4534 = vmatprep.subr.mxu0 0.0
  %4535 = vmatpush2.msra.mxu0 0.0
  %4536 = vmatprep.subr.mxu0 0.0
  %4537 = vmatpush2.msra.mxu0 0.0
  %4538 = vmatprep.subr.mxu0 0.0
  %4539 = vmatpush2.msra.mxu0 0.0
  %4540 = vmatprep.subr.mxu0 0.0
  %4541 = vmatpush2.msra.mxu0 0.0
  %4542 = vmatprep.subr.mxu0 0.0
  %4543 = vmatpush2.msra.mxu0 0.0
  %4544 = vmatprep.subr.mxu0 0.0
  %4545 = vmatpush2.msra.mxu0 0.0
  %4546 = vmatprep.subr.mxu0 0.0
  %4547 = vmatpush2.msra.mxu0 0.0
  %4548 = vmatprep.subr.mxu0 0.0
  %4549 = vmatpush2.msra.mxu0 0.0
  %4550 = vmatprep.subr.mxu0 0.0
  %4551 = vmatpush2.msra.mxu0 0.0
  %4552 = vmatprep.subr.mxu0 0.0
  %4553 = vmatpush2.msra.mxu0 0.0
  %4554 = vmatprep.subr.mxu0 0.0
  %4555 = vmatpush2.msra.mxu0 0.0
  %4556 = vmatprep.subr.mxu0 0.0
  %4557 = vmatpush2.msra.mxu0 0.0
  %4558 = vmatprep.subr.mxu0 0.0
  %4559 = vmatpush2.msra.mxu0 0.0
  %4560 = vmatprep.mubr.f32.mxu0 0.0
  %4561 = vmatmul.mubr.f32.gmra.mxu0 %v4492
  %v4562 = vpop.f32.mrf.mxu0
  %v4563 = vadd.f32 0.0, %v4562
  %v4564 = vpop.f32.mrf.mxu0
  %4565 = vmatprep.mubr.f32.mxu0 0.0
  %4566 = vmatmul.mubr.f32.gmra.mxu0 %v4493
  %v4567 = vpop.f32.mrf.mxu0
  %v4568 = vadd.f32 0.0, %v4567
  %v4569 = vpop.f32.mrf.mxu0
  %4570 = vmatprep.mubr.f32.mxu0 0.0
  %4571 = vmatmul.mubr.f32.gmra.mxu0 %v4494
  %v4572 = vpop.f32.mrf.mxu0
  %v4573 = vadd.f32 0.0, %v4572
  %v4574 = vpop.f32.mrf.mxu0
  %4575 = vmatprep.mubr.f32.mxu0 0.0
  %4576 = vmatmul.mubr.f32.gmra.mxu0 %v4495
  %v4577 = vpop.f32.mrf.mxu0
  %v4578 = vadd.f32 0.0, %v4577
  %v4579 = vpop.f32.mrf.mxu0
  %4580 = vdwg.mxu0
  %4581 = vmatprep.subr.mxu0 0.0
  %4582 = vmatpush1.msra.mxu0 %v200
  %4583 = vmatprep.subr.mxu0 0.0
  %4584 = vmatpush1.msra.mxu0 %v199
  %4585 = vmatprep.subr.mxu0 0.0
  %4586 = vmatpush1.msra.mxu0 %v198
  %4587 = vmatprep.subr.mxu0 0.0
  %4588 = vmatpush1.msra.mxu0 %v197
  %4589 = vmatprep.subr.mxu0 0.0
  %4590 = vmatpush1.msra.mxu0 %v196
  %4591 = vmatprep.subr.mxu0 0.0
  %4592 = vmatpush1.msra.mxu0 %v195
  %4593 = vmatprep.subr.mxu0 0.0
  %4594 = vmatpush1.msra.mxu0 %v194
  %4595 = vmatprep.subr.mxu0 0.0
  %4596 = vmatpush1.msra.mxu0 %v193
  %4597 = vmatprep.subr.mxu0 0.0
  %4598 = vmatpush1.msra.mxu0 %v192
  %4599 = vmatprep.subr.mxu0 0.0
  %4600 = vmatpush1.msra.mxu0 %v191
  %4601 = vmatprep.subr.mxu0 0.0
  %4602 = vmatpush1.msra.mxu0 %v190
  %4603 = vmatprep.subr.mxu0 0.0
  %4604 = vmatpush1.msra.mxu0 %v189
  %4605 = vmatprep.subr.mxu0 0.0
  %4606 = vmatpush1.msra.mxu0 %v188
  %4607 = vmatprep.subr.mxu0 0.0
  %4608 = vmatpush1.msra.mxu0 %v187
  %4609 = vmatprep.subr.mxu0 0.0
  %4610 = vmatpush1.msra.mxu0 %v186
  %4611 = vmatprep.subr.mxu0 0.0
  %4612 = vmatpush1.msra.mxu0 %v185
  %4613 = vmatprep.subr.mxu0 0.0
  %4614 = vmatpush2.msra.mxu0 0.0
  %4615 = vmatprep.subr.mxu0 0.0
  %4616 = vmatpush2.msra.mxu0 0.0
  %4617 = vmatprep.subr.mxu0 0.0
  %4618 = vmatpush2.msra.mxu0 0.0
  %4619 = vmatprep.subr.mxu0 0.0
  %4620 = vmatpush2.msra.mxu0 0.0
  %4621 = vmatprep.subr.mxu0 0.0
  %4622 = vmatpush2.msra.mxu0 0.0
  %4623 = vmatprep.subr.mxu0 0.0
  %4624 = vmatpush2.msra.mxu0 0.0
  %4625 = vmatprep.subr.mxu0 0.0
  %4626 = vmatpush2.msra.mxu0 0.0
  %4627 = vmatprep.subr.mxu0 0.0
  %4628 = vmatpush2.msra.mxu0 0.0
  %4629 = vmatprep.subr.mxu0 0.0
  %4630 = vmatpush2.msra.mxu0 0.0
  %4631 = vmatprep.subr.mxu0 0.0
  %4632 = vmatpush2.msra.mxu0 0.0
  %4633 = vmatprep.subr.mxu0 0.0
  %4634 = vmatpush2.msra.mxu0 0.0
  %4635 = vmatprep.subr.mxu0 0.0
  %4636 = vmatpush2.msra.mxu0 0.0
  %4637 = vmatprep.subr.mxu0 0.0
  %4638 = vmatpush2.msra.mxu0 0.0
  %4639 = vmatprep.subr.mxu0 0.0
  %4640 = vmatpush2.msra.mxu0 0.0
  %4641 = vmatprep.subr.mxu0 0.0
  %4642 = vmatpush2.msra.mxu0 0.0
  %4643 = vmatprep.subr.mxu0 0.0
  %4644 = vmatpush2.msra.mxu0 0.0
  %4645 = vmatprep.mubr.f32.mxu0 0.0
  %4646 = vmatmul.mubr.f32.gmra.mxu0 %v4474
  %v4647 = vpop.f32.mrf.mxu0
  %v4648 = vadd.f32 %v4563, %v4647
  %v4649 = vpop.f32.mrf.mxu0
  %4650 = vmatprep.mubr.f32.mxu0 0.0
  %4651 = vmatmul.mubr.f32.gmra.mxu0 %v4479
  %v4652 = vpop.f32.mrf.mxu0
  %v4653 = vadd.f32 %v4568, %v4652
  %v4654 = vpop.f32.mrf.mxu0
  %4655 = vmatprep.mubr.f32.mxu0 0.0
  %4656 = vmatmul.mubr.f32.gmra.mxu0 %v4484
  %v4657 = vpop.f32.mrf.mxu0
  %v4658 = vadd.f32 %v4573, %v4657
  %v4659 = vpop.f32.mrf.mxu0
  %4660 = vmatprep.mubr.f32.mxu0 0.0
  %4661 = vmatmul.mubr.f32.gmra.mxu0 %v4489
  %v4662 = vpop.f32.mrf.mxu0
  %v4663 = vadd.f32 %v4578, %v4662
  %v4664 = vpop.f32.mrf.mxu0
  %4665 = vdwg.mxu0
  %v4666 = vmul.f32 %v4648, %v395
  %v4667 = vmul.f32 %v4653, %v396
  %v4668 = vmul.f32 %v4658, %v397
  %v4669 = vmul.f32 %v4663, %v398
  %4670 = vmatprep.subr.mxu0 0.0
  %4671 = vmatpush1.msra.mxu0 0.0
  %4672 = vmatprep.subr.mxu0 0.0
  %4673 = vmatpush1.msra.mxu0 0.0
  %4674 = vmatprep.subr.mxu0 0.0
  %4675 = vmatpush1.msra.mxu0 0.0
  %4676 = vmatprep.subr.mxu0 0.0
  %4677 = vmatpush1.msra.mxu0 0.0
  %4678 = vmatprep.subr.mxu0 0.0
  %4679 = vmatpush1.msra.mxu0 0.0
  %4680 = vmatprep.subr.mxu0 0.0
  %4681 = vmatpush1.msra.mxu0 0.0
  %4682 = vmatprep.subr.mxu0 0.0
  %4683 = vmatpush1.msra.mxu0 0.0
  %4684 = vmatprep.subr.mxu0 0.0
  %4685 = vmatpush1.msra.mxu0 0.0
  %4686 = vmatprep.subr.mxu0 0.0
  %4687 = vmatpush1.msra.mxu0 0.0
  %4688 = vmatprep.subr.mxu0 0.0
  %4689 = vmatpush1.msra.mxu0 0.0
  %4690 = vmatprep.subr.mxu0 0.0
  %4691 = vmatpush1.msra.mxu0 0.0
  %4692 = vmatprep.subr.mxu0 0.0
  %4693 = vmatpush1.msra.mxu0 0.0
  %4694 = vmatprep.subr.mxu0 0.0
  %4695 = vmatpush1.msra.mxu0 %v4669
  %4696 = vmatprep.subr.mxu0 0.0
  %4697 = vmatpush1.msra.mxu0 %v4668
  %4698 = vmatprep.subr.mxu0 0.0
  %4699 = vmatpush1.msra.mxu0 %v4667
  %4700 = vmatprep.subr.mxu0 0.0
  %4701 = vmatpush1.msra.mxu0 %v4666
  %4702 = vmatprep.subr.mxu0 0.0
  %4703 = vmatpush2.msra.mxu0 0.0
  %4704 = vmatprep.subr.mxu0 0.0
  %4705 = vmatpush2.msra.mxu0 0.0
  %4706 = vmatprep.subr.mxu0 0.0
  %4707 = vmatpush2.msra.mxu0 0.0
  %4708 = vmatprep.subr.mxu0 0.0
  %4709 = vmatpush2.msra.mxu0 0.0
  %4710 = vmatprep.subr.mxu0 0.0
  %4711 = vmatpush2.msra.mxu0 0.0
  %4712 = vmatprep.subr.mxu0 0.0
  %4713 = vmatpush2.msra.mxu0 0.0
  %4714 = vmatprep.subr.mxu0 0.0
  %4715 = vmatpush2.msra.mxu0 0.0
  %4716 = vmatprep.subr.mxu0 0.0
  %4717 = vmatpush2.msra.mxu0 0.0
  %4718 = vmatprep.subr.mxu0 0.0
  %4719 = vmatpush2.msra.mxu0 0.0
  %4720 = vmatprep.subr.mxu0 0.0
  %4721 = vmatpush2.msra.mxu0 0.0
  %4722 = vmatprep.subr.mxu0 0.0
  %4723 = vmatpush2.msra.mxu0 0.0
  %4724 = vmatprep.subr.mxu0 0.0
  %4725 = vmatpush2.msra.mxu0 0.0
  %4726 = vmatprep.subr.mxu0 0.0
  %4727 = vmatpush2.msra.mxu0 0.0
  %4728 = vmatprep.subr.mxu0 0.0
  %4729 = vmatpush2.msra.mxu0 0.0
  %4730 = vmatprep.subr.mxu0 0.0
  %4731 = vmatpush2.msra.mxu0 0.0
  %4732 = vmatprep.subr.mxu0 0.0
  %4733 = vmatpush2.msra.mxu0 0.0
  %4734 = vmatprep.mubr.f32.mxu0 0.0
  %4735 = vmatmul.mubr.f32.gmra.mxu0 %v408
  %v4736 = vpop.f32.mrf.mxu0
  %v4737 = vadd.f32 0.0, %v4736
  %v4738 = vpop.f32.mrf.mxu0
  %4739 = vmatprep.mubr.f32.mxu0 0.0
  %4740 = vmatmul.mubr.f32.gmra.mxu0 %v411
  %v4741 = vpop.f32.mrf.mxu0
  %v4742 = vadd.f32 0.0, %v4741
  %v4743 = vpop.f32.mrf.mxu0
  %4744 = vmatprep.mubr.f32.mxu0 0.0
  %4745 = vmatmul.mubr.f32.gmra.mxu0 %v414
  %v4746 = vpop.f32.mrf.mxu0
  %v4747 = vadd.f32 0.0, %v4746
  %v4748 = vpop.f32.mrf.mxu0
  %4749 = vmatprep.mubr.f32.mxu0 0.0
  %4750 = vmatmul.mubr.f32.gmra.mxu0 %v417
  %v4751 = vpop.f32.mrf.mxu0
  %v4752 = vadd.f32 0.0, %v4751
  %v4753 = vpop.f32.mrf.mxu0
  %4754 = vdwg.mxu0
  %4755 = vmatprep.subr.mxu0 0.0
  %4756 = vmatpush1.msra.mxu0 %v200
  %4757 = vmatprep.subr.mxu0 0.0
  %4758 = vmatpush1.msra.mxu0 %v199
  %4759 = vmatprep.subr.mxu0 0.0
  %4760 = vmatpush1.msra.mxu0 %v198
  %4761 = vmatprep.subr.mxu0 0.0
  %4762 = vmatpush1.msra.mxu0 %v197
  %4763 = vmatprep.subr.mxu0 0.0
  %4764 = vmatpush1.msra.mxu0 %v196
  %4765 = vmatprep.subr.mxu0 0.0
  %4766 = vmatpush1.msra.mxu0 %v195
  %4767 = vmatprep.subr.mxu0 0.0
  %4768 = vmatpush1.msra.mxu0 %v194
  %4769 = vmatprep.subr.mxu0 0.0
  %4770 = vmatpush1.msra.mxu0 %v193
  %4771 = vmatprep.subr.mxu0 0.0
  %4772 = vmatpush1.msra.mxu0 %v192
  %4773 = vmatprep.subr.mxu0 0.0
  %4774 = vmatpush1.msra.mxu0 %v191
  %4775 = vmatprep.subr.mxu0 0.0
  %4776 = vmatpush1.msra.mxu0 %v190
  %4777 = vmatprep.subr.mxu0 0.0
  %4778 = vmatpush1.msra.mxu0 %v189
  %4779 = vmatprep.subr.mxu0 0.0
  %4780 = vmatpush1.msra.mxu0 %v188
  %4781 = vmatprep.subr.mxu0 0.0
  %4782 = vmatpush1.msra.mxu0 %v187
  %4783 = vmatprep.subr.mxu0 0.0
  %4784 = vmatpush1.msra.mxu0 %v186
  %4785 = vmatprep.subr.mxu0 0.0
  %4786 = vmatpush1.msra.mxu0 %v185
  %4787 = vmatprep.subr.mxu0 0.0
  %4788 = vmatpush2.msra.mxu0 0.0
  %4789 = vmatprep.subr.mxu0 0.0
  %4790 = vmatpush2.msra.mxu0 0.0
  %4791 = vmatprep.subr.mxu0 0.0
  %4792 = vmatpush2.msra.mxu0 0.0
  %4793 = vmatprep.subr.mxu0 0.0
  %4794 = vmatpush2.msra.mxu0 0.0
  %4795 = vmatprep.subr.mxu0 0.0
  %4796 = vmatpush2.msra.mxu0 0.0
  %4797 = vmatprep.subr.mxu0 0.0
  %4798 = vmatpush2.msra.mxu0 0.0
  %4799 = vmatprep.subr.mxu0 0.0
  %4800 = vmatpush2.msra.mxu0 0.0
  %4801 = vmatprep.subr.mxu0 0.0
  %4802 = vmatpush2.msra.mxu0 0.0
  %4803 = vmatprep.subr.mxu0 0.0
  %4804 = vmatpush2.msra.mxu0 0.0
  %4805 = vmatprep.subr.mxu0 0.0
  %4806 = vmatpush2.msra.mxu0 0.0
  %4807 = vmatprep.subr.mxu0 0.0
  %4808 = vmatpush2.msra.mxu0 0.0
  %4809 = vmatprep.subr.mxu0 0.0
  %4810 = vmatpush2.msra.mxu0 0.0
  %4811 = vmatprep.subr.mxu0 0.0
  %4812 = vmatpush2.msra.mxu0 0.0
  %4813 = vmatprep.subr.mxu0 0.0
  %4814 = vmatpush2.msra.mxu0 0.0
  %4815 = vmatprep.subr.mxu0 0.0
  %4816 = vmatpush2.msra.mxu0 0.0
  %4817 = vmatprep.subr.mxu0 0.0
  %4818 = vmatpush2.msra.mxu0 0.0
  %4819 = vmatprep.mubr.f32.mxu0 0.0
  %4820 = vmatmul.mubr.f32.gmra.mxu0 %v4737
  %v4821 = vpop.f32.mrf.mxu0
  %v4822 = vadd.f32 0.0, %v4821
  %v4823 = vpop.f32.mrf.mxu0
  %4824 = vmatprep.mubr.f32.mxu0 0.0
  %4825 = vmatmul.mubr.f32.gmra.mxu0 %v4742
  %v4826 = vpop.f32.mrf.mxu0
  %v4827 = vadd.f32 0.0, %v4826
  %v4828 = vpop.f32.mrf.mxu0
  %4829 = vmatprep.mubr.f32.mxu0 0.0
  %4830 = vmatmul.mubr.f32.gmra.mxu0 %v4747
  %v4831 = vpop.f32.mrf.mxu0
  %v4832 = vadd.f32 0.0, %v4831
  %v4833 = vpop.f32.mrf.mxu0
  %4834 = vmatprep.mubr.f32.mxu0 0.0
  %4835 = vmatmul.mubr.f32.gmra.mxu0 %v4752
  %v4836 = vpop.f32.mrf.mxu0
  %v4837 = vadd.f32 0.0, %v4836
  %v4838 = vpop.f32.mrf.mxu0
  %4839 = vdwg.mxu0
  %v4840 = vmul.f32 %v201, %v4747
  %v4841 = vmul.f32 %v202, %v4752
  %v4842 = vmul.f32 %v203, %v4737
  %v4843 = vmul.f32 %v204, %v4742
  %4844 = vmatprep.subr.mxu0 0.0
  %4845 = vmatpush1.msra.mxu0 %v224
  %4846 = vmatprep.subr.mxu0 0.0
  %4847 = vmatpush1.msra.mxu0 %v223
  %4848 = vmatprep.subr.mxu0 0.0
  %4849 = vmatpush1.msra.mxu0 %v222
  %4850 = vmatprep.subr.mxu0 0.0
  %4851 = vmatpush1.msra.mxu0 %v221
  %4852 = vmatprep.subr.mxu0 0.0
  %4853 = vmatpush1.msra.mxu0 %v220
  %4854 = vmatprep.subr.mxu0 0.0
  %4855 = vmatpush1.msra.mxu0 %v219
  %4856 = vmatprep.subr.mxu0 0.0
  %4857 = vmatpush1.msra.mxu0 %v218
  %4858 = vmatprep.subr.mxu0 0.0
  %4859 = vmatpush1.msra.mxu0 %v217
  %4860 = vmatprep.subr.mxu0 0.0
  %4861 = vmatpush1.msra.mxu0 %v216
  %4862 = vmatprep.subr.mxu0 0.0
  %4863 = vmatpush1.msra.mxu0 %v215
  %4864 = vmatprep.subr.mxu0 0.0
  %4865 = vmatpush1.msra.mxu0 %v214
  %4866 = vmatprep.subr.mxu0 0.0
  %4867 = vmatpush1.msra.mxu0 %v213
  %4868 = vmatprep.subr.mxu0 0.0
  %4869 = vmatpush1.msra.mxu0 %v212
  %4870 = vmatprep.subr.mxu0 0.0
  %4871 = vmatpush1.msra.mxu0 %v211
  %4872 = vmatprep.subr.mxu0 0.0
  %4873 = vmatpush1.msra.mxu0 %v210
  %4874 = vmatprep.subr.mxu0 0.0
  %4875 = vmatpush1.msra.mxu0 %v209
  %4876 = vmatprep.subr.mxu0 0.0
  %4877 = vmatpush2.msra.mxu0 0.0
  %4878 = vmatprep.subr.mxu0 0.0
  %4879 = vmatpush2.msra.mxu0 0.0
  %4880 = vmatprep.subr.mxu0 0.0
  %4881 = vmatpush2.msra.mxu0 0.0
  %4882 = vmatprep.subr.mxu0 0.0
  %4883 = vmatpush2.msra.mxu0 0.0
  %4884 = vmatprep.subr.mxu0 0.0
  %4885 = vmatpush2.msra.mxu0 0.0
  %4886 = vmatprep.subr.mxu0 0.0
  %4887 = vmatpush2.msra.mxu0 0.0
  %4888 = vmatprep.subr.mxu0 0.0
  %4889 = vmatpush2.msra.mxu0 0.0
  %4890 = vmatprep.subr.mxu0 0.0
  %4891 = vmatpush2.msra.mxu0 0.0
  %4892 = vmatprep.subr.mxu0 0.0
  %4893 = vmatpush2.msra.mxu0 0.0
  %4894 = vmatprep.subr.mxu0 0.0
  %4895 = vmatpush2.msra.mxu0 0.0
  %4896 = vmatprep.subr.mxu0 0.0
  %4897 = vmatpush2.msra.mxu0 0.0
  %4898 = vmatprep.subr.mxu0 0.0
  %4899 = vmatpush2.msra.mxu0 0.0
  %4900 = vmatprep.subr.mxu0 0.0
  %4901 = vmatpush2.msra.mxu0 0.0
  %4902 = vmatprep.subr.mxu0 0.0
  %4903 = vmatpush2.msra.mxu0 0.0
  %4904 = vmatprep.subr.mxu0 0.0
  %4905 = vmatpush2.msra.mxu0 0.0
  %4906 = vmatprep.subr.mxu0 0.0
  %4907 = vmatpush2.msra.mxu0 0.0
  %4908 = vmatprep.mubr.f32.mxu0 0.0
  %4909 = vmatmul.mubr.f32.gmra.mxu0 %v4840
  %v4910 = vpop.f32.mrf.mxu0
  %v4911 = vadd.f32 0.0, %v4910
  %v4912 = vpop.f32.mrf.mxu0
  %4913 = vmatprep.mubr.f32.mxu0 0.0
  %4914 = vmatmul.mubr.f32.gmra.mxu0 %v4841
  %v4915 = vpop.f32.mrf.mxu0
  %v4916 = vadd.f32 0.0, %v4915
  %v4917 = vpop.f32.mrf.mxu0
  %4918 = vmatprep.mubr.f32.mxu0 0.0
  %4919 = vmatmul.mubr.f32.gmra.mxu0 %v4842
  %v4920 = vpop.f32.mrf.mxu0
  %v4921 = vadd.f32 0.0, %v4920
  %v4922 = vpop.f32.mrf.mxu0
  %4923 = vmatprep.mubr.f32.mxu0 0.0
  %4924 = vmatmul.mubr.f32.gmra.mxu0 %v4843
  %v4925 = vpop.f32.mrf.mxu0
  %v4926 = vadd.f32 0.0, %v4925
  %v4927 = vpop.f32.mrf.mxu0
  %4928 = vdwg.mxu0
  %v4929 = vsub.f32 %v4822, %v4911
  %v4930 = vsub.f32 %v4827, %v4916
  %v4931 = vsub.f32 %v4832, %v4921
  %v4932 = vsub.f32 %v4837, %v4926
  %v4933 = vmul.f32 %v4929, %v63
  %v4934 = vmul.f32 %v4930, %v64
  %v4935 = vmul.f32 %v4931, %v65
  %v4936 = vmul.f32 %v4932, %v66
  %v4937 = vmul.f32 %v4931, %v686
  %v4938 = vmul.f32 %v4932, %v687
  %v4939 = vmul.f32 %v4929, %v688
  %v4940 = vmul.f32 %v4930, %v689
  %v4941 = vadd.f32 %v4933, %v4937
  %v4942 = vadd.f32 %v4934, %v4938
  %v4943 = vadd.f32 %v4935, %v4939
  %v4944 = vadd.f32 %v4936, %v4940
  %v4945 = vmul.f32 %v714, %v4391
  %v4946 = vmul.f32 %v714, %v4392
  %v4947 = vmul.f32 %v714, %v4393
  %v4948 = vmul.f32 %v714, %v4394
  %4949 = vmatprep.subr.mxu0 0.0
  %4950 = vmatpush1.msra.mxu0 %v713
  %4951 = vmatprep.subr.mxu0 0.0
  %4952 = vmatpush1.msra.mxu0 %v712
  %4953 = vmatprep.subr.mxu0 0.0
  %4954 = vmatpush1.msra.mxu0 %v711
  %4955 = vmatprep.subr.mxu0 0.0
  %4956 = vmatpush1.msra.mxu0 %v710
  %4957 = vmatprep.subr.mxu0 0.0
  %4958 = vmatpush1.msra.mxu0 %v709
  %4959 = vmatprep.subr.mxu0 0.0
  %4960 = vmatpush1.msra.mxu0 %v708
  %4961 = vmatprep.subr.mxu0 0.0
  %4962 = vmatpush1.msra.mxu0 %v707
  %4963 = vmatprep.subr.mxu0 0.0
  %4964 = vmatpush1.msra.mxu0 %v706
  %4965 = vmatprep.subr.mxu0 0.0
  %4966 = vmatpush1.msra.mxu0 %v705
  %4967 = vmatprep.subr.mxu0 0.0
  %4968 = vmatpush1.msra.mxu0 %v704
  %4969 = vmatprep.subr.mxu0 0.0
  %4970 = vmatpush1.msra.mxu0 %v703
  %4971 = vmatprep.subr.mxu0 0.0
  %4972 = vmatpush1.msra.mxu0 %v702
  %4973 = vmatprep.subr.mxu0 0.0
  %4974 = vmatpush1.msra.mxu0 %v701
  %4975 = vmatprep.subr.mxu0 0.0
  %4976 = vmatpush1.msra.mxu0 %v700
  %4977 = vmatprep.subr.mxu0 0.0
  %4978 = vmatpush1.msra.mxu0 %v699
  %4979 = vmatprep.subr.mxu0 0.0
  %4980 = vmatpush1.msra.mxu0 %v698
  %4981 = vmatprep.subr.mxu0 0.0
  %4982 = vmatpush2.msra.mxu0 0.0
  %4983 = vmatprep.subr.mxu0 0.0
  %4984 = vmatpush2.msra.mxu0 0.0
  %4985 = vmatprep.subr.mxu0 0.0
  %4986 = vmatpush2.msra.mxu0 0.0
  %4987 = vmatprep.subr.mxu0 0.0
  %4988 = vmatpush2.msra.mxu0 0.0
  %4989 = vmatprep.subr.mxu0 0.0
  %4990 = vmatpush2.msra.mxu0 0.0
  %4991 = vmatprep.subr.mxu0 0.0
  %4992 = vmatpush2.msra.mxu0 0.0
  %4993 = vmatprep.subr.mxu0 0.0
  %4994 = vmatpush2.msra.mxu0 0.0
  %4995 = vmatprep.subr.mxu0 0.0
  %4996 = vmatpush2.msra.mxu0 0.0
  %4997 = vmatprep.subr.mxu0 0.0
  %4998 = vmatpush2.msra.mxu0 0.0
  %4999 = vmatprep.subr.mxu0 0.0
  %5000 = vmatpush2.msra.mxu0 0.0
  %5001 = vmatprep.subr.mxu0 0.0
  %5002 = vmatpush2.msra.mxu0 0.0
  %5003 = vmatprep.subr.mxu0 0.0
  %5004 = vmatpush2.msra.mxu0 0.0
  %5005 = vmatprep.subr.mxu0 0.0
  %5006 = vmatpush2.msra.mxu0 0.0
  %5007 = vmatprep.subr.mxu0 0.0
  %5008 = vmatpush2.msra.mxu0 0.0
  %5009 = vmatprep.subr.mxu0 0.0
  %5010 = vmatpush2.msra.mxu0 0.0
  %5011 = vmatprep.subr.mxu0 0.0
  %5012 = vmatpush2.msra.mxu0 0.0
  %5013 = vmatprep.mubr.f32.mxu0 0.0
  %5014 = vmatmul.mubr.f32.gmra.mxu0 %v4941
  %v5015 = vpop.f32.mrf.mxu0
  %v5016 = vadd.f32 %v4945, %v5015
  %v5017 = vpop.f32.mrf.mxu0
  %5018 = vmatprep.mubr.f32.mxu0 0.0
  %5019 = vmatmul.mubr.f32.gmra.mxu0 %v4942
  %v5020 = vpop.f32.mrf.mxu0
  %v5021 = vadd.f32 %v4946, %v5020
  %v5022 = vpop.f32.mrf.mxu0
  %5023 = vmatprep.mubr.f32.mxu0 0.0
  %5024 = vmatmul.mubr.f32.gmra.mxu0 %v4943
  %v5025 = vpop.f32.mrf.mxu0
  %v5026 = vadd.f32 %v4947, %v5025
  %v5027 = vpop.f32.mrf.mxu0
  %5028 = vmatprep.mubr.f32.mxu0 0.0
  %5029 = vmatmul.mubr.f32.gmra.mxu0 %v4944
  %v5030 = vpop.f32.mrf.mxu0
  %v5031 = vadd.f32 %v4948, %v5030
  %v5032 = vpop.f32.mrf.mxu0
  %5033 = vdwg.mxu0
  %v5034 = vmul.f32 %v4391, %v5016
  %v5035 = vmul.f32 %v4392, %v5021
  %v5036 = vmul.f32 %v4393, %v5026
  %v5037 = vmul.f32 %v4394, %v5031
  %v5038 = vadd.f32 %v5034, %v5035
  %v5039 = vadd.f32 %v5038, %v5036
  %v5040 = vadd.f32 %v5039, %v5037
  %5041 = vadd.xlane.f32.xlu0 %v5040
  %v5042 = vpop.xlane.xlu0 %5041
  %v5043 = vrot.slane %v5042, 4
  %v5044 = vadd.f32 %v5042, %v5043
  %v5045 = vrot.slane %v5044, 2
  %v5046 = vadd.f32 %v5044, %v5045
  %v5047 = vrot.slane %v5046, 1
  %v5048 = vadd.f32 %v5046, %v5047
  %s5049 = vtos %v5048
  %v5050 = vstv %s5049
  %v5051 = vrcp.pop %v5050
  %s5052 = vtos %v5051
  %s5053 = smul.f32 %s4381, %s5052
  %v5054 = vstv %s5053
  %v5055 = vmul.f32 %v5054, %v4391
  %v5056 = vmul.f32 %v5054, %v4392
  %v5057 = vmul.f32 %v5054, %v4393
  %v5058 = vmul.f32 %v5054, %v4394
  %v5059 = vadd.f32 %v4354, %v5055
  %v5060 = vadd.f32 %v4355, %v5056
  %v5061 = vadd.f32 %v4356, %v5057
  %v5062 = vadd.f32 %v4357, %v5058
  %v5063 = vmul.f32 %v5054, %v5016
  %v5064 = vmul.f32 %v5054, %v5021
  %v5065 = vmul.f32 %v5054, %v5026
  %v5066 = vmul.f32 %v5054, %v5031
  %v5067 = vsub.f32 %v4362, %v5063
  %v5068 = vsub.f32 %v4363, %v5064
  %v5069 = vsub.f32 %v4364, %v5065
  %v5070 = vsub.f32 %v4365, %v5066
  %v5071 = vmul.f32 %v5067, %v5067
  %v5072 = vmul.f32 %v5068, %v5068
  %v5073 = vmul.f32 %v5069, %v5069
  %v5074 = vmul.f32 %v5070, %v5070
  %v5075 = vadd.f32 %v5071, %v5072
  %v5076 = vadd.f32 %v5075, %v5073
  %v5077 = vadd.f32 %v5076, %v5074
  %5078 = vadd.xlane.f32.xlu0 %v5077
  %v5079 = vpop.xlane.xlu0 %5078
  %v5080 = vrot.slane %v5079, 4
  %v5081 = vadd.f32 %v5079, %v5080
  %v5082 = vrot.slane %v5081, 2
  %v5083 = vadd.f32 %v5081, %v5082
  %v5084 = vrot.slane %v5083, 1
  %v5085 = vadd.f32 %v5083, %v5084
  %s5086 = vtos %v5085
  %v5087 = vstv %s4381
  %v5088 = vrcp.pop %v5087
  %s5089 = vtos %v5088
  %s5090 = smul.f32 %s5086, %s5089
  %v5091 = vstv %s5090
  %v5092 = vmul.f32 %v5091, %v4391
  %v5093 = vmul.f32 %v5091, %v4392
  %v5094 = vmul.f32 %v5091, %v4393
  %v5095 = vmul.f32 %v5091, %v4394
  %v5096 = vadd.f32 %v5067, %v5092
  %v5097 = vadd.f32 %v5068, %v5093
  %v5098 = vadd.f32 %v5069, %v5094
  %v5099 = vadd.f32 %v5070, %v5095
  %v5100 = vmul.f32 %v5096, %v63
  %v5101 = vmul.f32 %v5097, %v64
  %v5102 = vmul.f32 %v5098, %v65
  %v5103 = vmul.f32 %v5099, %v66
  %v5104 = vmul.f32 %v5098, %v71
  %v5105 = vmul.f32 %v5099, %v72
  %v5106 = vmul.f32 %v5096, %v73
  %v5107 = vmul.f32 %v5097, %v74
  %v5108 = vadd.f32 %v5100, %v5104
  %v5109 = vadd.f32 %v5101, %v5105
  %v5110 = vadd.f32 %v5102, %v5106
  %v5111 = vadd.f32 %v5103, %v5107
  %5112 = vmatprep.subr.mxu0 0.0
  %5113 = vmatpush1.msra.mxu0 0.0
  %5114 = vmatprep.subr.mxu0 0.0
  %5115 = vmatpush1.msra.mxu0 0.0
  %5116 = vmatprep.subr.mxu0 0.0
  %5117 = vmatpush1.msra.mxu0 0.0
  %5118 = vmatprep.subr.mxu0 0.0
  %5119 = vmatpush1.msra.mxu0 0.0
  %5120 = vmatprep.subr.mxu0 0.0
  %5121 = vmatpush1.msra.mxu0 0.0
  %5122 = vmatprep.subr.mxu0 0.0
  %5123 = vmatpush1.msra.mxu0 0.0
  %5124 = vmatprep.subr.mxu0 0.0
  %5125 = vmatpush1.msra.mxu0 0.0
  %5126 = vmatprep.subr.mxu0 0.0
  %5127 = vmatpush1.msra.mxu0 0.0
  %5128 = vmatprep.subr.mxu0 0.0
  %5129 = vmatpush1.msra.mxu0 0.0
  %5130 = vmatprep.subr.mxu0 0.0
  %5131 = vmatpush1.msra.mxu0 0.0
  %5132 = vmatprep.subr.mxu0 0.0
  %5133 = vmatpush1.msra.mxu0 0.0
  %5134 = vmatprep.subr.mxu0 0.0
  %5135 = vmatpush1.msra.mxu0 0.0
  %5136 = vmatprep.subr.mxu0 0.0
  %5137 = vmatpush1.msra.mxu0 %v5111
  %5138 = vmatprep.subr.mxu0 0.0
  %5139 = vmatpush1.msra.mxu0 %v5110
  %5140 = vmatprep.subr.mxu0 0.0
  %5141 = vmatpush1.msra.mxu0 %v5109
  %5142 = vmatprep.subr.mxu0 0.0
  %5143 = vmatpush1.msra.mxu0 %v5108
  %5144 = vmatprep.subr.mxu0 0.0
  %5145 = vmatpush2.msra.mxu0 0.0
  %5146 = vmatprep.subr.mxu0 0.0
  %5147 = vmatpush2.msra.mxu0 0.0
  %5148 = vmatprep.subr.mxu0 0.0
  %5149 = vmatpush2.msra.mxu0 0.0
  %5150 = vmatprep.subr.mxu0 0.0
  %5151 = vmatpush2.msra.mxu0 0.0
  %5152 = vmatprep.subr.mxu0 0.0
  %5153 = vmatpush2.msra.mxu0 0.0
  %5154 = vmatprep.subr.mxu0 0.0
  %5155 = vmatpush2.msra.mxu0 0.0
  %5156 = vmatprep.subr.mxu0 0.0
  %5157 = vmatpush2.msra.mxu0 0.0
  %5158 = vmatprep.subr.mxu0 0.0
  %5159 = vmatpush2.msra.mxu0 0.0
  %5160 = vmatprep.subr.mxu0 0.0
  %5161 = vmatpush2.msra.mxu0 0.0
  %5162 = vmatprep.subr.mxu0 0.0
  %5163 = vmatpush2.msra.mxu0 0.0
  %5164 = vmatprep.subr.mxu0 0.0
  %5165 = vmatpush2.msra.mxu0 0.0
  %5166 = vmatprep.subr.mxu0 0.0
  %5167 = vmatpush2.msra.mxu0 0.0
  %5168 = vmatprep.subr.mxu0 0.0
  %5169 = vmatpush2.msra.mxu0 0.0
  %5170 = vmatprep.subr.mxu0 0.0
  %5171 = vmatpush2.msra.mxu0 0.0
  %5172 = vmatprep.subr.mxu0 0.0
  %5173 = vmatpush2.msra.mxu0 0.0
  %5174 = vmatprep.subr.mxu0 0.0
  %5175 = vmatpush2.msra.mxu0 0.0
  %5176 = vmatprep.mubr.f32.mxu0 0.0
  %5177 = vmatmul.mubr.f32.gmra.mxu0 %v89
  %v5178 = vpop.f32.mrf.mxu0
  %v5179 = vadd.f32 0.0, %v5178
  %v5180 = vpop.f32.mrf.mxu0
  %5181 = vmatprep.mubr.f32.mxu0 0.0
  %5182 = vmatmul.mubr.f32.gmra.mxu0 %v92
  %v5183 = vpop.f32.mrf.mxu0
  %v5184 = vadd.f32 0.0, %v5183
  %v5185 = vpop.f32.mrf.mxu0
  %5186 = vmatprep.mubr.f32.mxu0 0.0
  %5187 = vmatmul.mubr.f32.gmra.mxu0 %v95
  %v5188 = vpop.f32.mrf.mxu0
  %v5189 = vadd.f32 0.0, %v5188
  %v5190 = vpop.f32.mrf.mxu0
  %5191 = vmatprep.mubr.f32.mxu0 0.0
  %5192 = vmatmul.mubr.f32.gmra.mxu0 %v98
  %v5193 = vpop.f32.mrf.mxu0
  %v5194 = vadd.f32 0.0, %v5193
  %v5195 = vpop.f32.mrf.mxu0
  %5196 = vdwg.mxu0
  %v5197 = vmul.f32 %v201, %v5189
  %v5198 = vmul.f32 %v202, %v5194
  %v5199 = vmul.f32 %v203, %v5179
  %v5200 = vmul.f32 %v204, %v5184
  %5201 = vmatprep.subr.mxu0 0.0
  %5202 = vmatpush1.msra.mxu0 %v224
  %5203 = vmatprep.subr.mxu0 0.0
  %5204 = vmatpush1.msra.mxu0 %v223
  %5205 = vmatprep.subr.mxu0 0.0
  %5206 = vmatpush1.msra.mxu0 %v222
  %5207 = vmatprep.subr.mxu0 0.0
  %5208 = vmatpush1.msra.mxu0 %v221
  %5209 = vmatprep.subr.mxu0 0.0
  %5210 = vmatpush1.msra.mxu0 %v220
  %5211 = vmatprep.subr.mxu0 0.0
  %5212 = vmatpush1.msra.mxu0 %v219
  %5213 = vmatprep.subr.mxu0 0.0
  %5214 = vmatpush1.msra.mxu0 %v218
  %5215 = vmatprep.subr.mxu0 0.0
  %5216 = vmatpush1.msra.mxu0 %v217
  %5217 = vmatprep.subr.mxu0 0.0
  %5218 = vmatpush1.msra.mxu0 %v216
  %5219 = vmatprep.subr.mxu0 0.0
  %5220 = vmatpush1.msra.mxu0 %v215
  %5221 = vmatprep.subr.mxu0 0.0
  %5222 = vmatpush1.msra.mxu0 %v214
  %5223 = vmatprep.subr.mxu0 0.0
  %5224 = vmatpush1.msra.mxu0 %v213
  %5225 = vmatprep.subr.mxu0 0.0
  %5226 = vmatpush1.msra.mxu0 %v212
  %5227 = vmatprep.subr.mxu0 0.0
  %5228 = vmatpush1.msra.mxu0 %v211
  %5229 = vmatprep.subr.mxu0 0.0
  %5230 = vmatpush1.msra.mxu0 %v210
  %5231 = vmatprep.subr.mxu0 0.0
  %5232 = vmatpush1.msra.mxu0 %v209
  %5233 = vmatprep.subr.mxu0 0.0
  %5234 = vmatpush2.msra.mxu0 0.0
  %5235 = vmatprep.subr.mxu0 0.0
  %5236 = vmatpush2.msra.mxu0 0.0
  %5237 = vmatprep.subr.mxu0 0.0
  %5238 = vmatpush2.msra.mxu0 0.0
  %5239 = vmatprep.subr.mxu0 0.0
  %5240 = vmatpush2.msra.mxu0 0.0
  %5241 = vmatprep.subr.mxu0 0.0
  %5242 = vmatpush2.msra.mxu0 0.0
  %5243 = vmatprep.subr.mxu0 0.0
  %5244 = vmatpush2.msra.mxu0 0.0
  %5245 = vmatprep.subr.mxu0 0.0
  %5246 = vmatpush2.msra.mxu0 0.0
  %5247 = vmatprep.subr.mxu0 0.0
  %5248 = vmatpush2.msra.mxu0 0.0
  %5249 = vmatprep.subr.mxu0 0.0
  %5250 = vmatpush2.msra.mxu0 0.0
  %5251 = vmatprep.subr.mxu0 0.0
  %5252 = vmatpush2.msra.mxu0 0.0
  %5253 = vmatprep.subr.mxu0 0.0
  %5254 = vmatpush2.msra.mxu0 0.0
  %5255 = vmatprep.subr.mxu0 0.0
  %5256 = vmatpush2.msra.mxu0 0.0
  %5257 = vmatprep.subr.mxu0 0.0
  %5258 = vmatpush2.msra.mxu0 0.0
  %5259 = vmatprep.subr.mxu0 0.0
  %5260 = vmatpush2.msra.mxu0 0.0
  %5261 = vmatprep.subr.mxu0 0.0
  %5262 = vmatpush2.msra.mxu0 0.0
  %5263 = vmatprep.subr.mxu0 0.0
  %5264 = vmatpush2.msra.mxu0 0.0
  %5265 = vmatprep.mubr.f32.mxu0 0.0
  %5266 = vmatmul.mubr.f32.gmra.mxu0 %v5197
  %v5267 = vpop.f32.mrf.mxu0
  %v5268 = vadd.f32 0.0, %v5267
  %v5269 = vpop.f32.mrf.mxu0
  %5270 = vmatprep.mubr.f32.mxu0 0.0
  %5271 = vmatmul.mubr.f32.gmra.mxu0 %v5198
  %v5272 = vpop.f32.mrf.mxu0
  %v5273 = vadd.f32 0.0, %v5272
  %v5274 = vpop.f32.mrf.mxu0
  %5275 = vmatprep.mubr.f32.mxu0 0.0
  %5276 = vmatmul.mubr.f32.gmra.mxu0 %v5199
  %v5277 = vpop.f32.mrf.mxu0
  %v5278 = vadd.f32 0.0, %v5277
  %v5279 = vpop.f32.mrf.mxu0
  %5280 = vmatprep.mubr.f32.mxu0 0.0
  %5281 = vmatmul.mubr.f32.gmra.mxu0 %v5200
  %v5282 = vpop.f32.mrf.mxu0
  %v5283 = vadd.f32 0.0, %v5282
  %v5284 = vpop.f32.mrf.mxu0
  %5285 = vdwg.mxu0
  %5286 = vmatprep.subr.mxu0 0.0
  %5287 = vmatpush1.msra.mxu0 %v200
  %5288 = vmatprep.subr.mxu0 0.0
  %5289 = vmatpush1.msra.mxu0 %v199
  %5290 = vmatprep.subr.mxu0 0.0
  %5291 = vmatpush1.msra.mxu0 %v198
  %5292 = vmatprep.subr.mxu0 0.0
  %5293 = vmatpush1.msra.mxu0 %v197
  %5294 = vmatprep.subr.mxu0 0.0
  %5295 = vmatpush1.msra.mxu0 %v196
  %5296 = vmatprep.subr.mxu0 0.0
  %5297 = vmatpush1.msra.mxu0 %v195
  %5298 = vmatprep.subr.mxu0 0.0
  %5299 = vmatpush1.msra.mxu0 %v194
  %5300 = vmatprep.subr.mxu0 0.0
  %5301 = vmatpush1.msra.mxu0 %v193
  %5302 = vmatprep.subr.mxu0 0.0
  %5303 = vmatpush1.msra.mxu0 %v192
  %5304 = vmatprep.subr.mxu0 0.0
  %5305 = vmatpush1.msra.mxu0 %v191
  %5306 = vmatprep.subr.mxu0 0.0
  %5307 = vmatpush1.msra.mxu0 %v190
  %5308 = vmatprep.subr.mxu0 0.0
  %5309 = vmatpush1.msra.mxu0 %v189
  %5310 = vmatprep.subr.mxu0 0.0
  %5311 = vmatpush1.msra.mxu0 %v188
  %5312 = vmatprep.subr.mxu0 0.0
  %5313 = vmatpush1.msra.mxu0 %v187
  %5314 = vmatprep.subr.mxu0 0.0
  %5315 = vmatpush1.msra.mxu0 %v186
  %5316 = vmatprep.subr.mxu0 0.0
  %5317 = vmatpush1.msra.mxu0 %v185
  %5318 = vmatprep.subr.mxu0 0.0
  %5319 = vmatpush2.msra.mxu0 0.0
  %5320 = vmatprep.subr.mxu0 0.0
  %5321 = vmatpush2.msra.mxu0 0.0
  %5322 = vmatprep.subr.mxu0 0.0
  %5323 = vmatpush2.msra.mxu0 0.0
  %5324 = vmatprep.subr.mxu0 0.0
  %5325 = vmatpush2.msra.mxu0 0.0
  %5326 = vmatprep.subr.mxu0 0.0
  %5327 = vmatpush2.msra.mxu0 0.0
  %5328 = vmatprep.subr.mxu0 0.0
  %5329 = vmatpush2.msra.mxu0 0.0
  %5330 = vmatprep.subr.mxu0 0.0
  %5331 = vmatpush2.msra.mxu0 0.0
  %5332 = vmatprep.subr.mxu0 0.0
  %5333 = vmatpush2.msra.mxu0 0.0
  %5334 = vmatprep.subr.mxu0 0.0
  %5335 = vmatpush2.msra.mxu0 0.0
  %5336 = vmatprep.subr.mxu0 0.0
  %5337 = vmatpush2.msra.mxu0 0.0
  %5338 = vmatprep.subr.mxu0 0.0
  %5339 = vmatpush2.msra.mxu0 0.0
  %5340 = vmatprep.subr.mxu0 0.0
  %5341 = vmatpush2.msra.mxu0 0.0
  %5342 = vmatprep.subr.mxu0 0.0
  %5343 = vmatpush2.msra.mxu0 0.0
  %5344 = vmatprep.subr.mxu0 0.0
  %5345 = vmatpush2.msra.mxu0 0.0
  %5346 = vmatprep.subr.mxu0 0.0
  %5347 = vmatpush2.msra.mxu0 0.0
  %5348 = vmatprep.subr.mxu0 0.0
  %5349 = vmatpush2.msra.mxu0 0.0
  %5350 = vmatprep.mubr.f32.mxu0 0.0
  %5351 = vmatmul.mubr.f32.gmra.mxu0 %v5179
  %v5352 = vpop.f32.mrf.mxu0
  %v5353 = vadd.f32 %v5268, %v5352
  %v5354 = vpop.f32.mrf.mxu0
  %5355 = vmatprep.mubr.f32.mxu0 0.0
  %5356 = vmatmul.mubr.f32.gmra.mxu0 %v5184
  %v5357 = vpop.f32.mrf.mxu0
  %v5358 = vadd.f32 %v5273, %v5357
  %v5359 = vpop.f32.mrf.mxu0
  %5360 = vmatprep.mubr.f32.mxu0 0.0
  %5361 = vmatmul.mubr.f32.gmra.mxu0 %v5189
  %v5362 = vpop.f32.mrf.mxu0
  %v5363 = vadd.f32 %v5278, %v5362
  %v5364 = vpop.f32.mrf.mxu0
  %5365 = vmatprep.mubr.f32.mxu0 0.0
  %5366 = vmatmul.mubr.f32.gmra.mxu0 %v5194
  %v5367 = vpop.f32.mrf.mxu0
  %v5368 = vadd.f32 %v5283, %v5367
  %v5369 = vpop.f32.mrf.mxu0
  %5370 = vdwg.mxu0
  %v5371 = vmul.f32 %v5353, %v395
  %v5372 = vmul.f32 %v5358, %v396
  %v5373 = vmul.f32 %v5363, %v397
  %v5374 = vmul.f32 %v5368, %v398
  %5375 = vmatprep.subr.mxu0 0.0
  %5376 = vmatpush1.msra.mxu0 0.0
  %5377 = vmatprep.subr.mxu0 0.0
  %5378 = vmatpush1.msra.mxu0 0.0
  %5379 = vmatprep.subr.mxu0 0.0
  %5380 = vmatpush1.msra.mxu0 0.0
  %5381 = vmatprep.subr.mxu0 0.0
  %5382 = vmatpush1.msra.mxu0 0.0
  %5383 = vmatprep.subr.mxu0 0.0
  %5384 = vmatpush1.msra.mxu0 0.0
  %5385 = vmatprep.subr.mxu0 0.0
  %5386 = vmatpush1.msra.mxu0 0.0
  %5387 = vmatprep.subr.mxu0 0.0
  %5388 = vmatpush1.msra.mxu0 0.0
  %5389 = vmatprep.subr.mxu0 0.0
  %5390 = vmatpush1.msra.mxu0 0.0
  %5391 = vmatprep.subr.mxu0 0.0
  %5392 = vmatpush1.msra.mxu0 0.0
  %5393 = vmatprep.subr.mxu0 0.0
  %5394 = vmatpush1.msra.mxu0 0.0
  %5395 = vmatprep.subr.mxu0 0.0
  %5396 = vmatpush1.msra.mxu0 0.0
  %5397 = vmatprep.subr.mxu0 0.0
  %5398 = vmatpush1.msra.mxu0 0.0
  %5399 = vmatprep.subr.mxu0 0.0
  %5400 = vmatpush1.msra.mxu0 %v5374
  %5401 = vmatprep.subr.mxu0 0.0
  %5402 = vmatpush1.msra.mxu0 %v5373
  %5403 = vmatprep.subr.mxu0 0.0
  %5404 = vmatpush1.msra.mxu0 %v5372
  %5405 = vmatprep.subr.mxu0 0.0
  %5406 = vmatpush1.msra.mxu0 %v5371
  %5407 = vmatprep.subr.mxu0 0.0
  %5408 = vmatpush2.msra.mxu0 0.0
  %5409 = vmatprep.subr.mxu0 0.0
  %5410 = vmatpush2.msra.mxu0 0.0
  %5411 = vmatprep.subr.mxu0 0.0
  %5412 = vmatpush2.msra.mxu0 0.0
  %5413 = vmatprep.subr.mxu0 0.0
  %5414 = vmatpush2.msra.mxu0 0.0
  %5415 = vmatprep.subr.mxu0 0.0
  %5416 = vmatpush2.msra.mxu0 0.0
  %5417 = vmatprep.subr.mxu0 0.0
  %5418 = vmatpush2.msra.mxu0 0.0
  %5419 = vmatprep.subr.mxu0 0.0
  %5420 = vmatpush2.msra.mxu0 0.0
  %5421 = vmatprep.subr.mxu0 0.0
  %5422 = vmatpush2.msra.mxu0 0.0
  %5423 = vmatprep.subr.mxu0 0.0
  %5424 = vmatpush2.msra.mxu0 0.0
  %5425 = vmatprep.subr.mxu0 0.0
  %5426 = vmatpush2.msra.mxu0 0.0
  %5427 = vmatprep.subr.mxu0 0.0
  %5428 = vmatpush2.msra.mxu0 0.0
  %5429 = vmatprep.subr.mxu0 0.0
  %5430 = vmatpush2.msra.mxu0 0.0
  %5431 = vmatprep.subr.mxu0 0.0
  %5432 = vmatpush2.msra.mxu0 0.0
  %5433 = vmatprep.subr.mxu0 0.0
  %5434 = vmatpush2.msra.mxu0 0.0
  %5435 = vmatprep.subr.mxu0 0.0
  %5436 = vmatpush2.msra.mxu0 0.0
  %5437 = vmatprep.subr.mxu0 0.0
  %5438 = vmatpush2.msra.mxu0 0.0
  %5439 = vmatprep.mubr.f32.mxu0 0.0
  %5440 = vmatmul.mubr.f32.gmra.mxu0 %v408
  %v5441 = vpop.f32.mrf.mxu0
  %v5442 = vadd.f32 0.0, %v5441
  %v5443 = vpop.f32.mrf.mxu0
  %5444 = vmatprep.mubr.f32.mxu0 0.0
  %5445 = vmatmul.mubr.f32.gmra.mxu0 %v411
  %v5446 = vpop.f32.mrf.mxu0
  %v5447 = vadd.f32 0.0, %v5446
  %v5448 = vpop.f32.mrf.mxu0
  %5449 = vmatprep.mubr.f32.mxu0 0.0
  %5450 = vmatmul.mubr.f32.gmra.mxu0 %v414
  %v5451 = vpop.f32.mrf.mxu0
  %v5452 = vadd.f32 0.0, %v5451
  %v5453 = vpop.f32.mrf.mxu0
  %5454 = vmatprep.mubr.f32.mxu0 0.0
  %5455 = vmatmul.mubr.f32.gmra.mxu0 %v417
  %v5456 = vpop.f32.mrf.mxu0
  %v5457 = vadd.f32 0.0, %v5456
  %v5458 = vpop.f32.mrf.mxu0
  %5459 = vdwg.mxu0
  %5460 = vmatprep.subr.mxu0 0.0
  %5461 = vmatpush1.msra.mxu0 %v200
  %5462 = vmatprep.subr.mxu0 0.0
  %5463 = vmatpush1.msra.mxu0 %v199
  %5464 = vmatprep.subr.mxu0 0.0
  %5465 = vmatpush1.msra.mxu0 %v198
  %5466 = vmatprep.subr.mxu0 0.0
  %5467 = vmatpush1.msra.mxu0 %v197
  %5468 = vmatprep.subr.mxu0 0.0
  %5469 = vmatpush1.msra.mxu0 %v196
  %5470 = vmatprep.subr.mxu0 0.0
  %5471 = vmatpush1.msra.mxu0 %v195
  %5472 = vmatprep.subr.mxu0 0.0
  %5473 = vmatpush1.msra.mxu0 %v194
  %5474 = vmatprep.subr.mxu0 0.0
  %5475 = vmatpush1.msra.mxu0 %v193
  %5476 = vmatprep.subr.mxu0 0.0
  %5477 = vmatpush1.msra.mxu0 %v192
  %5478 = vmatprep.subr.mxu0 0.0
  %5479 = vmatpush1.msra.mxu0 %v191
  %5480 = vmatprep.subr.mxu0 0.0
  %5481 = vmatpush1.msra.mxu0 %v190
  %5482 = vmatprep.subr.mxu0 0.0
  %5483 = vmatpush1.msra.mxu0 %v189
  %5484 = vmatprep.subr.mxu0 0.0
  %5485 = vmatpush1.msra.mxu0 %v188
  %5486 = vmatprep.subr.mxu0 0.0
  %5487 = vmatpush1.msra.mxu0 %v187
  %5488 = vmatprep.subr.mxu0 0.0
  %5489 = vmatpush1.msra.mxu0 %v186
  %5490 = vmatprep.subr.mxu0 0.0
  %5491 = vmatpush1.msra.mxu0 %v185
  %5492 = vmatprep.subr.mxu0 0.0
  %5493 = vmatpush2.msra.mxu0 0.0
  %5494 = vmatprep.subr.mxu0 0.0
  %5495 = vmatpush2.msra.mxu0 0.0
  %5496 = vmatprep.subr.mxu0 0.0
  %5497 = vmatpush2.msra.mxu0 0.0
  %5498 = vmatprep.subr.mxu0 0.0
  %5499 = vmatpush2.msra.mxu0 0.0
  %5500 = vmatprep.subr.mxu0 0.0
  %5501 = vmatpush2.msra.mxu0 0.0
  %5502 = vmatprep.subr.mxu0 0.0
  %5503 = vmatpush2.msra.mxu0 0.0
  %5504 = vmatprep.subr.mxu0 0.0
  %5505 = vmatpush2.msra.mxu0 0.0
  %5506 = vmatprep.subr.mxu0 0.0
  %5507 = vmatpush2.msra.mxu0 0.0
  %5508 = vmatprep.subr.mxu0 0.0
  %5509 = vmatpush2.msra.mxu0 0.0
  %5510 = vmatprep.subr.mxu0 0.0
  %5511 = vmatpush2.msra.mxu0 0.0
  %5512 = vmatprep.subr.mxu0 0.0
  %5513 = vmatpush2.msra.mxu0 0.0
  %5514 = vmatprep.subr.mxu0 0.0
  %5515 = vmatpush2.msra.mxu0 0.0
  %5516 = vmatprep.subr.mxu0 0.0
  %5517 = vmatpush2.msra.mxu0 0.0
  %5518 = vmatprep.subr.mxu0 0.0
  %5519 = vmatpush2.msra.mxu0 0.0
  %5520 = vmatprep.subr.mxu0 0.0
  %5521 = vmatpush2.msra.mxu0 0.0
  %5522 = vmatprep.subr.mxu0 0.0
  %5523 = vmatpush2.msra.mxu0 0.0
  %5524 = vmatprep.mubr.f32.mxu0 0.0
  %5525 = vmatmul.mubr.f32.gmra.mxu0 %v5442
  %v5526 = vpop.f32.mrf.mxu0
  %v5527 = vadd.f32 0.0, %v5526
  %v5528 = vpop.f32.mrf.mxu0
  %5529 = vmatprep.mubr.f32.mxu0 0.0
  %5530 = vmatmul.mubr.f32.gmra.mxu0 %v5447
  %v5531 = vpop.f32.mrf.mxu0
  %v5532 = vadd.f32 0.0, %v5531
  %v5533 = vpop.f32.mrf.mxu0
  %5534 = vmatprep.mubr.f32.mxu0 0.0
  %5535 = vmatmul.mubr.f32.gmra.mxu0 %v5452
  %v5536 = vpop.f32.mrf.mxu0
  %v5537 = vadd.f32 0.0, %v5536
  %v5538 = vpop.f32.mrf.mxu0
  %5539 = vmatprep.mubr.f32.mxu0 0.0
  %5540 = vmatmul.mubr.f32.gmra.mxu0 %v5457
  %v5541 = vpop.f32.mrf.mxu0
  %v5542 = vadd.f32 0.0, %v5541
  %v5543 = vpop.f32.mrf.mxu0
  %5544 = vdwg.mxu0
  %v5545 = vmul.f32 %v201, %v5452
  %v5546 = vmul.f32 %v202, %v5457
  %v5547 = vmul.f32 %v203, %v5442
  %v5548 = vmul.f32 %v204, %v5447
  %5549 = vmatprep.subr.mxu0 0.0
  %5550 = vmatpush1.msra.mxu0 %v224
  %5551 = vmatprep.subr.mxu0 0.0
  %5552 = vmatpush1.msra.mxu0 %v223
  %5553 = vmatprep.subr.mxu0 0.0
  %5554 = vmatpush1.msra.mxu0 %v222
  %5555 = vmatprep.subr.mxu0 0.0
  %5556 = vmatpush1.msra.mxu0 %v221
  %5557 = vmatprep.subr.mxu0 0.0
  %5558 = vmatpush1.msra.mxu0 %v220
  %5559 = vmatprep.subr.mxu0 0.0
  %5560 = vmatpush1.msra.mxu0 %v219
  %5561 = vmatprep.subr.mxu0 0.0
  %5562 = vmatpush1.msra.mxu0 %v218
  %5563 = vmatprep.subr.mxu0 0.0
  %5564 = vmatpush1.msra.mxu0 %v217
  %5565 = vmatprep.subr.mxu0 0.0
  %5566 = vmatpush1.msra.mxu0 %v216
  %5567 = vmatprep.subr.mxu0 0.0
  %5568 = vmatpush1.msra.mxu0 %v215
  %5569 = vmatprep.subr.mxu0 0.0
  %5570 = vmatpush1.msra.mxu0 %v214
  %5571 = vmatprep.subr.mxu0 0.0
  %5572 = vmatpush1.msra.mxu0 %v213
  %5573 = vmatprep.subr.mxu0 0.0
  %5574 = vmatpush1.msra.mxu0 %v212
  %5575 = vmatprep.subr.mxu0 0.0
  %5576 = vmatpush1.msra.mxu0 %v211
  %5577 = vmatprep.subr.mxu0 0.0
  %5578 = vmatpush1.msra.mxu0 %v210
  %5579 = vmatprep.subr.mxu0 0.0
  %5580 = vmatpush1.msra.mxu0 %v209
  %5581 = vmatprep.subr.mxu0 0.0
  %5582 = vmatpush2.msra.mxu0 0.0
  %5583 = vmatprep.subr.mxu0 0.0
  %5584 = vmatpush2.msra.mxu0 0.0
  %5585 = vmatprep.subr.mxu0 0.0
  %5586 = vmatpush2.msra.mxu0 0.0
  %5587 = vmatprep.subr.mxu0 0.0
  %5588 = vmatpush2.msra.mxu0 0.0
  %5589 = vmatprep.subr.mxu0 0.0
  %5590 = vmatpush2.msra.mxu0 0.0
  %5591 = vmatprep.subr.mxu0 0.0
  %5592 = vmatpush2.msra.mxu0 0.0
  %5593 = vmatprep.subr.mxu0 0.0
  %5594 = vmatpush2.msra.mxu0 0.0
  %5595 = vmatprep.subr.mxu0 0.0
  %5596 = vmatpush2.msra.mxu0 0.0
  %5597 = vmatprep.subr.mxu0 0.0
  %5598 = vmatpush2.msra.mxu0 0.0
  %5599 = vmatprep.subr.mxu0 0.0
  %5600 = vmatpush2.msra.mxu0 0.0
  %5601 = vmatprep.subr.mxu0 0.0
  %5602 = vmatpush2.msra.mxu0 0.0
  %5603 = vmatprep.subr.mxu0 0.0
  %5604 = vmatpush2.msra.mxu0 0.0
  %5605 = vmatprep.subr.mxu0 0.0
  %5606 = vmatpush2.msra.mxu0 0.0
  %5607 = vmatprep.subr.mxu0 0.0
  %5608 = vmatpush2.msra.mxu0 0.0
  %5609 = vmatprep.subr.mxu0 0.0
  %5610 = vmatpush2.msra.mxu0 0.0
  %5611 = vmatprep.subr.mxu0 0.0
  %5612 = vmatpush2.msra.mxu0 0.0
  %5613 = vmatprep.mubr.f32.mxu0 0.0
  %5614 = vmatmul.mubr.f32.gmra.mxu0 %v5545
  %v5615 = vpop.f32.mrf.mxu0
  %v5616 = vadd.f32 0.0, %v5615
  %v5617 = vpop.f32.mrf.mxu0
  %5618 = vmatprep.mubr.f32.mxu0 0.0
  %5619 = vmatmul.mubr.f32.gmra.mxu0 %v5546
  %v5620 = vpop.f32.mrf.mxu0
  %v5621 = vadd.f32 0.0, %v5620
  %v5622 = vpop.f32.mrf.mxu0
  %5623 = vmatprep.mubr.f32.mxu0 0.0
  %5624 = vmatmul.mubr.f32.gmra.mxu0 %v5547
  %v5625 = vpop.f32.mrf.mxu0
  %v5626 = vadd.f32 0.0, %v5625
  %v5627 = vpop.f32.mrf.mxu0
  %5628 = vmatprep.mubr.f32.mxu0 0.0
  %5629 = vmatmul.mubr.f32.gmra.mxu0 %v5548
  %v5630 = vpop.f32.mrf.mxu0
  %v5631 = vadd.f32 0.0, %v5630
  %v5632 = vpop.f32.mrf.mxu0
  %5633 = vdwg.mxu0
  %v5634 = vsub.f32 %v5527, %v5616
  %v5635 = vsub.f32 %v5532, %v5621
  %v5636 = vsub.f32 %v5537, %v5626
  %v5637 = vsub.f32 %v5542, %v5631
  %v5638 = vmul.f32 %v5634, %v63
  %v5639 = vmul.f32 %v5635, %v64
  %v5640 = vmul.f32 %v5636, %v65
  %v5641 = vmul.f32 %v5637, %v66
  %v5642 = vmul.f32 %v5636, %v686
  %v5643 = vmul.f32 %v5637, %v687
  %v5644 = vmul.f32 %v5634, %v688
  %v5645 = vmul.f32 %v5635, %v689
  %v5646 = vadd.f32 %v5638, %v5642
  %v5647 = vadd.f32 %v5639, %v5643
  %v5648 = vadd.f32 %v5640, %v5644
  %v5649 = vadd.f32 %v5641, %v5645
  %v5650 = vmul.f32 %v714, %v5096
  %v5651 = vmul.f32 %v714, %v5097
  %v5652 = vmul.f32 %v714, %v5098
  %v5653 = vmul.f32 %v714, %v5099
  %5654 = vmatprep.subr.mxu0 0.0
  %5655 = vmatpush1.msra.mxu0 %v713
  %5656 = vmatprep.subr.mxu0 0.0
  %5657 = vmatpush1.msra.mxu0 %v712
  %5658 = vmatprep.subr.mxu0 0.0
  %5659 = vmatpush1.msra.mxu0 %v711
  %5660 = vmatprep.subr.mxu0 0.0
  %5661 = vmatpush1.msra.mxu0 %v710
  %5662 = vmatprep.subr.mxu0 0.0
  %5663 = vmatpush1.msra.mxu0 %v709
  %5664 = vmatprep.subr.mxu0 0.0
  %5665 = vmatpush1.msra.mxu0 %v708
  %5666 = vmatprep.subr.mxu0 0.0
  %5667 = vmatpush1.msra.mxu0 %v707
  %5668 = vmatprep.subr.mxu0 0.0
  %5669 = vmatpush1.msra.mxu0 %v706
  %5670 = vmatprep.subr.mxu0 0.0
  %5671 = vmatpush1.msra.mxu0 %v705
  %5672 = vmatprep.subr.mxu0 0.0
  %5673 = vmatpush1.msra.mxu0 %v704
  %5674 = vmatprep.subr.mxu0 0.0
  %5675 = vmatpush1.msra.mxu0 %v703
  %5676 = vmatprep.subr.mxu0 0.0
  %5677 = vmatpush1.msra.mxu0 %v702
  %5678 = vmatprep.subr.mxu0 0.0
  %5679 = vmatpush1.msra.mxu0 %v701
  %5680 = vmatprep.subr.mxu0 0.0
  %5681 = vmatpush1.msra.mxu0 %v700
  %5682 = vmatprep.subr.mxu0 0.0
  %5683 = vmatpush1.msra.mxu0 %v699
  %5684 = vmatprep.subr.mxu0 0.0
  %5685 = vmatpush1.msra.mxu0 %v698
  %5686 = vmatprep.subr.mxu0 0.0
  %5687 = vmatpush2.msra.mxu0 0.0
  %5688 = vmatprep.subr.mxu0 0.0
  %5689 = vmatpush2.msra.mxu0 0.0
  %5690 = vmatprep.subr.mxu0 0.0
  %5691 = vmatpush2.msra.mxu0 0.0
  %5692 = vmatprep.subr.mxu0 0.0
  %5693 = vmatpush2.msra.mxu0 0.0
  %5694 = vmatprep.subr.mxu0 0.0
  %5695 = vmatpush2.msra.mxu0 0.0
  %5696 = vmatprep.subr.mxu0 0.0
  %5697 = vmatpush2.msra.mxu0 0.0
  %5698 = vmatprep.subr.mxu0 0.0
  %5699 = vmatpush2.msra.mxu0 0.0
  %5700 = vmatprep.subr.mxu0 0.0
  %5701 = vmatpush2.msra.mxu0 0.0
  %5702 = vmatprep.subr.mxu0 0.0
  %5703 = vmatpush2.msra.mxu0 0.0
  %5704 = vmatprep.subr.mxu0 0.0
  %5705 = vmatpush2.msra.mxu0 0.0
  %5706 = vmatprep.subr.mxu0 0.0
  %5707 = vmatpush2.msra.mxu0 0.0
  %5708 = vmatprep.subr.mxu0 0.0
  %5709 = vmatpush2.msra.mxu0 0.0
  %5710 = vmatprep.subr.mxu0 0.0
  %5711 = vmatpush2.msra.mxu0 0.0
  %5712 = vmatprep.subr.mxu0 0.0
  %5713 = vmatpush2.msra.mxu0 0.0
  %5714 = vmatprep.subr.mxu0 0.0
  %5715 = vmatpush2.msra.mxu0 0.0
  %5716 = vmatprep.subr.mxu0 0.0
  %5717 = vmatpush2.msra.mxu0 0.0
  %5718 = vmatprep.mubr.f32.mxu0 0.0
  %5719 = vmatmul.mubr.f32.gmra.mxu0 %v5646
  %v5720 = vpop.f32.mrf.mxu0
  %v5721 = vadd.f32 %v5650, %v5720
  %v5722 = vpop.f32.mrf.mxu0
  %5723 = vmatprep.mubr.f32.mxu0 0.0
  %5724 = vmatmul.mubr.f32.gmra.mxu0 %v5647
  %v5725 = vpop.f32.mrf.mxu0
  %v5726 = vadd.f32 %v5651, %v5725
  %v5727 = vpop.f32.mrf.mxu0
  %5728 = vmatprep.mubr.f32.mxu0 0.0
  %5729 = vmatmul.mubr.f32.gmra.mxu0 %v5648
  %v5730 = vpop.f32.mrf.mxu0
  %v5731 = vadd.f32 %v5652, %v5730
  %v5732 = vpop.f32.mrf.mxu0
  %5733 = vmatprep.mubr.f32.mxu0 0.0
  %5734 = vmatmul.mubr.f32.gmra.mxu0 %v5649
  %v5735 = vpop.f32.mrf.mxu0
  %v5736 = vadd.f32 %v5653, %v5735
  %v5737 = vpop.f32.mrf.mxu0
  %5738 = vdwg.mxu0
  %v5739 = vmul.f32 %v5096, %v5721
  %v5740 = vmul.f32 %v5097, %v5726
  %v5741 = vmul.f32 %v5098, %v5731
  %v5742 = vmul.f32 %v5099, %v5736
  %v5743 = vadd.f32 %v5739, %v5740
  %v5744 = vadd.f32 %v5743, %v5741
  %v5745 = vadd.f32 %v5744, %v5742
  %5746 = vadd.xlane.f32.xlu0 %v5745
  %v5747 = vpop.xlane.xlu0 %5746
  %v5748 = vrot.slane %v5747, 4
  %v5749 = vadd.f32 %v5747, %v5748
  %v5750 = vrot.slane %v5749, 2
  %v5751 = vadd.f32 %v5749, %v5750
  %v5752 = vrot.slane %v5751, 1
  %v5753 = vadd.f32 %v5751, %v5752
  %s5754 = vtos %v5753
  %v5755 = vstv %s5754
  %v5756 = vrcp.pop %v5755
  %s5757 = vtos %v5756
  %s5758 = smul.f32 %s5086, %s5757
  %v5759 = vstv %s5758
  %v5760 = vmul.f32 %v5759, %v5096
  %v5761 = vmul.f32 %v5759, %v5097
  %v5762 = vmul.f32 %v5759, %v5098
  %v5763 = vmul.f32 %v5759, %v5099
  %v5764 = vadd.f32 %v5059, %v5760
  %v5765 = vadd.f32 %v5060, %v5761
  %v5766 = vadd.f32 %v5061, %v5762
  %v5767 = vadd.f32 %v5062, %v5763
  %v5768 = vmul.f32 %v5759, %v5721
  %v5769 = vmul.f32 %v5759, %v5726
  %v5770 = vmul.f32 %v5759, %v5731
  %v5771 = vmul.f32 %v5759, %v5736
  %v5772 = vsub.f32 %v5067, %v5768
  %v5773 = vsub.f32 %v5068, %v5769
  %v5774 = vsub.f32 %v5069, %v5770
  %v5775 = vsub.f32 %v5070, %v5771
  %v5776 = vmul.f32 %v5772, %v5772
  %v5777 = vmul.f32 %v5773, %v5773
  %v5778 = vmul.f32 %v5774, %v5774
  %v5779 = vmul.f32 %v5775, %v5775
  %v5780 = vadd.f32 %v5776, %v5777
  %v5781 = vadd.f32 %v5780, %v5778
  %v5782 = vadd.f32 %v5781, %v5779
  %5783 = vadd.xlane.f32.xlu0 %v5782
  %v5784 = vpop.xlane.xlu0 %5783
  %v5785 = vrot.slane %v5784, 4
  %v5786 = vadd.f32 %v5784, %v5785
  %v5787 = vrot.slane %v5786, 2
  %v5788 = vadd.f32 %v5786, %v5787
  %v5789 = vrot.slane %v5788, 1
  %v5790 = vadd.f32 %v5788, %v5789
  %s5791 = vtos %v5790
  %v5792 = vstv %s5086
  %v5793 = vrcp.pop %v5792
  %s5794 = vtos %v5793
  %s5795 = smul.f32 %s5791, %s5794
  %v5796 = vstv %s5795
  %v5797 = vmul.f32 %v5796, %v5096
  %v5798 = vmul.f32 %v5796, %v5097
  %v5799 = vmul.f32 %v5796, %v5098
  %v5800 = vmul.f32 %v5796, %v5099
  %v5801 = vadd.f32 %v5772, %v5797
  %v5802 = vadd.f32 %v5773, %v5798
  %v5803 = vadd.f32 %v5774, %v5799
  %v5804 = vadd.f32 %v5775, %v5800
  %v5805 = vmul.f32 %v5801, %v63
  %v5806 = vmul.f32 %v5802, %v64
  %v5807 = vmul.f32 %v5803, %v65
  %v5808 = vmul.f32 %v5804, %v66
  %v5809 = vmul.f32 %v5803, %v71
  %v5810 = vmul.f32 %v5804, %v72
  %v5811 = vmul.f32 %v5801, %v73
  %v5812 = vmul.f32 %v5802, %v74
  %v5813 = vadd.f32 %v5805, %v5809
  %v5814 = vadd.f32 %v5806, %v5810
  %v5815 = vadd.f32 %v5807, %v5811
  %v5816 = vadd.f32 %v5808, %v5812
  %5817 = vmatprep.subr.mxu0 0.0
  %5818 = vmatpush1.msra.mxu0 0.0
  %5819 = vmatprep.subr.mxu0 0.0
  %5820 = vmatpush1.msra.mxu0 0.0
  %5821 = vmatprep.subr.mxu0 0.0
  %5822 = vmatpush1.msra.mxu0 0.0
  %5823 = vmatprep.subr.mxu0 0.0
  %5824 = vmatpush1.msra.mxu0 0.0
  %5825 = vmatprep.subr.mxu0 0.0
  %5826 = vmatpush1.msra.mxu0 0.0
  %5827 = vmatprep.subr.mxu0 0.0
  %5828 = vmatpush1.msra.mxu0 0.0
  %5829 = vmatprep.subr.mxu0 0.0
  %5830 = vmatpush1.msra.mxu0 0.0
  %5831 = vmatprep.subr.mxu0 0.0
  %5832 = vmatpush1.msra.mxu0 0.0
  %5833 = vmatprep.subr.mxu0 0.0
  %5834 = vmatpush1.msra.mxu0 0.0
  %5835 = vmatprep.subr.mxu0 0.0
  %5836 = vmatpush1.msra.mxu0 0.0
  %5837 = vmatprep.subr.mxu0 0.0
  %5838 = vmatpush1.msra.mxu0 0.0
  %5839 = vmatprep.subr.mxu0 0.0
  %5840 = vmatpush1.msra.mxu0 0.0
  %5841 = vmatprep.subr.mxu0 0.0
  %5842 = vmatpush1.msra.mxu0 %v5816
  %5843 = vmatprep.subr.mxu0 0.0
  %5844 = vmatpush1.msra.mxu0 %v5815
  %5845 = vmatprep.subr.mxu0 0.0
  %5846 = vmatpush1.msra.mxu0 %v5814
  %5847 = vmatprep.subr.mxu0 0.0
  %5848 = vmatpush1.msra.mxu0 %v5813
  %5849 = vmatprep.subr.mxu0 0.0
  %5850 = vmatpush2.msra.mxu0 0.0
  %5851 = vmatprep.subr.mxu0 0.0
  %5852 = vmatpush2.msra.mxu0 0.0
  %5853 = vmatprep.subr.mxu0 0.0
  %5854 = vmatpush2.msra.mxu0 0.0
  %5855 = vmatprep.subr.mxu0 0.0
  %5856 = vmatpush2.msra.mxu0 0.0
  %5857 = vmatprep.subr.mxu0 0.0
  %5858 = vmatpush2.msra.mxu0 0.0
  %5859 = vmatprep.subr.mxu0 0.0
  %5860 = vmatpush2.msra.mxu0 0.0
  %5861 = vmatprep.subr.mxu0 0.0
  %5862 = vmatpush2.msra.mxu0 0.0
  %5863 = vmatprep.subr.mxu0 0.0
  %5864 = vmatpush2.msra.mxu0 0.0
  %5865 = vmatprep.subr.mxu0 0.0
  %5866 = vmatpush2.msra.mxu0 0.0
  %5867 = vmatprep.subr.mxu0 0.0
  %5868 = vmatpush2.msra.mxu0 0.0
  %5869 = vmatprep.subr.mxu0 0.0
  %5870 = vmatpush2.msra.mxu0 0.0
  %5871 = vmatprep.subr.mxu0 0.0
  %5872 = vmatpush2.msra.mxu0 0.0
  %5873 = vmatprep.subr.mxu0 0.0
  %5874 = vmatpush2.msra.mxu0 0.0
  %5875 = vmatprep.subr.mxu0 0.0
  %5876 = vmatpush2.msra.mxu0 0.0
  %5877 = vmatprep.subr.mxu0 0.0
  %5878 = vmatpush2.msra.mxu0 0.0
  %5879 = vmatprep.subr.mxu0 0.0
  %5880 = vmatpush2.msra.mxu0 0.0
  %5881 = vmatprep.mubr.f32.mxu0 0.0
  %5882 = vmatmul.mubr.f32.gmra.mxu0 %v89
  %v5883 = vpop.f32.mrf.mxu0
  %v5884 = vadd.f32 0.0, %v5883
  %v5885 = vpop.f32.mrf.mxu0
  %5886 = vmatprep.mubr.f32.mxu0 0.0
  %5887 = vmatmul.mubr.f32.gmra.mxu0 %v92
  %v5888 = vpop.f32.mrf.mxu0
  %v5889 = vadd.f32 0.0, %v5888
  %v5890 = vpop.f32.mrf.mxu0
  %5891 = vmatprep.mubr.f32.mxu0 0.0
  %5892 = vmatmul.mubr.f32.gmra.mxu0 %v95
  %v5893 = vpop.f32.mrf.mxu0
  %v5894 = vadd.f32 0.0, %v5893
  %v5895 = vpop.f32.mrf.mxu0
  %5896 = vmatprep.mubr.f32.mxu0 0.0
  %5897 = vmatmul.mubr.f32.gmra.mxu0 %v98
  %v5898 = vpop.f32.mrf.mxu0
  %v5899 = vadd.f32 0.0, %v5898
  %v5900 = vpop.f32.mrf.mxu0
  %5901 = vdwg.mxu0
  %v5902 = vmul.f32 %v201, %v5894
  %v5903 = vmul.f32 %v202, %v5899
  %v5904 = vmul.f32 %v203, %v5884
  %v5905 = vmul.f32 %v204, %v5889
  %5906 = vmatprep.subr.mxu0 0.0
  %5907 = vmatpush1.msra.mxu0 %v224
  %5908 = vmatprep.subr.mxu0 0.0
  %5909 = vmatpush1.msra.mxu0 %v223
  %5910 = vmatprep.subr.mxu0 0.0
  %5911 = vmatpush1.msra.mxu0 %v222
  %5912 = vmatprep.subr.mxu0 0.0
  %5913 = vmatpush1.msra.mxu0 %v221
  %5914 = vmatprep.subr.mxu0 0.0
  %5915 = vmatpush1.msra.mxu0 %v220
  %5916 = vmatprep.subr.mxu0 0.0
  %5917 = vmatpush1.msra.mxu0 %v219
  %5918 = vmatprep.subr.mxu0 0.0
  %5919 = vmatpush1.msra.mxu0 %v218
  %5920 = vmatprep.subr.mxu0 0.0
  %5921 = vmatpush1.msra.mxu0 %v217
  %5922 = vmatprep.subr.mxu0 0.0
  %5923 = vmatpush1.msra.mxu0 %v216
  %5924 = vmatprep.subr.mxu0 0.0
  %5925 = vmatpush1.msra.mxu0 %v215
  %5926 = vmatprep.subr.mxu0 0.0
  %5927 = vmatpush1.msra.mxu0 %v214
  %5928 = vmatprep.subr.mxu0 0.0
  %5929 = vmatpush1.msra.mxu0 %v213
  %5930 = vmatprep.subr.mxu0 0.0
  %5931 = vmatpush1.msra.mxu0 %v212
  %5932 = vmatprep.subr.mxu0 0.0
  %5933 = vmatpush1.msra.mxu0 %v211
  %5934 = vmatprep.subr.mxu0 0.0
  %5935 = vmatpush1.msra.mxu0 %v210
  %5936 = vmatprep.subr.mxu0 0.0
  %5937 = vmatpush1.msra.mxu0 %v209
  %5938 = vmatprep.subr.mxu0 0.0
  %5939 = vmatpush2.msra.mxu0 0.0
  %5940 = vmatprep.subr.mxu0 0.0
  %5941 = vmatpush2.msra.mxu0 0.0
  %5942 = vmatprep.subr.mxu0 0.0
  %5943 = vmatpush2.msra.mxu0 0.0
  %5944 = vmatprep.subr.mxu0 0.0
  %5945 = vmatpush2.msra.mxu0 0.0
  %5946 = vmatprep.subr.mxu0 0.0
  %5947 = vmatpush2.msra.mxu0 0.0
  %5948 = vmatprep.subr.mxu0 0.0
  %5949 = vmatpush2.msra.mxu0 0.0
  %5950 = vmatprep.subr.mxu0 0.0
  %5951 = vmatpush2.msra.mxu0 0.0
  %5952 = vmatprep.subr.mxu0 0.0
  %5953 = vmatpush2.msra.mxu0 0.0
  %5954 = vmatprep.subr.mxu0 0.0
  %5955 = vmatpush2.msra.mxu0 0.0
  %5956 = vmatprep.subr.mxu0 0.0
  %5957 = vmatpush2.msra.mxu0 0.0
  %5958 = vmatprep.subr.mxu0 0.0
  %5959 = vmatpush2.msra.mxu0 0.0
  %5960 = vmatprep.subr.mxu0 0.0
  %5961 = vmatpush2.msra.mxu0 0.0
  %5962 = vmatprep.subr.mxu0 0.0
  %5963 = vmatpush2.msra.mxu0 0.0
  %5964 = vmatprep.subr.mxu0 0.0
  %5965 = vmatpush2.msra.mxu0 0.0
  %5966 = vmatprep.subr.mxu0 0.0
  %5967 = vmatpush2.msra.mxu0 0.0
  %5968 = vmatprep.subr.mxu0 0.0
  %5969 = vmatpush2.msra.mxu0 0.0
  %5970 = vmatprep.mubr.f32.mxu0 0.0
  %5971 = vmatmul.mubr.f32.gmra.mxu0 %v5902
  %v5972 = vpop.f32.mrf.mxu0
  %v5973 = vadd.f32 0.0, %v5972
  %v5974 = vpop.f32.mrf.mxu0
  %5975 = vmatprep.mubr.f32.mxu0 0.0
  %5976 = vmatmul.mubr.f32.gmra.mxu0 %v5903
  %v5977 = vpop.f32.mrf.mxu0
  %v5978 = vadd.f32 0.0, %v5977
  %v5979 = vpop.f32.mrf.mxu0
  %5980 = vmatprep.mubr.f32.mxu0 0.0
  %5981 = vmatmul.mubr.f32.gmra.mxu0 %v5904
  %v5982 = vpop.f32.mrf.mxu0
  %v5983 = vadd.f32 0.0, %v5982
  %v5984 = vpop.f32.mrf.mxu0
  %5985 = vmatprep.mubr.f32.mxu0 0.0
  %5986 = vmatmul.mubr.f32.gmra.mxu0 %v5905
  %v5987 = vpop.f32.mrf.mxu0
  %v5988 = vadd.f32 0.0, %v5987
  %v5989 = vpop.f32.mrf.mxu0
  %5990 = vdwg.mxu0
  %5991 = vmatprep.subr.mxu0 0.0
  %5992 = vmatpush1.msra.mxu0 %v200
  %5993 = vmatprep.subr.mxu0 0.0
  %5994 = vmatpush1.msra.mxu0 %v199
  %5995 = vmatprep.subr.mxu0 0.0
  %5996 = vmatpush1.msra.mxu0 %v198
  %5997 = vmatprep.subr.mxu0 0.0
  %5998 = vmatpush1.msra.mxu0 %v197
  %5999 = vmatprep.subr.mxu0 0.0
  %6000 = vmatpush1.msra.mxu0 %v196
  %6001 = vmatprep.subr.mxu0 0.0
  %6002 = vmatpush1.msra.mxu0 %v195
  %6003 = vmatprep.subr.mxu0 0.0
  %6004 = vmatpush1.msra.mxu0 %v194
  %6005 = vmatprep.subr.mxu0 0.0
  %6006 = vmatpush1.msra.mxu0 %v193
  %6007 = vmatprep.subr.mxu0 0.0
  %6008 = vmatpush1.msra.mxu0 %v192
  %6009 = vmatprep.subr.mxu0 0.0
  %6010 = vmatpush1.msra.mxu0 %v191
  %6011 = vmatprep.subr.mxu0 0.0
  %6012 = vmatpush1.msra.mxu0 %v190
  %6013 = vmatprep.subr.mxu0 0.0
  %6014 = vmatpush1.msra.mxu0 %v189
  %6015 = vmatprep.subr.mxu0 0.0
  %6016 = vmatpush1.msra.mxu0 %v188
  %6017 = vmatprep.subr.mxu0 0.0
  %6018 = vmatpush1.msra.mxu0 %v187
  %6019 = vmatprep.subr.mxu0 0.0
  %6020 = vmatpush1.msra.mxu0 %v186
  %6021 = vmatprep.subr.mxu0 0.0
  %6022 = vmatpush1.msra.mxu0 %v185
  %6023 = vmatprep.subr.mxu0 0.0
  %6024 = vmatpush2.msra.mxu0 0.0
  %6025 = vmatprep.subr.mxu0 0.0
  %6026 = vmatpush2.msra.mxu0 0.0
  %6027 = vmatprep.subr.mxu0 0.0
  %6028 = vmatpush2.msra.mxu0 0.0
  %6029 = vmatprep.subr.mxu0 0.0
  %6030 = vmatpush2.msra.mxu0 0.0
  %6031 = vmatprep.subr.mxu0 0.0
  %6032 = vmatpush2.msra.mxu0 0.0
  %6033 = vmatprep.subr.mxu0 0.0
  %6034 = vmatpush2.msra.mxu0 0.0
  %6035 = vmatprep.subr.mxu0 0.0
  %6036 = vmatpush2.msra.mxu0 0.0
  %6037 = vmatprep.subr.mxu0 0.0
  %6038 = vmatpush2.msra.mxu0 0.0
  %6039 = vmatprep.subr.mxu0 0.0
  %6040 = vmatpush2.msra.mxu0 0.0
  %6041 = vmatprep.subr.mxu0 0.0
  %6042 = vmatpush2.msra.mxu0 0.0
  %6043 = vmatprep.subr.mxu0 0.0
  %6044 = vmatpush2.msra.mxu0 0.0
  %6045 = vmatprep.subr.mxu0 0.0
  %6046 = vmatpush2.msra.mxu0 0.0
  %6047 = vmatprep.subr.mxu0 0.0
  %6048 = vmatpush2.msra.mxu0 0.0
  %6049 = vmatprep.subr.mxu0 0.0
  %6050 = vmatpush2.msra.mxu0 0.0
  %6051 = vmatprep.subr.mxu0 0.0
  %6052 = vmatpush2.msra.mxu0 0.0
  %6053 = vmatprep.subr.mxu0 0.0
  %6054 = vmatpush2.msra.mxu0 0.0
  %6055 = vmatprep.mubr.f32.mxu0 0.0
  %6056 = vmatmul.mubr.f32.gmra.mxu0 %v5884
  %v6057 = vpop.f32.mrf.mxu0
  %v6058 = vadd.f32 %v5973, %v6057
  %v6059 = vpop.f32.mrf.mxu0
  %6060 = vmatprep.mubr.f32.mxu0 0.0
  %6061 = vmatmul.mubr.f32.gmra.mxu0 %v5889
  %v6062 = vpop.f32.mrf.mxu0
  %v6063 = vadd.f32 %v5978, %v6062
  %v6064 = vpop.f32.mrf.mxu0
  %6065 = vmatprep.mubr.f32.mxu0 0.0
  %6066 = vmatmul.mubr.f32.gmra.mxu0 %v5894
  %v6067 = vpop.f32.mrf.mxu0
  %v6068 = vadd.f32 %v5983, %v6067
  %v6069 = vpop.f32.mrf.mxu0
  %6070 = vmatprep.mubr.f32.mxu0 0.0
  %6071 = vmatmul.mubr.f32.gmra.mxu0 %v5899
  %v6072 = vpop.f32.mrf.mxu0
  %v6073 = vadd.f32 %v5988, %v6072
  %v6074 = vpop.f32.mrf.mxu0
  %6075 = vdwg.mxu0
  %v6076 = vmul.f32 %v6058, %v395
  %v6077 = vmul.f32 %v6063, %v396
  %v6078 = vmul.f32 %v6068, %v397
  %v6079 = vmul.f32 %v6073, %v398
  %6080 = vmatprep.subr.mxu0 0.0
  %6081 = vmatpush1.msra.mxu0 0.0
  %6082 = vmatprep.subr.mxu0 0.0
  %6083 = vmatpush1.msra.mxu0 0.0
  %6084 = vmatprep.subr.mxu0 0.0
  %6085 = vmatpush1.msra.mxu0 0.0
  %6086 = vmatprep.subr.mxu0 0.0
  %6087 = vmatpush1.msra.mxu0 0.0
  %6088 = vmatprep.subr.mxu0 0.0
  %6089 = vmatpush1.msra.mxu0 0.0
  %6090 = vmatprep.subr.mxu0 0.0
  %6091 = vmatpush1.msra.mxu0 0.0
  %6092 = vmatprep.subr.mxu0 0.0
  %6093 = vmatpush1.msra.mxu0 0.0
  %6094 = vmatprep.subr.mxu0 0.0
  %6095 = vmatpush1.msra.mxu0 0.0
  %6096 = vmatprep.subr.mxu0 0.0
  %6097 = vmatpush1.msra.mxu0 0.0
  %6098 = vmatprep.subr.mxu0 0.0
  %6099 = vmatpush1.msra.mxu0 0.0
  %6100 = vmatprep.subr.mxu0 0.0
  %6101 = vmatpush1.msra.mxu0 0.0
  %6102 = vmatprep.subr.mxu0 0.0
  %6103 = vmatpush1.msra.mxu0 0.0
  %6104 = vmatprep.subr.mxu0 0.0
  %6105 = vmatpush1.msra.mxu0 %v6079
  %6106 = vmatprep.subr.mxu0 0.0
  %6107 = vmatpush1.msra.mxu0 %v6078
  %6108 = vmatprep.subr.mxu0 0.0
  %6109 = vmatpush1.msra.mxu0 %v6077
  %6110 = vmatprep.subr.mxu0 0.0
  %6111 = vmatpush1.msra.mxu0 %v6076
  %6112 = vmatprep.subr.mxu0 0.0
  %6113 = vmatpush2.msra.mxu0 0.0
  %6114 = vmatprep.subr.mxu0 0.0
  %6115 = vmatpush2.msra.mxu0 0.0
  %6116 = vmatprep.subr.mxu0 0.0
  %6117 = vmatpush2.msra.mxu0 0.0
  %6118 = vmatprep.subr.mxu0 0.0
  %6119 = vmatpush2.msra.mxu0 0.0
  %6120 = vmatprep.subr.mxu0 0.0
  %6121 = vmatpush2.msra.mxu0 0.0
  %6122 = vmatprep.subr.mxu0 0.0
  %6123 = vmatpush2.msra.mxu0 0.0
  %6124 = vmatprep.subr.mxu0 0.0
  %6125 = vmatpush2.msra.mxu0 0.0
  %6126 = vmatprep.subr.mxu0 0.0
  %6127 = vmatpush2.msra.mxu0 0.0
  %6128 = vmatprep.subr.mxu0 0.0
  %6129 = vmatpush2.msra.mxu0 0.0
  %6130 = vmatprep.subr.mxu0 0.0
  %6131 = vmatpush2.msra.mxu0 0.0
  %6132 = vmatprep.subr.mxu0 0.0
  %6133 = vmatpush2.msra.mxu0 0.0
  %6134 = vmatprep.subr.mxu0 0.0
  %6135 = vmatpush2.msra.mxu0 0.0
  %6136 = vmatprep.subr.mxu0 0.0
  %6137 = vmatpush2.msra.mxu0 0.0
  %6138 = vmatprep.subr.mxu0 0.0
  %6139 = vmatpush2.msra.mxu0 0.0
  %6140 = vmatprep.subr.mxu0 0.0
  %6141 = vmatpush2.msra.mxu0 0.0
  %6142 = vmatprep.subr.mxu0 0.0
  %6143 = vmatpush2.msra.mxu0 0.0
  %6144 = vmatprep.mubr.f32.mxu0 0.0
  %6145 = vmatmul.mubr.f32.gmra.mxu0 %v408
  %v6146 = vpop.f32.mrf.mxu0
  %v6147 = vadd.f32 0.0, %v6146
  %v6148 = vpop.f32.mrf.mxu0
  %6149 = vmatprep.mubr.f32.mxu0 0.0
  %6150 = vmatmul.mubr.f32.gmra.mxu0 %v411
  %v6151 = vpop.f32.mrf.mxu0
  %v6152 = vadd.f32 0.0, %v6151
  %v6153 = vpop.f32.mrf.mxu0
  %6154 = vmatprep.mubr.f32.mxu0 0.0
  %6155 = vmatmul.mubr.f32.gmra.mxu0 %v414
  %v6156 = vpop.f32.mrf.mxu0
  %v6157 = vadd.f32 0.0, %v6156
  %v6158 = vpop.f32.mrf.mxu0
  %6159 = vmatprep.mubr.f32.mxu0 0.0
  %6160 = vmatmul.mubr.f32.gmra.mxu0 %v417
  %v6161 = vpop.f32.mrf.mxu0
  %v6162 = vadd.f32 0.0, %v6161
  %v6163 = vpop.f32.mrf.mxu0
  %6164 = vdwg.mxu0
  %6165 = vmatprep.subr.mxu0 0.0
  %6166 = vmatpush1.msra.mxu0 %v200
  %6167 = vmatprep.subr.mxu0 0.0
  %6168 = vmatpush1.msra.mxu0 %v199
  %6169 = vmatprep.subr.mxu0 0.0
  %6170 = vmatpush1.msra.mxu0 %v198
  %6171 = vmatprep.subr.mxu0 0.0
  %6172 = vmatpush1.msra.mxu0 %v197
  %6173 = vmatprep.subr.mxu0 0.0
  %6174 = vmatpush1.msra.mxu0 %v196
  %6175 = vmatprep.subr.mxu0 0.0
  %6176 = vmatpush1.msra.mxu0 %v195
  %6177 = vmatprep.subr.mxu0 0.0
  %6178 = vmatpush1.msra.mxu0 %v194
  %6179 = vmatprep.subr.mxu0 0.0
  %6180 = vmatpush1.msra.mxu0 %v193
  %6181 = vmatprep.subr.mxu0 0.0
  %6182 = vmatpush1.msra.mxu0 %v192
  %6183 = vmatprep.subr.mxu0 0.0
  %6184 = vmatpush1.msra.mxu0 %v191
  %6185 = vmatprep.subr.mxu0 0.0
  %6186 = vmatpush1.msra.mxu0 %v190
  %6187 = vmatprep.subr.mxu0 0.0
  %6188 = vmatpush1.msra.mxu0 %v189
  %6189 = vmatprep.subr.mxu0 0.0
  %6190 = vmatpush1.msra.mxu0 %v188
  %6191 = vmatprep.subr.mxu0 0.0
  %6192 = vmatpush1.msra.mxu0 %v187
  %6193 = vmatprep.subr.mxu0 0.0
  %6194 = vmatpush1.msra.mxu0 %v186
  %6195 = vmatprep.subr.mxu0 0.0
  %6196 = vmatpush1.msra.mxu0 %v185
  %6197 = vmatprep.subr.mxu0 0.0
  %6198 = vmatpush2.msra.mxu0 0.0
  %6199 = vmatprep.subr.mxu0 0.0
  %6200 = vmatpush2.msra.mxu0 0.0
  %6201 = vmatprep.subr.mxu0 0.0
  %6202 = vmatpush2.msra.mxu0 0.0
  %6203 = vmatprep.subr.mxu0 0.0
  %6204 = vmatpush2.msra.mxu0 0.0
  %6205 = vmatprep.subr.mxu0 0.0
  %6206 = vmatpush2.msra.mxu0 0.0
  %6207 = vmatprep.subr.mxu0 0.0
  %6208 = vmatpush2.msra.mxu0 0.0
  %6209 = vmatprep.subr.mxu0 0.0
  %6210 = vmatpush2.msra.mxu0 0.0
  %6211 = vmatprep.subr.mxu0 0.0
  %6212 = vmatpush2.msra.mxu0 0.0
  %6213 = vmatprep.subr.mxu0 0.0
  %6214 = vmatpush2.msra.mxu0 0.0
  %6215 = vmatprep.subr.mxu0 0.0
  %6216 = vmatpush2.msra.mxu0 0.0
  %6217 = vmatprep.subr.mxu0 0.0
  %6218 = vmatpush2.msra.mxu0 0.0
  %6219 = vmatprep.subr.mxu0 0.0
  %6220 = vmatpush2.msra.mxu0 0.0
  %6221 = vmatprep.subr.mxu0 0.0
  %6222 = vmatpush2.msra.mxu0 0.0
  %6223 = vmatprep.subr.mxu0 0.0
  %6224 = vmatpush2.msra.mxu0 0.0
  %6225 = vmatprep.subr.mxu0 0.0
  %6226 = vmatpush2.msra.mxu0 0.0
  %6227 = vmatprep.subr.mxu0 0.0
  %6228 = vmatpush2.msra.mxu0 0.0
  %6229 = vmatprep.mubr.f32.mxu0 0.0
  %6230 = vmatmul.mubr.f32.gmra.mxu0 %v6147
  %v6231 = vpop.f32.mrf.mxu0
  %v6232 = vadd.f32 0.0, %v6231
  %v6233 = vpop.f32.mrf.mxu0
  %6234 = vmatprep.mubr.f32.mxu0 0.0
  %6235 = vmatmul.mubr.f32.gmra.mxu0 %v6152
  %v6236 = vpop.f32.mrf.mxu0
  %v6237 = vadd.f32 0.0, %v6236
  %v6238 = vpop.f32.mrf.mxu0
  %6239 = vmatprep.mubr.f32.mxu0 0.0
  %6240 = vmatmul.mubr.f32.gmra.mxu0 %v6157
  %v6241 = vpop.f32.mrf.mxu0
  %v6242 = vadd.f32 0.0, %v6241
  %v6243 = vpop.f32.mrf.mxu0
  %6244 = vmatprep.mubr.f32.mxu0 0.0
  %6245 = vmatmul.mubr.f32.gmra.mxu0 %v6162
  %v6246 = vpop.f32.mrf.mxu0
  %v6247 = vadd.f32 0.0, %v6246
  %v6248 = vpop.f32.mrf.mxu0
  %6249 = vdwg.mxu0
  %v6250 = vmul.f32 %v201, %v6157
  %v6251 = vmul.f32 %v202, %v6162
  %v6252 = vmul.f32 %v203, %v6147
  %v6253 = vmul.f32 %v204, %v6152
  %6254 = vmatprep.subr.mxu0 0.0
  %6255 = vmatpush1.msra.mxu0 %v224
  %6256 = vmatprep.subr.mxu0 0.0
  %6257 = vmatpush1.msra.mxu0 %v223
  %6258 = vmatprep.subr.mxu0 0.0
  %6259 = vmatpush1.msra.mxu0 %v222
  %6260 = vmatprep.subr.mxu0 0.0
  %6261 = vmatpush1.msra.mxu0 %v221
  %6262 = vmatprep.subr.mxu0 0.0
  %6263 = vmatpush1.msra.mxu0 %v220
  %6264 = vmatprep.subr.mxu0 0.0
  %6265 = vmatpush1.msra.mxu0 %v219
  %6266 = vmatprep.subr.mxu0 0.0
  %6267 = vmatpush1.msra.mxu0 %v218
  %6268 = vmatprep.subr.mxu0 0.0
  %6269 = vmatpush1.msra.mxu0 %v217
  %6270 = vmatprep.subr.mxu0 0.0
  %6271 = vmatpush1.msra.mxu0 %v216
  %6272 = vmatprep.subr.mxu0 0.0
  %6273 = vmatpush1.msra.mxu0 %v215
  %6274 = vmatprep.subr.mxu0 0.0
  %6275 = vmatpush1.msra.mxu0 %v214
  %6276 = vmatprep.subr.mxu0 0.0
  %6277 = vmatpush1.msra.mxu0 %v213
  %6278 = vmatprep.subr.mxu0 0.0
  %6279 = vmatpush1.msra.mxu0 %v212
  %6280 = vmatprep.subr.mxu0 0.0
  %6281 = vmatpush1.msra.mxu0 %v211
  %6282 = vmatprep.subr.mxu0 0.0
  %6283 = vmatpush1.msra.mxu0 %v210
  %6284 = vmatprep.subr.mxu0 0.0
  %6285 = vmatpush1.msra.mxu0 %v209
  %6286 = vmatprep.subr.mxu0 0.0
  %6287 = vmatpush2.msra.mxu0 0.0
  %6288 = vmatprep.subr.mxu0 0.0
  %6289 = vmatpush2.msra.mxu0 0.0
  %6290 = vmatprep.subr.mxu0 0.0
  %6291 = vmatpush2.msra.mxu0 0.0
  %6292 = vmatprep.subr.mxu0 0.0
  %6293 = vmatpush2.msra.mxu0 0.0
  %6294 = vmatprep.subr.mxu0 0.0
  %6295 = vmatpush2.msra.mxu0 0.0
  %6296 = vmatprep.subr.mxu0 0.0
  %6297 = vmatpush2.msra.mxu0 0.0
  %6298 = vmatprep.subr.mxu0 0.0
  %6299 = vmatpush2.msra.mxu0 0.0
  %6300 = vmatprep.subr.mxu0 0.0
  %6301 = vmatpush2.msra.mxu0 0.0
  %6302 = vmatprep.subr.mxu0 0.0
  %6303 = vmatpush2.msra.mxu0 0.0
  %6304 = vmatprep.subr.mxu0 0.0
  %6305 = vmatpush2.msra.mxu0 0.0
  %6306 = vmatprep.subr.mxu0 0.0
  %6307 = vmatpush2.msra.mxu0 0.0
  %6308 = vmatprep.subr.mxu0 0.0
  %6309 = vmatpush2.msra.mxu0 0.0
  %6310 = vmatprep.subr.mxu0 0.0
  %6311 = vmatpush2.msra.mxu0 0.0
  %6312 = vmatprep.subr.mxu0 0.0
  %6313 = vmatpush2.msra.mxu0 0.0
  %6314 = vmatprep.subr.mxu0 0.0
  %6315 = vmatpush2.msra.mxu0 0.0
  %6316 = vmatprep.subr.mxu0 0.0
  %6317 = vmatpush2.msra.mxu0 0.0
  %6318 = vmatprep.mubr.f32.mxu0 0.0
  %6319 = vmatmul.mubr.f32.gmra.mxu0 %v6250
  %v6320 = vpop.f32.mrf.mxu0
  %v6321 = vadd.f32 0.0, %v6320
  %v6322 = vpop.f32.mrf.mxu0
  %6323 = vmatprep.mubr.f32.mxu0 0.0
  %6324 = vmatmul.mubr.f32.gmra.mxu0 %v6251
  %v6325 = vpop.f32.mrf.mxu0
  %v6326 = vadd.f32 0.0, %v6325
  %v6327 = vpop.f32.mrf.mxu0
  %6328 = vmatprep.mubr.f32.mxu0 0.0
  %6329 = vmatmul.mubr.f32.gmra.mxu0 %v6252
  %v6330 = vpop.f32.mrf.mxu0
  %v6331 = vadd.f32 0.0, %v6330
  %v6332 = vpop.f32.mrf.mxu0
  %6333 = vmatprep.mubr.f32.mxu0 0.0
  %6334 = vmatmul.mubr.f32.gmra.mxu0 %v6253
  %v6335 = vpop.f32.mrf.mxu0
  %v6336 = vadd.f32 0.0, %v6335
  %v6337 = vpop.f32.mrf.mxu0
  %6338 = vdwg.mxu0
  %v6339 = vsub.f32 %v6232, %v6321
  %v6340 = vsub.f32 %v6237, %v6326
  %v6341 = vsub.f32 %v6242, %v6331
  %v6342 = vsub.f32 %v6247, %v6336
  %v6343 = vmul.f32 %v6339, %v63
  %v6344 = vmul.f32 %v6340, %v64
  %v6345 = vmul.f32 %v6341, %v65
  %v6346 = vmul.f32 %v6342, %v66
  %v6347 = vmul.f32 %v6341, %v686
  %v6348 = vmul.f32 %v6342, %v687
  %v6349 = vmul.f32 %v6339, %v688
  %v6350 = vmul.f32 %v6340, %v689
  %v6351 = vadd.f32 %v6343, %v6347
  %v6352 = vadd.f32 %v6344, %v6348
  %v6353 = vadd.f32 %v6345, %v6349
  %v6354 = vadd.f32 %v6346, %v6350
  %v6355 = vmul.f32 %v714, %v5801
  %v6356 = vmul.f32 %v714, %v5802
  %v6357 = vmul.f32 %v714, %v5803
  %v6358 = vmul.f32 %v714, %v5804
  %6359 = vmatprep.subr.mxu0 0.0
  %6360 = vmatpush1.msra.mxu0 %v713
  %6361 = vmatprep.subr.mxu0 0.0
  %6362 = vmatpush1.msra.mxu0 %v712
  %6363 = vmatprep.subr.mxu0 0.0
  %6364 = vmatpush1.msra.mxu0 %v711
  %6365 = vmatprep.subr.mxu0 0.0
  %6366 = vmatpush1.msra.mxu0 %v710
  %6367 = vmatprep.subr.mxu0 0.0
  %6368 = vmatpush1.msra.mxu0 %v709
  %6369 = vmatprep.subr.mxu0 0.0
  %6370 = vmatpush1.msra.mxu0 %v708
  %6371 = vmatprep.subr.mxu0 0.0
  %6372 = vmatpush1.msra.mxu0 %v707
  %6373 = vmatprep.subr.mxu0 0.0
  %6374 = vmatpush1.msra.mxu0 %v706
  %6375 = vmatprep.subr.mxu0 0.0
  %6376 = vmatpush1.msra.mxu0 %v705
  %6377 = vmatprep.subr.mxu0 0.0
  %6378 = vmatpush1.msra.mxu0 %v704
  %6379 = vmatprep.subr.mxu0 0.0
  %6380 = vmatpush1.msra.mxu0 %v703
  %6381 = vmatprep.subr.mxu0 0.0
  %6382 = vmatpush1.msra.mxu0 %v702
  %6383 = vmatprep.subr.mxu0 0.0
  %6384 = vmatpush1.msra.mxu0 %v701
  %6385 = vmatprep.subr.mxu0 0.0
  %6386 = vmatpush1.msra.mxu0 %v700
  %6387 = vmatprep.subr.mxu0 0.0
  %6388 = vmatpush1.msra.mxu0 %v699
  %6389 = vmatprep.subr.mxu0 0.0
  %6390 = vmatpush1.msra.mxu0 %v698
  %6391 = vmatprep.subr.mxu0 0.0
  %6392 = vmatpush2.msra.mxu0 0.0
  %6393 = vmatprep.subr.mxu0 0.0
  %6394 = vmatpush2.msra.mxu0 0.0
  %6395 = vmatprep.subr.mxu0 0.0
  %6396 = vmatpush2.msra.mxu0 0.0
  %6397 = vmatprep.subr.mxu0 0.0
  %6398 = vmatpush2.msra.mxu0 0.0
  %6399 = vmatprep.subr.mxu0 0.0
  %6400 = vmatpush2.msra.mxu0 0.0
  %6401 = vmatprep.subr.mxu0 0.0
  %6402 = vmatpush2.msra.mxu0 0.0
  %6403 = vmatprep.subr.mxu0 0.0
  %6404 = vmatpush2.msra.mxu0 0.0
  %6405 = vmatprep.subr.mxu0 0.0
  %6406 = vmatpush2.msra.mxu0 0.0
  %6407 = vmatprep.subr.mxu0 0.0
  %6408 = vmatpush2.msra.mxu0 0.0
  %6409 = vmatprep.subr.mxu0 0.0
  %6410 = vmatpush2.msra.mxu0 0.0
  %6411 = vmatprep.subr.mxu0 0.0
  %6412 = vmatpush2.msra.mxu0 0.0
  %6413 = vmatprep.subr.mxu0 0.0
  %6414 = vmatpush2.msra.mxu0 0.0
  %6415 = vmatprep.subr.mxu0 0.0
  %6416 = vmatpush2.msra.mxu0 0.0
  %6417 = vmatprep.subr.mxu0 0.0
  %6418 = vmatpush2.msra.mxu0 0.0
  %6419 = vmatprep.subr.mxu0 0.0
  %6420 = vmatpush2.msra.mxu0 0.0
  %6421 = vmatprep.subr.mxu0 0.0
  %6422 = vmatpush2.msra.mxu0 0.0
  %6423 = vmatprep.mubr.f32.mxu0 0.0
  %6424 = vmatmul.mubr.f32.gmra.mxu0 %v6351
  %v6425 = vpop.f32.mrf.mxu0
  %v6426 = vadd.f32 %v6355, %v6425
  %v6427 = vpop.f32.mrf.mxu0
  %6428 = vmatprep.mubr.f32.mxu0 0.0
  %6429 = vmatmul.mubr.f32.gmra.mxu0 %v6352
  %v6430 = vpop.f32.mrf.mxu0
  %v6431 = vadd.f32 %v6356, %v6430
  %v6432 = vpop.f32.mrf.mxu0
  %6433 = vmatprep.mubr.f32.mxu0 0.0
  %6434 = vmatmul.mubr.f32.gmra.mxu0 %v6353
  %v6435 = vpop.f32.mrf.mxu0
  %v6436 = vadd.f32 %v6357, %v6435
  %v6437 = vpop.f32.mrf.mxu0
  %6438 = vmatprep.mubr.f32.mxu0 0.0
  %6439 = vmatmul.mubr.f32.gmra.mxu0 %v6354
  %v6440 = vpop.f32.mrf.mxu0
  %v6441 = vadd.f32 %v6358, %v6440
  %v6442 = vpop.f32.mrf.mxu0
  %6443 = vdwg.mxu0
  %v6444 = vmul.f32 %v5801, %v6426
  %v6445 = vmul.f32 %v5802, %v6431
  %v6446 = vmul.f32 %v5803, %v6436
  %v6447 = vmul.f32 %v5804, %v6441
  %v6448 = vadd.f32 %v6444, %v6445
  %v6449 = vadd.f32 %v6448, %v6446
  %v6450 = vadd.f32 %v6449, %v6447
  %6451 = vadd.xlane.f32.xlu0 %v6450
  %v6452 = vpop.xlane.xlu0 %6451
  %v6453 = vrot.slane %v6452, 4
  %v6454 = vadd.f32 %v6452, %v6453
  %v6455 = vrot.slane %v6454, 2
  %v6456 = vadd.f32 %v6454, %v6455
  %v6457 = vrot.slane %v6456, 1
  %v6458 = vadd.f32 %v6456, %v6457
  %s6459 = vtos %v6458
  %v6460 = vstv %s6459
  %v6461 = vrcp.pop %v6460
  %s6462 = vtos %v6461
  %s6463 = smul.f32 %s5791, %s6462
  %v6464 = vstv %s6463
  %v6465 = vmul.f32 %v6464, %v5801
  %v6466 = vmul.f32 %v6464, %v5802
  %v6467 = vmul.f32 %v6464, %v5803
  %v6468 = vmul.f32 %v6464, %v5804
  %v6469 = vadd.f32 %v5764, %v6465
  %v6470 = vadd.f32 %v5765, %v6466
  %v6471 = vadd.f32 %v5766, %v6467
  %v6472 = vadd.f32 %v5767, %v6468
  %v6473 = vmul.f32 %v6464, %v6426
  %v6474 = vmul.f32 %v6464, %v6431
  %v6475 = vmul.f32 %v6464, %v6436
  %v6476 = vmul.f32 %v6464, %v6441
  %v6477 = vsub.f32 %v5772, %v6473
  %v6478 = vsub.f32 %v5773, %v6474
  %v6479 = vsub.f32 %v5774, %v6475
  %v6480 = vsub.f32 %v5775, %v6476
  %v6481 = vmul.f32 %v6477, %v6477
  %v6482 = vmul.f32 %v6478, %v6478
  %v6483 = vmul.f32 %v6479, %v6479
  %v6484 = vmul.f32 %v6480, %v6480
  %v6485 = vadd.f32 %v6481, %v6482
  %v6486 = vadd.f32 %v6485, %v6483
  %v6487 = vadd.f32 %v6486, %v6484
  %6488 = vadd.xlane.f32.xlu0 %v6487
  %v6489 = vpop.xlane.xlu0 %6488
  %v6490 = vrot.slane %v6489, 4
  %v6491 = vadd.f32 %v6489, %v6490
  %v6492 = vrot.slane %v6491, 2
  %v6493 = vadd.f32 %v6491, %v6492
  %v6494 = vrot.slane %v6493, 1
  %v6495 = vadd.f32 %v6493, %v6494
  %s6496 = vtos %v6495
  %v6497 = vstv %s5791
  %v6498 = vrcp.pop %v6497
  %s6499 = vtos %v6498
  %s6500 = smul.f32 %s6496, %s6499
  %v6501 = vstv %s6500
  %v6502 = vmul.f32 %v6501, %v5801
  %v6503 = vmul.f32 %v6501, %v5802
  %v6504 = vmul.f32 %v6501, %v5803
  %v6505 = vmul.f32 %v6501, %v5804
  %v6506 = vadd.f32 %v6477, %v6502
  %v6507 = vadd.f32 %v6478, %v6503
  %v6508 = vadd.f32 %v6479, %v6504
  %v6509 = vadd.f32 %v6480, %v6505
  %v6510 = vmul.f32 %v6506, %v63
  %v6511 = vmul.f32 %v6507, %v64
  %v6512 = vmul.f32 %v6508, %v65
  %v6513 = vmul.f32 %v6509, %v66
  %v6514 = vmul.f32 %v6508, %v71
  %v6515 = vmul.f32 %v6509, %v72
  %v6516 = vmul.f32 %v6506, %v73
  %v6517 = vmul.f32 %v6507, %v74
  %v6518 = vadd.f32 %v6510, %v6514
  %v6519 = vadd.f32 %v6511, %v6515
  %v6520 = vadd.f32 %v6512, %v6516
  %v6521 = vadd.f32 %v6513, %v6517
  %6522 = vmatprep.subr.mxu0 0.0
  %6523 = vmatpush1.msra.mxu0 0.0
  %6524 = vmatprep.subr.mxu0 0.0
  %6525 = vmatpush1.msra.mxu0 0.0
  %6526 = vmatprep.subr.mxu0 0.0
  %6527 = vmatpush1.msra.mxu0 0.0
  %6528 = vmatprep.subr.mxu0 0.0
  %6529 = vmatpush1.msra.mxu0 0.0
  %6530 = vmatprep.subr.mxu0 0.0
  %6531 = vmatpush1.msra.mxu0 0.0
  %6532 = vmatprep.subr.mxu0 0.0
  %6533 = vmatpush1.msra.mxu0 0.0
  %6534 = vmatprep.subr.mxu0 0.0
  %6535 = vmatpush1.msra.mxu0 0.0
  %6536 = vmatprep.subr.mxu0 0.0
  %6537 = vmatpush1.msra.mxu0 0.0
  %6538 = vmatprep.subr.mxu0 0.0
  %6539 = vmatpush1.msra.mxu0 0.0
  %6540 = vmatprep.subr.mxu0 0.0
  %6541 = vmatpush1.msra.mxu0 0.0
  %6542 = vmatprep.subr.mxu0 0.0
  %6543 = vmatpush1.msra.mxu0 0.0
  %6544 = vmatprep.subr.mxu0 0.0
  %6545 = vmatpush1.msra.mxu0 0.0
  %6546 = vmatprep.subr.mxu0 0.0
  %6547 = vmatpush1.msra.mxu0 %v6521
  %6548 = vmatprep.subr.mxu0 0.0
  %6549 = vmatpush1.msra.mxu0 %v6520
  %6550 = vmatprep.subr.mxu0 0.0
  %6551 = vmatpush1.msra.mxu0 %v6519
  %6552 = vmatprep.subr.mxu0 0.0
  %6553 = vmatpush1.msra.mxu0 %v6518
  %6554 = vmatprep.subr.mxu0 0.0
  %6555 = vmatpush2.msra.mxu0 0.0
  %6556 = vmatprep.subr.mxu0 0.0
  %6557 = vmatpush2.msra.mxu0 0.0
  %6558 = vmatprep.subr.mxu0 0.0
  %6559 = vmatpush2.msra.mxu0 0.0
  %6560 = vmatprep.subr.mxu0 0.0
  %6561 = vmatpush2.msra.mxu0 0.0
  %6562 = vmatprep.subr.mxu0 0.0
  %6563 = vmatpush2.msra.mxu0 0.0
  %6564 = vmatprep.subr.mxu0 0.0
  %6565 = vmatpush2.msra.mxu0 0.0
  %6566 = vmatprep.subr.mxu0 0.0
  %6567 = vmatpush2.msra.mxu0 0.0
  %6568 = vmatprep.subr.mxu0 0.0
  %6569 = vmatpush2.msra.mxu0 0.0
  %6570 = vmatprep.subr.mxu0 0.0
  %6571 = vmatpush2.msra.mxu0 0.0
  %6572 = vmatprep.subr.mxu0 0.0
  %6573 = vmatpush2.msra.mxu0 0.0
  %6574 = vmatprep.subr.mxu0 0.0
  %6575 = vmatpush2.msra.mxu0 0.0
  %6576 = vmatprep.subr.mxu0 0.0
  %6577 = vmatpush2.msra.mxu0 0.0
  %6578 = vmatprep.subr.mxu0 0.0
  %6579 = vmatpush2.msra.mxu0 0.0
  %6580 = vmatprep.subr.mxu0 0.0
  %6581 = vmatpush2.msra.mxu0 0.0
  %6582 = vmatprep.subr.mxu0 0.0
  %6583 = vmatpush2.msra.mxu0 0.0
  %6584 = vmatprep.subr.mxu0 0.0
  %6585 = vmatpush2.msra.mxu0 0.0
  %6586 = vmatprep.mubr.f32.mxu0 0.0
  %6587 = vmatmul.mubr.f32.gmra.mxu0 %v89
  %v6588 = vpop.f32.mrf.mxu0
  %v6589 = vadd.f32 0.0, %v6588
  %v6590 = vpop.f32.mrf.mxu0
  %6591 = vmatprep.mubr.f32.mxu0 0.0
  %6592 = vmatmul.mubr.f32.gmra.mxu0 %v92
  %v6593 = vpop.f32.mrf.mxu0
  %v6594 = vadd.f32 0.0, %v6593
  %v6595 = vpop.f32.mrf.mxu0
  %6596 = vmatprep.mubr.f32.mxu0 0.0
  %6597 = vmatmul.mubr.f32.gmra.mxu0 %v95
  %v6598 = vpop.f32.mrf.mxu0
  %v6599 = vadd.f32 0.0, %v6598
  %v6600 = vpop.f32.mrf.mxu0
  %6601 = vmatprep.mubr.f32.mxu0 0.0
  %6602 = vmatmul.mubr.f32.gmra.mxu0 %v98
  %v6603 = vpop.f32.mrf.mxu0
  %v6604 = vadd.f32 0.0, %v6603
  %v6605 = vpop.f32.mrf.mxu0
  %6606 = vdwg.mxu0
  %v6607 = vmul.f32 %v201, %v6599
  %v6608 = vmul.f32 %v202, %v6604
  %v6609 = vmul.f32 %v203, %v6589
  %v6610 = vmul.f32 %v204, %v6594
  %6611 = vmatprep.subr.mxu0 0.0
  %6612 = vmatpush1.msra.mxu0 %v224
  %6613 = vmatprep.subr.mxu0 0.0
  %6614 = vmatpush1.msra.mxu0 %v223
  %6615 = vmatprep.subr.mxu0 0.0
  %6616 = vmatpush1.msra.mxu0 %v222
  %6617 = vmatprep.subr.mxu0 0.0
  %6618 = vmatpush1.msra.mxu0 %v221
  %6619 = vmatprep.subr.mxu0 0.0
  %6620 = vmatpush1.msra.mxu0 %v220
  %6621 = vmatprep.subr.mxu0 0.0
  %6622 = vmatpush1.msra.mxu0 %v219
  %6623 = vmatprep.subr.mxu0 0.0
  %6624 = vmatpush1.msra.mxu0 %v218
  %6625 = vmatprep.subr.mxu0 0.0
  %6626 = vmatpush1.msra.mxu0 %v217
  %6627 = vmatprep.subr.mxu0 0.0
  %6628 = vmatpush1.msra.mxu0 %v216
  %6629 = vmatprep.subr.mxu0 0.0
  %6630 = vmatpush1.msra.mxu0 %v215
  %6631 = vmatprep.subr.mxu0 0.0
  %6632 = vmatpush1.msra.mxu0 %v214
  %6633 = vmatprep.subr.mxu0 0.0
  %6634 = vmatpush1.msra.mxu0 %v213
  %6635 = vmatprep.subr.mxu0 0.0
  %6636 = vmatpush1.msra.mxu0 %v212
  %6637 = vmatprep.subr.mxu0 0.0
  %6638 = vmatpush1.msra.mxu0 %v211
  %6639 = vmatprep.subr.mxu0 0.0
  %6640 = vmatpush1.msra.mxu0 %v210
  %6641 = vmatprep.subr.mxu0 0.0
  %6642 = vmatpush1.msra.mxu0 %v209
  %6643 = vmatprep.subr.mxu0 0.0
  %6644 = vmatpush2.msra.mxu0 0.0
  %6645 = vmatprep.subr.mxu0 0.0
  %6646 = vmatpush2.msra.mxu0 0.0
  %6647 = vmatprep.subr.mxu0 0.0
  %6648 = vmatpush2.msra.mxu0 0.0
  %6649 = vmatprep.subr.mxu0 0.0
  %6650 = vmatpush2.msra.mxu0 0.0
  %6651 = vmatprep.subr.mxu0 0.0
  %6652 = vmatpush2.msra.mxu0 0.0
  %6653 = vmatprep.subr.mxu0 0.0
  %6654 = vmatpush2.msra.mxu0 0.0
  %6655 = vmatprep.subr.mxu0 0.0
  %6656 = vmatpush2.msra.mxu0 0.0
  %6657 = vmatprep.subr.mxu0 0.0
  %6658 = vmatpush2.msra.mxu0 0.0
  %6659 = vmatprep.subr.mxu0 0.0
  %6660 = vmatpush2.msra.mxu0 0.0
  %6661 = vmatprep.subr.mxu0 0.0
  %6662 = vmatpush2.msra.mxu0 0.0
  %6663 = vmatprep.subr.mxu0 0.0
  %6664 = vmatpush2.msra.mxu0 0.0
  %6665 = vmatprep.subr.mxu0 0.0
  %6666 = vmatpush2.msra.mxu0 0.0
  %6667 = vmatprep.subr.mxu0 0.0
  %6668 = vmatpush2.msra.mxu0 0.0
  %6669 = vmatprep.subr.mxu0 0.0
  %6670 = vmatpush2.msra.mxu0 0.0
  %6671 = vmatprep.subr.mxu0 0.0
  %6672 = vmatpush2.msra.mxu0 0.0
  %6673 = vmatprep.subr.mxu0 0.0
  %6674 = vmatpush2.msra.mxu0 0.0
  %6675 = vmatprep.mubr.f32.mxu0 0.0
  %6676 = vmatmul.mubr.f32.gmra.mxu0 %v6607
  %v6677 = vpop.f32.mrf.mxu0
  %v6678 = vadd.f32 0.0, %v6677
  %v6679 = vpop.f32.mrf.mxu0
  %6680 = vmatprep.mubr.f32.mxu0 0.0
  %6681 = vmatmul.mubr.f32.gmra.mxu0 %v6608
  %v6682 = vpop.f32.mrf.mxu0
  %v6683 = vadd.f32 0.0, %v6682
  %v6684 = vpop.f32.mrf.mxu0
  %6685 = vmatprep.mubr.f32.mxu0 0.0
  %6686 = vmatmul.mubr.f32.gmra.mxu0 %v6609
  %v6687 = vpop.f32.mrf.mxu0
  %v6688 = vadd.f32 0.0, %v6687
  %v6689 = vpop.f32.mrf.mxu0
  %6690 = vmatprep.mubr.f32.mxu0 0.0
  %6691 = vmatmul.mubr.f32.gmra.mxu0 %v6610
  %v6692 = vpop.f32.mrf.mxu0
  %v6693 = vadd.f32 0.0, %v6692
  %v6694 = vpop.f32.mrf.mxu0
  %6695 = vdwg.mxu0
  %6696 = vmatprep.subr.mxu0 0.0
  %6697 = vmatpush1.msra.mxu0 %v200
  %6698 = vmatprep.subr.mxu0 0.0
  %6699 = vmatpush1.msra.mxu0 %v199
  %6700 = vmatprep.subr.mxu0 0.0
  %6701 = vmatpush1.msra.mxu0 %v198
  %6702 = vmatprep.subr.mxu0 0.0
  %6703 = vmatpush1.msra.mxu0 %v197
  %6704 = vmatprep.subr.mxu0 0.0
  %6705 = vmatpush1.msra.mxu0 %v196
  %6706 = vmatprep.subr.mxu0 0.0
  %6707 = vmatpush1.msra.mxu0 %v195
  %6708 = vmatprep.subr.mxu0 0.0
  %6709 = vmatpush1.msra.mxu0 %v194
  %6710 = vmatprep.subr.mxu0 0.0
  %6711 = vmatpush1.msra.mxu0 %v193
  %6712 = vmatprep.subr.mxu0 0.0
  %6713 = vmatpush1.msra.mxu0 %v192
  %6714 = vmatprep.subr.mxu0 0.0
  %6715 = vmatpush1.msra.mxu0 %v191
  %6716 = vmatprep.subr.mxu0 0.0
  %6717 = vmatpush1.msra.mxu0 %v190
  %6718 = vmatprep.subr.mxu0 0.0
  %6719 = vmatpush1.msra.mxu0 %v189
  %6720 = vmatprep.subr.mxu0 0.0
  %6721 = vmatpush1.msra.mxu0 %v188
  %6722 = vmatprep.subr.mxu0 0.0
  %6723 = vmatpush1.msra.mxu0 %v187
  %6724 = vmatprep.subr.mxu0 0.0
  %6725 = vmatpush1.msra.mxu0 %v186
  %6726 = vmatprep.subr.mxu0 0.0
  %6727 = vmatpush1.msra.mxu0 %v185
  %6728 = vmatprep.subr.mxu0 0.0
  %6729 = vmatpush2.msra.mxu0 0.0
  %6730 = vmatprep.subr.mxu0 0.0
  %6731 = vmatpush2.msra.mxu0 0.0
  %6732 = vmatprep.subr.mxu0 0.0
  %6733 = vmatpush2.msra.mxu0 0.0
  %6734 = vmatprep.subr.mxu0 0.0
  %6735 = vmatpush2.msra.mxu0 0.0
  %6736 = vmatprep.subr.mxu0 0.0
  %6737 = vmatpush2.msra.mxu0 0.0
  %6738 = vmatprep.subr.mxu0 0.0
  %6739 = vmatpush2.msra.mxu0 0.0
  %6740 = vmatprep.subr.mxu0 0.0
  %6741 = vmatpush2.msra.mxu0 0.0
  %6742 = vmatprep.subr.mxu0 0.0
  %6743 = vmatpush2.msra.mxu0 0.0
  %6744 = vmatprep.subr.mxu0 0.0
  %6745 = vmatpush2.msra.mxu0 0.0
  %6746 = vmatprep.subr.mxu0 0.0
  %6747 = vmatpush2.msra.mxu0 0.0
  %6748 = vmatprep.subr.mxu0 0.0
  %6749 = vmatpush2.msra.mxu0 0.0
  %6750 = vmatprep.subr.mxu0 0.0
  %6751 = vmatpush2.msra.mxu0 0.0
  %6752 = vmatprep.subr.mxu0 0.0
  %6753 = vmatpush2.msra.mxu0 0.0
  %6754 = vmatprep.subr.mxu0 0.0
  %6755 = vmatpush2.msra.mxu0 0.0
  %6756 = vmatprep.subr.mxu0 0.0
  %6757 = vmatpush2.msra.mxu0 0.0
  %6758 = vmatprep.subr.mxu0 0.0
  %6759 = vmatpush2.msra.mxu0 0.0
  %6760 = vmatprep.mubr.f32.mxu0 0.0
  %6761 = vmatmul.mubr.f32.gmra.mxu0 %v6589
  %v6762 = vpop.f32.mrf.mxu0
  %v6763 = vadd.f32 %v6678, %v6762
  %v6764 = vpop.f32.mrf.mxu0
  %6765 = vmatprep.mubr.f32.mxu0 0.0
  %6766 = vmatmul.mubr.f32.gmra.mxu0 %v6594
  %v6767 = vpop.f32.mrf.mxu0
  %v6768 = vadd.f32 %v6683, %v6767
  %v6769 = vpop.f32.mrf.mxu0
  %6770 = vmatprep.mubr.f32.mxu0 0.0
  %6771 = vmatmul.mubr.f32.gmra.mxu0 %v6599
  %v6772 = vpop.f32.mrf.mxu0
  %v6773 = vadd.f32 %v6688, %v6772
  %v6774 = vpop.f32.mrf.mxu0
  %6775 = vmatprep.mubr.f32.mxu0 0.0
  %6776 = vmatmul.mubr.f32.gmra.mxu0 %v6604
  %v6777 = vpop.f32.mrf.mxu0
  %v6778 = vadd.f32 %v6693, %v6777
  %v6779 = vpop.f32.mrf.mxu0
  %6780 = vdwg.mxu0
  %v6781 = vmul.f32 %v6763, %v395
  %v6782 = vmul.f32 %v6768, %v396
  %v6783 = vmul.f32 %v6773, %v397
  %v6784 = vmul.f32 %v6778, %v398
  %6785 = vmatprep.subr.mxu0 0.0
  %6786 = vmatpush1.msra.mxu0 0.0
  %6787 = vmatprep.subr.mxu0 0.0
  %6788 = vmatpush1.msra.mxu0 0.0
  %6789 = vmatprep.subr.mxu0 0.0
  %6790 = vmatpush1.msra.mxu0 0.0
  %6791 = vmatprep.subr.mxu0 0.0
  %6792 = vmatpush1.msra.mxu0 0.0
  %6793 = vmatprep.subr.mxu0 0.0
  %6794 = vmatpush1.msra.mxu0 0.0
  %6795 = vmatprep.subr.mxu0 0.0
  %6796 = vmatpush1.msra.mxu0 0.0
  %6797 = vmatprep.subr.mxu0 0.0
  %6798 = vmatpush1.msra.mxu0 0.0
  %6799 = vmatprep.subr.mxu0 0.0
  %6800 = vmatpush1.msra.mxu0 0.0
  %6801 = vmatprep.subr.mxu0 0.0
  %6802 = vmatpush1.msra.mxu0 0.0
  %6803 = vmatprep.subr.mxu0 0.0
  %6804 = vmatpush1.msra.mxu0 0.0
  %6805 = vmatprep.subr.mxu0 0.0
  %6806 = vmatpush1.msra.mxu0 0.0
  %6807 = vmatprep.subr.mxu0 0.0
  %6808 = vmatpush1.msra.mxu0 0.0
  %6809 = vmatprep.subr.mxu0 0.0
  %6810 = vmatpush1.msra.mxu0 %v6784
  %6811 = vmatprep.subr.mxu0 0.0
  %6812 = vmatpush1.msra.mxu0 %v6783
  %6813 = vmatprep.subr.mxu0 0.0
  %6814 = vmatpush1.msra.mxu0 %v6782
  %6815 = vmatprep.subr.mxu0 0.0
  %6816 = vmatpush1.msra.mxu0 %v6781
  %6817 = vmatprep.subr.mxu0 0.0
  %6818 = vmatpush2.msra.mxu0 0.0
  %6819 = vmatprep.subr.mxu0 0.0
  %6820 = vmatpush2.msra.mxu0 0.0
  %6821 = vmatprep.subr.mxu0 0.0
  %6822 = vmatpush2.msra.mxu0 0.0
  %6823 = vmatprep.subr.mxu0 0.0
  %6824 = vmatpush2.msra.mxu0 0.0
  %6825 = vmatprep.subr.mxu0 0.0
  %6826 = vmatpush2.msra.mxu0 0.0
  %6827 = vmatprep.subr.mxu0 0.0
  %6828 = vmatpush2.msra.mxu0 0.0
  %6829 = vmatprep.subr.mxu0 0.0
  %6830 = vmatpush2.msra.mxu0 0.0
  %6831 = vmatprep.subr.mxu0 0.0
  %6832 = vmatpush2.msra.mxu0 0.0
  %6833 = vmatprep.subr.mxu0 0.0
  %6834 = vmatpush2.msra.mxu0 0.0
  %6835 = vmatprep.subr.mxu0 0.0
  %6836 = vmatpush2.msra.mxu0 0.0
  %6837 = vmatprep.subr.mxu0 0.0
  %6838 = vmatpush2.msra.mxu0 0.0
  %6839 = vmatprep.subr.mxu0 0.0
  %6840 = vmatpush2.msra.mxu0 0.0
  %6841 = vmatprep.subr.mxu0 0.0
  %6842 = vmatpush2.msra.mxu0 0.0
  %6843 = vmatprep.subr.mxu0 0.0
  %6844 = vmatpush2.msra.mxu0 0.0
  %6845 = vmatprep.subr.mxu0 0.0
  %6846 = vmatpush2.msra.mxu0 0.0
  %6847 = vmatprep.subr.mxu0 0.0
  %6848 = vmatpush2.msra.mxu0 0.0
  %6849 = vmatprep.mubr.f32.mxu0 0.0
  %6850 = vmatmul.mubr.f32.gmra.mxu0 %v408
  %v6851 = vpop.f32.mrf.mxu0
  %v6852 = vadd.f32 0.0, %v6851
  %v6853 = vpop.f32.mrf.mxu0
  %6854 = vmatprep.mubr.f32.mxu0 0.0
  %6855 = vmatmul.mubr.f32.gmra.mxu0 %v411
  %v6856 = vpop.f32.mrf.mxu0
  %v6857 = vadd.f32 0.0, %v6856
  %v6858 = vpop.f32.mrf.mxu0
  %6859 = vmatprep.mubr.f32.mxu0 0.0
  %6860 = vmatmul.mubr.f32.gmra.mxu0 %v414
  %v6861 = vpop.f32.mrf.mxu0
  %v6862 = vadd.f32 0.0, %v6861
  %v6863 = vpop.f32.mrf.mxu0
  %6864 = vmatprep.mubr.f32.mxu0 0.0
  %6865 = vmatmul.mubr.f32.gmra.mxu0 %v417
  %v6866 = vpop.f32.mrf.mxu0
  %v6867 = vadd.f32 0.0, %v6866
  %v6868 = vpop.f32.mrf.mxu0
  %6869 = vdwg.mxu0
  %6870 = vmatprep.subr.mxu0 0.0
  %6871 = vmatpush1.msra.mxu0 %v200
  %6872 = vmatprep.subr.mxu0 0.0
  %6873 = vmatpush1.msra.mxu0 %v199
  %6874 = vmatprep.subr.mxu0 0.0
  %6875 = vmatpush1.msra.mxu0 %v198
  %6876 = vmatprep.subr.mxu0 0.0
  %6877 = vmatpush1.msra.mxu0 %v197
  %6878 = vmatprep.subr.mxu0 0.0
  %6879 = vmatpush1.msra.mxu0 %v196
  %6880 = vmatprep.subr.mxu0 0.0
  %6881 = vmatpush1.msra.mxu0 %v195
  %6882 = vmatprep.subr.mxu0 0.0
  %6883 = vmatpush1.msra.mxu0 %v194
  %6884 = vmatprep.subr.mxu0 0.0
  %6885 = vmatpush1.msra.mxu0 %v193
  %6886 = vmatprep.subr.mxu0 0.0
  %6887 = vmatpush1.msra.mxu0 %v192
  %6888 = vmatprep.subr.mxu0 0.0
  %6889 = vmatpush1.msra.mxu0 %v191
  %6890 = vmatprep.subr.mxu0 0.0
  %6891 = vmatpush1.msra.mxu0 %v190
  %6892 = vmatprep.subr.mxu0 0.0
  %6893 = vmatpush1.msra.mxu0 %v189
  %6894 = vmatprep.subr.mxu0 0.0
  %6895 = vmatpush1.msra.mxu0 %v188
  %6896 = vmatprep.subr.mxu0 0.0
  %6897 = vmatpush1.msra.mxu0 %v187
  %6898 = vmatprep.subr.mxu0 0.0
  %6899 = vmatpush1.msra.mxu0 %v186
  %6900 = vmatprep.subr.mxu0 0.0
  %6901 = vmatpush1.msra.mxu0 %v185
  %6902 = vmatprep.subr.mxu0 0.0
  %6903 = vmatpush2.msra.mxu0 0.0
  %6904 = vmatprep.subr.mxu0 0.0
  %6905 = vmatpush2.msra.mxu0 0.0
  %6906 = vmatprep.subr.mxu0 0.0
  %6907 = vmatpush2.msra.mxu0 0.0
  %6908 = vmatprep.subr.mxu0 0.0
  %6909 = vmatpush2.msra.mxu0 0.0
  %6910 = vmatprep.subr.mxu0 0.0
  %6911 = vmatpush2.msra.mxu0 0.0
  %6912 = vmatprep.subr.mxu0 0.0
  %6913 = vmatpush2.msra.mxu0 0.0
  %6914 = vmatprep.subr.mxu0 0.0
  %6915 = vmatpush2.msra.mxu0 0.0
  %6916 = vmatprep.subr.mxu0 0.0
  %6917 = vmatpush2.msra.mxu0 0.0
  %6918 = vmatprep.subr.mxu0 0.0
  %6919 = vmatpush2.msra.mxu0 0.0
  %6920 = vmatprep.subr.mxu0 0.0
  %6921 = vmatpush2.msra.mxu0 0.0
  %6922 = vmatprep.subr.mxu0 0.0
  %6923 = vmatpush2.msra.mxu0 0.0
  %6924 = vmatprep.subr.mxu0 0.0
  %6925 = vmatpush2.msra.mxu0 0.0
  %6926 = vmatprep.subr.mxu0 0.0
  %6927 = vmatpush2.msra.mxu0 0.0
  %6928 = vmatprep.subr.mxu0 0.0
  %6929 = vmatpush2.msra.mxu0 0.0
  %6930 = vmatprep.subr.mxu0 0.0
  %6931 = vmatpush2.msra.mxu0 0.0
  %6932 = vmatprep.subr.mxu0 0.0
  %6933 = vmatpush2.msra.mxu0 0.0
  %6934 = vmatprep.mubr.f32.mxu0 0.0
  %6935 = vmatmul.mubr.f32.gmra.mxu0 %v6852
  %v6936 = vpop.f32.mrf.mxu0
  %v6937 = vadd.f32 0.0, %v6936
  %v6938 = vpop.f32.mrf.mxu0
  %6939 = vmatprep.mubr.f32.mxu0 0.0
  %6940 = vmatmul.mubr.f32.gmra.mxu0 %v6857
  %v6941 = vpop.f32.mrf.mxu0
  %v6942 = vadd.f32 0.0, %v6941
  %v6943 = vpop.f32.mrf.mxu0
  %6944 = vmatprep.mubr.f32.mxu0 0.0
  %6945 = vmatmul.mubr.f32.gmra.mxu0 %v6862
  %v6946 = vpop.f32.mrf.mxu0
  %v6947 = vadd.f32 0.0, %v6946
  %v6948 = vpop.f32.mrf.mxu0
  %6949 = vmatprep.mubr.f32.mxu0 0.0
  %6950 = vmatmul.mubr.f32.gmra.mxu0 %v6867
  %v6951 = vpop.f32.mrf.mxu0
  %v6952 = vadd.f32 0.0, %v6951
  %v6953 = vpop.f32.mrf.mxu0
  %6954 = vdwg.mxu0
  %v6955 = vmul.f32 %v201, %v6862
  %v6956 = vmul.f32 %v202, %v6867
  %v6957 = vmul.f32 %v203, %v6852
  %v6958 = vmul.f32 %v204, %v6857
  %6959 = vmatprep.subr.mxu0 0.0
  %6960 = vmatpush1.msra.mxu0 %v224
  %6961 = vmatprep.subr.mxu0 0.0
  %6962 = vmatpush1.msra.mxu0 %v223
  %6963 = vmatprep.subr.mxu0 0.0
  %6964 = vmatpush1.msra.mxu0 %v222
  %6965 = vmatprep.subr.mxu0 0.0
  %6966 = vmatpush1.msra.mxu0 %v221
  %6967 = vmatprep.subr.mxu0 0.0
  %6968 = vmatpush1.msra.mxu0 %v220
  %6969 = vmatprep.subr.mxu0 0.0
  %6970 = vmatpush1.msra.mxu0 %v219
  %6971 = vmatprep.subr.mxu0 0.0
  %6972 = vmatpush1.msra.mxu0 %v218
  %6973 = vmatprep.subr.mxu0 0.0
  %6974 = vmatpush1.msra.mxu0 %v217
  %6975 = vmatprep.subr.mxu0 0.0
  %6976 = vmatpush1.msra.mxu0 %v216
  %6977 = vmatprep.subr.mxu0 0.0
  %6978 = vmatpush1.msra.mxu0 %v215
  %6979 = vmatprep.subr.mxu0 0.0
  %6980 = vmatpush1.msra.mxu0 %v214
  %6981 = vmatprep.subr.mxu0 0.0
  %6982 = vmatpush1.msra.mxu0 %v213
  %6983 = vmatprep.subr.mxu0 0.0
  %6984 = vmatpush1.msra.mxu0 %v212
  %6985 = vmatprep.subr.mxu0 0.0
  %6986 = vmatpush1.msra.mxu0 %v211
  %6987 = vmatprep.subr.mxu0 0.0
  %6988 = vmatpush1.msra.mxu0 %v210
  %6989 = vmatprep.subr.mxu0 0.0
  %6990 = vmatpush1.msra.mxu0 %v209
  %6991 = vmatprep.subr.mxu0 0.0
  %6992 = vmatpush2.msra.mxu0 0.0
  %6993 = vmatprep.subr.mxu0 0.0
  %6994 = vmatpush2.msra.mxu0 0.0
  %6995 = vmatprep.subr.mxu0 0.0
  %6996 = vmatpush2.msra.mxu0 0.0
  %6997 = vmatprep.subr.mxu0 0.0
  %6998 = vmatpush2.msra.mxu0 0.0
  %6999 = vmatprep.subr.mxu0 0.0
  %7000 = vmatpush2.msra.mxu0 0.0
  %7001 = vmatprep.subr.mxu0 0.0
  %7002 = vmatpush2.msra.mxu0 0.0
  %7003 = vmatprep.subr.mxu0 0.0
  %7004 = vmatpush2.msra.mxu0 0.0
  %7005 = vmatprep.subr.mxu0 0.0
  %7006 = vmatpush2.msra.mxu0 0.0
  %7007 = vmatprep.subr.mxu0 0.0
  %7008 = vmatpush2.msra.mxu0 0.0
  %7009 = vmatprep.subr.mxu0 0.0
  %7010 = vmatpush2.msra.mxu0 0.0
  %7011 = vmatprep.subr.mxu0 0.0
  %7012 = vmatpush2.msra.mxu0 0.0
  %7013 = vmatprep.subr.mxu0 0.0
  %7014 = vmatpush2.msra.mxu0 0.0
  %7015 = vmatprep.subr.mxu0 0.0
  %7016 = vmatpush2.msra.mxu0 0.0
  %7017 = vmatprep.subr.mxu0 0.0
  %7018 = vmatpush2.msra.mxu0 0.0
  %7019 = vmatprep.subr.mxu0 0.0
  %7020 = vmatpush2.msra.mxu0 0.0
  %7021 = vmatprep.subr.mxu0 0.0
  %7022 = vmatpush2.msra.mxu0 0.0
  %7023 = vmatprep.mubr.f32.mxu0 0.0
  %7024 = vmatmul.mubr.f32.gmra.mxu0 %v6955
  %v7025 = vpop.f32.mrf.mxu0
  %v7026 = vadd.f32 0.0, %v7025
  %v7027 = vpop.f32.mrf.mxu0
  %7028 = vmatprep.mubr.f32.mxu0 0.0
  %7029 = vmatmul.mubr.f32.gmra.mxu0 %v6956
  %v7030 = vpop.f32.mrf.mxu0
  %v7031 = vadd.f32 0.0, %v7030
  %v7032 = vpop.f32.mrf.mxu0
  %7033 = vmatprep.mubr.f32.mxu0 0.0
  %7034 = vmatmul.mubr.f32.gmra.mxu0 %v6957
  %v7035 = vpop.f32.mrf.mxu0
  %v7036 = vadd.f32 0.0, %v7035
  %v7037 = vpop.f32.mrf.mxu0
  %7038 = vmatprep.mubr.f32.mxu0 0.0
  %7039 = vmatmul.mubr.f32.gmra.mxu0 %v6958
  %v7040 = vpop.f32.mrf.mxu0
  %v7041 = vadd.f32 0.0, %v7040
  %v7042 = vpop.f32.mrf.mxu0
  %7043 = vdwg.mxu0
  %v7044 = vsub.f32 %v6937, %v7026
  %v7045 = vsub.f32 %v6942, %v7031
  %v7046 = vsub.f32 %v6947, %v7036
  %v7047 = vsub.f32 %v6952, %v7041
  %v7048 = vmul.f32 %v7044, %v63
  %v7049 = vmul.f32 %v7045, %v64
  %v7050 = vmul.f32 %v7046, %v65
  %v7051 = vmul.f32 %v7047, %v66
  %v7052 = vmul.f32 %v7046, %v686
  %v7053 = vmul.f32 %v7047, %v687
  %v7054 = vmul.f32 %v7044, %v688
  %v7055 = vmul.f32 %v7045, %v689
  %v7056 = vadd.f32 %v7048, %v7052
  %v7057 = vadd.f32 %v7049, %v7053
  %v7058 = vadd.f32 %v7050, %v7054
  %v7059 = vadd.f32 %v7051, %v7055
  %v7060 = vmul.f32 %v714, %v6506
  %v7061 = vmul.f32 %v714, %v6507
  %v7062 = vmul.f32 %v714, %v6508
  %v7063 = vmul.f32 %v714, %v6509
  %7064 = vmatprep.subr.mxu0 0.0
  %7065 = vmatpush1.msra.mxu0 %v713
  %7066 = vmatprep.subr.mxu0 0.0
  %7067 = vmatpush1.msra.mxu0 %v712
  %7068 = vmatprep.subr.mxu0 0.0
  %7069 = vmatpush1.msra.mxu0 %v711
  %7070 = vmatprep.subr.mxu0 0.0
  %7071 = vmatpush1.msra.mxu0 %v710
  %7072 = vmatprep.subr.mxu0 0.0
  %7073 = vmatpush1.msra.mxu0 %v709
  %7074 = vmatprep.subr.mxu0 0.0
  %7075 = vmatpush1.msra.mxu0 %v708
  %7076 = vmatprep.subr.mxu0 0.0
  %7077 = vmatpush1.msra.mxu0 %v707
  %7078 = vmatprep.subr.mxu0 0.0
  %7079 = vmatpush1.msra.mxu0 %v706
  %7080 = vmatprep.subr.mxu0 0.0
  %7081 = vmatpush1.msra.mxu0 %v705
  %7082 = vmatprep.subr.mxu0 0.0
  %7083 = vmatpush1.msra.mxu0 %v704
  %7084 = vmatprep.subr.mxu0 0.0
  %7085 = vmatpush1.msra.mxu0 %v703
  %7086 = vmatprep.subr.mxu0 0.0
  %7087 = vmatpush1.msra.mxu0 %v702
  %7088 = vmatprep.subr.mxu0 0.0
  %7089 = vmatpush1.msra.mxu0 %v701
  %7090 = vmatprep.subr.mxu0 0.0
  %7091 = vmatpush1.msra.mxu0 %v700
  %7092 = vmatprep.subr.mxu0 0.0
  %7093 = vmatpush1.msra.mxu0 %v699
  %7094 = vmatprep.subr.mxu0 0.0
  %7095 = vmatpush1.msra.mxu0 %v698
  %7096 = vmatprep.subr.mxu0 0.0
  %7097 = vmatpush2.msra.mxu0 0.0
  %7098 = vmatprep.subr.mxu0 0.0
  %7099 = vmatpush2.msra.mxu0 0.0
  %7100 = vmatprep.subr.mxu0 0.0
  %7101 = vmatpush2.msra.mxu0 0.0
  %7102 = vmatprep.subr.mxu0 0.0
  %7103 = vmatpush2.msra.mxu0 0.0
  %7104 = vmatprep.subr.mxu0 0.0
  %7105 = vmatpush2.msra.mxu0 0.0
  %7106 = vmatprep.subr.mxu0 0.0
  %7107 = vmatpush2.msra.mxu0 0.0
  %7108 = vmatprep.subr.mxu0 0.0
  %7109 = vmatpush2.msra.mxu0 0.0
  %7110 = vmatprep.subr.mxu0 0.0
  %7111 = vmatpush2.msra.mxu0 0.0
  %7112 = vmatprep.subr.mxu0 0.0
  %7113 = vmatpush2.msra.mxu0 0.0
  %7114 = vmatprep.subr.mxu0 0.0
  %7115 = vmatpush2.msra.mxu0 0.0
  %7116 = vmatprep.subr.mxu0 0.0
  %7117 = vmatpush2.msra.mxu0 0.0
  %7118 = vmatprep.subr.mxu0 0.0
  %7119 = vmatpush2.msra.mxu0 0.0
  %7120 = vmatprep.subr.mxu0 0.0
  %7121 = vmatpush2.msra.mxu0 0.0
  %7122 = vmatprep.subr.mxu0 0.0
  %7123 = vmatpush2.msra.mxu0 0.0
  %7124 = vmatprep.subr.mxu0 0.0
  %7125 = vmatpush2.msra.mxu0 0.0
  %7126 = vmatprep.subr.mxu0 0.0
  %7127 = vmatpush2.msra.mxu0 0.0
  %7128 = vmatprep.mubr.f32.mxu0 0.0
  %7129 = vmatmul.mubr.f32.gmra.mxu0 %v7056
  %v7130 = vpop.f32.mrf.mxu0
  %v7131 = vadd.f32 %v7060, %v7130
  %v7132 = vpop.f32.mrf.mxu0
  %7133 = vmatprep.mubr.f32.mxu0 0.0
  %7134 = vmatmul.mubr.f32.gmra.mxu0 %v7057
  %v7135 = vpop.f32.mrf.mxu0
  %v7136 = vadd.f32 %v7061, %v7135
  %v7137 = vpop.f32.mrf.mxu0
  %7138 = vmatprep.mubr.f32.mxu0 0.0
  %7139 = vmatmul.mubr.f32.gmra.mxu0 %v7058
  %v7140 = vpop.f32.mrf.mxu0
  %v7141 = vadd.f32 %v7062, %v7140
  %v7142 = vpop.f32.mrf.mxu0
  %7143 = vmatprep.mubr.f32.mxu0 0.0
  %7144 = vmatmul.mubr.f32.gmra.mxu0 %v7059
  %v7145 = vpop.f32.mrf.mxu0
  %v7146 = vadd.f32 %v7063, %v7145
  %v7147 = vpop.f32.mrf.mxu0
  %7148 = vdwg.mxu0
  %v7149 = vmul.f32 %v6506, %v7131
  %v7150 = vmul.f32 %v6507, %v7136
  %v7151 = vmul.f32 %v6508, %v7141
  %v7152 = vmul.f32 %v6509, %v7146
  %v7153 = vadd.f32 %v7149, %v7150
  %v7154 = vadd.f32 %v7153, %v7151
  %v7155 = vadd.f32 %v7154, %v7152
  %7156 = vadd.xlane.f32.xlu0 %v7155
  %v7157 = vpop.xlane.xlu0 %7156
  %v7158 = vrot.slane %v7157, 4
  %v7159 = vadd.f32 %v7157, %v7158
  %v7160 = vrot.slane %v7159, 2
  %v7161 = vadd.f32 %v7159, %v7160
  %v7162 = vrot.slane %v7161, 1
  %v7163 = vadd.f32 %v7161, %v7162
  %s7164 = vtos %v7163
  %v7165 = vstv %s7164
  %v7166 = vrcp.pop %v7165
  %s7167 = vtos %v7166
  %s7168 = smul.f32 %s6496, %s7167
  %v7169 = vstv %s7168
  %v7170 = vmul.f32 %v7169, %v6506
  %v7171 = vmul.f32 %v7169, %v6507
  %v7172 = vmul.f32 %v7169, %v6508
  %v7173 = vmul.f32 %v7169, %v6509
  %v7174 = vadd.f32 %v6469, %v7170
  %v7175 = vadd.f32 %v6470, %v7171
  %v7176 = vadd.f32 %v6471, %v7172
  %v7177 = vadd.f32 %v6472, %v7173
  %7178 = vst [vmem:[%s12] sm:$0xff] %v7174
  %7179 = vst [vmem:[%s12 + $0x8] sm:$0xff] %v7175
  %7180 = vst [vmem:[%s12 + $0x10] sm:$0xff] %v7176
  %7181 = vst [vmem:[%s12 + $0x18] sm:$0xff] %v7177
  // Predicated region
  $region50: #{_lambda_.1} parent=0 // pred_check
    _
  $region51: #{_lambda_.1} parent=0 // pred_check_branch
    %7183 = sbr.rel (0) target = $region53
  $region52: #{_lambda_.1} parent=0 // pred_region
    _
  $region53: #{_lambda_.1} parent=0 // pred_fallthru
    _
  // Predicated region
  $region54: #{_lambda_.1} parent=0 // pred_check
    _
  $region55: #{_lambda_.1} parent=0 // pred_check_branch
    %7185 = sbr.rel (0) target = $region57
  $region56: #{_lambda_.1} parent=0 // pred_region
    _
  $region57: #{_lambda_.1} parent=0 // pred_fallthru
    _

</llo_original>
